<compile_context>
chip_gen: v7x
topology: tpu7x:2x2x1
jax: 0.10.0
libtpu: 0.0.40
codegen_flags: <defaults>
</compile_context>

<pallas_src>
import math
from collections import namedtuple

import numpy as np
import jax
import jax.numpy as jnp
from jax import lax
from jax.experimental import pallas as pl
from jax.experimental.pallas import tpu as pltpu

_GELU_C = 0.7978845608028654  # sqrt(2/pi)


def _gelu(x):
    # tanh-approx GELU (EUP tanh); |err| vs torch.nn.GELU's exact erf < 1e-3,
    # far inside the 5e-2 test tolerance and the bf16 matmul noise floor.
    return 0.5 * x * (1.0 + jnp.tanh(_GELU_C * (x + 0.044715 * x * x * x)))


def _weight_spec(w):
    # Whole-array weight block, resident across the grid (same block every step).
    return pl.BlockSpec(w.shape, lambda n: (0, 0))


def _mlp_block(xT, w1_ref, b1_ref, w2_ref, b2_ref):
    """SpatialMLP in (L, lanes) layout: contracts over L (rows), lanes stay dense.
    Weights are bf16, biases f32 (hidden,1)/(L,1); accumulation in f32."""
    h = jnp.dot(w1_ref[...], xT.astype(jnp.bfloat16),
                preferred_element_type=jnp.float32) + b1_ref[...]       # (hidden, lanes)
    h = _gelu(h)
    return jnp.dot(w2_ref[...], h.astype(jnp.bfloat16),
                   preferred_element_type=jnp.float32) + b2_ref[...]    # (L, lanes)


# ------------------------- fused 'entrance' edge kernel -------------------------
def entrance_edge(xT, wqkv_t, emb, mlp1, mlp2, shared, heads, dim_head):
    """xT: (N, L, C) bf16; wqkv_t: (C, 3*inner) bf16 with q rows pre-scaled (HBM);
    emb: (L, d) f32; mlp*/shared: (w1 bf16 (hid,L), b1 f32 (hid,1), w2 bf16 (L,hid), b2 f32 (L,1)).
    Returns mlp_shared(mlp1(attn(x)) + mlp2(x)) as (N, L, C) f32."""
    N, L, C = xT.shape
    inner = heads * dim_head
    assert wqkv_t.shape == (C, 3 * inner)
    assert inner == C, "mlp1(attn(x)) + mlp2(x) requires dim == heads*dim_head"

    def kernel(x_ref, e_ref,
               w1a, b1a, w2a, b2a,      # mlp1 (on attention output)
               w1b, b1b, w2b, b2b,      # mlp2 (on x)
               w1s, b1s, w2s, b2s,      # shared SpatialMLP (on the sum)
               wqkv_hbm,                # (C, 3*inner) bf16, memory_space=pl.ANY
               o_ref,
               wqkv_vmem, attn_buf, sem):
        # Kick off the big weight fetch, then overlap it with the mlp2 branch
        # (which does not depend on wqkv).
        cp = pltpu.make_async_copy(wqkv_hbm, wqkv_vmem, sem)
        cp.start()

        x_blk = x_ref[0]                                                # (L, C) bf16
        mlp2_out = _mlp_block(x_blk, w1b, b1b, w2b, b2b)                # (L, C) f32

        cp.wait()
        qkv = jnp.dot(x_blk, wqkv_vmem[...],
                      preferred_element_type=jnp.float32)               # (L, 3*inner) f32
        e = e_ref[...]                                                  # (L, d) f32
        for h in range(heads):                                          # unrolled at trace time
            lo = h * dim_head
            qh = qkv[:, lo:lo + dim_head].astype(jnp.bfloat16)          # pre-scaled q
            kp = (qkv[:, inner + lo:inner + lo + dim_head] + e).astype(jnp.bfloat16)
            vh = qkv[:, 2 * inner + lo:2 * inner + lo + dim_head].astype(jnp.bfloat16)
            # logits[i, j] = q_i . (k_j + emb_j)  (abs-pos folded into K)
            logits = lax.dot_general(qh, kp, (((1,), (1,)), ((), ())),
                                     preferred_element_type=jnp.float32)  # (L, L)
            logits = logits - jnp.max(logits, axis=-1, keepdims=True)
            p = jnp.exp(logits)
            attn = p * pl.reciprocal(jnp.sum(p, axis=-1, keepdims=True), approx=True)
            # write each head's output straight into its lane slice (no concat)
            attn_buf[:, lo:lo + dim_head] = jnp.dot(
                attn.astype(jnp.bfloat16), vh, preferred_element_type=jnp.float32)

        ent = _mlp_block(attn_buf[...], w1a, b1a, w2a, b2a) + mlp2_out  # (L, C)
        o_ref[0] = _mlp_block(ent, w1s, b1s, w2s, b2s)

    weights = [emb, *mlp1, *mlp2, *shared]
    return pl.pallas_call(
        kernel,
        out_shape=jax.ShapeDtypeStruct((N, L, C), jnp.float32),
        grid_spec=pltpu.PrefetchScalarGridSpec(
            num_scalar_prefetch=0,
            grid=(N,),
            in_specs=[pl.BlockSpec((1, L, C), lambda n: (n, 0, 0))]
                     + [_weight_spec(w) for w in weights]
                     + [pl.BlockSpec(memory_space=pl.ANY)],             # wqkv stays in HBM
            out_specs=pl.BlockSpec((1, L, C), lambda n: (n, 0, 0)),
            scratch_shapes=[
                pltpu.VMEM((C, 3 * inner), jnp.bfloat16),               # wqkv landing buffer
                pltpu.VMEM((L, inner), jnp.float32),                    # per-head attn output
                pltpu.SemaphoreType.DMA,
            ],
        ),
        compiler_params=pltpu.CompilerParams(dimension_semantics=("parallel",)),
    )(xT, *weights, wqkv_t)


# -------------- fused 'pooling' and/or 'identity' edges (shared weights) --------------
def pool_identity_edges(x_lane, pool_mat, shared, N, do_pool, do_identity):
    """x_lane: (L, N*C) bf16 (batch lane-stacked); pool_mat: (L, L) bf16 averaging
    matrix (count_include_pad=False).  One pallas_call, one x DMA, one shared-MLP
    weight fetch, single grid step; emits mlp_shared(avgpool(x)-x) and/or
    mlp_shared(x), each as (N, L, C) f32."""
    L, NC = x_lane.shape
    C = NC // N
    n_out = int(do_pool) + int(do_identity)
    assert n_out >= 1

    def kernel(x_ref, p_ref, w1, b1, w2, b2, *o_refs):
        xs = x_ref[...]                                                 # (L, N*C) bf16
        idx = 0
        if do_pool:
            pooled = jnp.dot(p_ref[...], xs,
                             preferred_element_type=jnp.float32)        # (L, N*C) f32
            res = _mlp_block(pooled - xs.astype(jnp.float32), w1, b1, w2, b2)
            for n in range(N):
                o_refs[idx][n] = res[:, n * C:(n + 1) * C]
            idx += 1
        if do_identity:
            res = _mlp_block(xs, w1, b1, w2, b2)
            for n in range(N):
                o_refs[idx][n] = res[:, n * C:(n + 1) * C]

    weights = [pool_mat, *shared]
    out_shape = tuple(jax.ShapeDtypeStruct((N, L, C), jnp.float32) for _ in range(n_out))
    out_specs = tuple(pl.BlockSpec((N, L, C), lambda i: (0, 0, 0)) for _ in range(n_out))
    outs = pl.pallas_call(
        kernel,
        out_shape=out_shape,
        grid_spec=pltpu.PrefetchScalarGridSpec(
            num_scalar_prefetch=0,
            grid=(1,),
            in_specs=[pl.BlockSpec((L, NC), lambda i: (0, 0))]
                     + [pl.BlockSpec(w.shape, lambda i: (0, 0)) for w in weights],
            out_specs=out_specs,
        ),
        compiler_params=pltpu.CompilerParams(dimension_semantics=("arbitrary",)),
    )(x_lane, *weights)
    return outs


# ----------------------------------- parameters -----------------------------------
def build_pool_matrix(H, W, pool_size=3):
    """P[o, i] = 1/count(o) if pixel i is in output o's 3x3 window (count excludes
    padding, matching AvgPool2d(3, stride=1, padding=1, count_include_pad=False))."""
    L = H * W
    P = np.zeros((L, L), np.float32)
    r = pool_size // 2
    for i in range(H):
        for j in range(W):
            o = i * W + j
            rows = range(max(0, i - r), min(H, i + r + 1))
            cols = range(max(0, j - r), min(W, j + r + 1))
            cnt = len(rows) * len(cols)
            for ii in rows:
                for jj in cols:
                    P[o, ii * W + jj] = 1.0 / cnt
    return jnp.asarray(P)


def init_params(key, dim, H, W, heads, dim_head, hidden_rate, num_nodes):
    L = H * W
    hidden = int(L * hidden_rate)
    inner = heads * dim_head
    ks = list(jax.random.split(key, 5 + (num_nodes - 1)))

    def mlp_params(k):
        k1, k2, k3, k4 = jax.random.split(k, 4)
        w1 = jax.random.normal(k1, (hidden, L), jnp.float32) / math.sqrt(L)
        b1 = 0.01 * jax.random.normal(k2, (hidden,), jnp.float32)
        w2 = jax.random.normal(k3, (L, hidden), jnp.float32) / math.sqrt(hidden)
        b2 = 0.01 * jax.random.normal(k4, (L,), jnp.float32)
        return (w1, b1, w2, b2)

    return {
        'wqkv': jax.random.normal(ks[0], (3 * inner, dim), jnp.float32) / math.sqrt(dim),
        'pos_h': jax.random.normal(ks[1], (H, dim_head), jnp.float32) * dim_head ** -0.5,
        'pos_w': jax.random.normal(ks[2], (W, dim_head), jnp.float32) * dim_head ** -0.5,
        'mlp1': mlp_params(ks[3]),
        'mlp2': mlp_params(ks[4]),
        'shared': [mlp_params(ks[5 + i]) for i in range(num_nodes - 1)],
        'pool': build_pool_matrix(H, W),
    }


def prepare_device_params(params, heads, dim_head):
    """One-time glue (hoisted out of the forward): fold q-scale into the QKV weight,
    transpose to (C, 3*inner), combine the AbsPosEmb parameters, cast matmul weights
    to bf16, reshape biases to lane-broadcast form."""
    inner = heads * dim_head
    scale = dim_head ** -0.5
    wqkv = params['wqkv']
    wqkv_scaled = jnp.concatenate([wqkv[:inner] * scale, wqkv[inner:]], axis=0)
    emb = (params['pos_h'][:, None, :] + params['pos_w'][None, :, :]).reshape(-1, dim_head)

    def prep_mlp(p):
        w1, b1, w2, b2 = p
        return (w1.astype(jnp.bfloat16), b1.reshape(-1, 1).astype(jnp.float32),
                w2.astype(jnp.bfloat16), b2.reshape(-1, 1).astype(jnp.float32))

    return {
        'wqkv_t': jnp.transpose(wqkv_scaled).astype(jnp.bfloat16),    # (C, 3*inner)
        'emb': emb.astype(jnp.float32),                               # (L, d)
        'mlp1': prep_mlp(params['mlp1']),
        'mlp2': prep_mlp(params['mlp2']),
        'shared': [prep_mlp(p) for p in params['shared']],
        'pool': params['pool'].astype(jnp.bfloat16),                  # (L, L)
    }


# ------------------------------- MetaMixer forward -------------------------------
def make_metamixer_forward(arch, num_nodes, heads, dim_head):
    """Returns a jitted forward(x, device_params) -> (out, edge_results).

    Faithful to MetaMixer.forward: every edge op is applied to the ORIGINAL input x,
    so identical (node_id, op) edges are computed once and edges that share the same
    destination node (and therefore the same shared SpatialMLP) are fused into one
    pallas_call.  Edges into the terminal node must be 'avg' (as in the PyTorch
    module, where anything else would index shared_mlps out of range), so the final
    BFS average reduces to x; edge_results is also returned so the fused edge
    kernels always execute on device."""

    def fwd(x, dp):
        N, C, H, W = x.shape
        L = H * W
        x_nlc = jnp.transpose(x.reshape(N, C, L), (0, 2, 1))              # (N, L, C) f32
        xT_bf = x_nlc.astype(jnp.bfloat16)                                # kernel inputs bf16
        x_lane = jnp.transpose(xT_bf, (1, 0, 2)).reshape(L, N * C)        # (L, N*C) lane-stacked

        # --- group unique edge ops by destination node (same shared MLP) ---
        ops_by_node = {}
        for edges in arch:
            for node in edges:
                if node.name != 'avg':
                    ops_by_node.setdefault(node.id, set()).add(node.name)

        results = {}                                                      # (nid, name) -> (N,L,C) f32
        for nid, ops in ops_by_node.items():
            shared = dp['shared'][nid - 1]
            if 'entrance' in ops:
                results[(nid, 'entrance')] = entrance_edge(
                    xT_bf, dp['wqkv_t'], dp['emb'], dp['mlp1'], dp['mlp2'],
                    shared, heads, dim_head)
            do_pool = 'pooling' in ops
            do_id = 'identity' in ops
            if do_pool or do_id:
                outs = pool_identity_edges(x_lane, dp['pool'], shared, N, do_pool, do_id)
                i = 0
                if do_pool:
                    results[(nid, 'pooling')] = outs[i]
                    i += 1
                if do_id:
                    results[(nid, 'identity')] = outs[i]

        def edge(node):
            return x_nlc if node.name == 'avg' else results[(node.id, node.name)]

        # --- BFS replay, exactly as in MetaMixer.forward ---
        queue = [(x_nlc, 0)]
        out_features = []
        while queue:
            feat, nid = queue[0]
            if nid == num_nodes:
                out_features.append(feat)
                queue = queue[1:]
                continue
            for node in arch[nid]:
                queue.append((edge(node), node.id))
            queue = queue[1:]
        res = jnp.stack(out_features).sum(0) / len(out_features)          # (N, L, C)
        out = jnp.transpose(res, (0, 2, 1)).reshape(N, C, H, W)
        return out, results

    return jax.jit(fwd)


# --------------------------- plain-JAX f32 references (checks) ---------------------------
def _mlp_ref(x_ncl, w1, b1, w2, b2):
    h = jnp.einsum('ncl,hl->nch', x_ncl, w1) + b1
    h = jax.nn.gelu(h, approximate=False)
    return jnp.einsum('nch,lh->ncl', h, w2) + b2


def _attention_ref(x_ncl, wqkv, pos_h, pos_w, heads, dim_head):
    N, C, L = x_ncl.shape
    inner = heads * dim_head
    scale = dim_head ** -0.5
    qkv = jnp.einsum('oc,ncl->nol', wqkv, x_ncl)
    q, k, v = jnp.split(qkv, 3, axis=1)

    def to_heads(t):
        return t.reshape(N, heads, dim_head, L).transpose(0, 1, 3, 2)   # n h l d

    q, k, v = map(to_heads, (q, k, v))
    q = q * scale
    sim = jnp.einsum('nhid,nhjd->nhij', q, k)
    emb = (pos_h[:, None, :] + pos_w[None, :, :]).reshape(L, dim_head)
    sim = sim + jnp.einsum('nhid,jd->nhij', q, emb)
    attn = jax.nn.softmax(sim, axis=-1)
    out = jnp.einsum('nhij,nhjd->nhid', attn, v)
    return out.transpose(0, 1, 3, 2).reshape(N, inner, L)


def _pooling_ref(x_ncl, pool_mat_f32):
    pooled = jnp.einsum('ncl,ol->nco', x_ncl, pool_mat_f32)
    return pooled - x_ncl


if __name__ == "__main__":
    N = 2
    HEADS, DIM_HEAD = 4, 128           # Attention defaults in the reference module
    DIM = HEADS * DIM_HEAD             # entrance sum requires dim == heads*dim_head
    H = W = 8
    NUM_NODES = 3
    HIDDEN_RATE = 0.5

    key = jax.random.PRNGKey(0)
    kx, kp = jax.random.split(key)
    x = jax.random.normal(kx, (N, DIM, H, W), jnp.float32)
    params = init_params(kp, DIM, H, W, HEADS, DIM_HEAD, HIDDEN_RATE, NUM_NODES)
    dp = prepare_device_params(params, HEADS, DIM_HEAD)   # hoisted: built once, reused

    Node = namedtuple('Node', ['id', 'name'])
    arch = [
        [Node(1, 'entrance'), Node(2, 'pooling')],   # edges out of node 0
        [Node(2, 'identity'), Node(3, 'avg')],       # edges out of node 1
        [Node(3, 'avg')],                            # edges out of node 2
    ]

    forward = make_metamixer_forward(arch, NUM_NODES, HEADS, DIM_HEAD)
    out, edge_outs = forward(x, dp)
    jax.block_until_ready((out, edge_outs))
    assert out.shape == x.shape, (out.shape, x.shape)

    # --- check each fused edge result against a plain-JAX f32 reference ---
    L = H * W
    x_ncl = x.reshape(N, DIM, L)

    def back(t_nlc):                     # (N, L, C) -> (N, C, L)
        return jnp.transpose(t_nlc, (0, 2, 1))

    # entrance edge (-> node 1, shared_mlps[0]): QKV+attn+mlp1+mlp2+shared, fully fused
    a_ref = _attention_ref(x_ncl, params['wqkv'], params['pos_h'], params['pos_w'],
                           HEADS, DIM_HEAD)
    ent_ref = _mlp_ref(a_ref, *params['mlp1']) + _mlp_ref(x_ncl, *params['mlp2'])
    ent_ref = _mlp_ref(ent_ref, *params['shared'][0])
    np.testing.assert_allclose(np.asarray(back(edge_outs[(1, 'entrance')])),
                               np.asarray(ent_ref), rtol=5e-2, atol=5e-2)

    # pooling edge (-> node 2, shared_mlps[1]): (avgpool - x) + shared MLP, fused
    pool_ref = _mlp_ref(_pooling_ref(x_ncl, params['pool']), *params['shared'][1])
    np.testing.assert_allclose(np.asarray(back(edge_outs[(2, 'pooling')])),
                               np.asarray(pool_ref), rtol=5e-2, atol=5e-2)

    # identity edge (-> node 2, shared_mlps[1]): shared MLP only (same fused launch)
    id_ref = _mlp_ref(x_ncl, *params['shared'][1])
    np.testing.assert_allclose(np.asarray(back(edge_outs[(2, 'identity')])),
                               np.asarray(id_ref), rtol=5e-2, atol=5e-2)

    # As written, MetaMixer.forward averages the 'avg' pass-throughs of the original x.
    np.testing.assert_allclose(np.asarray(out), np.asarray(x), rtol=1e-5, atol=1e-5)

    print("KERNEL_OK")
</pallas_src>

<mosaic_0001>
module attributes {stable_mosaic.version = 11 : i64} {
  func.func @kernel(%arg0: i32, %arg1: memref<64x1024xbf16, #tpu.memory_space<vmem>>, %arg2: memref<64x64xbf16, #tpu.memory_space<vmem>>, %arg3: memref<32x64xbf16, #tpu.memory_space<vmem>>, %arg4: memref<32x1xf32, #tpu.memory_space<vmem>>, %arg5: memref<64x32xbf16, #tpu.memory_space<vmem>>, %arg6: memref<64x1xf32, #tpu.memory_space<vmem>>, %arg7: memref<2x64x512xf32, #tpu.memory_space<vmem>>, %arg8: memref<2x64x512xf32, #tpu.memory_space<vmem>>) attributes {dimension_semantics = [#tpu.dimension_semantics<arbitrary>], iteration_bounds = array<i64: 1>, scalar_prefetch = 0 : i64, scratch_operands = 0 : i64, tpu.core_type = #tpu.core_type<tc>, window_params = [{pipeline_mode = #tpu.pipeline_mode<synchronous>, transform_indices = @transform_0, window_bounds = array<i64: 64, 1024>}, {pipeline_mode = #tpu.pipeline_mode<synchronous>, transform_indices = @transform_1, window_bounds = array<i64: 64, 64>}, {pipeline_mode = #tpu.pipeline_mode<synchronous>, transform_indices = @transform_2, window_bounds = array<i64: 32, 64>}, {pipeline_mode = #tpu.pipeline_mode<synchronous>, transform_indices = @transform_3, window_bounds = array<i64: 32, 1>}, {pipeline_mode = #tpu.pipeline_mode<synchronous>, transform_indices = @transform_4, window_bounds = array<i64: 64, 32>}, {pipeline_mode = #tpu.pipeline_mode<synchronous>, transform_indices = @transform_5, window_bounds = array<i64: 64, 1>}, {pipeline_mode = #tpu.pipeline_mode<synchronous>, transform_indices = @transform_6, window_bounds = array<i64: 2, 64, 512>}, {pipeline_mode = #tpu.pipeline_mode<synchronous>, transform_indices = @transform_7, window_bounds = array<i64: 2, 64, 512>}]} {
    %c0 = arith.constant 0 : index
    %c0_0 = arith.constant 0 : index
    %0 = vector.load %arg1[%c0, %c0_0] : memref<64x1024xbf16, #tpu.memory_space<vmem>>, vector<64x1024xbf16>
    %c0_1 = arith.constant 0 : index
    %c0_2 = arith.constant 0 : index
    %1 = vector.load %arg2[%c0_1, %c0_2] : memref<64x64xbf16, #tpu.memory_space<vmem>>, vector<64x64xbf16>
    %cst = arith.constant dense<0.000000e+00> : vector<64x1024xf32>
    %2 = tpu.matmul %1, %0, %cst {dimension_numbers = #tpu.dot_dimension_numbers<[1], [0], [0], [1], [0, 0, 1, 1], [], []>} : vector<64x64xbf16>, vector<64x1024xbf16>, vector<64x1024xf32> -> vector<64x1024xf32>
    %3 = arith.extf %0 : vector<64x1024xbf16> to vector<64x1024xf32>
    %4 = arith.subf %2, %3 : vector<64x1024xf32>
    %c0_3 = arith.constant 0 : index
    %c0_4 = arith.constant 0 : index
    %5 = vector.load %arg3[%c0_3, %c0_4] : memref<32x64xbf16, #tpu.memory_space<vmem>>, vector<32x64xbf16>
    %6 = arith.truncf %4 : vector<64x1024xf32> to vector<64x1024xbf16>
    %cst_5 = arith.constant dense<0.000000e+00> : vector<32x1024xf32>
    %7 = tpu.matmul %5, %6, %cst_5 {dimension_numbers = #tpu.dot_dimension_numbers<[1], [0], [0], [1], [0, 0, 1, 1], [], []>} : vector<32x64xbf16>, vector<64x1024xbf16>, vector<32x1024xf32> -> vector<32x1024xf32>
    %c0_6 = arith.constant 0 : index
    %c0_7 = arith.constant 0 : index
    %8 = vector.load %arg4[%c0_6, %c0_7] : memref<32x1xf32, #tpu.memory_space<vmem>>, vector<32x1xf32>
    %9 = vector.broadcast %8 : vector<32x1xf32> to vector<32x1024xf32>
    %10 = arith.addf %7, %9 : vector<32x1024xf32>
    %cst_8 = arith.constant 5.000000e-01 : f32
    %11 = vector.broadcast %cst_8 : f32 to vector<32x1024xf32>
    %12 = arith.mulf %11, %10 : vector<32x1024xf32>
    %cst_9 = arith.constant 4.471500e-02 : f32
    %13 = vector.broadcast %cst_9 : f32 to vector<32x1024xf32>
    %14 = arith.mulf %13, %10 : vector<32x1024xf32>
    %15 = arith.mulf %14, %10 : vector<32x1024xf32>
    %16 = arith.mulf %15, %10 : vector<32x1024xf32>
    %17 = arith.addf %10, %16 : vector<32x1024xf32>
    %cst_10 = arith.constant 0.797884583 : f32
    %18 = vector.broadcast %cst_10 : f32 to vector<32x1024xf32>
    %19 = arith.mulf %18, %17 : vector<32x1024xf32>
    %20 = math.tanh %19 : vector<32x1024xf32>
    %cst_11 = arith.constant 1.000000e+00 : f32
    %21 = vector.broadcast %cst_11 : f32 to vector<32x1024xf32>
    %22 = arith.addf %21, %20 : vector<32x1024xf32>
    %23 = arith.mulf %12, %22 : vector<32x1024xf32>
    %c0_12 = arith.constant 0 : index
    %c0_13 = arith.constant 0 : index
    %24 = vector.load %arg5[%c0_12, %c0_13] : memref<64x32xbf16, #tpu.memory_space<vmem>>, vector<64x32xbf16>
    %25 = arith.truncf %23 : vector<32x1024xf32> to vector<32x1024xbf16>
    %cst_14 = arith.constant dense<0.000000e+00> : vector<64x1024xf32>
    %26 = tpu.matmul %24, %25, %cst_14 {dimension_numbers = #tpu.dot_dimension_numbers<[1], [0], [0], [1], [0, 0, 1, 1], [], []>} : vector<64x32xbf16>, vector<32x1024xbf16>, vector<64x1024xf32> -> vector<64x1024xf32>
    %c0_15 = arith.constant 0 : index
    %c0_16 = arith.constant 0 : index
    %27 = vector.load %arg6[%c0_15, %c0_16] : memref<64x1xf32, #tpu.memory_space<vmem>>, vector<64x1xf32>
    %28 = vector.broadcast %27 : vector<64x1xf32> to vector<64x1024xf32>
    %29 = arith.addf %26, %28 : vector<64x1024xf32>
    %30 = vector.extract_strided_slice %29 {offsets = [0, 0], sizes = [64, 512], strides = [1, 1]} : vector<64x1024xf32> to vector<64x512xf32>
    %c0_17 = arith.constant 0 : index
    %c0_18 = arith.constant 0 : index
    %c0_19 = arith.constant 0 : index
    %31 = vector.load %arg7[%c0_17, %c0_18, %c0_19] : memref<2x64x512xf32, #tpu.memory_space<vmem>>, vector<1x64x512xf32>
    %32 = vector.shape_cast %31 : vector<1x64x512xf32> to vector<64x512xf32>
    %33 = vector.shape_cast %30 : vector<64x512xf32> to vector<1x64x512xf32>
    tpu.vector_store %arg7[%c0_17, %c0_18, %c0_19], %33 {strides = array<i32>} : memref<2x64x512xf32, #tpu.memory_space<vmem>>, vector<1x64x512xf32>,
    %34 = vector.extract_strided_slice %29 {offsets = [0, 512], sizes = [64, 512], strides = [1, 1]} : vector<64x1024xf32> to vector<64x512xf32>
    %c1 = arith.constant 1 : index
    %c0_20 = arith.constant 0 : index
    %c0_21 = arith.constant 0 : index
    %35 = vector.load %arg7[%c1, %c0_20, %c0_21] : memref<2x64x512xf32, #tpu.memory_space<vmem>>, vector<1x64x512xf32>
    %36 = vector.shape_cast %35 : vector<1x64x512xf32> to vector<64x512xf32>
    %37 = vector.shape_cast %34 : vector<64x512xf32> to vector<1x64x512xf32>
    tpu.vector_store %arg7[%c1, %c0_20, %c0_21], %37 {strides = array<i32>} : memref<2x64x512xf32, #tpu.memory_space<vmem>>, vector<1x64x512xf32>,
    %c0_22 = arith.constant 0 : index
    %c0_23 = arith.constant 0 : index
    %38 = vector.load %arg3[%c0_22, %c0_23] : memref<32x64xbf16, #tpu.memory_space<vmem>>, vector<32x64xbf16>
    %cst_24 = arith.constant dense<0.000000e+00> : vector<32x1024xf32>
    %39 = tpu.matmul %38, %0, %cst_24 {dimension_numbers = #tpu.dot_dimension_numbers<[1], [0], [0], [1], [0, 0, 1, 1], [], []>} : vector<32x64xbf16>, vector<64x1024xbf16>, vector<32x1024xf32> -> vector<32x1024xf32>
    %c0_25 = arith.constant 0 : index
    %c0_26 = arith.constant 0 : index
    %40 = vector.load %arg4[%c0_25, %c0_26] : memref<32x1xf32, #tpu.memory_space<vmem>>, vector<32x1xf32>
    %41 = vector.broadcast %40 : vector<32x1xf32> to vector<32x1024xf32>
    %42 = arith.addf %39, %41 : vector<32x1024xf32>
    %cst_27 = arith.constant 5.000000e-01 : f32
    %43 = vector.broadcast %cst_27 : f32 to vector<32x1024xf32>
    %44 = arith.mulf %43, %42 : vector<32x1024xf32>
    %cst_28 = arith.constant 4.471500e-02 : f32
    %45 = vector.broadcast %cst_28 : f32 to vector<32x1024xf32>
    %46 = arith.mulf %45, %42 : vector<32x1024xf32>
    %47 = arith.mulf %46, %42 : vector<32x1024xf32>
    %48 = arith.mulf %47, %42 : vector<32x1024xf32>
    %49 = arith.addf %42, %48 : vector<32x1024xf32>
    %cst_29 = arith.constant 0.797884583 : f32
    %50 = vector.broadcast %cst_29 : f32 to vector<32x1024xf32>
    %51 = arith.mulf %50, %49 : vector<32x1024xf32>
    %52 = math.tanh %51 : vector<32x1024xf32>
    %cst_30 = arith.constant 1.000000e+00 : f32
    %53 = vector.broadcast %cst_30 : f32 to vector<32x1024xf32>
    %54 = arith.addf %53, %52 : vector<32x1024xf32>
    %55 = arith.mulf %44, %54 : vector<32x1024xf32>
    %c0_31 = arith.constant 0 : index
    %c0_32 = arith.constant 0 : index
    %56 = vector.load %arg5[%c0_31, %c0_32] : memref<64x32xbf16, #tpu.memory_space<vmem>>, vector<64x32xbf16>
    %57 = arith.truncf %55 : vector<32x1024xf32> to vector<32x1024xbf16>
    %cst_33 = arith.constant dense<0.000000e+00> : vector<64x1024xf32>
    %58 = tpu.matmul %56, %57, %cst_33 {dimension_numbers = #tpu.dot_dimension_numbers<[1], [0], [0], [1], [0, 0, 1, 1], [], []>} : vector<64x32xbf16>, vector<32x1024xbf16>, vector<64x1024xf32> -> vector<64x1024xf32>
    %c0_34 = arith.constant 0 : index
    %c0_35 = arith.constant 0 : index
    %59 = vector.load %arg6[%c0_34, %c0_35] : memref<64x1xf32, #tpu.memory_space<vmem>>, vector<64x1xf32>
    %60 = vector.broadcast %59 : vector<64x1xf32> to vector<64x1024xf32>
    %61 = arith.addf %58, %60 : vector<64x1024xf32>
    %62 = vector.extract_strided_slice %61 {offsets = [0, 0], sizes = [64, 512], strides = [1, 1]} : vector<64x1024xf32> to vector<64x512xf32>
    %c0_36 = arith.constant 0 : index
    %c0_37 = arith.constant 0 : index
    %c0_38 = arith.constant 0 : index
    %63 = vector.load %arg8[%c0_36, %c0_37, %c0_38] : memref<2x64x512xf32, #tpu.memory_space<vmem>>, vector<1x64x512xf32>
    %64 = vector.shape_cast %63 : vector<1x64x512xf32> to vector<64x512xf32>
    %65 = vector.shape_cast %62 : vector<64x512xf32> to vector<1x64x512xf32>
    tpu.vector_store %arg8[%c0_36, %c0_37, %c0_38], %65 {strides = array<i32>} : memref<2x64x512xf32, #tpu.memory_space<vmem>>, vector<1x64x512xf32>,
    %66 = vector.extract_strided_slice %61 {offsets = [0, 512], sizes = [64, 512], strides = [1, 1]} : vector<64x1024xf32> to vector<64x512xf32>
    %c1_39 = arith.constant 1 : index
    %c0_40 = arith.constant 0 : index
    %c0_41 = arith.constant 0 : index
    %67 = vector.load %arg8[%c1_39, %c0_40, %c0_41] : memref<2x64x512xf32, #tpu.memory_space<vmem>>, vector<1x64x512xf32>
    %68 = vector.shape_cast %67 : vector<1x64x512xf32> to vector<64x512xf32>
    %69 = vector.shape_cast %66 : vector<64x512xf32> to vector<1x64x512xf32>
    tpu.vector_store %arg8[%c1_39, %c0_40, %c0_41], %69 {strides = array<i32>} : memref<2x64x512xf32, #tpu.memory_space<vmem>>, vector<1x64x512xf32>,
    return
  }
  func.func @transform_0(%arg0: i32) -> (i32, i32) {
    %c0_i32 = arith.constant 0 : i32
    %c0_i32_0 = arith.constant 0 : i32
    %c0_i32_1 = arith.constant 0 : i32
    return %c0_i32, %c0_i32_0 : i32, i32
  }
  func.func @transform_1(%arg0: i32) -> (i32, i32) {
    %c0_i32 = arith.constant 0 : i32
    %c0_i32_0 = arith.constant 0 : i32
    %c0_i32_1 = arith.constant 0 : i32
    return %c0_i32, %c0_i32_0 : i32, i32
  }
  func.func @transform_2(%arg0: i32) -> (i32, i32) {
    %c0_i32 = arith.constant 0 : i32
    %c0_i32_0 = arith.constant 0 : i32
    %c0_i32_1 = arith.constant 0 : i32
    return %c0_i32, %c0_i32_0 : i32, i32
  }
  func.func @transform_3(%arg0: i32) -> (i32, i32) {
    %c0_i32 = arith.constant 0 : i32
    %c0_i32_0 = arith.constant 0 : i32
    %c0_i32_1 = arith.constant 0 : i32
    return %c0_i32, %c0_i32_0 : i32, i32
  }
  func.func @transform_4(%arg0: i32) -> (i32, i32) {
    %c0_i32 = arith.constant 0 : i32
    %c0_i32_0 = arith.constant 0 : i32
    %c0_i32_1 = arith.constant 0 : i32
    return %c0_i32, %c0_i32_0 : i32, i32
  }
  func.func @transform_5(%arg0: i32) -> (i32, i32) {
    %c0_i32 = arith.constant 0 : i32
    %c0_i32_0 = arith.constant 0 : i32
    %c0_i32_1 = arith.constant 0 : i32
    return %c0_i32, %c0_i32_0 : i32, i32
  }
  func.func @transform_6(%arg0: i32) -> (i32, i32, i32) {
    %c0_i32 = arith.constant 0 : i32
    %c0_i32_0 = arith.constant 0 : i32
    %c0_i32_1 = arith.constant 0 : i32
    %c0_i32_2 = arith.constant 0 : i32
    return %c0_i32, %c0_i32_0, %c0_i32_1 : i32, i32, i32
  }
  func.func @transform_7(%arg0: i32) -> (i32, i32, i32) {
    %c0_i32 = arith.constant 0 : i32
    %c0_i32_0 = arith.constant 0 : i32
    %c0_i32_1 = arith.constant 0 : i32
    %c0_i32_2 = arith.constant 0 : i32
    return %c0_i32, %c0_i32_0, %c0_i32_1 : i32, i32, i32
  }
}

module attributes {stable_mosaic.version = 11 : i64} {
  func.func @kernel(%arg0: i32, %arg1: memref<1x64x512xbf16, #tpu.memory_space<vmem>>, %arg2: memref<64x128xf32, #tpu.memory_space<vmem>>, %arg3: memref<32x64xbf16, #tpu.memory_space<vmem>>, %arg4: memref<32x1xf32, #tpu.memory_space<vmem>>, %arg5: memref<64x32xbf16, #tpu.memory_space<vmem>>, %arg6: memref<64x1xf32, #tpu.memory_space<vmem>>, %arg7: memref<32x64xbf16, #tpu.memory_space<vmem>>, %arg8: memref<32x1xf32, #tpu.memory_space<vmem>>, %arg9: memref<64x32xbf16, #tpu.memory_space<vmem>>, %arg10: memref<64x1xf32, #tpu.memory_space<vmem>>, %arg11: memref<32x64xbf16, #tpu.memory_space<vmem>>, %arg12: memref<32x1xf32, #tpu.memory_space<vmem>>, %arg13: memref<64x32xbf16, #tpu.memory_space<vmem>>, %arg14: memref<64x1xf32, #tpu.memory_space<vmem>>, %arg15: memref<512x1536xbf16, #tpu.memory_space<any>>, %arg16: memref<1x64x512xf32, #tpu.memory_space<vmem>>, %arg17: memref<512x1536xbf16, #tpu.memory_space<vmem>>, %arg18: memref<64x512xf32, #tpu.memory_space<vmem>>, %arg19: memref<!tpu.dma_semaphore, #tpu.memory_space<semaphore_mem>>) attributes {dimension_semantics = [#tpu.dimension_semantics<parallel>], iteration_bounds = array<i64: 2>, scalar_prefetch = 0 : i64, scratch_operands = 3 : i64, tpu.core_type = #tpu.core_type<tc>, window_params = [{transform_indices = @transform_0, window_bounds = array<i64: 1, 64, 512>}, {pipeline_mode = #tpu.pipeline_mode<synchronous>, transform_indices = @transform_1, window_bounds = array<i64: 64, 128>}, {pipeline_mode = #tpu.pipeline_mode<synchronous>, transform_indices = @transform_2, window_bounds = array<i64: 32, 64>}, {pipeline_mode = #tpu.pipeline_mode<synchronous>, transform_indices = @transform_3, window_bounds = array<i64: 32, 1>}, {pipeline_mode = #tpu.pipeline_mode<synchronous>, transform_indices = @transform_4, window_bounds = array<i64: 64, 32>}, {pipeline_mode = #tpu.pipeline_mode<synchronous>, transform_indices = @transform_5, window_bounds = array<i64: 64, 1>}, {pipeline_mode = #tpu.pipeline_mode<synchronous>, transform_indices = @transform_6, window_bounds = array<i64: 32, 64>}, {pipeline_mode = #tpu.pipeline_mode<synchronous>, transform_indices = @transform_7, window_bounds = array<i64: 32, 1>}, {pipeline_mode = #tpu.pipeline_mode<synchronous>, transform_indices = @transform_8, window_bounds = array<i64: 64, 32>}, {pipeline_mode = #tpu.pipeline_mode<synchronous>, transform_indices = @transform_9, window_bounds = array<i64: 64, 1>}, {pipeline_mode = #tpu.pipeline_mode<synchronous>, transform_indices = @transform_10, window_bounds = array<i64: 32, 64>}, {pipeline_mode = #tpu.pipeline_mode<synchronous>, transform_indices = @transform_11, window_bounds = array<i64: 32, 1>}, {pipeline_mode = #tpu.pipeline_mode<synchronous>, transform_indices = @transform_12, window_bounds = array<i64: 64, 32>}, {pipeline_mode = #tpu.pipeline_mode<synchronous>, transform_indices = @transform_13, window_bounds = array<i64: 64, 1>}, {}, {transform_indices = @transform_15, window_bounds = array<i64: 1, 64, 512>}]} {
    tpu.enqueue_dma source(%arg15 : memref<512x1536xbf16, #tpu.memory_space<any>>) target(%arg17 : memref<512x1536xbf16, #tpu.memory_space<vmem>>) target_semaphore(%arg19 : memref<!tpu.dma_semaphore, #tpu.memory_space<semaphore_mem>>)
    %c0 = arith.constant 0 : index
    %c0_0 = arith.constant 0 : index
    %c0_1 = arith.constant 0 : index
    %0 = vector.load %arg1[%c0, %c0_0, %c0_1] : memref<1x64x512xbf16, #tpu.memory_space<vmem>>, vector<1x64x512xbf16>
    %1 = vector.shape_cast %0 : vector<1x64x512xbf16> to vector<64x512xbf16>
    %c0_2 = arith.constant 0 : index
    %c0_3 = arith.constant 0 : index
    %2 = vector.load %arg7[%c0_2, %c0_3] : memref<32x64xbf16, #tpu.memory_space<vmem>>, vector<32x64xbf16>
    %cst = arith.constant dense<0.000000e+00> : vector<32x512xf32>
    %3 = tpu.matmul %2, %1, %cst {dimension_numbers = #tpu.dot_dimension_numbers<[1], [0], [0], [1], [0, 0, 1, 1], [], []>} : vector<32x64xbf16>, vector<64x512xbf16>, vector<32x512xf32> -> vector<32x512xf32>
    %c0_4 = arith.constant 0 : index
    %c0_5 = arith.constant 0 : index
    %4 = vector.load %arg8[%c0_4, %c0_5] : memref<32x1xf32, #tpu.memory_space<vmem>>, vector<32x1xf32>
    %5 = vector.broadcast %4 : vector<32x1xf32> to vector<32x512xf32>
    %6 = arith.addf %3, %5 : vector<32x512xf32>
    %cst_6 = arith.constant 5.000000e-01 : f32
    %7 = vector.broadcast %cst_6 : f32 to vector<32x512xf32>
    %8 = arith.mulf %7, %6 : vector<32x512xf32>
    %cst_7 = arith.constant 4.471500e-02 : f32
    %9 = vector.broadcast %cst_7 : f32 to vector<32x512xf32>
    %10 = arith.mulf %9, %6 : vector<32x512xf32>
    %11 = arith.mulf %10, %6 : vector<32x512xf32>
    %12 = arith.mulf %11, %6 : vector<32x512xf32>
    %13 = arith.addf %6, %12 : vector<32x512xf32>
    %cst_8 = arith.constant 0.797884583 : f32
    %14 = vector.broadcast %cst_8 : f32 to vector<32x512xf32>
    %15 = arith.mulf %14, %13 : vector<32x512xf32>
    %16 = math.tanh %15 : vector<32x512xf32>
    %cst_9 = arith.constant 1.000000e+00 : f32
    %17 = vector.broadcast %cst_9 : f32 to vector<32x512xf32>
    %18 = arith.addf %17, %16 : vector<32x512xf32>
    %19 = arith.mulf %8, %18 : vector<32x512xf32>
    %c0_10 = arith.constant 0 : index
    %c0_11 = arith.constant 0 : index
    %20 = vector.load %arg9[%c0_10, %c0_11] : memref<64x32xbf16, #tpu.memory_space<vmem>>, vector<64x32xbf16>
    %21 = arith.truncf %19 : vector<32x512xf32> to vector<32x512xbf16>
    %cst_12 = arith.constant dense<0.000000e+00> : vector<64x512xf32>
    %22 = tpu.matmul %20, %21, %cst_12 {dimension_numbers = #tpu.dot_dimension_numbers<[1], [0], [0], [1], [0, 0, 1, 1], [], []>} : vector<64x32xbf16>, vector<32x512xbf16>, vector<64x512xf32> -> vector<64x512xf32>
    %c0_13 = arith.constant 0 : index
    %c0_14 = arith.constant 0 : index
    %23 = vector.load %arg10[%c0_13, %c0_14] : memref<64x1xf32, #tpu.memory_space<vmem>>, vector<64x1xf32>
    %24 = vector.broadcast %23 : vector<64x1xf32> to vector<64x512xf32>
    %25 = arith.addf %22, %24 : vector<64x512xf32>
    tpu.wait_dma2 semaphore(%arg19 : memref<!tpu.dma_semaphore, #tpu.memory_space<semaphore_mem>>) src(%arg15 : memref<512x1536xbf16, #tpu.memory_space<any>>) dst(%arg17 : memref<512x1536xbf16, #tpu.memory_space<vmem>>)
    %c0_15 = arith.constant 0 : index
    %c0_16 = arith.constant 0 : index
    %26 = vector.load %arg17[%c0_15, %c0_16] : memref<512x1536xbf16, #tpu.memory_space<vmem>>, vector<512x1536xbf16>
    %cst_17 = arith.constant dense<0.000000e+00> : vector<64x1536xf32>
    %27 = tpu.matmul %1, %26, %cst_17 {dimension_numbers = #tpu.dot_dimension_numbers<[1], [0], [0], [1], [0, 0, 1, 1], [], []>} : vector<64x512xbf16>, vector<512x1536xbf16>, vector<64x1536xf32> -> vector<64x1536xf32>
    %c0_18 = arith.constant 0 : index
    %c0_19 = arith.constant 0 : index
    %28 = vector.load %arg2[%c0_18, %c0_19] : memref<64x128xf32, #tpu.memory_space<vmem>>, vector<64x128xf32>
    %29 = vector.extract_strided_slice %27 {offsets = [0, 0], sizes = [64, 128], strides = [1, 1]} : vector<64x1536xf32> to vector<64x128xf32>
    %30 = arith.truncf %29 : vector<64x128xf32> to vector<64x128xbf16>
    %31 = vector.extract_strided_slice %27 {offsets = [0, 512], sizes = [64, 128], strides = [1, 1]} : vector<64x1536xf32> to vector<64x128xf32>
    %32 = arith.addf %31, %28 : vector<64x128xf32>
    %33 = arith.truncf %32 : vector<64x128xf32> to vector<64x128xbf16>
    %34 = vector.extract_strided_slice %27 {offsets = [0, 1024], sizes = [64, 128], strides = [1, 1]} : vector<64x1536xf32> to vector<64x128xf32>
    %35 = arith.truncf %34 : vector<64x128xf32> to vector<64x128xbf16>
    %cst_20 = arith.constant dense<0.000000e+00> : vector<64x64xf32>
    %36 = tpu.matmul %30, %33, %cst_20 {dimension_numbers = #tpu.dot_dimension_numbers<[1], [1], [0], [0], [0, 0, 1, 0], [], []>} : vector<64x128xbf16>, vector<64x128xbf16>, vector<64x64xf32> -> vector<64x64xf32>
    %cst_21 = arith.constant dense<0xFF800000> : vector<64xf32>
    %37 = vector.multi_reduction <maximumf>, %36, %cst_21 [1] : vector<64x64xf32> to vector<64xf32>
    %38 = vector.shape_cast %37 : vector<64xf32> to vector<64x1xf32>
    %39 = vector.broadcast %38 : vector<64x1xf32> to vector<64x64xf32>
    %40 = arith.subf %36, %39 : vector<64x64xf32>
    %41 = math.exp %40 : vector<64x64xf32>
    %cst_22 = arith.constant dense<0.000000e+00> : vector<64xf32>
    %42 = vector.multi_reduction <add>, %41, %cst_22 [1] : vector<64x64xf32> to vector<64xf32>
    %43 = vector.shape_cast %42 : vector<64xf32> to vector<64x1xf32>
    %44 = tpu.reciprocal %43 {approx = true} : vector<64x1xf32> -> vector<64x1xf32>
    %45 = vector.broadcast %44 : vector<64x1xf32> to vector<64x64xf32>
    %46 = arith.mulf %41, %45 : vector<64x64xf32>
    %47 = arith.truncf %46 : vector<64x64xf32> to vector<64x64xbf16>
    %cst_23 = arith.constant dense<0.000000e+00> : vector<64x128xf32>
    %48 = tpu.matmul %47, %35, %cst_23 {dimension_numbers = #tpu.dot_dimension_numbers<[1], [0], [0], [1], [0, 0, 1, 1], [], []>} : vector<64x64xbf16>, vector<64x128xbf16>, vector<64x128xf32> -> vector<64x128xf32>
    %c0_24 = arith.constant 0 : index
    %c0_25 = arith.constant 0 : index
    %49 = vector.load %arg18[%c0_24, %c0_25] : memref<64x512xf32, #tpu.memory_space<vmem>>, vector<64x128xf32>
    tpu.vector_store %arg18[%c0_24, %c0_25], %48 {strides = array<i32>} : memref<64x512xf32, #tpu.memory_space<vmem>>, vector<64x128xf32>,
    %50 = vector.extract_strided_slice %27 {offsets = [0, 128], sizes = [64, 128], strides = [1, 1]} : vector<64x1536xf32> to vector<64x128xf32>
    %51 = arith.truncf %50 : vector<64x128xf32> to vector<64x128xbf16>
    %52 = vector.extract_strided_slice %27 {offsets = [0, 640], sizes = [64, 128], strides = [1, 1]} : vector<64x1536xf32> to vector<64x128xf32>
    %53 = arith.addf %52, %28 : vector<64x128xf32>
    %54 = arith.truncf %53 : vector<64x128xf32> to vector<64x128xbf16>
    %55 = vector.extract_strided_slice %27 {offsets = [0, 1152], sizes = [64, 128], strides = [1, 1]} : vector<64x1536xf32> to vector<64x128xf32>
    %56 = arith.truncf %55 : vector<64x128xf32> to vector<64x128xbf16>
    %cst_26 = arith.constant dense<0.000000e+00> : vector<64x64xf32>
    %57 = tpu.matmul %51, %54, %cst_26 {dimension_numbers = #tpu.dot_dimension_numbers<[1], [1], [0], [0], [0, 0, 1, 0], [], []>} : vector<64x128xbf16>, vector<64x128xbf16>, vector<64x64xf32> -> vector<64x64xf32>
    %cst_27 = arith.constant dense<0xFF800000> : vector<64xf32>
    %58 = vector.multi_reduction <maximumf>, %57, %cst_27 [1] : vector<64x64xf32> to vector<64xf32>
    %59 = vector.shape_cast %58 : vector<64xf32> to vector<64x1xf32>
    %60 = vector.broadcast %59 : vector<64x1xf32> to vector<64x64xf32>
    %61 = arith.subf %57, %60 : vector<64x64xf32>
    %62 = math.exp %61 : vector<64x64xf32>
    %cst_28 = arith.constant dense<0.000000e+00> : vector<64xf32>
    %63 = vector.multi_reduction <add>, %62, %cst_28 [1] : vector<64x64xf32> to vector<64xf32>
    %64 = vector.shape_cast %63 : vector<64xf32> to vector<64x1xf32>
    %65 = tpu.reciprocal %64 {approx = true} : vector<64x1xf32> -> vector<64x1xf32>
    %66 = vector.broadcast %65 : vector<64x1xf32> to vector<64x64xf32>
    %67 = arith.mulf %62, %66 : vector<64x64xf32>
    %68 = arith.truncf %67 : vector<64x64xf32> to vector<64x64xbf16>
    %cst_29 = arith.constant dense<0.000000e+00> : vector<64x128xf32>
    %69 = tpu.matmul %68, %56, %cst_29 {dimension_numbers = #tpu.dot_dimension_numbers<[1], [0], [0], [1], [0, 0, 1, 1], [], []>} : vector<64x64xbf16>, vector<64x128xbf16>, vector<64x128xf32> -> vector<64x128xf32>
    %c0_30 = arith.constant 0 : index
    %c128 = arith.constant 128 : index
    %70 = vector.load %arg18[%c0_30, %c128] : memref<64x512xf32, #tpu.memory_space<vmem>>, vector<64x128xf32>
    tpu.vector_store %arg18[%c0_30, %c128], %69 {strides = array<i32>} : memref<64x512xf32, #tpu.memory_space<vmem>>, vector<64x128xf32>,
    %71 = vector.extract_strided_slice %27 {offsets = [0, 256], sizes = [64, 128], strides = [1, 1]} : vector<64x1536xf32> to vector<64x128xf32>
    %72 = arith.truncf %71 : vector<64x128xf32> to vector<64x128xbf16>
    %73 = vector.extract_strided_slice %27 {offsets = [0, 768], sizes = [64, 128], strides = [1, 1]} : vector<64x1536xf32> to vector<64x128xf32>
    %74 = arith.addf %73, %28 : vector<64x128xf32>
    %75 = arith.truncf %74 : vector<64x128xf32> to vector<64x128xbf16>
    %76 = vector.extract_strided_slice %27 {offsets = [0, 1280], sizes = [64, 128], strides = [1, 1]} : vector<64x1536xf32> to vector<64x128xf32>
    %77 = arith.truncf %76 : vector<64x128xf32> to vector<64x128xbf16>
    %cst_31 = arith.constant dense<0.000000e+00> : vector<64x64xf32>
    %78 = tpu.matmul %72, %75, %cst_31 {dimension_numbers = #tpu.dot_dimension_numbers<[1], [1], [0], [0], [0, 0, 1, 0], [], []>} : vector<64x128xbf16>, vector<64x128xbf16>, vector<64x64xf32> -> vector<64x64xf32>
    %cst_32 = arith.constant dense<0xFF800000> : vector<64xf32>
    %79 = vector.multi_reduction <maximumf>, %78, %cst_32 [1] : vector<64x64xf32> to vector<64xf32>
    %80 = vector.shape_cast %79 : vector<64xf32> to vector<64x1xf32>
    %81 = vector.broadcast %80 : vector<64x1xf32> to vector<64x64xf32>
    %82 = arith.subf %78, %81 : vector<64x64xf32>
    %83 = math.exp %82 : vector<64x64xf32>
    %cst_33 = arith.constant dense<0.000000e+00> : vector<64xf32>
    %84 = vector.multi_reduction <add>, %83, %cst_33 [1] : vector<64x64xf32> to vector<64xf32>
    %85 = vector.shape_cast %84 : vector<64xf32> to vector<64x1xf32>
    %86 = tpu.reciprocal %85 {approx = true} : vector<64x1xf32> -> vector<64x1xf32>
    %87 = vector.broadcast %86 : vector<64x1xf32> to vector<64x64xf32>
    %88 = arith.mulf %83, %87 : vector<64x64xf32>
    %89 = arith.truncf %88 : vector<64x64xf32> to vector<64x64xbf16>
    %cst_34 = arith.constant dense<0.000000e+00> : vector<64x128xf32>
    %90 = tpu.matmul %89, %77, %cst_34 {dimension_numbers = #tpu.dot_dimension_numbers<[1], [0], [0], [1], [0, 0, 1, 1], [], []>} : vector<64x64xbf16>, vector<64x128xbf16>, vector<64x128xf32> -> vector<64x128xf32>
    %c0_35 = arith.constant 0 : index
    %c256 = arith.constant 256 : index
    %91 = vector.load %arg18[%c0_35, %c256] : memref<64x512xf32, #tpu.memory_space<vmem>>, vector<64x128xf32>
    tpu.vector_store %arg18[%c0_35, %c256], %90 {strides = array<i32>} : memref<64x512xf32, #tpu.memory_space<vmem>>, vector<64x128xf32>,
    %92 = vector.extract_strided_slice %27 {offsets = [0, 384], sizes = [64, 128], strides = [1, 1]} : vector<64x1536xf32> to vector<64x128xf32>
    %93 = arith.truncf %92 : vector<64x128xf32> to vector<64x128xbf16>
    %94 = vector.extract_strided_slice %27 {offsets = [0, 896], sizes = [64, 128], strides = [1, 1]} : vector<64x1536xf32> to vector<64x128xf32>
    %95 = arith.addf %94, %28 : vector<64x128xf32>
    %96 = arith.truncf %95 : vector<64x128xf32> to vector<64x128xbf16>
    %97 = vector.extract_strided_slice %27 {offsets = [0, 1408], sizes = [64, 128], strides = [1, 1]} : vector<64x1536xf32> to vector<64x128xf32>
    %98 = arith.truncf %97 : vector<64x128xf32> to vector<64x128xbf16>
    %cst_36 = arith.constant dense<0.000000e+00> : vector<64x64xf32>
    %99 = tpu.matmul %93, %96, %cst_36 {dimension_numbers = #tpu.dot_dimension_numbers<[1], [1], [0], [0], [0, 0, 1, 0], [], []>} : vector<64x128xbf16>, vector<64x128xbf16>, vector<64x64xf32> -> vector<64x64xf32>
    %cst_37 = arith.constant dense<0xFF800000> : vector<64xf32>
    %100 = vector.multi_reduction <maximumf>, %99, %cst_37 [1] : vector<64x64xf32> to vector<64xf32>
    %101 = vector.shape_cast %100 : vector<64xf32> to vector<64x1xf32>
    %102 = vector.broadcast %101 : vector<64x1xf32> to vector<64x64xf32>
    %103 = arith.subf %99, %102 : vector<64x64xf32>
    %104 = math.exp %103 : vector<64x64xf32>
    %cst_38 = arith.constant dense<0.000000e+00> : vector<64xf32>
    %105 = vector.multi_reduction <add>, %104, %cst_38 [1] : vector<64x64xf32> to vector<64xf32>
    %106 = vector.shape_cast %105 : vector<64xf32> to vector<64x1xf32>
    %107 = tpu.reciprocal %106 {approx = true} : vector<64x1xf32> -> vector<64x1xf32>
    %108 = vector.broadcast %107 : vector<64x1xf32> to vector<64x64xf32>
    %109 = arith.mulf %104, %108 : vector<64x64xf32>
    %110 = arith.truncf %109 : vector<64x64xf32> to vector<64x64xbf16>
    %cst_39 = arith.constant dense<0.000000e+00> : vector<64x128xf32>
    %111 = tpu.matmul %110, %98, %cst_39 {dimension_numbers = #tpu.dot_dimension_numbers<[1], [0], [0], [1], [0, 0, 1, 1], [], []>} : vector<64x64xbf16>, vector<64x128xbf16>, vector<64x128xf32> -> vector<64x128xf32>
    %c0_40 = arith.constant 0 : index
    %c384 = arith.constant 384 : index
    %112 = vector.load %arg18[%c0_40, %c384] : memref<64x512xf32, #tpu.memory_space<vmem>>, vector<64x128xf32>
    tpu.vector_store %arg18[%c0_40, %c384], %111 {strides = array<i32>} : memref<64x512xf32, #tpu.memory_space<vmem>>, vector<64x128xf32>,
    %c0_41 = arith.constant 0 : index
    %c0_42 = arith.constant 0 : index
    %113 = vector.load %arg18[%c0_41, %c0_42] : memref<64x512xf32, #tpu.memory_space<vmem>>, vector<64x512xf32>
    %c0_43 = arith.constant 0 : index
    %c0_44 = arith.constant 0 : index
    %114 = vector.load %arg3[%c0_43, %c0_44] : memref<32x64xbf16, #tpu.memory_space<vmem>>, vector<32x64xbf16>
    %115 = arith.truncf %113 : vector<64x512xf32> to vector<64x512xbf16>
    %cst_45 = arith.constant dense<0.000000e+00> : vector<32x512xf32>
    %116 = tpu.matmul %114, %115, %cst_45 {dimension_numbers = #tpu.dot_dimension_numbers<[1], [0], [0], [1], [0, 0, 1, 1], [], []>} : vector<32x64xbf16>, vector<64x512xbf16>, vector<32x512xf32> -> vector<32x512xf32>
    %c0_46 = arith.constant 0 : index
    %c0_47 = arith.constant 0 : index
    %117 = vector.load %arg4[%c0_46, %c0_47] : memref<32x1xf32, #tpu.memory_space<vmem>>, vector<32x1xf32>
    %118 = vector.broadcast %117 : vector<32x1xf32> to vector<32x512xf32>
    %119 = arith.addf %116, %118 : vector<32x512xf32>
    %cst_48 = arith.constant 5.000000e-01 : f32
    %120 = vector.broadcast %cst_48 : f32 to vector<32x512xf32>
    %121 = arith.mulf %120, %119 : vector<32x512xf32>
    %cst_49 = arith.constant 4.471500e-02 : f32
    %122 = vector.broadcast %cst_49 : f32 to vector<32x512xf32>
    %123 = arith.mulf %122, %119 : vector<32x512xf32>
    %124 = arith.mulf %123, %119 : vector<32x512xf32>
    %125 = arith.mulf %124, %119 : vector<32x512xf32>
    %126 = arith.addf %119, %125 : vector<32x512xf32>
    %cst_50 = arith.constant 0.797884583 : f32
    %127 = vector.broadcast %cst_50 : f32 to vector<32x512xf32>
    %128 = arith.mulf %127, %126 : vector<32x512xf32>
    %129 = math.tanh %128 : vector<32x512xf32>
    %cst_51 = arith.constant 1.000000e+00 : f32
    %130 = vector.broadcast %cst_51 : f32 to vector<32x512xf32>
    %131 = arith.addf %130, %129 : vector<32x512xf32>
    %132 = arith.mulf %121, %131 : vector<32x512xf32>
    %c0_52 = arith.constant 0 : index
    %c0_53 = arith.constant 0 : index
    %133 = vector.load %arg5[%c0_52, %c0_53] : memref<64x32xbf16, #tpu.memory_space<vmem>>, vector<64x32xbf16>
    %134 = arith.truncf %132 : vector<32x512xf32> to vector<32x512xbf16>
    %cst_54 = arith.constant dense<0.000000e+00> : vector<64x512xf32>
    %135 = tpu.matmul %133, %134, %cst_54 {dimension_numbers = #tpu.dot_dimension_numbers<[1], [0], [0], [1], [0, 0, 1, 1], [], []>} : vector<64x32xbf16>, vector<32x512xbf16>, vector<64x512xf32> -> vector<64x512xf32>
    %c0_55 = arith.constant 0 : index
    %c0_56 = arith.constant 0 : index
    %136 = vector.load %arg6[%c0_55, %c0_56] : memref<64x1xf32, #tpu.memory_space<vmem>>, vector<64x1xf32>
    %137 = vector.broadcast %136 : vector<64x1xf32> to vector<64x512xf32>
    %138 = arith.addf %135, %137 : vector<64x512xf32>
    %139 = arith.addf %138, %25 : vector<64x512xf32>
    %c0_57 = arith.constant 0 : index
    %c0_58 = arith.constant 0 : index
    %140 = vector.load %arg11[%c0_57, %c0_58] : memref<32x64xbf16, #tpu.memory_space<vmem>>, vector<32x64xbf16>
    %141 = arith.truncf %139 : vector<64x512xf32> to vector<64x512xbf16>
    %cst_59 = arith.constant dense<0.000000e+00> : vector<32x512xf32>
    %142 = tpu.matmul %140, %141, %cst_59 {dimension_numbers = #tpu.dot_dimension_numbers<[1], [0], [0], [1], [0, 0, 1, 1], [], []>} : vector<32x64xbf16>, vector<64x512xbf16>, vector<32x512xf32> -> vector<32x512xf32>
    %c0_60 = arith.constant 0 : index
    %c0_61 = arith.constant 0 : index
    %143 = vector.load %arg12[%c0_60, %c0_61] : memref<32x1xf32, #tpu.memory_space<vmem>>, vector<32x1xf32>
    %144 = vector.broadcast %143 : vector<32x1xf32> to vector<32x512xf32>
    %145 = arith.addf %142, %144 : vector<32x512xf32>
    %cst_62 = arith.constant 5.000000e-01 : f32
    %146 = vector.broadcast %cst_62 : f32 to vector<32x512xf32>
    %147 = arith.mulf %146, %145 : vector<32x512xf32>
    %cst_63 = arith.constant 4.471500e-02 : f32
    %148 = vector.broadcast %cst_63 : f32 to vector<32x512xf32>
    %149 = arith.mulf %148, %145 : vector<32x512xf32>
    %150 = arith.mulf %149, %145 : vector<32x512xf32>
    %151 = arith.mulf %150, %145 : vector<32x512xf32>
    %152 = arith.addf %145, %151 : vector<32x512xf32>
    %cst_64 = arith.constant 0.797884583 : f32
    %153 = vector.broadcast %cst_64 : f32 to vector<32x512xf32>
    %154 = arith.mulf %153, %152 : vector<32x512xf32>
    %155 = math.tanh %154 : vector<32x512xf32>
    %cst_65 = arith.constant 1.000000e+00 : f32
    %156 = vector.broadcast %cst_65 : f32 to vector<32x512xf32>
    %157 = arith.addf %156, %155 : vector<32x512xf32>
    %158 = arith.mulf %147, %157 : vector<32x512xf32>
    %c0_66 = arith.constant 0 : index
    %c0_67 = arith.constant 0 : index
    %159 = vector.load %arg13[%c0_66, %c0_67] : memref<64x32xbf16, #tpu.memory_space<vmem>>, vector<64x32xbf16>
    %160 = arith.truncf %158 : vector<32x512xf32> to vector<32x512xbf16>
    %cst_68 = arith.constant dense<0.000000e+00> : vector<64x512xf32>
    %161 = tpu.matmul %159, %160, %cst_68 {dimension_numbers = #tpu.dot_dimension_numbers<[1], [0], [0], [1], [0, 0, 1, 1], [], []>} : vector<64x32xbf16>, vector<32x512xbf16>, vector<64x512xf32> -> vector<64x512xf32>
    %c0_69 = arith.constant 0 : index
    %c0_70 = arith.constant 0 : index
    %162 = vector.load %arg14[%c0_69, %c0_70] : memref<64x1xf32, #tpu.memory_space<vmem>>, vector<64x1xf32>
    %163 = vector.broadcast %162 : vector<64x1xf32> to vector<64x512xf32>
    %164 = arith.addf %161, %163 : vector<64x512xf32>
    %c0_71 = arith.constant 0 : index
    %c0_72 = arith.constant 0 : index
    %c0_73 = arith.constant 0 : index
    %165 = vector.load %arg16[%c0_71, %c0_72, %c0_73] : memref<1x64x512xf32, #tpu.memory_space<vmem>>, vector<1x64x512xf32>
    %166 = vector.shape_cast %165 : vector<1x64x512xf32> to vector<64x512xf32>
    %167 = vector.shape_cast %164 : vector<64x512xf32> to vector<1x64x512xf32>
    tpu.vector_store %arg16[%c0_71, %c0_72, %c0_73], %167 {strides = array<i32>} : memref<1x64x512xf32, #tpu.memory_space<vmem>>, vector<1x64x512xf32>,
    return
  }
  func.func @transform_0(%arg0: i32) -> (i32, i32, i32) {
    %c0_i32 = arith.constant 0 : i32
    %c0_i32_0 = arith.constant 0 : i32
    %c0_i32_1 = arith.constant 0 : i32
    return %arg0, %c0_i32, %c0_i32_0 : i32, i32, i32
  }
  func.func @transform_1(%arg0: i32) -> (i32, i32) {
    %c0_i32 = arith.constant 0 : i32
    %c0_i32_0 = arith.constant 0 : i32
    %c0_i32_1 = arith.constant 0 : i32
    return %c0_i32, %c0_i32_0 : i32, i32
  }
  func.func @transform_2(%arg0: i32) -> (i32, i32) {
    %c0_i32 = arith.constant 0 : i32
    %c0_i32_0 = arith.constant 0 : i32
    %c0_i32_1 = arith.constant 0 : i32
    return %c0_i32, %c0_i32_0 : i32, i32
  }
  func.func @transform_3(%arg0: i32) -> (i32, i32) {
    %c0_i32 = arith.constant 0 : i32
    %c0_i32_0 = arith.constant 0 : i32
    %c0_i32_1 = arith.constant 0 : i32
    return %c0_i32, %c0_i32_0 : i32, i32
  }
  func.func @transform_4(%arg0: i32) -> (i32, i32) {
    %c0_i32 = arith.constant 0 : i32
    %c0_i32_0 = arith.constant 0 : i32
    %c0_i32_1 = arith.constant 0 : i32
    return %c0_i32, %c0_i32_0 : i32, i32
  }
  func.func @transform_5(%arg0: i32) -> (i32, i32) {
    %c0_i32 = arith.constant 0 : i32
    %c0_i32_0 = arith.constant 0 : i32
    %c0_i32_1 = arith.constant 0 : i32
    return %c0_i32, %c0_i32_0 : i32, i32
  }
  func.func @transform_6(%arg0: i32) -> (i32, i32) {
    %c0_i32 = arith.constant 0 : i32
    %c0_i32_0 = arith.constant 0 : i32
    %c0_i32_1 = arith.constant 0 : i32
    return %c0_i32, %c0_i32_0 : i32, i32
  }
  func.func @transform_7(%arg0: i32) -> (i32, i32) {
    %c0_i32 = arith.constant 0 : i32
    %c0_i32_0 = arith.constant 0 : i32
    %c0_i32_1 = arith.constant 0 : i32
    return %c0_i32, %c0_i32_0 : i32, i32
  }
  func.func @transform_8(%arg0: i32) -> (i32, i32) {
    %c0_i32 = arith.constant 0 : i32
    %c0_i32_0 = arith.constant 0 : i32
    %c0_i32_1 = arith.constant 0 : i32
    return %c0_i32, %c0_i32_0 : i32, i32
  }
  func.func @transform_9(%arg0: i32) -> (i32, i32) {
    %c0_i32 = arith.constant 0 : i32
    %c0_i32_0 = arith.constant 0 : i32
    %c0_i32_1 = arith.constant 0 : i32
    return %c0_i32, %c0_i32_0 : i32, i32
  }
  func.func @transform_10(%arg0: i32) -> (i32, i32) {
    %c0_i32 = arith.constant 0 : i32
    %c0_i32_0 = arith.constant 0 : i32
    %c0_i32_1 = arith.constant 0 : i32
    return %c0_i32, %c0_i32_0 : i32, i32
  }
  func.func @transform_11(%arg0: i32) -> (i32, i32) {
    %c0_i32 = arith.constant 0 : i32
    %c0_i32_0 = arith.constant 0 : i32
    %c0_i32_1 = arith.constant 0 : i32
    return %c0_i32, %c0_i32_0 : i32, i32
  }
  func.func @transform_12(%arg0: i32) -> (i32, i32) {
    %c0_i32 = arith.constant 0 : i32
    %c0_i32_0 = arith.constant 0 : i32
    %c0_i32_1 = arith.constant 0 : i32
    return %c0_i32, %c0_i32_0 : i32, i32
  }
  func.func @transform_13(%arg0: i32) -> (i32, i32) {
    %c0_i32 = arith.constant 0 : i32
    %c0_i32_0 = arith.constant 0 : i32
    %c0_i32_1 = arith.constant 0 : i32
    return %c0_i32, %c0_i32_0 : i32, i32
  }
  func.func @transform_15(%arg0: i32) -> (i32, i32, i32) {
    %c0_i32 = arith.constant 0 : i32
    %c0_i32_0 = arith.constant 0 : i32
    %c0_i32_1 = arith.constant 0 : i32
    return %arg0, %c0_i32, %c0_i32_0 : i32, i32, i32
  }
}

</mosaic_0001>

<llo_original>
// kernel: fwd.3
$region0: #{fwd.3}
  #allocation0 [shape = 'u32[]', space=smem, size = 0x4, offset = 0x4, fixed_abs, tag = 'smem constant byte address 0x4 - core index']
  #allocation1 [shape = 'u32[144,128]{1,0:T(1,128)}', space=vmem, size = 0x12000, scoped, tag = 'internal scratch']
  %s0 = inlined_call_operand.vmem [shape: bf16[64,1024], index: 0, kind: input, shape index: {}]
  %s1 = inlined_call_operand.hbm [shape: bf16[64,64], index: 1, kind: input, shape index: {}]
  %s2 = inlined_call_operand.hbm [shape: bf16[32,64], index: 2, kind: input, shape index: {}]
  %s3 = inlined_call_operand.vmem [shape: f32[32,1], index: 3, kind: input, shape index: {}]
  %s4 = inlined_call_operand.vmem [shape: bf16[64,32], index: 4, kind: input, shape index: {}]
  %s5 = inlined_call_operand.vmem [shape: f32[64,1], index: 5, kind: input, shape index: {}]
  %s6 = inlined_call_operand.hbm [shape: f32[2,64,512], index: 6, kind: output, shape index: {0}]
  %s7 = inlined_call_operand.hbm [shape: f32[2,64,512], index: 7, kind: output, shape index: {1}]
  %8 = xla_tuple %s6, %s7
  %s9 = sld [smem:[#allocation0]]
  $region50: #{fwd.3} parent=0
    _
  %s11 = ssub.s32 1, %s9
  %s12 = scalar_select 0, %s11, %s9
  $region1: #{fwd.3} parent=0
    #allocation2 [shape = 'u8[16384]{0}', space=vmem, size = 0x4000, scoped, tag = 'input window, operand 1, single buffered']
    #allocation3 [shape = 's32[1]{0}', space=sflag, size = 0x4, scoped, tag = 'scoped memory for fwd.3']
    #allocation4 [shape = 's32[1]{0}', space=sflag, size = 0x4, scoped, tag = 'scoped memory for fwd.3']
    #allocation5 [shape = 'u8[8192]{0}', space=vmem, size = 0x2000, scoped, tag = 'input window, operand 2, single buffered']
    #allocation6 [shape = 's32[1]{0}', space=sflag, size = 0x4, scoped, tag = 'scoped memory for fwd.3']
    #allocation7 [shape = 'u8[262144]{0}', space=vmem, size = 0x40000, scoped, tag = 'output window, operand 0, single buffered']
    #allocation8 [shape = 'u8[262144]{0}', space=vmem, size = 0x40000, scoped, tag = 'output window, operand 1, single buffered']
    #allocation9 [shape = 's32[1]{0}', space=sflag, size = 0x4, scoped, tag = 'scoped memory for fwd.3']
    %13 = vsyncpa [#allocation3], 0
    %14 = vsyncpa [#allocation6], 0
    %15 = vsyncpa [#allocation4], 0
    %16 = vsyncpa [#allocation9], 0
    // Predicated region
    $region2: #{fwd.3} parent=1 // pred_check
      _
    $region3: #{fwd.3} parent=1 // pred_check_branch
      %18 = sbr.rel (0) target = $region5
    $region4: #{fwd.3} parent=1 // pred_region
      _
    $region5: #{fwd.3} parent=1 // pred_fallthru
      _
    // Predicated region
    $region6: #{fwd.3} parent=1 // pred_check
      _
    $region7: #{fwd.3} parent=1 // pred_check_branch
      %20 = sbr.rel (0) target = $region9
    $region8: #{fwd.3} parent=1 // pred_region
      %s22 = ssub.s32 512, 512
      %23 = vsyncadd [#allocation3], %s22
      %s24 = sshll.u32 [#allocation2], 4
      %s25 = int_to_ptr.vmem [resolvable:$true] %s24
      %30 = dma.hbm_to_vmem [thread:$0]  %s1, 512, %s25, [#allocation3], 64, 64, 4
    $region9: #{fwd.3} parent=1 // pred_fallthru
      _
    // Predicated region
    $region10: #{fwd.3} parent=1 // pred_check
      _
    $region11: #{fwd.3} parent=1 // pred_check_branch
      %32 = sbr.rel (0) target = $region13
    $region12: #{fwd.3} parent=1 // pred_region
      %s34 = ssub.s32 256, 256
      %35 = vsyncadd [#allocation6], %s34
      %s36 = sshll.u32 [#allocation5], 4
      %s37 = int_to_ptr.vmem [resolvable:$true] %s36
      %42 = dma.hbm_to_vmem [thread:$0]  %s2, 256, %s37, [#allocation6], 64, 64, 4
    $region13: #{fwd.3} parent=1 // pred_fallthru
      _
    // Predicated region
    $region14: #{fwd.3} parent=1 // pred_check
      _
    $region15: #{fwd.3} parent=1 // pred_check_branch
      %44 = sbr.rel (0) target = $region17
    $region16: #{fwd.3} parent=1 // pred_region
      _
    $region17: #{fwd.3} parent=1 // pred_fallthru
      _
    // Predicated region
    $region18: #{fwd.3} parent=1 // pred_check
      _
    $region19: #{fwd.3} parent=1 // pred_check_branch
      %46 = sbr.rel (0) target = $region21
    $region20: #{fwd.3} parent=1 // pred_region
      _
    $region21: #{fwd.3} parent=1 // pred_fallthru
      _
    // Predicated region
    $region22: #{fwd.3} parent=1 // pred_check
      _
    $region23: #{fwd.3} parent=1 // pred_check_branch
      %48 = sbr.rel (0) target = $region25
    $region24: #{fwd.3} parent=1 // pred_region
      _
    $region25: #{fwd.3} parent=1 // pred_fallthru
      _
    // Predicated region
    $region26: #{fwd.3} parent=1 // pred_check
      _
    $region27: #{fwd.3} parent=1 // pred_check_branch
      %50 = sbr.rel (0) target = $region29
    $region28: #{fwd.3} parent=1 // pred_region
      %51 = dma.done [#allocation3], 512
    $region29: #{fwd.3} parent=1 // pred_fallthru
      _
    // Predicated region
    $region30: #{fwd.3} parent=1 // pred_check
      _
    $region31: #{fwd.3} parent=1 // pred_check_branch
      %53 = sbr.rel (0) target = $region33
    $region32: #{fwd.3} parent=1 // pred_region
      %54 = dma.done [#allocation6], 256
    $region33: #{fwd.3} parent=1 // pred_fallthru
      _
    %v56 = vld [vmem:[%s0] sm:$0xff]
    %v57 = vld [vmem:[%s0 + $0x8] sm:$0xff]
    %v58 = vld [vmem:[%s0 + $0x10] sm:$0xff]
    %v59 = vld [vmem:[%s0 + $0x18] sm:$0xff]
    %v60 = vld [vmem:[%s0 + $0x20] sm:$0xff]
    %v61 = vld [vmem:[%s0 + $0x28] sm:$0xff]
    %v62 = vld [vmem:[%s0 + $0x30] sm:$0xff]
    %v63 = vld [vmem:[%s0 + $0x38] sm:$0xff]
    %v64 = vld [vmem:[%s0 + $0x40] sm:$0xff]
    %v65 = vld [vmem:[%s0 + $0x48] sm:$0xff]
    %v66 = vld [vmem:[%s0 + $0x50] sm:$0xff]
    %v67 = vld [vmem:[%s0 + $0x58] sm:$0xff]
    %v68 = vld [vmem:[%s0 + $0x60] sm:$0xff]
    %v69 = vld [vmem:[%s0 + $0x68] sm:$0xff]
    %v70 = vld [vmem:[%s0 + $0x70] sm:$0xff]
    %v71 = vld [vmem:[%s0 + $0x78] sm:$0xff]
    %v72 = vld [vmem:[%s0 + $0x80] sm:$0xff]
    %v73 = vld [vmem:[%s0 + $0x88] sm:$0xff]
    %v74 = vld [vmem:[%s0 + $0x90] sm:$0xff]
    %v75 = vld [vmem:[%s0 + $0x98] sm:$0xff]
    %v76 = vld [vmem:[%s0 + $0xa0] sm:$0xff]
    %v77 = vld [vmem:[%s0 + $0xa8] sm:$0xff]
    %v78 = vld [vmem:[%s0 + $0xb0] sm:$0xff]
    %v79 = vld [vmem:[%s0 + $0xb8] sm:$0xff]
    %v80 = vld [vmem:[%s0 + $0xc0] sm:$0xff]
    %v81 = vld [vmem:[%s0 + $0xc8] sm:$0xff]
    %v82 = vld [vmem:[%s0 + $0xd0] sm:$0xff]
    %v83 = vld [vmem:[%s0 + $0xd8] sm:$0xff]
    %v84 = vld [vmem:[%s0 + $0xe0] sm:$0xff]
    %v85 = vld [vmem:[%s0 + $0xe8] sm:$0xff]
    %v86 = vld [vmem:[%s0 + $0xf0] sm:$0xff]
    %v87 = vld [vmem:[%s0 + $0xf8] sm:$0xff]
    %v88 = vld [vmem:[#allocation2] sm:$0xf]
    %v89 = vld [vmem:[#allocation2 + $0x4] sm:$0xf]
    %v90 = vld [vmem:[#allocation2 + $0x8] sm:$0xf]
    %v91 = vld [vmem:[#allocation2 + $0xc] sm:$0xf]
    %v92 = vld [vmem:[#allocation2 + $0x10] sm:$0xf]
    %v93 = vld [vmem:[#allocation2 + $0x14] sm:$0xf]
    %v94 = vld [vmem:[#allocation2 + $0x18] sm:$0xf]
    %v95 = vld [vmem:[#allocation2 + $0x1c] sm:$0xf]
    %v104 = vunpack.c.l.b16 %v88
    %v105 = vunpack.c.l.b16 %v89
    %v106 = vunpack.c.l.b16 %v90
    %v107 = vunpack.c.l.b16 %v91
    %v108 = vunpack.c.l.b16 %v92
    %v109 = vunpack.c.l.b16 %v93
    %v110 = vunpack.c.l.b16 %v94
    %v111 = vunpack.c.l.b16 %v95
    %v112 = vpack.c.b16 %v105, %v104
    %v113 = vpack.c.b16 %v107, %v106
    %v114 = vpack.c.b16 %v109, %v108
    %v115 = vpack.c.b16 %v111, %v110
    %v148 = vunpack.c.l.b16 %v56
    %v149 = vunpack.c.h.b16 %v56
    %v150 = vunpack.c.l.b16 %v57
    %v151 = vunpack.c.h.b16 %v57
    %v152 = vunpack.c.l.b16 %v58
    %v153 = vunpack.c.h.b16 %v58
    %v154 = vunpack.c.l.b16 %v59
    %v155 = vunpack.c.h.b16 %v59
    %v156 = vunpack.c.l.b16 %v60
    %v157 = vunpack.c.h.b16 %v60
    %v158 = vunpack.c.l.b16 %v61
    %v159 = vunpack.c.h.b16 %v61
    %v160 = vunpack.c.l.b16 %v62
    %v161 = vunpack.c.h.b16 %v62
    %v162 = vunpack.c.l.b16 %v63
    %v163 = vunpack.c.h.b16 %v63
    %v164 = vunpack.c.l.b16 %v64
    %v165 = vunpack.c.h.b16 %v64
    %v166 = vunpack.c.l.b16 %v65
    %v167 = vunpack.c.h.b16 %v65
    %v168 = vunpack.c.l.b16 %v66
    %v169 = vunpack.c.h.b16 %v66
    %v170 = vunpack.c.l.b16 %v67
    %v171 = vunpack.c.h.b16 %v67
    %v172 = vunpack.c.l.b16 %v68
    %v173 = vunpack.c.h.b16 %v68
    %v174 = vunpack.c.l.b16 %v69
    %v175 = vunpack.c.h.b16 %v69
    %v176 = vunpack.c.l.b16 %v70
    %v177 = vunpack.c.h.b16 %v70
    %v178 = vunpack.c.l.b16 %v71
    %v179 = vunpack.c.h.b16 %v71
    %v180 = vunpack.c.l.b16 %v72
    %v181 = vunpack.c.h.b16 %v72
    %v182 = vunpack.c.l.b16 %v73
    %v183 = vunpack.c.h.b16 %v73
    %v184 = vunpack.c.l.b16 %v74
    %v185 = vunpack.c.h.b16 %v74
    %v186 = vunpack.c.l.b16 %v75
    %v187 = vunpack.c.h.b16 %v75
    %v188 = vunpack.c.l.b16 %v76
    %v189 = vunpack.c.h.b16 %v76
    %v190 = vunpack.c.l.b16 %v77
    %v191 = vunpack.c.h.b16 %v77
    %v192 = vunpack.c.l.b16 %v78
    %v193 = vunpack.c.h.b16 %v78
    %v194 = vunpack.c.l.b16 %v79
    %v195 = vunpack.c.h.b16 %v79
    %v196 = vunpack.c.l.b16 %v80
    %v197 = vunpack.c.h.b16 %v80
    %v198 = vunpack.c.l.b16 %v81
    %v199 = vunpack.c.h.b16 %v81
    %v200 = vunpack.c.l.b16 %v82
    %v201 = vunpack.c.h.b16 %v82
    %v202 = vunpack.c.l.b16 %v83
    %v203 = vunpack.c.h.b16 %v83
    %v204 = vunpack.c.l.b16 %v84
    %v205 = vunpack.c.h.b16 %v84
    %v206 = vunpack.c.l.b16 %v85
    %v207 = vunpack.c.h.b16 %v85
    %v208 = vunpack.c.l.b16 %v86
    %v209 = vunpack.c.h.b16 %v86
    %v210 = vunpack.c.l.b16 %v87
    %v211 = vunpack.c.h.b16 %v87
    %v212 = vpack.c.b16 %v156, %v148
    %v213 = vpack.c.b16 %v157, %v149
    %v214 = vpack.c.b16 %v158, %v150
    %v215 = vpack.c.b16 %v159, %v151
    %v216 = vpack.c.b16 %v160, %v152
    %v217 = vpack.c.b16 %v161, %v153
    %v218 = vpack.c.b16 %v162, %v154
    %v219 = vpack.c.b16 %v163, %v155
    %v220 = vpack.c.b16 %v172, %v164
    %v221 = vpack.c.b16 %v173, %v165
    %v222 = vpack.c.b16 %v174, %v166
    %v223 = vpack.c.b16 %v175, %v167
    %v224 = vpack.c.b16 %v176, %v168
    %v225 = vpack.c.b16 %v177, %v169
    %v226 = vpack.c.b16 %v178, %v170
    %v227 = vpack.c.b16 %v179, %v171
    %v228 = vpack.c.b16 %v188, %v180
    %v229 = vpack.c.b16 %v189, %v181
    %v230 = vpack.c.b16 %v190, %v182
    %v231 = vpack.c.b16 %v191, %v183
    %v232 = vpack.c.b16 %v192, %v184
    %v233 = vpack.c.b16 %v193, %v185
    %v234 = vpack.c.b16 %v194, %v186
    %v235 = vpack.c.b16 %v195, %v187
    %v236 = vpack.c.b16 %v204, %v196
    %v237 = vpack.c.b16 %v205, %v197
    %v238 = vpack.c.b16 %v206, %v198
    %v239 = vpack.c.b16 %v207, %v199
    %v240 = vpack.c.b16 %v208, %v200
    %v241 = vpack.c.b16 %v209, %v201
    %v242 = vpack.c.b16 %v210, %v202
    %v243 = vpack.c.b16 %v211, %v203
    %vm276 = vcmask 523264
    %v278 = vsel %vm276, %v112, 0
    %v281 = vsel %vm276, %v113, 0
    %v284 = vsel %vm276, %v114, 0
    %v287 = vsel %vm276, %v115, 0
    %289 = vmatprep.subr.bf16.mxu0 %v213
    %290 = vmatpush1.bf16.msra.mxu0 %v212
    %291 = vmatprep.subr.bf16.mxu0 %v221
    %292 = vmatpush1.bf16.msra.mxu0 %v220
    %293 = vmatprep.subr.bf16.mxu0 %v229
    %294 = vmatpush1.bf16.msra.mxu0 %v228
    %295 = vmatprep.subr.bf16.mxu0 %v237
    %296 = vmatpush1.bf16.msra.mxu0 %v236
    %297 = vmatprep.subr.bf16.mxu0 0
    %298 = vmatpush1.bf16.msra.mxu0 0
    %299 = vmatprep.subr.bf16.mxu0 0
    %300 = vmatpush1.bf16.msra.mxu0 0
    %301 = vmatprep.subr.bf16.mxu0 0
    %302 = vmatpush1.bf16.msra.mxu0 0
    %303 = vmatprep.subr.bf16.mxu0 0
    %304 = vmatpush1.bf16.msra.mxu0 0
    %305 = vmatprep.subr.bf16.mxu0 0
    %306 = vmatpush1.bf16.msra.mxu0 0
    %307 = vmatprep.subr.bf16.mxu0 0
    %308 = vmatpush1.bf16.msra.mxu0 0
    %309 = vmatprep.subr.bf16.mxu0 0
    %310 = vmatpush1.bf16.msra.mxu0 0
    %311 = vmatprep.subr.bf16.mxu0 0
    %312 = vmatpush1.bf16.msra.mxu0 0
    %313 = vmatprep.subr.bf16.mxu0 0
    %314 = vmatpush1.bf16.msra.mxu0 0
    %315 = vmatprep.subr.bf16.mxu0 0
    %316 = vmatpush1.bf16.msra.mxu0 0
    %317 = vmatprep.subr.bf16.mxu0 0
    %318 = vmatpush1.bf16.msra.mxu0 0
    %319 = vmatprep.subr.bf16.mxu0 0
    %320 = vmatpush1.bf16.msra.mxu0 0
    %321 = vmatprep.mubr.bf16.mxu0 0
    %322 = vmatmul.mubr.bf16.gmra.mrb[0].mxu0 %v278
    %v323 = vpop.f32.mrb[0].mxu0
    %v324 = vadd.f32 0.0, %v323
    %v325 = vpop.f32.mrb[0].mxu0
    %v326 = vadd.f32 0.0, %v325
    %v327 = vpop.f32.mrb[0].mxu0
    %v328 = vadd.f32 0.0, %v327
    %v329 = vpop.f32.mrb[0].mxu0
    %v330 = vadd.f32 0.0, %v329
    %331 = vmatprep.mubr.bf16.mxu0 0
    %332 = vmatmul.mubr.bf16.gmra.mrb[0].mxu0 %v281
    %v333 = vpop.f32.mrb[0].mxu0
    %v334 = vadd.f32 0.0, %v333
    %v335 = vpop.f32.mrb[0].mxu0
    %v336 = vadd.f32 0.0, %v335
    %v337 = vpop.f32.mrb[0].mxu0
    %v338 = vadd.f32 0.0, %v337
    %v339 = vpop.f32.mrb[0].mxu0
    %v340 = vadd.f32 0.0, %v339
    %341 = vmatprep.mubr.bf16.mxu0 0
    %342 = vmatmul.mubr.bf16.gmra.mrb[0].mxu0 %v284
    %v343 = vpop.f32.mrb[0].mxu0
    %v344 = vadd.f32 0.0, %v343
    %v345 = vpop.f32.mrb[0].mxu0
    %v346 = vadd.f32 0.0, %v345
    %v347 = vpop.f32.mrb[0].mxu0
    %v348 = vadd.f32 0.0, %v347
    %v349 = vpop.f32.mrb[0].mxu0
    %v350 = vadd.f32 0.0, %v349
    %351 = vmatprep.mubr.bf16.mxu0 0
    %352 = vmatmul.mubr.bf16.gmra.mrb[0].mxu0 %v287
    %v353 = vpop.f32.mrb[0].mxu0
    %v354 = vadd.f32 0.0, %v353
    %v355 = vpop.f32.mrb[0].mxu0
    %v356 = vadd.f32 0.0, %v355
    %v357 = vpop.f32.mrb[0].mxu0
    %v358 = vadd.f32 0.0, %v357
    %v359 = vpop.f32.mrb[0].mxu0
    %v360 = vadd.f32 0.0, %v359
    %361 = vdwg.mxu0
    %362 = vmatprep.subr.bf16.mxu0 %v215
    %363 = vmatpush1.bf16.msra.mxu0 %v214
    %364 = vmatprep.subr.bf16.mxu0 %v223
    %365 = vmatpush1.bf16.msra.mxu0 %v222
    %366 = vmatprep.subr.bf16.mxu0 %v231
    %367 = vmatpush1.bf16.msra.mxu0 %v230
    %368 = vmatprep.subr.bf16.mxu0 %v239
    %369 = vmatpush1.bf16.msra.mxu0 %v238
    %370 = vmatprep.subr.bf16.mxu0 0
    %371 = vmatpush1.bf16.msra.mxu0 0
    %372 = vmatprep.subr.bf16.mxu0 0
    %373 = vmatpush1.bf16.msra.mxu0 0
    %374 = vmatprep.subr.bf16.mxu0 0
    %375 = vmatpush1.bf16.msra.mxu0 0
    %376 = vmatprep.subr.bf16.mxu0 0
    %377 = vmatpush1.bf16.msra.mxu0 0
    %378 = vmatprep.subr.bf16.mxu0 0
    %379 = vmatpush1.bf16.msra.mxu0 0
    %380 = vmatprep.subr.bf16.mxu0 0
    %381 = vmatpush1.bf16.msra.mxu0 0
    %382 = vmatprep.subr.bf16.mxu0 0
    %383 = vmatpush1.bf16.msra.mxu0 0
    %384 = vmatprep.subr.bf16.mxu0 0
    %385 = vmatpush1.bf16.msra.mxu0 0
    %386 = vmatprep.subr.bf16.mxu0 0
    %387 = vmatpush1.bf16.msra.mxu0 0
    %388 = vmatprep.subr.bf16.mxu0 0
    %389 = vmatpush1.bf16.msra.mxu0 0
    %390 = vmatprep.subr.bf16.mxu0 0
    %391 = vmatpush1.bf16.msra.mxu0 0
    %392 = vmatprep.subr.bf16.mxu0 0
    %393 = vmatpush1.bf16.msra.mxu0 0
    %394 = vmatprep.mubr.bf16.mxu0 0
    %395 = vmatmul.mubr.bf16.gmra.mrb[0].mxu0 %v278
    %v396 = vpop.f32.mrb[0].mxu0
    %v397 = vadd.f32 0.0, %v396
    %v398 = vpop.f32.mrb[0].mxu0
    %v399 = vadd.f32 0.0, %v398
    %v400 = vpop.f32.mrb[0].mxu0
    %v401 = vadd.f32 0.0, %v400
    %v402 = vpop.f32.mrb[0].mxu0
    %v403 = vadd.f32 0.0, %v402
    %404 = vmatprep.mubr.bf16.mxu0 0
    %405 = vmatmul.mubr.bf16.gmra.mrb[0].mxu0 %v281
    %v406 = vpop.f32.mrb[0].mxu0
    %v407 = vadd.f32 0.0, %v406
    %v408 = vpop.f32.mrb[0].mxu0
    %v409 = vadd.f32 0.0, %v408
    %v410 = vpop.f32.mrb[0].mxu0
    %v411 = vadd.f32 0.0, %v410
    %v412 = vpop.f32.mrb[0].mxu0
    %v413 = vadd.f32 0.0, %v412
    %414 = vmatprep.mubr.bf16.mxu0 0
    %415 = vmatmul.mubr.bf16.gmra.mrb[0].mxu0 %v284
    %v416 = vpop.f32.mrb[0].mxu0
    %v417 = vadd.f32 0.0, %v416
    %v418 = vpop.f32.mrb[0].mxu0
    %v419 = vadd.f32 0.0, %v418
    %v420 = vpop.f32.mrb[0].mxu0
    %v421 = vadd.f32 0.0, %v420
    %v422 = vpop.f32.mrb[0].mxu0
    %v423 = vadd.f32 0.0, %v422
    %424 = vmatprep.mubr.bf16.mxu0 0
    %425 = vmatmul.mubr.bf16.gmra.mrb[0].mxu0 %v287
    %v426 = vpop.f32.mrb[0].mxu0
    %v427 = vadd.f32 0.0, %v426
    %v428 = vpop.f32.mrb[0].mxu0
    %v429 = vadd.f32 0.0, %v428
    %v430 = vpop.f32.mrb[0].mxu0
    %v431 = vadd.f32 0.0, %v430
    %v432 = vpop.f32.mrb[0].mxu0
    %v433 = vadd.f32 0.0, %v432
    %434 = vdwg.mxu0
    %435 = vmatprep.subr.bf16.mxu0 %v217
    %436 = vmatpush1.bf16.msra.mxu0 %v216
    %437 = vmatprep.subr.bf16.mxu0 %v225
    %438 = vmatpush1.bf16.msra.mxu0 %v224
    %439 = vmatprep.subr.bf16.mxu0 %v233
    %440 = vmatpush1.bf16.msra.mxu0 %v232
    %441 = vmatprep.subr.bf16.mxu0 %v241
    %442 = vmatpush1.bf16.msra.mxu0 %v240
    %443 = vmatprep.subr.bf16.mxu0 0
    %444 = vmatpush1.bf16.msra.mxu0 0
    %445 = vmatprep.subr.bf16.mxu0 0
    %446 = vmatpush1.bf16.msra.mxu0 0
    %447 = vmatprep.subr.bf16.mxu0 0
    %448 = vmatpush1.bf16.msra.mxu0 0
    %449 = vmatprep.subr.bf16.mxu0 0
    %450 = vmatpush1.bf16.msra.mxu0 0
    %451 = vmatprep.subr.bf16.mxu0 0
    %452 = vmatpush1.bf16.msra.mxu0 0
    %453 = vmatprep.subr.bf16.mxu0 0
    %454 = vmatpush1.bf16.msra.mxu0 0
    %455 = vmatprep.subr.bf16.mxu0 0
    %456 = vmatpush1.bf16.msra.mxu0 0
    %457 = vmatprep.subr.bf16.mxu0 0
    %458 = vmatpush1.bf16.msra.mxu0 0
    %459 = vmatprep.subr.bf16.mxu0 0
    %460 = vmatpush1.bf16.msra.mxu0 0
    %461 = vmatprep.subr.bf16.mxu0 0
    %462 = vmatpush1.bf16.msra.mxu0 0
    %463 = vmatprep.subr.bf16.mxu0 0
    %464 = vmatpush1.bf16.msra.mxu0 0
    %465 = vmatprep.subr.bf16.mxu0 0
    %466 = vmatpush1.bf16.msra.mxu0 0
    %467 = vmatprep.mubr.bf16.mxu0 0
    %468 = vmatmul.mubr.bf16.gmra.mrb[0].mxu0 %v278
    %v469 = vpop.f32.mrb[0].mxu0
    %v470 = vadd.f32 0.0, %v469
    %v471 = vpop.f32.mrb[0].mxu0
    %v472 = vadd.f32 0.0, %v471
    %v473 = vpop.f32.mrb[0].mxu0
    %v474 = vadd.f32 0.0, %v473
    %v475 = vpop.f32.mrb[0].mxu0
    %v476 = vadd.f32 0.0, %v475
    %477 = vmatprep.mubr.bf16.mxu0 0
    %478 = vmatmul.mubr.bf16.gmra.mrb[0].mxu0 %v281
    %v479 = vpop.f32.mrb[0].mxu0
    %v480 = vadd.f32 0.0, %v479
    %v481 = vpop.f32.mrb[0].mxu0
    %v482 = vadd.f32 0.0, %v481
    %v483 = vpop.f32.mrb[0].mxu0
    %v484 = vadd.f32 0.0, %v483
    %v485 = vpop.f32.mrb[0].mxu0
    %v486 = vadd.f32 0.0, %v485
    %487 = vmatprep.mubr.bf16.mxu0 0
    %488 = vmatmul.mubr.bf16.gmra.mrb[0].mxu0 %v284
    %v489 = vpop.f32.mrb[0].mxu0
    %v490 = vadd.f32 0.0, %v489
    %v491 = vpop.f32.mrb[0].mxu0
    %v492 = vadd.f32 0.0, %v491
    %v493 = vpop.f32.mrb[0].mxu0
    %v494 = vadd.f32 0.0, %v493
    %v495 = vpop.f32.mrb[0].mxu0
    %v496 = vadd.f32 0.0, %v495
    %497 = vmatprep.mubr.bf16.mxu0 0
    %498 = vmatmul.mubr.bf16.gmra.mrb[0].mxu0 %v287
    %v499 = vpop.f32.mrb[0].mxu0
    %v500 = vadd.f32 0.0, %v499
    %v501 = vpop.f32.mrb[0].mxu0
    %v502 = vadd.f32 0.0, %v501
    %v503 = vpop.f32.mrb[0].mxu0
    %v504 = vadd.f32 0.0, %v503
    %v505 = vpop.f32.mrb[0].mxu0
    %v506 = vadd.f32 0.0, %v505
    %507 = vdwg.mxu0
    %508 = vmatprep.subr.bf16.mxu0 %v219
    %509 = vmatpush1.bf16.msra.mxu0 %v218
    %510 = vmatprep.subr.bf16.mxu0 %v227
    %511 = vmatpush1.bf16.msra.mxu0 %v226
    %512 = vmatprep.subr.bf16.mxu0 %v235
    %513 = vmatpush1.bf16.msra.mxu0 %v234
    %514 = vmatprep.subr.bf16.mxu0 %v243
    %515 = vmatpush1.bf16.msra.mxu0 %v242
    %516 = vmatprep.subr.bf16.mxu0 0
    %517 = vmatpush1.bf16.msra.mxu0 0
    %518 = vmatprep.subr.bf16.mxu0 0
    %519 = vmatpush1.bf16.msra.mxu0 0
    %520 = vmatprep.subr.bf16.mxu0 0
    %521 = vmatpush1.bf16.msra.mxu0 0
    %522 = vmatprep.subr.bf16.mxu0 0
    %523 = vmatpush1.bf16.msra.mxu0 0
    %524 = vmatprep.subr.bf16.mxu0 0
    %525 = vmatpush1.bf16.msra.mxu0 0
    %526 = vmatprep.subr.bf16.mxu0 0
    %527 = vmatpush1.bf16.msra.mxu0 0
    %528 = vmatprep.subr.bf16.mxu0 0
    %529 = vmatpush1.bf16.msra.mxu0 0
    %530 = vmatprep.subr.bf16.mxu0 0
    %531 = vmatpush1.bf16.msra.mxu0 0
    %532 = vmatprep.subr.bf16.mxu0 0
    %533 = vmatpush1.bf16.msra.mxu0 0
    %534 = vmatprep.subr.bf16.mxu0 0
    %535 = vmatpush1.bf16.msra.mxu0 0
    %536 = vmatprep.subr.bf16.mxu0 0
    %537 = vmatpush1.bf16.msra.mxu0 0
    %538 = vmatprep.subr.bf16.mxu0 0
    %539 = vmatpush1.bf16.msra.mxu0 0
    %540 = vmatprep.mubr.bf16.mxu0 0
    %541 = vmatmul.mubr.bf16.gmra.mrb[0].mxu0 %v278
    %v542 = vpop.f32.mrb[0].mxu0
    %v543 = vadd.f32 0.0, %v542
    %v544 = vpop.f32.mrb[0].mxu0
    %v545 = vadd.f32 0.0, %v544
    %v546 = vpop.f32.mrb[0].mxu0
    %v547 = vadd.f32 0.0, %v546
    %v548 = vpop.f32.mrb[0].mxu0
    %v549 = vadd.f32 0.0, %v548
    %550 = vmatprep.mubr.bf16.mxu0 0
    %551 = vmatmul.mubr.bf16.gmra.mrb[0].mxu0 %v281
    %v552 = vpop.f32.mrb[0].mxu0
    %v553 = vadd.f32 0.0, %v552
    %v554 = vpop.f32.mrb[0].mxu0
    %v555 = vadd.f32 0.0, %v554
    %v556 = vpop.f32.mrb[0].mxu0
    %v557 = vadd.f32 0.0, %v556
    %v558 = vpop.f32.mrb[0].mxu0
    %v559 = vadd.f32 0.0, %v558
    %560 = vmatprep.mubr.bf16.mxu0 0
    %561 = vmatmul.mubr.bf16.gmra.mrb[0].mxu0 %v284
    %v562 = vpop.f32.mrb[0].mxu0
    %v563 = vadd.f32 0.0, %v562
    %v564 = vpop.f32.mrb[0].mxu0
    %v565 = vadd.f32 0.0, %v564
    %v566 = vpop.f32.mrb[0].mxu0
    %v567 = vadd.f32 0.0, %v566
    %v568 = vpop.f32.mrb[0].mxu0
    %v569 = vadd.f32 0.0, %v568
    %570 = vmatprep.mubr.bf16.mxu0 0
    %571 = vmatmul.mubr.bf16.gmra.mrb[0].mxu0 %v287
    %v572 = vpop.f32.mrb[0].mxu0
    %v573 = vadd.f32 0.0, %v572
    %v574 = vpop.f32.mrb[0].mxu0
    %v575 = vadd.f32 0.0, %v574
    %v576 = vpop.f32.mrb[0].mxu0
    %v577 = vadd.f32 0.0, %v576
    %v578 = vpop.f32.mrb[0].mxu0
    %v579 = vadd.f32 0.0, %v578
    %580 = vdwg.mxu0
    %v581 = vunpack.c.l.bf16 %v56
    %v582 = vunpack.c.h.bf16 %v56
    %v583 = vunpack.c.l.bf16 %v57
    %v584 = vunpack.c.h.bf16 %v57
    %v585 = vunpack.c.l.bf16 %v58
    %v586 = vunpack.c.h.bf16 %v58
    %v587 = vunpack.c.l.bf16 %v59
    %v588 = vunpack.c.h.bf16 %v59
    %v589 = vunpack.c.l.bf16 %v60
    %v590 = vunpack.c.h.bf16 %v60
    %v591 = vunpack.c.l.bf16 %v61
    %v592 = vunpack.c.h.bf16 %v61
    %v593 = vunpack.c.l.bf16 %v62
    %v594 = vunpack.c.h.bf16 %v62
    %v595 = vunpack.c.l.bf16 %v63
    %v596 = vunpack.c.h.bf16 %v63
    %v597 = vunpack.c.l.bf16 %v64
    %v598 = vunpack.c.h.bf16 %v64
    %v599 = vunpack.c.l.bf16 %v65
    %v600 = vunpack.c.h.bf16 %v65
    %v601 = vunpack.c.l.bf16 %v66
    %v602 = vunpack.c.h.bf16 %v66
    %v603 = vunpack.c.l.bf16 %v67
    %v604 = vunpack.c.h.bf16 %v67
    %v605 = vunpack.c.l.bf16 %v68
    %v606 = vunpack.c.h.bf16 %v68
    %v607 = vunpack.c.l.bf16 %v69
    %v608 = vunpack.c.h.bf16 %v69
    %v609 = vunpack.c.l.bf16 %v70
    %v610 = vunpack.c.h.bf16 %v70
    %v611 = vunpack.c.l.bf16 %v71
    %v612 = vunpack.c.h.bf16 %v71
    %v613 = vunpack.c.l.bf16 %v72
    %v614 = vunpack.c.h.bf16 %v72
    %v615 = vunpack.c.l.bf16 %v73
    %v616 = vunpack.c.h.bf16 %v73
    %v617 = vunpack.c.l.bf16 %v74
    %v618 = vunpack.c.h.bf16 %v74
    %v619 = vunpack.c.l.bf16 %v75
    %v620 = vunpack.c.h.bf16 %v75
    %v621 = vunpack.c.l.bf16 %v76
    %v622 = vunpack.c.h.bf16 %v76
    %v623 = vunpack.c.l.bf16 %v77
    %v624 = vunpack.c.h.bf16 %v77
    %v625 = vunpack.c.l.bf16 %v78
    %v626 = vunpack.c.h.bf16 %v78
    %v627 = vunpack.c.l.bf16 %v79
    %v628 = vunpack.c.h.bf16 %v79
    %v629 = vunpack.c.l.bf16 %v80
    %v630 = vunpack.c.h.bf16 %v80
    %v631 = vunpack.c.l.bf16 %v81
    %v632 = vunpack.c.h.bf16 %v81
    %v633 = vunpack.c.l.bf16 %v82
    %v634 = vunpack.c.h.bf16 %v82
    %v635 = vunpack.c.l.bf16 %v83
    %v636 = vunpack.c.h.bf16 %v83
    %v637 = vunpack.c.l.bf16 %v84
    %v638 = vunpack.c.h.bf16 %v84
    %v639 = vunpack.c.l.bf16 %v85
    %v640 = vunpack.c.h.bf16 %v85
    %v641 = vunpack.c.l.bf16 %v86
    %v642 = vunpack.c.h.bf16 %v86
    %v643 = vunpack.c.l.bf16 %v87
    %v644 = vunpack.c.h.bf16 %v87
    %v645 = vsub.f32 %v324, %v581
    %v646 = vsub.f32 %v326, %v582
    %v647 = vsub.f32 %v397, %v583
    %v648 = vsub.f32 %v399, %v584
    %v649 = vsub.f32 %v470, %v585
    %v650 = vsub.f32 %v472, %v586
    %v651 = vsub.f32 %v543, %v587
    %v652 = vsub.f32 %v545, %v588
    %v653 = vsub.f32 %v328, %v589
    %v654 = vsub.f32 %v330, %v590
    %v655 = vsub.f32 %v401, %v591
    %v656 = vsub.f32 %v403, %v592
    %v657 = vsub.f32 %v474, %v593
    %v658 = vsub.f32 %v476, %v594
    %v659 = vsub.f32 %v547, %v595
    %v660 = vsub.f32 %v549, %v596
    %v661 = vsub.f32 %v334, %v597
    %v662 = vsub.f32 %v336, %v598
    %v663 = vsub.f32 %v407, %v599
    %v664 = vsub.f32 %v409, %v600
    %v665 = vsub.f32 %v480, %v601
    %v666 = vsub.f32 %v482, %v602
    %v667 = vsub.f32 %v553, %v603
    %v668 = vsub.f32 %v555, %v604
    %v669 = vsub.f32 %v338, %v605
    %v670 = vsub.f32 %v340, %v606
    %v671 = vsub.f32 %v411, %v607
    %v672 = vsub.f32 %v413, %v608
    %v673 = vsub.f32 %v484, %v609
    %v674 = vsub.f32 %v486, %v610
    %v675 = vsub.f32 %v557, %v611
    %v676 = vsub.f32 %v559, %v612
    %v677 = vsub.f32 %v344, %v613
    %v678 = vsub.f32 %v346, %v614
    %v679 = vsub.f32 %v417, %v615
    %v680 = vsub.f32 %v419, %v616
    %v681 = vsub.f32 %v490, %v617
    %v682 = vsub.f32 %v492, %v618
    %v683 = vsub.f32 %v563, %v619
    %v684 = vsub.f32 %v565, %v620
    %v685 = vsub.f32 %v348, %v621
    %v686 = vsub.f32 %v350, %v622
    %v687 = vsub.f32 %v421, %v623
    %v688 = vsub.f32 %v423, %v624
    %v689 = vsub.f32 %v494, %v625
    %v690 = vsub.f32 %v496, %v626
    %v691 = vsub.f32 %v567, %v627
    %v692 = vsub.f32 %v569, %v628
    %v693 = vsub.f32 %v354, %v629
    %v694 = vsub.f32 %v356, %v630
    %v695 = vsub.f32 %v427, %v631
    %v696 = vsub.f32 %v429, %v632
    %v697 = vsub.f32 %v500, %v633
    %v698 = vsub.f32 %v502, %v634
    %v699 = vsub.f32 %v573, %v635
    %v700 = vsub.f32 %v575, %v636
    %v701 = vsub.f32 %v358, %v637
    %v702 = vsub.f32 %v360, %v638
    %v703 = vsub.f32 %v431, %v639
    %v704 = vsub.f32 %v433, %v640
    %v705 = vsub.f32 %v504, %v641
    %v706 = vsub.f32 %v506, %v642
    %v707 = vsub.f32 %v577, %v643
    %v708 = vsub.f32 %v579, %v644
    %v709 = vld [vmem:[#allocation5] sm:$0xf]
    %v710 = vld [vmem:[#allocation5 + $0x4] sm:$0xf]
    %v711 = vld [vmem:[#allocation5 + $0x8] sm:$0xf]
    %v712 = vld [vmem:[#allocation5 + $0xc] sm:$0xf]
    %v713 = vpack.c.bf16 %v653, %v645
    %v714 = vpack.c.bf16 %v654, %v646
    %v715 = vpack.c.bf16 %v655, %v647
    %v716 = vpack.c.bf16 %v656, %v648
    %v717 = vpack.c.bf16 %v657, %v649
    %v718 = vpack.c.bf16 %v658, %v650
    %v719 = vpack.c.bf16 %v659, %v651
    %v720 = vpack.c.bf16 %v660, %v652
    %v721 = vpack.c.bf16 %v669, %v661
    %v722 = vpack.c.bf16 %v670, %v662
    %v723 = vpack.c.bf16 %v671, %v663
    %v724 = vpack.c.bf16 %v672, %v664
    %v725 = vpack.c.bf16 %v673, %v665
    %v726 = vpack.c.bf16 %v674, %v666
    %v727 = vpack.c.bf16 %v675, %v667
    %v728 = vpack.c.bf16 %v676, %v668
    %v729 = vpack.c.bf16 %v685, %v677
    %v730 = vpack.c.bf16 %v686, %v678
    %v731 = vpack.c.bf16 %v687, %v679
    %v732 = vpack.c.bf16 %v688, %v680
    %v733 = vpack.c.bf16 %v689, %v681
    %v734 = vpack.c.bf16 %v690, %v682
    %v735 = vpack.c.bf16 %v691, %v683
    %v736 = vpack.c.bf16 %v692, %v684
    %v737 = vpack.c.bf16 %v701, %v693
    %v738 = vpack.c.bf16 %v702, %v694
    %v739 = vpack.c.bf16 %v703, %v695
    %v740 = vpack.c.bf16 %v704, %v696
    %v741 = vpack.c.bf16 %v705, %v697
    %v742 = vpack.c.bf16 %v706, %v698
    %v743 = vpack.c.bf16 %v707, %v699
    %v744 = vpack.c.bf16 %v708, %v700
    %v745 = vld [vmem:[%s3] sm:$0xff]
    %v746 = vld [vmem:[%s3 + $0x8] sm:$0xff]
    %v747 = vld [vmem:[%s3 + $0x10] sm:$0xff]
    %v748 = vld [vmem:[%s3 + $0x18] sm:$0xff]
    %750 = vset.pattern.permute.xlu0 0
    %751 = vperm.xlu0 %750, %v745
    %v752 = vpop.permute.xlu0 %751
    %755 = vset.pattern.permute.xlu0 0
    %756 = vperm.xlu0 %755, %v746
    %v757 = vpop.permute.xlu0 %756
    %760 = vset.pattern.permute.xlu0 0
    %761 = vperm.xlu0 %760, %v747
    %v762 = vpop.permute.xlu0 %761
    %765 = vset.pattern.permute.xlu0 0
    %766 = vperm.xlu0 %765, %v748
    %v767 = vpop.permute.xlu0 %766
    %v773 = vunpack.c.l.b16 %v709
    %v774 = vunpack.c.l.b16 %v710
    %v775 = vunpack.c.l.b16 %v711
    %v776 = vunpack.c.l.b16 %v712
    %v777 = vpack.c.b16 %v774, %v773
    %v778 = vpack.c.b16 %v776, %v775
    %v780 = vsel %vm276, %v777, 0
    %v783 = vsel %vm276, %v778, 0
    %785 = vmatprep.subr.bf16.mxu0 %v714
    %786 = vmatpush1.bf16.msra.mxu0 %v713
    %787 = vmatprep.subr.bf16.mxu0 %v722
    %788 = vmatpush1.bf16.msra.mxu0 %v721
    %789 = vmatprep.subr.bf16.mxu0 %v730
    %790 = vmatpush1.bf16.msra.mxu0 %v729
    %791 = vmatprep.subr.bf16.mxu0 %v738
    %792 = vmatpush1.bf16.msra.mxu0 %v737
    %793 = vmatprep.subr.bf16.mxu0 0
    %794 = vmatpush1.bf16.msra.mxu0 0
    %795 = vmatprep.subr.bf16.mxu0 0
    %796 = vmatpush1.bf16.msra.mxu0 0
    %797 = vmatprep.subr.bf16.mxu0 0
    %798 = vmatpush1.bf16.msra.mxu0 0
    %799 = vmatprep.subr.bf16.mxu0 0
    %800 = vmatpush1.bf16.msra.mxu0 0
    %801 = vmatprep.subr.bf16.mxu0 0
    %802 = vmatpush1.bf16.msra.mxu0 0
    %803 = vmatprep.subr.bf16.mxu0 0
    %804 = vmatpush1.bf16.msra.mxu0 0
    %805 = vmatprep.subr.bf16.mxu0 0
    %806 = vmatpush1.bf16.msra.mxu0 0
    %807 = vmatprep.subr.bf16.mxu0 0
    %808 = vmatpush1.bf16.msra.mxu0 0
    %809 = vmatprep.subr.bf16.mxu0 0
    %810 = vmatpush1.bf16.msra.mxu0 0
    %811 = vmatprep.subr.bf16.mxu0 0
    %812 = vmatpush1.bf16.msra.mxu0 0
    %813 = vmatprep.subr.bf16.mxu0 0
    %814 = vmatpush1.bf16.msra.mxu0 0
    %815 = vmatprep.subr.bf16.mxu0 0
    %816 = vmatpush1.bf16.msra.mxu0 0
    %817 = vmatprep.mubr.bf16.mxu0 0
    %818 = vmatmul.mubr.bf16.gmra.mrb[0].mxu0 %v780
    %v819 = vpop.f32.mrb[0].mxu0
    %v820 = vadd.f32 %v752, %v819
    %v821 = vpop.f32.mrb[0].mxu0
    %v822 = vadd.f32 %v752, %v821
    %v823 = vpop.f32.mrb[0].mxu0
    %v824 = vadd.f32 %v757, %v823
    %v825 = vpop.f32.mrb[0].mxu0
    %v826 = vadd.f32 %v757, %v825
    %827 = vmatprep.mubr.bf16.mxu0 0
    %828 = vmatmul.mubr.bf16.gmra.mrb[0].mxu0 %v783
    %v829 = vpop.f32.mrb[0].mxu0
    %v830 = vadd.f32 %v762, %v829
    %v831 = vpop.f32.mrb[0].mxu0
    %v832 = vadd.f32 %v762, %v831
    %v833 = vpop.f32.mrb[0].mxu0
    %v834 = vadd.f32 %v767, %v833
    %v835 = vpop.f32.mrb[0].mxu0
    %v836 = vadd.f32 %v767, %v835
    %837 = vdwg.mxu0
    %838 = vmatprep.subr.bf16.mxu0 %v716
    %839 = vmatpush1.bf16.msra.mxu0 %v715
    %840 = vmatprep.subr.bf16.mxu0 %v724
    %841 = vmatpush1.bf16.msra.mxu0 %v723
    %842 = vmatprep.subr.bf16.mxu0 %v732
    %843 = vmatpush1.bf16.msra.mxu0 %v731
    %844 = vmatprep.subr.bf16.mxu0 %v740
    %845 = vmatpush1.bf16.msra.mxu0 %v739
    %846 = vmatprep.subr.bf16.mxu0 0
    %847 = vmatpush1.bf16.msra.mxu0 0
    %848 = vmatprep.subr.bf16.mxu0 0
    %849 = vmatpush1.bf16.msra.mxu0 0
    %850 = vmatprep.subr.bf16.mxu0 0
    %851 = vmatpush1.bf16.msra.mxu0 0
    %852 = vmatprep.subr.bf16.mxu0 0
    %853 = vmatpush1.bf16.msra.mxu0 0
    %854 = vmatprep.subr.bf16.mxu0 0
    %855 = vmatpush1.bf16.msra.mxu0 0
    %856 = vmatprep.subr.bf16.mxu0 0
    %857 = vmatpush1.bf16.msra.mxu0 0
    %858 = vmatprep.subr.bf16.mxu0 0
    %859 = vmatpush1.bf16.msra.mxu0 0
    %860 = vmatprep.subr.bf16.mxu0 0
    %861 = vmatpush1.bf16.msra.mxu0 0
    %862 = vmatprep.subr.bf16.mxu0 0
    %863 = vmatpush1.bf16.msra.mxu0 0
    %864 = vmatprep.subr.bf16.mxu0 0
    %865 = vmatpush1.bf16.msra.mxu0 0
    %866 = vmatprep.subr.bf16.mxu0 0
    %867 = vmatpush1.bf16.msra.mxu0 0
    %868 = vmatprep.subr.bf16.mxu0 0
    %869 = vmatpush1.bf16.msra.mxu0 0
    %870 = vmatprep.mubr.bf16.mxu0 0
    %871 = vmatmul.mubr.bf16.gmra.mrb[0].mxu0 %v780
    %v872 = vpop.f32.mrb[0].mxu0
    %v873 = vadd.f32 %v752, %v872
    %v874 = vpop.f32.mrb[0].mxu0
    %v875 = vadd.f32 %v752, %v874
    %v876 = vpop.f32.mrb[0].mxu0
    %v877 = vadd.f32 %v757, %v876
    %v878 = vpop.f32.mrb[0].mxu0
    %v879 = vadd.f32 %v757, %v878
    %880 = vmatprep.mubr.bf16.mxu0 0
    %881 = vmatmul.mubr.bf16.gmra.mrb[0].mxu0 %v783
    %v882 = vpop.f32.mrb[0].mxu0
    %v883 = vadd.f32 %v762, %v882
    %v884 = vpop.f32.mrb[0].mxu0
    %v885 = vadd.f32 %v762, %v884
    %v886 = vpop.f32.mrb[0].mxu0
    %v887 = vadd.f32 %v767, %v886
    %v888 = vpop.f32.mrb[0].mxu0
    %v889 = vadd.f32 %v767, %v888
    %890 = vdwg.mxu0
    %891 = vmatprep.subr.bf16.mxu0 %v718
    %892 = vmatpush1.bf16.msra.mxu0 %v717
    %893 = vmatprep.subr.bf16.mxu0 %v726
    %894 = vmatpush1.bf16.msra.mxu0 %v725
    %895 = vmatprep.subr.bf16.mxu0 %v734
    %896 = vmatpush1.bf16.msra.mxu0 %v733
    %897 = vmatprep.subr.bf16.mxu0 %v742
    %898 = vmatpush1.bf16.msra.mxu0 %v741
    %899 = vmatprep.subr.bf16.mxu0 0
    %900 = vmatpush1.bf16.msra.mxu0 0
    %901 = vmatprep.subr.bf16.mxu0 0
    %902 = vmatpush1.bf16.msra.mxu0 0
    %903 = vmatprep.subr.bf16.mxu0 0
    %904 = vmatpush1.bf16.msra.mxu0 0
    %905 = vmatprep.subr.bf16.mxu0 0
    %906 = vmatpush1.bf16.msra.mxu0 0
    %907 = vmatprep.subr.bf16.mxu0 0
    %908 = vmatpush1.bf16.msra.mxu0 0
    %909 = vmatprep.subr.bf16.mxu0 0
    %910 = vmatpush1.bf16.msra.mxu0 0
    %911 = vmatprep.subr.bf16.mxu0 0
    %912 = vmatpush1.bf16.msra.mxu0 0
    %913 = vmatprep.subr.bf16.mxu0 0
    %914 = vmatpush1.bf16.msra.mxu0 0
    %915 = vmatprep.subr.bf16.mxu0 0
    %916 = vmatpush1.bf16.msra.mxu0 0
    %917 = vmatprep.subr.bf16.mxu0 0
    %918 = vmatpush1.bf16.msra.mxu0 0
    %919 = vmatprep.subr.bf16.mxu0 0
    %920 = vmatpush1.bf16.msra.mxu0 0
    %921 = vmatprep.subr.bf16.mxu0 0
    %922 = vmatpush1.bf16.msra.mxu0 0
    %923 = vmatprep.mubr.bf16.mxu0 0
    %924 = vmatmul.mubr.bf16.gmra.mrb[0].mxu0 %v780
    %v925 = vpop.f32.mrb[0].mxu0
    %v926 = vadd.f32 %v752, %v925
    %v927 = vpop.f32.mrb[0].mxu0
    %v928 = vadd.f32 %v752, %v927
    %v929 = vpop.f32.mrb[0].mxu0
    %v930 = vadd.f32 %v757, %v929
    %v931 = vpop.f32.mrb[0].mxu0
    %v932 = vadd.f32 %v757, %v931
    %933 = vmatprep.mubr.bf16.mxu0 0
    %934 = vmatmul.mubr.bf16.gmra.mrb[0].mxu0 %v783
    %v935 = vpop.f32.mrb[0].mxu0
    %v936 = vadd.f32 %v762, %v935
    %v937 = vpop.f32.mrb[0].mxu0
    %v938 = vadd.f32 %v762, %v937
    %v939 = vpop.f32.mrb[0].mxu0
    %v940 = vadd.f32 %v767, %v939
    %v941 = vpop.f32.mrb[0].mxu0
    %v942 = vadd.f32 %v767, %v941
    %943 = vdwg.mxu0
    %944 = vmatprep.subr.bf16.mxu0 %v720
    %945 = vmatpush1.bf16.msra.mxu0 %v719
    %946 = vmatprep.subr.bf16.mxu0 %v728
    %947 = vmatpush1.bf16.msra.mxu0 %v727
    %948 = vmatprep.subr.bf16.mxu0 %v736
    %949 = vmatpush1.bf16.msra.mxu0 %v735
    %950 = vmatprep.subr.bf16.mxu0 %v744
    %951 = vmatpush1.bf16.msra.mxu0 %v743
    %952 = vmatprep.subr.bf16.mxu0 0
    %953 = vmatpush1.bf16.msra.mxu0 0
    %954 = vmatprep.subr.bf16.mxu0 0
    %955 = vmatpush1.bf16.msra.mxu0 0
    %956 = vmatprep.subr.bf16.mxu0 0
    %957 = vmatpush1.bf16.msra.mxu0 0
    %958 = vmatprep.subr.bf16.mxu0 0
    %959 = vmatpush1.bf16.msra.mxu0 0
    %960 = vmatprep.subr.bf16.mxu0 0
    %961 = vmatpush1.bf16.msra.mxu0 0
    %962 = vmatprep.subr.bf16.mxu0 0
    %963 = vmatpush1.bf16.msra.mxu0 0
    %964 = vmatprep.subr.bf16.mxu0 0
    %965 = vmatpush1.bf16.msra.mxu0 0
    %966 = vmatprep.subr.bf16.mxu0 0
    %967 = vmatpush1.bf16.msra.mxu0 0
    %968 = vmatprep.subr.bf16.mxu0 0
    %969 = vmatpush1.bf16.msra.mxu0 0
    %970 = vmatprep.subr.bf16.mxu0 0
    %971 = vmatpush1.bf16.msra.mxu0 0
    %972 = vmatprep.subr.bf16.mxu0 0
    %973 = vmatpush1.bf16.msra.mxu0 0
    %974 = vmatprep.subr.bf16.mxu0 0
    %975 = vmatpush1.bf16.msra.mxu0 0
    %976 = vmatprep.mubr.bf16.mxu0 0
    %977 = vmatmul.mubr.bf16.gmra.mrb[0].mxu0 %v780
    %v978 = vpop.f32.mrb[0].mxu0
    %v979 = vadd.f32 %v752, %v978
    %v980 = vpop.f32.mrb[0].mxu0
    %v981 = vadd.f32 %v752, %v980
    %v982 = vpop.f32.mrb[0].mxu0
    %v983 = vadd.f32 %v757, %v982
    %v984 = vpop.f32.mrb[0].mxu0
    %v985 = vadd.f32 %v757, %v984
    %986 = vmatprep.mubr.bf16.mxu0 0
    %987 = vmatmul.mubr.bf16.gmra.mrb[0].mxu0 %v783
    %v988 = vpop.f32.mrb[0].mxu0
    %v989 = vadd.f32 %v762, %v988
    %v990 = vpop.f32.mrb[0].mxu0
    %v991 = vadd.f32 %v762, %v990
    %v992 = vpop.f32.mrb[0].mxu0
    %v993 = vadd.f32 %v767, %v992
    %v994 = vpop.f32.mrb[0].mxu0
    %v995 = vadd.f32 %v767, %v994
    %996 = vdwg.mxu0
    %v997 = vmul.f32 %v820, 0.5
    %v998 = vmul.f32 %v822, 0.5
    %v999 = vmul.f32 %v873, 0.5
    %v1000 = vmul.f32 %v875, 0.5
    %v1001 = vmul.f32 %v926, 0.5
    %v1002 = vmul.f32 %v928, 0.5
    %v1003 = vmul.f32 %v979, 0.5
    %v1004 = vmul.f32 %v981, 0.5
    %v1005 = vmul.f32 %v824, 0.5
    %v1006 = vmul.f32 %v826, 0.5
    %v1007 = vmul.f32 %v877, 0.5
    %v1008 = vmul.f32 %v879, 0.5
    %v1009 = vmul.f32 %v930, 0.5
    %v1010 = vmul.f32 %v932, 0.5
    %v1011 = vmul.f32 %v983, 0.5
    %v1012 = vmul.f32 %v985, 0.5
    %v1013 = vmul.f32 %v830, 0.5
    %v1014 = vmul.f32 %v832, 0.5
    %v1015 = vmul.f32 %v883, 0.5
    %v1016 = vmul.f32 %v885, 0.5
    %v1017 = vmul.f32 %v936, 0.5
    %v1018 = vmul.f32 %v938, 0.5
    %v1019 = vmul.f32 %v989, 0.5
    %v1020 = vmul.f32 %v991, 0.5
    %v1021 = vmul.f32 %v834, 0.5
    %v1022 = vmul.f32 %v836, 0.5
    %v1023 = vmul.f32 %v887, 0.5
    %v1024 = vmul.f32 %v889, 0.5
    %v1025 = vmul.f32 %v940, 0.5
    %v1026 = vmul.f32 %v942, 0.5
    %v1027 = vmul.f32 %v993, 0.5
    %v1028 = vmul.f32 %v995, 0.5
    %v1029 = vmul.f32 %v820, 0.044715
    %v1030 = vmul.f32 %v822, 0.044715
    %v1031 = vmul.f32 %v873, 0.044715
    %v1032 = vmul.f32 %v875, 0.044715
    %v1033 = vmul.f32 %v926, 0.044715
    %v1034 = vmul.f32 %v928, 0.044715
    %v1035 = vmul.f32 %v979, 0.044715
    %v1036 = vmul.f32 %v981, 0.044715
    %v1037 = vmul.f32 %v824, 0.044715
    %v1038 = vmul.f32 %v826, 0.044715
    %v1039 = vmul.f32 %v877, 0.044715
    %v1040 = vmul.f32 %v879, 0.044715
    %v1041 = vmul.f32 %v930, 0.044715
    %v1042 = vmul.f32 %v932, 0.044715
    %v1043 = vmul.f32 %v983, 0.044715
    %v1044 = vmul.f32 %v985, 0.044715
    %v1045 = vmul.f32 %v830, 0.044715
    %v1046 = vmul.f32 %v832, 0.044715
    %v1047 = vmul.f32 %v883, 0.044715
    %v1048 = vmul.f32 %v885, 0.044715
    %v1049 = vmul.f32 %v936, 0.044715
    %v1050 = vmul.f32 %v938, 0.044715
    %v1051 = vmul.f32 %v989, 0.044715
    %v1052 = vmul.f32 %v991, 0.044715
    %v1053 = vmul.f32 %v834, 0.044715
    %v1054 = vmul.f32 %v836, 0.044715
    %v1055 = vmul.f32 %v887, 0.044715
    %v1056 = vmul.f32 %v889, 0.044715
    %v1057 = vmul.f32 %v940, 0.044715
    %v1058 = vmul.f32 %v942, 0.044715
    %v1059 = vmul.f32 %v993, 0.044715
    %v1060 = vmul.f32 %v995, 0.044715
    %v1061 = vmul.f32 %v1029, %v820
    %v1062 = vmul.f32 %v1030, %v822
    %v1063 = vmul.f32 %v1031, %v873
    %v1064 = vmul.f32 %v1032, %v875
    %v1065 = vmul.f32 %v1033, %v926
    %v1066 = vmul.f32 %v1034, %v928
    %v1067 = vmul.f32 %v1035, %v979
    %v1068 = vmul.f32 %v1036, %v981
    %v1069 = vmul.f32 %v1037, %v824
    %v1070 = vmul.f32 %v1038, %v826
    %v1071 = vmul.f32 %v1039, %v877
    %v1072 = vmul.f32 %v1040, %v879
    %v1073 = vmul.f32 %v1041, %v930
    %v1074 = vmul.f32 %v1042, %v932
    %v1075 = vmul.f32 %v1043, %v983
    %v1076 = vmul.f32 %v1044, %v985
    %v1077 = vmul.f32 %v1045, %v830
    %v1078 = vmul.f32 %v1046, %v832
    %v1079 = vmul.f32 %v1047, %v883
    %v1080 = vmul.f32 %v1048, %v885
    %v1081 = vmul.f32 %v1049, %v936
    %v1082 = vmul.f32 %v1050, %v938
    %v1083 = vmul.f32 %v1051, %v989
    %v1084 = vmul.f32 %v1052, %v991
    %v1085 = vmul.f32 %v1053, %v834
    %v1086 = vmul.f32 %v1054, %v836
    %v1087 = vmul.f32 %v1055, %v887
    %v1088 = vmul.f32 %v1056, %v889
    %v1089 = vmul.f32 %v1057, %v940
    %v1090 = vmul.f32 %v1058, %v942
    %v1091 = vmul.f32 %v1059, %v993
    %v1092 = vmul.f32 %v1060, %v995
    %v1093 = vmul.f32 %v1061, %v820
    %v1094 = vmul.f32 %v1062, %v822
    %v1095 = vmul.f32 %v1063, %v873
    %v1096 = vmul.f32 %v1064, %v875
    %v1097 = vmul.f32 %v1065, %v926
    %v1098 = vmul.f32 %v1066, %v928
    %v1099 = vmul.f32 %v1067, %v979
    %v1100 = vmul.f32 %v1068, %v981
    %v1101 = vmul.f32 %v1069, %v824
    %v1102 = vmul.f32 %v1070, %v826
    %v1103 = vmul.f32 %v1071, %v877
    %v1104 = vmul.f32 %v1072, %v879
    %v1105 = vmul.f32 %v1073, %v930
    %v1106 = vmul.f32 %v1074, %v932
    %v1107 = vmul.f32 %v1075, %v983
    %v1108 = vmul.f32 %v1076, %v985
    %v1109 = vmul.f32 %v1077, %v830
    %v1110 = vmul.f32 %v1078, %v832
    %v1111 = vmul.f32 %v1079, %v883
    %v1112 = vmul.f32 %v1080, %v885
    %v1113 = vmul.f32 %v1081, %v936
    %v1114 = vmul.f32 %v1082, %v938
    %v1115 = vmul.f32 %v1083, %v989
    %v1116 = vmul.f32 %v1084, %v991
    %v1117 = vmul.f32 %v1085, %v834
    %v1118 = vmul.f32 %v1086, %v836
    %v1119 = vmul.f32 %v1087, %v887
    %v1120 = vmul.f32 %v1088, %v889
    %v1121 = vmul.f32 %v1089, %v940
    %v1122 = vmul.f32 %v1090, %v942
    %v1123 = vmul.f32 %v1091, %v993
    %v1124 = vmul.f32 %v1092, %v995
    %v1125 = vadd.f32 %v820, %v1093
    %v1126 = vadd.f32 %v822, %v1094
    %v1127 = vadd.f32 %v873, %v1095
    %v1128 = vadd.f32 %v875, %v1096
    %v1129 = vadd.f32 %v926, %v1097
    %v1130 = vadd.f32 %v928, %v1098
    %v1131 = vadd.f32 %v979, %v1099
    %v1132 = vadd.f32 %v981, %v1100
    %v1133 = vadd.f32 %v824, %v1101
    %v1134 = vadd.f32 %v826, %v1102
    %v1135 = vadd.f32 %v877, %v1103
    %v1136 = vadd.f32 %v879, %v1104
    %v1137 = vadd.f32 %v930, %v1105
    %v1138 = vadd.f32 %v932, %v1106
    %v1139 = vadd.f32 %v983, %v1107
    %v1140 = vadd.f32 %v985, %v1108
    %v1141 = vadd.f32 %v830, %v1109
    %v1142 = vadd.f32 %v832, %v1110
    %v1143 = vadd.f32 %v883, %v1111
    %v1144 = vadd.f32 %v885, %v1112
    %v1145 = vadd.f32 %v936, %v1113
    %v1146 = vadd.f32 %v938, %v1114
    %v1147 = vadd.f32 %v989, %v1115
    %v1148 = vadd.f32 %v991, %v1116
    %v1149 = vadd.f32 %v834, %v1117
    %v1150 = vadd.f32 %v836, %v1118
    %v1151 = vadd.f32 %v887, %v1119
    %v1152 = vadd.f32 %v889, %v1120
    %v1153 = vadd.f32 %v940, %v1121
    %v1154 = vadd.f32 %v942, %v1122
    %v1155 = vadd.f32 %v993, %v1123
    %v1156 = vadd.f32 %v995, %v1124
    %v1157 = vmul.f32 %v1125, 0.7978846
    %v1158 = vmul.f32 %v1126, 0.7978846
    %v1159 = vmul.f32 %v1127, 0.7978846
    %v1160 = vmul.f32 %v1128, 0.7978846
    %v1161 = vmul.f32 %v1129, 0.7978846
    %v1162 = vmul.f32 %v1130, 0.7978846
    %v1163 = vmul.f32 %v1131, 0.7978846
    %v1164 = vmul.f32 %v1132, 0.7978846
    %v1165 = vmul.f32 %v1133, 0.7978846
    %v1166 = vmul.f32 %v1134, 0.7978846
    %v1167 = vmul.f32 %v1135, 0.7978846
    %v1168 = vmul.f32 %v1136, 0.7978846
    %v1169 = vmul.f32 %v1137, 0.7978846
    %v1170 = vmul.f32 %v1138, 0.7978846
    %v1171 = vmul.f32 %v1139, 0.7978846
    %v1172 = vmul.f32 %v1140, 0.7978846
    %v1173 = vmul.f32 %v1141, 0.7978846
    %v1174 = vmul.f32 %v1142, 0.7978846
    %v1175 = vmul.f32 %v1143, 0.7978846
    %v1176 = vmul.f32 %v1144, 0.7978846
    %v1177 = vmul.f32 %v1145, 0.7978846
    %v1178 = vmul.f32 %v1146, 0.7978846
    %v1179 = vmul.f32 %v1147, 0.7978846
    %v1180 = vmul.f32 %v1148, 0.7978846
    %v1181 = vmul.f32 %v1149, 0.7978846
    %v1182 = vmul.f32 %v1150, 0.7978846
    %v1183 = vmul.f32 %v1151, 0.7978846
    %v1184 = vmul.f32 %v1152, 0.7978846
    %v1185 = vmul.f32 %v1153, 0.7978846
    %v1186 = vmul.f32 %v1154, 0.7978846
    %v1187 = vmul.f32 %v1155, 0.7978846
    %v1188 = vmul.f32 %v1156, 0.7978846
    %v1189 = vtanh.pop %v1157
    %v1190 = vtanh.pop %v1158
    %v1191 = vtanh.pop %v1159
    %v1192 = vtanh.pop %v1160
    %v1193 = vtanh.pop %v1161
    %v1194 = vtanh.pop %v1162
    %v1195 = vtanh.pop %v1163
    %v1196 = vtanh.pop %v1164
    %v1197 = vtanh.pop %v1165
    %v1198 = vtanh.pop %v1166
    %v1199 = vtanh.pop %v1167
    %v1200 = vtanh.pop %v1168
    %v1201 = vtanh.pop %v1169
    %v1202 = vtanh.pop %v1170
    %v1203 = vtanh.pop %v1171
    %v1204 = vtanh.pop %v1172
    %v1205 = vtanh.pop %v1173
    %v1206 = vtanh.pop %v1174
    %v1207 = vtanh.pop %v1175
    %v1208 = vtanh.pop %v1176
    %v1209 = vtanh.pop %v1177
    %v1210 = vtanh.pop %v1178
    %v1211 = vtanh.pop %v1179
    %v1212 = vtanh.pop %v1180
    %v1213 = vtanh.pop %v1181
    %v1214 = vtanh.pop %v1182
    %v1215 = vtanh.pop %v1183
    %v1216 = vtanh.pop %v1184
    %v1217 = vtanh.pop %v1185
    %v1218 = vtanh.pop %v1186
    %v1219 = vtanh.pop %v1187
    %v1220 = vtanh.pop %v1188
    %v1221 = vadd.f32 %v1189, 1.0
    %v1222 = vadd.f32 %v1190, 1.0
    %v1223 = vadd.f32 %v1191, 1.0
    %v1224 = vadd.f32 %v1192, 1.0
    %v1225 = vadd.f32 %v1193, 1.0
    %v1226 = vadd.f32 %v1194, 1.0
    %v1227 = vadd.f32 %v1195, 1.0
    %v1228 = vadd.f32 %v1196, 1.0
    %v1229 = vadd.f32 %v1197, 1.0
    %v1230 = vadd.f32 %v1198, 1.0
    %v1231 = vadd.f32 %v1199, 1.0
    %v1232 = vadd.f32 %v1200, 1.0
    %v1233 = vadd.f32 %v1201, 1.0
    %v1234 = vadd.f32 %v1202, 1.0
    %v1235 = vadd.f32 %v1203, 1.0
    %v1236 = vadd.f32 %v1204, 1.0
    %v1237 = vadd.f32 %v1205, 1.0
    %v1238 = vadd.f32 %v1206, 1.0
    %v1239 = vadd.f32 %v1207, 1.0
    %v1240 = vadd.f32 %v1208, 1.0
    %v1241 = vadd.f32 %v1209, 1.0
    %v1242 = vadd.f32 %v1210, 1.0
    %v1243 = vadd.f32 %v1211, 1.0
    %v1244 = vadd.f32 %v1212, 1.0
    %v1245 = vadd.f32 %v1213, 1.0
    %v1246 = vadd.f32 %v1214, 1.0
    %v1247 = vadd.f32 %v1215, 1.0
    %v1248 = vadd.f32 %v1216, 1.0
    %v1249 = vadd.f32 %v1217, 1.0
    %v1250 = vadd.f32 %v1218, 1.0
    %v1251 = vadd.f32 %v1219, 1.0
    %v1252 = vadd.f32 %v1220, 1.0
    %v1253 = vmul.f32 %v997, %v1221
    %v1254 = vmul.f32 %v998, %v1222
    %v1255 = vmul.f32 %v999, %v1223
    %v1256 = vmul.f32 %v1000, %v1224
    %v1257 = vmul.f32 %v1001, %v1225
    %v1258 = vmul.f32 %v1002, %v1226
    %v1259 = vmul.f32 %v1003, %v1227
    %v1260 = vmul.f32 %v1004, %v1228
    %v1261 = vmul.f32 %v1005, %v1229
    %v1262 = vmul.f32 %v1006, %v1230
    %v1263 = vmul.f32 %v1007, %v1231
    %v1264 = vmul.f32 %v1008, %v1232
    %v1265 = vmul.f32 %v1009, %v1233
    %v1266 = vmul.f32 %v1010, %v1234
    %v1267 = vmul.f32 %v1011, %v1235
    %v1268 = vmul.f32 %v1012, %v1236
    %v1269 = vmul.f32 %v1013, %v1237
    %v1270 = vmul.f32 %v1014, %v1238
    %v1271 = vmul.f32 %v1015, %v1239
    %v1272 = vmul.f32 %v1016, %v1240
    %v1273 = vmul.f32 %v1017, %v1241
    %v1274 = vmul.f32 %v1018, %v1242
    %v1275 = vmul.f32 %v1019, %v1243
    %v1276 = vmul.f32 %v1020, %v1244
    %v1277 = vmul.f32 %v1021, %v1245
    %v1278 = vmul.f32 %v1022, %v1246
    %v1279 = vmul.f32 %v1023, %v1247
    %v1280 = vmul.f32 %v1024, %v1248
    %v1281 = vmul.f32 %v1025, %v1249
    %v1282 = vmul.f32 %v1026, %v1250
    %v1283 = vmul.f32 %v1027, %v1251
    %v1284 = vmul.f32 %v1028, %v1252
    %v1285 = vld [vmem:[%s4] sm:$0xf]
    %v1286 = vld [vmem:[%s4 + $0x4] sm:$0xf]
    %v1287 = vld [vmem:[%s4 + $0x8] sm:$0xf]
    %v1288 = vld [vmem:[%s4 + $0xc] sm:$0xf]
    %v1289 = vld [vmem:[%s4 + $0x10] sm:$0xf]
    %v1290 = vld [vmem:[%s4 + $0x14] sm:$0xf]
    %v1291 = vld [vmem:[%s4 + $0x18] sm:$0xf]
    %v1292 = vld [vmem:[%s4 + $0x1c] sm:$0xf]
    %v1293 = vpack.c.bf16 %v1261, %v1253
    %v1294 = vpack.c.bf16 %v1262, %v1254
    %v1295 = vpack.c.bf16 %v1263, %v1255
    %v1296 = vpack.c.bf16 %v1264, %v1256
    %v1297 = vpack.c.bf16 %v1265, %v1257
    %v1298 = vpack.c.bf16 %v1266, %v1258
    %v1299 = vpack.c.bf16 %v1267, %v1259
    %v1300 = vpack.c.bf16 %v1268, %v1260
    %v1301 = vpack.c.bf16 %v1277, %v1269
    %v1302 = vpack.c.bf16 %v1278, %v1270
    %v1303 = vpack.c.bf16 %v1279, %v1271
    %v1304 = vpack.c.bf16 %v1280, %v1272
    %v1305 = vpack.c.bf16 %v1281, %v1273
    %v1306 = vpack.c.bf16 %v1282, %v1274
    %v1307 = vpack.c.bf16 %v1283, %v1275
    %v1308 = vpack.c.bf16 %v1284, %v1276
    %v1309 = vld [vmem:[%s5] sm:$0xff]
    %v1310 = vld [vmem:[%s5 + $0x8] sm:$0xff]
    %v1311 = vld [vmem:[%s5 + $0x10] sm:$0xff]
    %v1312 = vld [vmem:[%s5 + $0x18] sm:$0xff]
    %v1313 = vld [vmem:[%s5 + $0x20] sm:$0xff]
    %v1314 = vld [vmem:[%s5 + $0x28] sm:$0xff]
    %v1315 = vld [vmem:[%s5 + $0x30] sm:$0xff]
    %v1316 = vld [vmem:[%s5 + $0x38] sm:$0xff]
    %1318 = vset.pattern.permute.xlu0 0
    %1319 = vperm.xlu0 %1318, %v1309
    %v1320 = vpop.permute.xlu0 %1319
    %1323 = vset.pattern.permute.xlu0 0
    %1324 = vperm.xlu0 %1323, %v1310
    %v1325 = vpop.permute.xlu0 %1324
    %1328 = vset.pattern.permute.xlu0 0
    %1329 = vperm.xlu0 %1328, %v1311
    %v1330 = vpop.permute.xlu0 %1329
    %1333 = vset.pattern.permute.xlu0 0
    %1334 = vperm.xlu0 %1333, %v1312
    %v1335 = vpop.permute.xlu0 %1334
    %1338 = vset.pattern.permute.xlu0 0
    %1339 = vperm.xlu0 %1338, %v1313
    %v1340 = vpop.permute.xlu0 %1339
    %1343 = vset.pattern.permute.xlu0 0
    %1344 = vperm.xlu0 %1343, %v1314
    %v1345 = vpop.permute.xlu0 %1344
    %1348 = vset.pattern.permute.xlu0 0
    %1349 = vperm.xlu0 %1348, %v1315
    %v1350 = vpop.permute.xlu0 %1349
    %1353 = vset.pattern.permute.xlu0 0
    %1354 = vperm.xlu0 %1353, %v1316
    %v1355 = vpop.permute.xlu0 %1354
    %v1365 = vunpack.c.l.b16 %v1285
    %v1366 = vunpack.c.l.b16 %v1286
    %v1367 = vunpack.c.l.b16 %v1287
    %v1368 = vunpack.c.l.b16 %v1288
    %v1369 = vunpack.c.l.b16 %v1289
    %v1370 = vunpack.c.l.b16 %v1290
    %v1371 = vunpack.c.l.b16 %v1291
    %v1372 = vunpack.c.l.b16 %v1292
    %v1373 = vpack.c.b16 %v1366, %v1365
    %v1374 = vpack.c.b16 %v1368, %v1367
    %v1375 = vpack.c.b16 %v1370, %v1369
    %v1376 = vpack.c.b16 %v1372, %v1371
    %vm1377 = vcmask 261120
    %v1379 = vsel %vm1377, %v1373, 0
    %v1382 = vsel %vm1377, %v1374, 0
    %v1385 = vsel %vm1377, %v1375, 0
    %v1388 = vsel %vm1377, %v1376, 0
    %1390 = vmatprep.subr.bf16.mxu0 %v1294
    %1391 = vmatpush1.bf16.msra.mxu0 %v1293
    %1392 = vmatprep.subr.bf16.mxu0 %v1302
    %1393 = vmatpush1.bf16.msra.mxu0 %v1301
    %1394 = vmatprep.subr.bf16.mxu0 0
    %1395 = vmatpush1.bf16.msra.mxu0 0
    %1396 = vmatprep.subr.bf16.mxu0 0
    %1397 = vmatpush1.bf16.msra.mxu0 0
    %1398 = vmatprep.subr.bf16.mxu0 0
    %1399 = vmatpush1.bf16.msra.mxu0 0
    %1400 = vmatprep.subr.bf16.mxu0 0
    %1401 = vmatpush1.bf16.msra.mxu0 0
    %1402 = vmatprep.subr.bf16.mxu0 0
    %1403 = vmatpush1.bf16.msra.mxu0 0
    %1404 = vmatprep.subr.bf16.mxu0 0
    %1405 = vmatpush1.bf16.msra.mxu0 0
    %1406 = vmatprep.subr.bf16.mxu0 0
    %1407 = vmatpush1.bf16.msra.mxu0 0
    %1408 = vmatprep.subr.bf16.mxu0 0
    %1409 = vmatpush1.bf16.msra.mxu0 0
    %1410 = vmatprep.subr.bf16.mxu0 0
    %1411 = vmatpush1.bf16.msra.mxu0 0
    %1412 = vmatprep.subr.bf16.mxu0 0
    %1413 = vmatpush1.bf16.msra.mxu0 0
    %1414 = vmatprep.subr.bf16.mxu0 0
    %1415 = vmatpush1.bf16.msra.mxu0 0
    %1416 = vmatprep.subr.bf16.mxu0 0
    %1417 = vmatpush1.bf16.msra.mxu0 0
    %1418 = vmatprep.subr.bf16.mxu0 0
    %1419 = vmatpush1.bf16.msra.mxu0 0
    %1420 = vmatprep.subr.bf16.mxu0 0
    %1421 = vmatpush1.bf16.msra.mxu0 0
    %1422 = vmatprep.mubr.bf16.mxu0 0
    %1423 = vmatmul.mubr.bf16.gmra.mrb[0].mxu0 %v1379
    %v1424 = vpop.f32.mrb[0].mxu0
    %v1425 = vadd.f32 %v1320, %v1424
    %v1426 = vpop.f32.mrb[0].mxu0
    %v1427 = vadd.f32 %v1320, %v1426
    %v1428 = vpop.f32.mrb[0].mxu0
    %v1429 = vadd.f32 %v1325, %v1428
    %v1430 = vpop.f32.mrb[0].mxu0
    %v1431 = vadd.f32 %v1325, %v1430
    %1432 = vmatprep.mubr.bf16.mxu0 0
    %1433 = vmatmul.mubr.bf16.gmra.mrb[0].mxu0 %v1382
    %v1434 = vpop.f32.mrb[0].mxu0
    %v1435 = vadd.f32 %v1330, %v1434
    %v1436 = vpop.f32.mrb[0].mxu0
    %v1437 = vadd.f32 %v1330, %v1436
    %v1438 = vpop.f32.mrb[0].mxu0
    %v1439 = vadd.f32 %v1335, %v1438
    %v1440 = vpop.f32.mrb[0].mxu0
    %v1441 = vadd.f32 %v1335, %v1440
    %1442 = vmatprep.mubr.bf16.mxu0 0
    %1443 = vmatmul.mubr.bf16.gmra.mrb[0].mxu0 %v1385
    %v1444 = vpop.f32.mrb[0].mxu0
    %v1445 = vadd.f32 %v1340, %v1444
    %v1446 = vpop.f32.mrb[0].mxu0
    %v1447 = vadd.f32 %v1340, %v1446
    %v1448 = vpop.f32.mrb[0].mxu0
    %v1449 = vadd.f32 %v1345, %v1448
    %v1450 = vpop.f32.mrb[0].mxu0
    %v1451 = vadd.f32 %v1345, %v1450
    %1452 = vmatprep.mubr.bf16.mxu0 0
    %1453 = vmatmul.mubr.bf16.gmra.mrb[0].mxu0 %v1388
    %v1454 = vpop.f32.mrb[0].mxu0
    %v1455 = vadd.f32 %v1350, %v1454
    %v1456 = vpop.f32.mrb[0].mxu0
    %v1457 = vadd.f32 %v1350, %v1456
    %v1458 = vpop.f32.mrb[0].mxu0
    %v1459 = vadd.f32 %v1355, %v1458
    %v1460 = vpop.f32.mrb[0].mxu0
    %v1461 = vadd.f32 %v1355, %v1460
    %1462 = vdwg.mxu0
    %1463 = vmatprep.subr.bf16.mxu0 %v1296
    %1464 = vmatpush1.bf16.msra.mxu0 %v1295
    %1465 = vmatprep.subr.bf16.mxu0 %v1304
    %1466 = vmatpush1.bf16.msra.mxu0 %v1303
    %1467 = vmatprep.subr.bf16.mxu0 0
    %1468 = vmatpush1.bf16.msra.mxu0 0
    %1469 = vmatprep.subr.bf16.mxu0 0
    %1470 = vmatpush1.bf16.msra.mxu0 0
    %1471 = vmatprep.subr.bf16.mxu0 0
    %1472 = vmatpush1.bf16.msra.mxu0 0
    %1473 = vmatprep.subr.bf16.mxu0 0
    %1474 = vmatpush1.bf16.msra.mxu0 0
    %1475 = vmatprep.subr.bf16.mxu0 0
    %1476 = vmatpush1.bf16.msra.mxu0 0
    %1477 = vmatprep.subr.bf16.mxu0 0
    %1478 = vmatpush1.bf16.msra.mxu0 0
    %1479 = vmatprep.subr.bf16.mxu0 0
    %1480 = vmatpush1.bf16.msra.mxu0 0
    %1481 = vmatprep.subr.bf16.mxu0 0
    %1482 = vmatpush1.bf16.msra.mxu0 0
    %1483 = vmatprep.subr.bf16.mxu0 0
    %1484 = vmatpush1.bf16.msra.mxu0 0
    %1485 = vmatprep.subr.bf16.mxu0 0
    %1486 = vmatpush1.bf16.msra.mxu0 0
    %1487 = vmatprep.subr.bf16.mxu0 0
    %1488 = vmatpush1.bf16.msra.mxu0 0
    %1489 = vmatprep.subr.bf16.mxu0 0
    %1490 = vmatpush1.bf16.msra.mxu0 0
    %1491 = vmatprep.subr.bf16.mxu0 0
    %1492 = vmatpush1.bf16.msra.mxu0 0
    %1493 = vmatprep.subr.bf16.mxu0 0
    %1494 = vmatpush1.bf16.msra.mxu0 0
    %1495 = vmatprep.mubr.bf16.mxu0 0
    %1496 = vmatmul.mubr.bf16.gmra.mrb[0].mxu0 %v1379
    %v1497 = vpop.f32.mrb[0].mxu0
    %v1498 = vadd.f32 %v1320, %v1497
    %v1499 = vpop.f32.mrb[0].mxu0
    %v1500 = vadd.f32 %v1320, %v1499
    %v1501 = vpop.f32.mrb[0].mxu0
    %v1502 = vadd.f32 %v1325, %v1501
    %v1503 = vpop.f32.mrb[0].mxu0
    %v1504 = vadd.f32 %v1325, %v1503
    %1505 = vmatprep.mubr.bf16.mxu0 0
    %1506 = vmatmul.mubr.bf16.gmra.mrb[0].mxu0 %v1382
    %v1507 = vpop.f32.mrb[0].mxu0
    %v1508 = vadd.f32 %v1330, %v1507
    %v1509 = vpop.f32.mrb[0].mxu0
    %v1510 = vadd.f32 %v1330, %v1509
    %v1511 = vpop.f32.mrb[0].mxu0
    %v1512 = vadd.f32 %v1335, %v1511
    %v1513 = vpop.f32.mrb[0].mxu0
    %v1514 = vadd.f32 %v1335, %v1513
    %1515 = vmatprep.mubr.bf16.mxu0 0
    %1516 = vmatmul.mubr.bf16.gmra.mrb[0].mxu0 %v1385
    %v1517 = vpop.f32.mrb[0].mxu0
    %v1518 = vadd.f32 %v1340, %v1517
    %v1519 = vpop.f32.mrb[0].mxu0
    %v1520 = vadd.f32 %v1340, %v1519
    %v1521 = vpop.f32.mrb[0].mxu0
    %v1522 = vadd.f32 %v1345, %v1521
    %v1523 = vpop.f32.mrb[0].mxu0
    %v1524 = vadd.f32 %v1345, %v1523
    %1525 = vmatprep.mubr.bf16.mxu0 0
    %1526 = vmatmul.mubr.bf16.gmra.mrb[0].mxu0 %v1388
    %v1527 = vpop.f32.mrb[0].mxu0
    %v1528 = vadd.f32 %v1350, %v1527
    %v1529 = vpop.f32.mrb[0].mxu0
    %v1530 = vadd.f32 %v1350, %v1529
    %v1531 = vpop.f32.mrb[0].mxu0
    %v1532 = vadd.f32 %v1355, %v1531
    %v1533 = vpop.f32.mrb[0].mxu0
    %v1534 = vadd.f32 %v1355, %v1533
    %1535 = vdwg.mxu0
    %1536 = vmatprep.subr.bf16.mxu0 %v1298
    %1537 = vmatpush1.bf16.msra.mxu0 %v1297
    %1538 = vmatprep.subr.bf16.mxu0 %v1306
    %1539 = vmatpush1.bf16.msra.mxu0 %v1305
    %1540 = vmatprep.subr.bf16.mxu0 0
    %1541 = vmatpush1.bf16.msra.mxu0 0
    %1542 = vmatprep.subr.bf16.mxu0 0
    %1543 = vmatpush1.bf16.msra.mxu0 0
    %1544 = vmatprep.subr.bf16.mxu0 0
    %1545 = vmatpush1.bf16.msra.mxu0 0
    %1546 = vmatprep.subr.bf16.mxu0 0
    %1547 = vmatpush1.bf16.msra.mxu0 0
    %1548 = vmatprep.subr.bf16.mxu0 0
    %1549 = vmatpush1.bf16.msra.mxu0 0
    %1550 = vmatprep.subr.bf16.mxu0 0
    %1551 = vmatpush1.bf16.msra.mxu0 0
    %1552 = vmatprep.subr.bf16.mxu0 0
    %1553 = vmatpush1.bf16.msra.mxu0 0
    %1554 = vmatprep.subr.bf16.mxu0 0
    %1555 = vmatpush1.bf16.msra.mxu0 0
    %1556 = vmatprep.subr.bf16.mxu0 0
    %1557 = vmatpush1.bf16.msra.mxu0 0
    %1558 = vmatprep.subr.bf16.mxu0 0
    %1559 = vmatpush1.bf16.msra.mxu0 0
    %1560 = vmatprep.subr.bf16.mxu0 0
    %1561 = vmatpush1.bf16.msra.mxu0 0
    %1562 = vmatprep.subr.bf16.mxu0 0
    %1563 = vmatpush1.bf16.msra.mxu0 0
    %1564 = vmatprep.subr.bf16.mxu0 0
    %1565 = vmatpush1.bf16.msra.mxu0 0
    %1566 = vmatprep.subr.bf16.mxu0 0
    %1567 = vmatpush1.bf16.msra.mxu0 0
    %1568 = vmatprep.mubr.bf16.mxu0 0
    %1569 = vmatmul.mubr.bf16.gmra.mrb[0].mxu0 %v1379
    %v1570 = vpop.f32.mrb[0].mxu0
    %v1571 = vadd.f32 %v1320, %v1570
    %v1572 = vpop.f32.mrb[0].mxu0
    %v1573 = vadd.f32 %v1320, %v1572
    %v1574 = vpop.f32.mrb[0].mxu0
    %v1575 = vadd.f32 %v1325, %v1574
    %v1576 = vpop.f32.mrb[0].mxu0
    %v1577 = vadd.f32 %v1325, %v1576
    %1578 = vmatprep.mubr.bf16.mxu0 0
    %1579 = vmatmul.mubr.bf16.gmra.mrb[0].mxu0 %v1382
    %v1580 = vpop.f32.mrb[0].mxu0
    %v1581 = vadd.f32 %v1330, %v1580
    %v1582 = vpop.f32.mrb[0].mxu0
    %v1583 = vadd.f32 %v1330, %v1582
    %v1584 = vpop.f32.mrb[0].mxu0
    %v1585 = vadd.f32 %v1335, %v1584
    %v1586 = vpop.f32.mrb[0].mxu0
    %v1587 = vadd.f32 %v1335, %v1586
    %1588 = vmatprep.mubr.bf16.mxu0 0
    %1589 = vmatmul.mubr.bf16.gmra.mrb[0].mxu0 %v1385
    %v1590 = vpop.f32.mrb[0].mxu0
    %v1591 = vadd.f32 %v1340, %v1590
    %v1592 = vpop.f32.mrb[0].mxu0
    %v1593 = vadd.f32 %v1340, %v1592
    %v1594 = vpop.f32.mrb[0].mxu0
    %v1595 = vadd.f32 %v1345, %v1594
    %v1596 = vpop.f32.mrb[0].mxu0
    %v1597 = vadd.f32 %v1345, %v1596
    %1598 = vmatprep.mubr.bf16.mxu0 0
    %1599 = vmatmul.mubr.bf16.gmra.mrb[0].mxu0 %v1388
    %v1600 = vpop.f32.mrb[0].mxu0
    %v1601 = vadd.f32 %v1350, %v1600
    %v1602 = vpop.f32.mrb[0].mxu0
    %v1603 = vadd.f32 %v1350, %v1602
    %v1604 = vpop.f32.mrb[0].mxu0
    %v1605 = vadd.f32 %v1355, %v1604
    %v1606 = vpop.f32.mrb[0].mxu0
    %v1607 = vadd.f32 %v1355, %v1606
    %1608 = vdwg.mxu0
    %1609 = vmatprep.subr.bf16.mxu0 %v1300
    %1610 = vmatpush1.bf16.msra.mxu0 %v1299
    %1611 = vmatprep.subr.bf16.mxu0 %v1308
    %1612 = vmatpush1.bf16.msra.mxu0 %v1307
    %1613 = vmatprep.subr.bf16.mxu0 0
    %1614 = vmatpush1.bf16.msra.mxu0 0
    %1615 = vmatprep.subr.bf16.mxu0 0
    %1616 = vmatpush1.bf16.msra.mxu0 0
    %1617 = vmatprep.subr.bf16.mxu0 0
    %1618 = vmatpush1.bf16.msra.mxu0 0
    %1619 = vmatprep.subr.bf16.mxu0 0
    %1620 = vmatpush1.bf16.msra.mxu0 0
    %1621 = vmatprep.subr.bf16.mxu0 0
    %1622 = vmatpush1.bf16.msra.mxu0 0
    %1623 = vmatprep.subr.bf16.mxu0 0
    %1624 = vmatpush1.bf16.msra.mxu0 0
    %1625 = vmatprep.subr.bf16.mxu0 0
    %1626 = vmatpush1.bf16.msra.mxu0 0
    %1627 = vmatprep.subr.bf16.mxu0 0
    %1628 = vmatpush1.bf16.msra.mxu0 0
    %1629 = vmatprep.subr.bf16.mxu0 0
    %1630 = vmatpush1.bf16.msra.mxu0 0
    %1631 = vmatprep.subr.bf16.mxu0 0
    %1632 = vmatpush1.bf16.msra.mxu0 0
    %1633 = vmatprep.subr.bf16.mxu0 0
    %1634 = vmatpush1.bf16.msra.mxu0 0
    %1635 = vmatprep.subr.bf16.mxu0 0
    %1636 = vmatpush1.bf16.msra.mxu0 0
    %1637 = vmatprep.subr.bf16.mxu0 0
    %1638 = vmatpush1.bf16.msra.mxu0 0
    %1639 = vmatprep.subr.bf16.mxu0 0
    %1640 = vmatpush1.bf16.msra.mxu0 0
    %1641 = vmatprep.mubr.bf16.mxu0 0
    %1642 = vmatmul.mubr.bf16.gmra.mrb[0].mxu0 %v1379
    %v1643 = vpop.f32.mrb[0].mxu0
    %v1644 = vadd.f32 %v1320, %v1643
    %v1645 = vpop.f32.mrb[0].mxu0
    %v1646 = vadd.f32 %v1320, %v1645
    %v1647 = vpop.f32.mrb[0].mxu0
    %v1648 = vadd.f32 %v1325, %v1647
    %v1649 = vpop.f32.mrb[0].mxu0
    %v1650 = vadd.f32 %v1325, %v1649
    %1651 = vmatprep.mubr.bf16.mxu0 0
    %1652 = vmatmul.mubr.bf16.gmra.mrb[0].mxu0 %v1382
    %v1653 = vpop.f32.mrb[0].mxu0
    %v1654 = vadd.f32 %v1330, %v1653
    %v1655 = vpop.f32.mrb[0].mxu0
    %v1656 = vadd.f32 %v1330, %v1655
    %v1657 = vpop.f32.mrb[0].mxu0
    %v1658 = vadd.f32 %v1335, %v1657
    %v1659 = vpop.f32.mrb[0].mxu0
    %v1660 = vadd.f32 %v1335, %v1659
    %1661 = vmatprep.mubr.bf16.mxu0 0
    %1662 = vmatmul.mubr.bf16.gmra.mrb[0].mxu0 %v1385
    %v1663 = vpop.f32.mrb[0].mxu0
    %v1664 = vadd.f32 %v1340, %v1663
    %v1665 = vpop.f32.mrb[0].mxu0
    %v1666 = vadd.f32 %v1340, %v1665
    %v1667 = vpop.f32.mrb[0].mxu0
    %v1668 = vadd.f32 %v1345, %v1667
    %v1669 = vpop.f32.mrb[0].mxu0
    %v1670 = vadd.f32 %v1345, %v1669
    %1671 = vmatprep.mubr.bf16.mxu0 0
    %1672 = vmatmul.mubr.bf16.gmra.mrb[0].mxu0 %v1388
    %v1673 = vpop.f32.mrb[0].mxu0
    %v1674 = vadd.f32 %v1350, %v1673
    %v1675 = vpop.f32.mrb[0].mxu0
    %v1676 = vadd.f32 %v1350, %v1675
    %v1677 = vpop.f32.mrb[0].mxu0
    %v1678 = vadd.f32 %v1355, %v1677
    %v1679 = vpop.f32.mrb[0].mxu0
    %v1680 = vadd.f32 %v1355, %v1679
    %1681 = vdwg.mxu0
    %1682 = vst [vmem:[#allocation7] sm:$0xff] %v1425
    %1683 = vst [vmem:[#allocation7 + $0x8] sm:$0xff] %v1427
    %1684 = vst [vmem:[#allocation7 + $0x10] sm:$0xff] %v1498
    %1685 = vst [vmem:[#allocation7 + $0x18] sm:$0xff] %v1500
    %1686 = vst [vmem:[#allocation7 + $0x20] sm:$0xff] %v1429
    %1687 = vst [vmem:[#allocation7 + $0x28] sm:$0xff] %v1431
    %1688 = vst [vmem:[#allocation7 + $0x30] sm:$0xff] %v1502
    %1689 = vst [vmem:[#allocation7 + $0x38] sm:$0xff] %v1504
    %1690 = vst [vmem:[#allocation7 + $0x40] sm:$0xff] %v1435
    %1691 = vst [vmem:[#allocation7 + $0x48] sm:$0xff] %v1437
    %1692 = vst [vmem:[#allocation7 + $0x50] sm:$0xff] %v1508
    %1693 = vst [vmem:[#allocation7 + $0x58] sm:$0xff] %v1510
    %1694 = vst [vmem:[#allocation7 + $0x60] sm:$0xff] %v1439
    %1695 = vst [vmem:[#allocation7 + $0x68] sm:$0xff] %v1441
    %1696 = vst [vmem:[#allocation7 + $0x70] sm:$0xff] %v1512
    %1697 = vst [vmem:[#allocation7 + $0x78] sm:$0xff] %v1514
    %1698 = vst [vmem:[#allocation7 + $0x80] sm:$0xff] %v1445
    %1699 = vst [vmem:[#allocation7 + $0x88] sm:$0xff] %v1447
    %1700 = vst [vmem:[#allocation7 + $0x90] sm:$0xff] %v1518
    %1701 = vst [vmem:[#allocation7 + $0x98] sm:$0xff] %v1520
    %1702 = vst [vmem:[#allocation7 + $0xa0] sm:$0xff] %v1449
    %1703 = vst [vmem:[#allocation7 + $0xa8] sm:$0xff] %v1451
    %1704 = vst [vmem:[#allocation7 + $0xb0] sm:$0xff] %v1522
    %1705 = vst [vmem:[#allocation7 + $0xb8] sm:$0xff] %v1524
    %1706 = vst [vmem:[#allocation7 + $0xc0] sm:$0xff] %v1455
    %1707 = vst [vmem:[#allocation7 + $0xc8] sm:$0xff] %v1457
    %1708 = vst [vmem:[#allocation7 + $0xd0] sm:$0xff] %v1528
    %1709 = vst [vmem:[#allocation7 + $0xd8] sm:$0xff] %v1530
    %1710 = vst [vmem:[#allocation7 + $0xe0] sm:$0xff] %v1459
    %1711 = vst [vmem:[#allocation7 + $0xe8] sm:$0xff] %v1461
    %1712 = vst [vmem:[#allocation7 + $0xf0] sm:$0xff] %v1532
    %1713 = vst [vmem:[#allocation7 + $0xf8] sm:$0xff] %v1534
    %s1714 = scalar_lea.vmem [#allocation7], 256
    %1715 = vst [vmem:[%s1714] sm:$0xff] %v1571
    %1716 = vst [vmem:[%s1714 + $0x8] sm:$0xff] %v1573
    %1717 = vst [vmem:[%s1714 + $0x10] sm:$0xff] %v1644
    %1718 = vst [vmem:[%s1714 + $0x18] sm:$0xff] %v1646
    %1719 = vst [vmem:[%s1714 + $0x20] sm:$0xff] %v1575
    %1720 = vst [vmem:[%s1714 + $0x28] sm:$0xff] %v1577
    %1721 = vst [vmem:[%s1714 + $0x30] sm:$0xff] %v1648
    %1722 = vst [vmem:[%s1714 + $0x38] sm:$0xff] %v1650
    %1723 = vst [vmem:[%s1714 + $0x40] sm:$0xff] %v1581
    %1724 = vst [vmem:[%s1714 + $0x48] sm:$0xff] %v1583
    %1725 = vst [vmem:[%s1714 + $0x50] sm:$0xff] %v1654
    %1726 = vst [vmem:[%s1714 + $0x58] sm:$0xff] %v1656
    %1727 = vst [vmem:[%s1714 + $0x60] sm:$0xff] %v1585
    %1728 = vst [vmem:[%s1714 + $0x68] sm:$0xff] %v1587
    %1729 = vst [vmem:[%s1714 + $0x70] sm:$0xff] %v1658
    %1730 = vst [vmem:[%s1714 + $0x78] sm:$0xff] %v1660
    %1731 = vst [vmem:[%s1714 + $0x80] sm:$0xff] %v1591
    %1732 = vst [vmem:[%s1714 + $0x88] sm:$0xff] %v1593
    %1733 = vst [vmem:[%s1714 + $0x90] sm:$0xff] %v1664
    %1734 = vst [vmem:[%s1714 + $0x98] sm:$0xff] %v1666
    %1735 = vst [vmem:[%s1714 + $0xa0] sm:$0xff] %v1595
    %1736 = vst [vmem:[%s1714 + $0xa8] sm:$0xff] %v1597
    %1737 = vst [vmem:[%s1714 + $0xb0] sm:$0xff] %v1668
    %1738 = vst [vmem:[%s1714 + $0xb8] sm:$0xff] %v1670
    %1739 = vst [vmem:[%s1714 + $0xc0] sm:$0xff] %v1601
    %1740 = vst [vmem:[%s1714 + $0xc8] sm:$0xff] %v1603
    %1741 = vst [vmem:[%s1714 + $0xd0] sm:$0xff] %v1674
    %1742 = vst [vmem:[%s1714 + $0xd8] sm:$0xff] %v1676
    %1743 = vst [vmem:[%s1714 + $0xe0] sm:$0xff] %v1605
    %1744 = vst [vmem:[%s1714 + $0xe8] sm:$0xff] %v1607
    %1745 = vst [vmem:[%s1714 + $0xf0] sm:$0xff] %v1678
    %1746 = vst [vmem:[%s1714 + $0xf8] sm:$0xff] %v1680
    %v1747 = vld [vmem:[#allocation5] sm:$0xf]
    %v1748 = vld [vmem:[#allocation5 + $0x4] sm:$0xf]
    %v1749 = vld [vmem:[#allocation5 + $0x8] sm:$0xf]
    %v1750 = vld [vmem:[#allocation5 + $0xc] sm:$0xf]
    %v1751 = vld [vmem:[%s3] sm:$0xff]
    %v1752 = vld [vmem:[%s3 + $0x8] sm:$0xff]
    %v1753 = vld [vmem:[%s3 + $0x10] sm:$0xff]
    %v1754 = vld [vmem:[%s3 + $0x18] sm:$0xff]
    %1756 = vset.pattern.permute.xlu0 0
    %1757 = vperm.xlu0 %1756, %v1751
    %v1758 = vpop.permute.xlu0 %1757
    %1761 = vset.pattern.permute.xlu0 0
    %1762 = vperm.xlu0 %1761, %v1752
    %v1763 = vpop.permute.xlu0 %1762
    %1766 = vset.pattern.permute.xlu0 0
    %1767 = vperm.xlu0 %1766, %v1753
    %v1768 = vpop.permute.xlu0 %1767
    %1771 = vset.pattern.permute.xlu0 0
    %1772 = vperm.xlu0 %1771, %v1754
    %v1773 = vpop.permute.xlu0 %1772
    %v1779 = vunpack.c.l.b16 %v1747
    %v1780 = vunpack.c.l.b16 %v1748
    %v1781 = vunpack.c.l.b16 %v1749
    %v1782 = vunpack.c.l.b16 %v1750
    %v1783 = vpack.c.b16 %v1780, %v1779
    %v1784 = vpack.c.b16 %v1782, %v1781
    %v1786 = vsel %vm276, %v1783, 0
    %v1789 = vsel %vm276, %v1784, 0
    %1791 = vmatprep.subr.bf16.mxu0 %v213
    %1792 = vmatpush1.bf16.msra.mxu0 %v212
    %1793 = vmatprep.subr.bf16.mxu0 %v221
    %1794 = vmatpush1.bf16.msra.mxu0 %v220
    %1795 = vmatprep.subr.bf16.mxu0 %v229
    %1796 = vmatpush1.bf16.msra.mxu0 %v228
    %1797 = vmatprep.subr.bf16.mxu0 %v237
    %1798 = vmatpush1.bf16.msra.mxu0 %v236
    %1799 = vmatprep.subr.bf16.mxu0 0
    %1800 = vmatpush1.bf16.msra.mxu0 0
    %1801 = vmatprep.subr.bf16.mxu0 0
    %1802 = vmatpush1.bf16.msra.mxu0 0
    %1803 = vmatprep.subr.bf16.mxu0 0
    %1804 = vmatpush1.bf16.msra.mxu0 0
    %1805 = vmatprep.subr.bf16.mxu0 0
    %1806 = vmatpush1.bf16.msra.mxu0 0
    %1807 = vmatprep.subr.bf16.mxu0 0
    %1808 = vmatpush1.bf16.msra.mxu0 0
    %1809 = vmatprep.subr.bf16.mxu0 0
    %1810 = vmatpush1.bf16.msra.mxu0 0
    %1811 = vmatprep.subr.bf16.mxu0 0
    %1812 = vmatpush1.bf16.msra.mxu0 0
    %1813 = vmatprep.subr.bf16.mxu0 0
    %1814 = vmatpush1.bf16.msra.mxu0 0
    %1815 = vmatprep.subr.bf16.mxu0 0
    %1816 = vmatpush1.bf16.msra.mxu0 0
    %1817 = vmatprep.subr.bf16.mxu0 0
    %1818 = vmatpush1.bf16.msra.mxu0 0
    %1819 = vmatprep.subr.bf16.mxu0 0
    %1820 = vmatpush1.bf16.msra.mxu0 0
    %1821 = vmatprep.subr.bf16.mxu0 0
    %1822 = vmatpush1.bf16.msra.mxu0 0
    %1823 = vmatprep.mubr.bf16.mxu0 0
    %1824 = vmatmul.mubr.bf16.gmra.mrb[0].mxu0 %v1786
    %v1825 = vpop.f32.mrb[0].mxu0
    %v1826 = vadd.f32 %v1758, %v1825
    %v1827 = vpop.f32.mrb[0].mxu0
    %v1828 = vadd.f32 %v1758, %v1827
    %v1829 = vpop.f32.mrb[0].mxu0
    %v1830 = vadd.f32 %v1763, %v1829
    %v1831 = vpop.f32.mrb[0].mxu0
    %v1832 = vadd.f32 %v1763, %v1831
    %1833 = vmatprep.mubr.bf16.mxu0 0
    %1834 = vmatmul.mubr.bf16.gmra.mrb[0].mxu0 %v1789
    %v1835 = vpop.f32.mrb[0].mxu0
    %v1836 = vadd.f32 %v1768, %v1835
    %v1837 = vpop.f32.mrb[0].mxu0
    %v1838 = vadd.f32 %v1768, %v1837
    %v1839 = vpop.f32.mrb[0].mxu0
    %v1840 = vadd.f32 %v1773, %v1839
    %v1841 = vpop.f32.mrb[0].mxu0
    %v1842 = vadd.f32 %v1773, %v1841
    %1843 = vdwg.mxu0
    %1844 = vmatprep.subr.bf16.mxu0 %v215
    %1845 = vmatpush1.bf16.msra.mxu0 %v214
    %1846 = vmatprep.subr.bf16.mxu0 %v223
    %1847 = vmatpush1.bf16.msra.mxu0 %v222
    %1848 = vmatprep.subr.bf16.mxu0 %v231
    %1849 = vmatpush1.bf16.msra.mxu0 %v230
    %1850 = vmatprep.subr.bf16.mxu0 %v239
    %1851 = vmatpush1.bf16.msra.mxu0 %v238
    %1852 = vmatprep.subr.bf16.mxu0 0
    %1853 = vmatpush1.bf16.msra.mxu0 0
    %1854 = vmatprep.subr.bf16.mxu0 0
    %1855 = vmatpush1.bf16.msra.mxu0 0
    %1856 = vmatprep.subr.bf16.mxu0 0
    %1857 = vmatpush1.bf16.msra.mxu0 0
    %1858 = vmatprep.subr.bf16.mxu0 0
    %1859 = vmatpush1.bf16.msra.mxu0 0
    %1860 = vmatprep.subr.bf16.mxu0 0
    %1861 = vmatpush1.bf16.msra.mxu0 0
    %1862 = vmatprep.subr.bf16.mxu0 0
    %1863 = vmatpush1.bf16.msra.mxu0 0
    %1864 = vmatprep.subr.bf16.mxu0 0
    %1865 = vmatpush1.bf16.msra.mxu0 0
    %1866 = vmatprep.subr.bf16.mxu0 0
    %1867 = vmatpush1.bf16.msra.mxu0 0
    %1868 = vmatprep.subr.bf16.mxu0 0
    %1869 = vmatpush1.bf16.msra.mxu0 0
    %1870 = vmatprep.subr.bf16.mxu0 0
    %1871 = vmatpush1.bf16.msra.mxu0 0
    %1872 = vmatprep.subr.bf16.mxu0 0
    %1873 = vmatpush1.bf16.msra.mxu0 0
    %1874 = vmatprep.subr.bf16.mxu0 0
    %1875 = vmatpush1.bf16.msra.mxu0 0
    %1876 = vmatprep.mubr.bf16.mxu0 0
    %1877 = vmatmul.mubr.bf16.gmra.mrb[0].mxu0 %v1786
    %v1878 = vpop.f32.mrb[0].mxu0
    %v1879 = vadd.f32 %v1758, %v1878
    %v1880 = vpop.f32.mrb[0].mxu0
    %v1881 = vadd.f32 %v1758, %v1880
    %v1882 = vpop.f32.mrb[0].mxu0
    %v1883 = vadd.f32 %v1763, %v1882
    %v1884 = vpop.f32.mrb[0].mxu0
    %v1885 = vadd.f32 %v1763, %v1884
    %1886 = vmatprep.mubr.bf16.mxu0 0
    %1887 = vmatmul.mubr.bf16.gmra.mrb[0].mxu0 %v1789
    %v1888 = vpop.f32.mrb[0].mxu0
    %v1889 = vadd.f32 %v1768, %v1888
    %v1890 = vpop.f32.mrb[0].mxu0
    %v1891 = vadd.f32 %v1768, %v1890
    %v1892 = vpop.f32.mrb[0].mxu0
    %v1893 = vadd.f32 %v1773, %v1892
    %v1894 = vpop.f32.mrb[0].mxu0
    %v1895 = vadd.f32 %v1773, %v1894
    %1896 = vdwg.mxu0
    %1897 = vmatprep.subr.bf16.mxu0 %v217
    %1898 = vmatpush1.bf16.msra.mxu0 %v216
    %1899 = vmatprep.subr.bf16.mxu0 %v225
    %1900 = vmatpush1.bf16.msra.mxu0 %v224
    %1901 = vmatprep.subr.bf16.mxu0 %v233
    %1902 = vmatpush1.bf16.msra.mxu0 %v232
    %1903 = vmatprep.subr.bf16.mxu0 %v241
    %1904 = vmatpush1.bf16.msra.mxu0 %v240
    %1905 = vmatprep.subr.bf16.mxu0 0
    %1906 = vmatpush1.bf16.msra.mxu0 0
    %1907 = vmatprep.subr.bf16.mxu0 0
    %1908 = vmatpush1.bf16.msra.mxu0 0
    %1909 = vmatprep.subr.bf16.mxu0 0
    %1910 = vmatpush1.bf16.msra.mxu0 0
    %1911 = vmatprep.subr.bf16.mxu0 0
    %1912 = vmatpush1.bf16.msra.mxu0 0
    %1913 = vmatprep.subr.bf16.mxu0 0
    %1914 = vmatpush1.bf16.msra.mxu0 0
    %1915 = vmatprep.subr.bf16.mxu0 0
    %1916 = vmatpush1.bf16.msra.mxu0 0
    %1917 = vmatprep.subr.bf16.mxu0 0
    %1918 = vmatpush1.bf16.msra.mxu0 0
    %1919 = vmatprep.subr.bf16.mxu0 0
    %1920 = vmatpush1.bf16.msra.mxu0 0
    %1921 = vmatprep.subr.bf16.mxu0 0
    %1922 = vmatpush1.bf16.msra.mxu0 0
    %1923 = vmatprep.subr.bf16.mxu0 0
    %1924 = vmatpush1.bf16.msra.mxu0 0
    %1925 = vmatprep.subr.bf16.mxu0 0
    %1926 = vmatpush1.bf16.msra.mxu0 0
    %1927 = vmatprep.subr.bf16.mxu0 0
    %1928 = vmatpush1.bf16.msra.mxu0 0
    %1929 = vmatprep.mubr.bf16.mxu0 0
    %1930 = vmatmul.mubr.bf16.gmra.mrb[0].mxu0 %v1786
    %v1931 = vpop.f32.mrb[0].mxu0
    %v1932 = vadd.f32 %v1758, %v1931
    %v1933 = vpop.f32.mrb[0].mxu0
    %v1934 = vadd.f32 %v1758, %v1933
    %v1935 = vpop.f32.mrb[0].mxu0
    %v1936 = vadd.f32 %v1763, %v1935
    %v1937 = vpop.f32.mrb[0].mxu0
    %v1938 = vadd.f32 %v1763, %v1937
    %1939 = vmatprep.mubr.bf16.mxu0 0
    %1940 = vmatmul.mubr.bf16.gmra.mrb[0].mxu0 %v1789
    %v1941 = vpop.f32.mrb[0].mxu0
    %v1942 = vadd.f32 %v1768, %v1941
    %v1943 = vpop.f32.mrb[0].mxu0
    %v1944 = vadd.f32 %v1768, %v1943
    %v1945 = vpop.f32.mrb[0].mxu0
    %v1946 = vadd.f32 %v1773, %v1945
    %v1947 = vpop.f32.mrb[0].mxu0
    %v1948 = vadd.f32 %v1773, %v1947
    %1949 = vdwg.mxu0
    %1950 = vmatprep.subr.bf16.mxu0 %v219
    %1951 = vmatpush1.bf16.msra.mxu0 %v218
    %1952 = vmatprep.subr.bf16.mxu0 %v227
    %1953 = vmatpush1.bf16.msra.mxu0 %v226
    %1954 = vmatprep.subr.bf16.mxu0 %v235
    %1955 = vmatpush1.bf16.msra.mxu0 %v234
    %1956 = vmatprep.subr.bf16.mxu0 %v243
    %1957 = vmatpush1.bf16.msra.mxu0 %v242
    %1958 = vmatprep.subr.bf16.mxu0 0
    %1959 = vmatpush1.bf16.msra.mxu0 0
    %1960 = vmatprep.subr.bf16.mxu0 0
    %1961 = vmatpush1.bf16.msra.mxu0 0
    %1962 = vmatprep.subr.bf16.mxu0 0
    %1963 = vmatpush1.bf16.msra.mxu0 0
    %1964 = vmatprep.subr.bf16.mxu0 0
    %1965 = vmatpush1.bf16.msra.mxu0 0
    %1966 = vmatprep.subr.bf16.mxu0 0
    %1967 = vmatpush1.bf16.msra.mxu0 0
    %1968 = vmatprep.subr.bf16.mxu0 0
    %1969 = vmatpush1.bf16.msra.mxu0 0
    %1970 = vmatprep.subr.bf16.mxu0 0
    %1971 = vmatpush1.bf16.msra.mxu0 0
    %1972 = vmatprep.subr.bf16.mxu0 0
    %1973 = vmatpush1.bf16.msra.mxu0 0
    %1974 = vmatprep.subr.bf16.mxu0 0
    %1975 = vmatpush1.bf16.msra.mxu0 0
    %1976 = vmatprep.subr.bf16.mxu0 0
    %1977 = vmatpush1.bf16.msra.mxu0 0
    %1978 = vmatprep.subr.bf16.mxu0 0
    %1979 = vmatpush1.bf16.msra.mxu0 0
    %1980 = vmatprep.subr.bf16.mxu0 0
    %1981 = vmatpush1.bf16.msra.mxu0 0
    %1982 = vmatprep.mubr.bf16.mxu0 0
    %1983 = vmatmul.mubr.bf16.gmra.mrb[0].mxu0 %v1786
    %v1984 = vpop.f32.mrb[0].mxu0
    %v1985 = vadd.f32 %v1758, %v1984
    %v1986 = vpop.f32.mrb[0].mxu0
    %v1987 = vadd.f32 %v1758, %v1986
    %v1988 = vpop.f32.mrb[0].mxu0
    %v1989 = vadd.f32 %v1763, %v1988
    %v1990 = vpop.f32.mrb[0].mxu0
    %v1991 = vadd.f32 %v1763, %v1990
    %1992 = vmatprep.mubr.bf16.mxu0 0
    %1993 = vmatmul.mubr.bf16.gmra.mrb[0].mxu0 %v1789
    %v1994 = vpop.f32.mrb[0].mxu0
    %v1995 = vadd.f32 %v1768, %v1994
    %v1996 = vpop.f32.mrb[0].mxu0
    %v1997 = vadd.f32 %v1768, %v1996
    %v1998 = vpop.f32.mrb[0].mxu0
    %v1999 = vadd.f32 %v1773, %v1998
    %v2000 = vpop.f32.mrb[0].mxu0
    %v2001 = vadd.f32 %v1773, %v2000
    %2002 = vdwg.mxu0
    %v2003 = vmul.f32 %v1826, 0.5
    %v2004 = vmul.f32 %v1828, 0.5
    %v2005 = vmul.f32 %v1879, 0.5
    %v2006 = vmul.f32 %v1881, 0.5
    %v2007 = vmul.f32 %v1932, 0.5
    %v2008 = vmul.f32 %v1934, 0.5
    %v2009 = vmul.f32 %v1985, 0.5
    %v2010 = vmul.f32 %v1987, 0.5
    %v2011 = vmul.f32 %v1830, 0.5
    %v2012 = vmul.f32 %v1832, 0.5
    %v2013 = vmul.f32 %v1883, 0.5
    %v2014 = vmul.f32 %v1885, 0.5
    %v2015 = vmul.f32 %v1936, 0.5
    %v2016 = vmul.f32 %v1938, 0.5
    %v2017 = vmul.f32 %v1989, 0.5
    %v2018 = vmul.f32 %v1991, 0.5
    %v2019 = vmul.f32 %v1836, 0.5
    %v2020 = vmul.f32 %v1838, 0.5
    %v2021 = vmul.f32 %v1889, 0.5
    %v2022 = vmul.f32 %v1891, 0.5
    %v2023 = vmul.f32 %v1942, 0.5
    %v2024 = vmul.f32 %v1944, 0.5
    %v2025 = vmul.f32 %v1995, 0.5
    %v2026 = vmul.f32 %v1997, 0.5
    %v2027 = vmul.f32 %v1840, 0.5
    %v2028 = vmul.f32 %v1842, 0.5
    %v2029 = vmul.f32 %v1893, 0.5
    %v2030 = vmul.f32 %v1895, 0.5
    %v2031 = vmul.f32 %v1946, 0.5
    %v2032 = vmul.f32 %v1948, 0.5
    %v2033 = vmul.f32 %v1999, 0.5
    %v2034 = vmul.f32 %v2001, 0.5
    %v2035 = vmul.f32 %v1826, 0.044715
    %v2036 = vmul.f32 %v1828, 0.044715
    %v2037 = vmul.f32 %v1879, 0.044715
    %v2038 = vmul.f32 %v1881, 0.044715
    %v2039 = vmul.f32 %v1932, 0.044715
    %v2040 = vmul.f32 %v1934, 0.044715
    %v2041 = vmul.f32 %v1985, 0.044715
    %v2042 = vmul.f32 %v1987, 0.044715
    %v2043 = vmul.f32 %v1830, 0.044715
    %v2044 = vmul.f32 %v1832, 0.044715
    %v2045 = vmul.f32 %v1883, 0.044715
    %v2046 = vmul.f32 %v1885, 0.044715
    %v2047 = vmul.f32 %v1936, 0.044715
    %v2048 = vmul.f32 %v1938, 0.044715
    %v2049 = vmul.f32 %v1989, 0.044715
    %v2050 = vmul.f32 %v1991, 0.044715
    %v2051 = vmul.f32 %v1836, 0.044715
    %v2052 = vmul.f32 %v1838, 0.044715
    %v2053 = vmul.f32 %v1889, 0.044715
    %v2054 = vmul.f32 %v1891, 0.044715
    %v2055 = vmul.f32 %v1942, 0.044715
    %v2056 = vmul.f32 %v1944, 0.044715
    %v2057 = vmul.f32 %v1995, 0.044715
    %v2058 = vmul.f32 %v1997, 0.044715
    %v2059 = vmul.f32 %v1840, 0.044715
    %v2060 = vmul.f32 %v1842, 0.044715
    %v2061 = vmul.f32 %v1893, 0.044715
    %v2062 = vmul.f32 %v1895, 0.044715
    %v2063 = vmul.f32 %v1946, 0.044715
    %v2064 = vmul.f32 %v1948, 0.044715
    %v2065 = vmul.f32 %v1999, 0.044715
    %v2066 = vmul.f32 %v2001, 0.044715
    %v2067 = vmul.f32 %v2035, %v1826
    %v2068 = vmul.f32 %v2036, %v1828
    %v2069 = vmul.f32 %v2037, %v1879
    %v2070 = vmul.f32 %v2038, %v1881
    %v2071 = vmul.f32 %v2039, %v1932
    %v2072 = vmul.f32 %v2040, %v1934
    %v2073 = vmul.f32 %v2041, %v1985
    %v2074 = vmul.f32 %v2042, %v1987
    %v2075 = vmul.f32 %v2043, %v1830
    %v2076 = vmul.f32 %v2044, %v1832
    %v2077 = vmul.f32 %v2045, %v1883
    %v2078 = vmul.f32 %v2046, %v1885
    %v2079 = vmul.f32 %v2047, %v1936
    %v2080 = vmul.f32 %v2048, %v1938
    %v2081 = vmul.f32 %v2049, %v1989
    %v2082 = vmul.f32 %v2050, %v1991
    %v2083 = vmul.f32 %v2051, %v1836
    %v2084 = vmul.f32 %v2052, %v1838
    %v2085 = vmul.f32 %v2053, %v1889
    %v2086 = vmul.f32 %v2054, %v1891
    %v2087 = vmul.f32 %v2055, %v1942
    %v2088 = vmul.f32 %v2056, %v1944
    %v2089 = vmul.f32 %v2057, %v1995
    %v2090 = vmul.f32 %v2058, %v1997
    %v2091 = vmul.f32 %v2059, %v1840
    %v2092 = vmul.f32 %v2060, %v1842
    %v2093 = vmul.f32 %v2061, %v1893
    %v2094 = vmul.f32 %v2062, %v1895
    %v2095 = vmul.f32 %v2063, %v1946
    %v2096 = vmul.f32 %v2064, %v1948
    %v2097 = vmul.f32 %v2065, %v1999
    %v2098 = vmul.f32 %v2066, %v2001
    %v2099 = vmul.f32 %v2067, %v1826
    %v2100 = vmul.f32 %v2068, %v1828
    %v2101 = vmul.f32 %v2069, %v1879
    %v2102 = vmul.f32 %v2070, %v1881
    %v2103 = vmul.f32 %v2071, %v1932
    %v2104 = vmul.f32 %v2072, %v1934
    %v2105 = vmul.f32 %v2073, %v1985
    %v2106 = vmul.f32 %v2074, %v1987
    %v2107 = vmul.f32 %v2075, %v1830
    %v2108 = vmul.f32 %v2076, %v1832
    %v2109 = vmul.f32 %v2077, %v1883
    %v2110 = vmul.f32 %v2078, %v1885
    %v2111 = vmul.f32 %v2079, %v1936
    %v2112 = vmul.f32 %v2080, %v1938
    %v2113 = vmul.f32 %v2081, %v1989
    %v2114 = vmul.f32 %v2082, %v1991
    %v2115 = vmul.f32 %v2083, %v1836
    %v2116 = vmul.f32 %v2084, %v1838
    %v2117 = vmul.f32 %v2085, %v1889
    %v2118 = vmul.f32 %v2086, %v1891
    %v2119 = vmul.f32 %v2087, %v1942
    %v2120 = vmul.f32 %v2088, %v1944
    %v2121 = vmul.f32 %v2089, %v1995
    %v2122 = vmul.f32 %v2090, %v1997
    %v2123 = vmul.f32 %v2091, %v1840
    %v2124 = vmul.f32 %v2092, %v1842
    %v2125 = vmul.f32 %v2093, %v1893
    %v2126 = vmul.f32 %v2094, %v1895
    %v2127 = vmul.f32 %v2095, %v1946
    %v2128 = vmul.f32 %v2096, %v1948
    %v2129 = vmul.f32 %v2097, %v1999
    %v2130 = vmul.f32 %v2098, %v2001
    %v2131 = vadd.f32 %v1826, %v2099
    %v2132 = vadd.f32 %v1828, %v2100
    %v2133 = vadd.f32 %v1879, %v2101
    %v2134 = vadd.f32 %v1881, %v2102
    %v2135 = vadd.f32 %v1932, %v2103
    %v2136 = vadd.f32 %v1934, %v2104
    %v2137 = vadd.f32 %v1985, %v2105
    %v2138 = vadd.f32 %v1987, %v2106
    %v2139 = vadd.f32 %v1830, %v2107
    %v2140 = vadd.f32 %v1832, %v2108
    %v2141 = vadd.f32 %v1883, %v2109
    %v2142 = vadd.f32 %v1885, %v2110
    %v2143 = vadd.f32 %v1936, %v2111
    %v2144 = vadd.f32 %v1938, %v2112
    %v2145 = vadd.f32 %v1989, %v2113
    %v2146 = vadd.f32 %v1991, %v2114
    %v2147 = vadd.f32 %v1836, %v2115
    %v2148 = vadd.f32 %v1838, %v2116
    %v2149 = vadd.f32 %v1889, %v2117
    %v2150 = vadd.f32 %v1891, %v2118
    %v2151 = vadd.f32 %v1942, %v2119
    %v2152 = vadd.f32 %v1944, %v2120
    %v2153 = vadd.f32 %v1995, %v2121
    %v2154 = vadd.f32 %v1997, %v2122
    %v2155 = vadd.f32 %v1840, %v2123
    %v2156 = vadd.f32 %v1842, %v2124
    %v2157 = vadd.f32 %v1893, %v2125
    %v2158 = vadd.f32 %v1895, %v2126
    %v2159 = vadd.f32 %v1946, %v2127
    %v2160 = vadd.f32 %v1948, %v2128
    %v2161 = vadd.f32 %v1999, %v2129
    %v2162 = vadd.f32 %v2001, %v2130
    %v2163 = vmul.f32 %v2131, 0.7978846
    %v2164 = vmul.f32 %v2132, 0.7978846
    %v2165 = vmul.f32 %v2133, 0.7978846
    %v2166 = vmul.f32 %v2134, 0.7978846
    %v2167 = vmul.f32 %v2135, 0.7978846
    %v2168 = vmul.f32 %v2136, 0.7978846
    %v2169 = vmul.f32 %v2137, 0.7978846
    %v2170 = vmul.f32 %v2138, 0.7978846
    %v2171 = vmul.f32 %v2139, 0.7978846
    %v2172 = vmul.f32 %v2140, 0.7978846
    %v2173 = vmul.f32 %v2141, 0.7978846
    %v2174 = vmul.f32 %v2142, 0.7978846
    %v2175 = vmul.f32 %v2143, 0.7978846
    %v2176 = vmul.f32 %v2144, 0.7978846
    %v2177 = vmul.f32 %v2145, 0.7978846
    %v2178 = vmul.f32 %v2146, 0.7978846
    %v2179 = vmul.f32 %v2147, 0.7978846
    %v2180 = vmul.f32 %v2148, 0.7978846
    %v2181 = vmul.f32 %v2149, 0.7978846
    %v2182 = vmul.f32 %v2150, 0.7978846
    %v2183 = vmul.f32 %v2151, 0.7978846
    %v2184 = vmul.f32 %v2152, 0.7978846
    %v2185 = vmul.f32 %v2153, 0.7978846
    %v2186 = vmul.f32 %v2154, 0.7978846
    %v2187 = vmul.f32 %v2155, 0.7978846
    %v2188 = vmul.f32 %v2156, 0.7978846
    %v2189 = vmul.f32 %v2157, 0.7978846
    %v2190 = vmul.f32 %v2158, 0.7978846
    %v2191 = vmul.f32 %v2159, 0.7978846
    %v2192 = vmul.f32 %v2160, 0.7978846
    %v2193 = vmul.f32 %v2161, 0.7978846
    %v2194 = vmul.f32 %v2162, 0.7978846
    %v2195 = vtanh.pop %v2163
    %v2196 = vtanh.pop %v2164
    %v2197 = vtanh.pop %v2165
    %v2198 = vtanh.pop %v2166
    %v2199 = vtanh.pop %v2167
    %v2200 = vtanh.pop %v2168
    %v2201 = vtanh.pop %v2169
    %v2202 = vtanh.pop %v2170
    %v2203 = vtanh.pop %v2171
    %v2204 = vtanh.pop %v2172
    %v2205 = vtanh.pop %v2173
    %v2206 = vtanh.pop %v2174
    %v2207 = vtanh.pop %v2175
    %v2208 = vtanh.pop %v2176
    %v2209 = vtanh.pop %v2177
    %v2210 = vtanh.pop %v2178
    %v2211 = vtanh.pop %v2179
    %v2212 = vtanh.pop %v2180
    %v2213 = vtanh.pop %v2181
    %v2214 = vtanh.pop %v2182
    %v2215 = vtanh.pop %v2183
    %v2216 = vtanh.pop %v2184
    %v2217 = vtanh.pop %v2185
    %v2218 = vtanh.pop %v2186
    %v2219 = vtanh.pop %v2187
    %v2220 = vtanh.pop %v2188
    %v2221 = vtanh.pop %v2189
    %v2222 = vtanh.pop %v2190
    %v2223 = vtanh.pop %v2191
    %v2224 = vtanh.pop %v2192
    %v2225 = vtanh.pop %v2193
    %v2226 = vtanh.pop %v2194
    %v2227 = vadd.f32 %v2195, 1.0
    %v2228 = vadd.f32 %v2196, 1.0
    %v2229 = vadd.f32 %v2197, 1.0
    %v2230 = vadd.f32 %v2198, 1.0
    %v2231 = vadd.f32 %v2199, 1.0
    %v2232 = vadd.f32 %v2200, 1.0
    %v2233 = vadd.f32 %v2201, 1.0
    %v2234 = vadd.f32 %v2202, 1.0
    %v2235 = vadd.f32 %v2203, 1.0
    %v2236 = vadd.f32 %v2204, 1.0
    %v2237 = vadd.f32 %v2205, 1.0
    %v2238 = vadd.f32 %v2206, 1.0
    %v2239 = vadd.f32 %v2207, 1.0
    %v2240 = vadd.f32 %v2208, 1.0
    %v2241 = vadd.f32 %v2209, 1.0
    %v2242 = vadd.f32 %v2210, 1.0
    %v2243 = vadd.f32 %v2211, 1.0
    %v2244 = vadd.f32 %v2212, 1.0
    %v2245 = vadd.f32 %v2213, 1.0
    %v2246 = vadd.f32 %v2214, 1.0
    %v2247 = vadd.f32 %v2215, 1.0
    %v2248 = vadd.f32 %v2216, 1.0
    %v2249 = vadd.f32 %v2217, 1.0
    %v2250 = vadd.f32 %v2218, 1.0
    %v2251 = vadd.f32 %v2219, 1.0
    %v2252 = vadd.f32 %v2220, 1.0
    %v2253 = vadd.f32 %v2221, 1.0
    %v2254 = vadd.f32 %v2222, 1.0
    %v2255 = vadd.f32 %v2223, 1.0
    %v2256 = vadd.f32 %v2224, 1.0
    %v2257 = vadd.f32 %v2225, 1.0
    %v2258 = vadd.f32 %v2226, 1.0
    %v2259 = vmul.f32 %v2003, %v2227
    %v2260 = vmul.f32 %v2004, %v2228
    %v2261 = vmul.f32 %v2005, %v2229
    %v2262 = vmul.f32 %v2006, %v2230
    %v2263 = vmul.f32 %v2007, %v2231
    %v2264 = vmul.f32 %v2008, %v2232
    %v2265 = vmul.f32 %v2009, %v2233
    %v2266 = vmul.f32 %v2010, %v2234
    %v2267 = vmul.f32 %v2011, %v2235
    %v2268 = vmul.f32 %v2012, %v2236
    %v2269 = vmul.f32 %v2013, %v2237
    %v2270 = vmul.f32 %v2014, %v2238
    %v2271 = vmul.f32 %v2015, %v2239
    %v2272 = vmul.f32 %v2016, %v2240
    %v2273 = vmul.f32 %v2017, %v2241
    %v2274 = vmul.f32 %v2018, %v2242
    %v2275 = vmul.f32 %v2019, %v2243
    %v2276 = vmul.f32 %v2020, %v2244
    %v2277 = vmul.f32 %v2021, %v2245
    %v2278 = vmul.f32 %v2022, %v2246
    %v2279 = vmul.f32 %v2023, %v2247
    %v2280 = vmul.f32 %v2024, %v2248
    %v2281 = vmul.f32 %v2025, %v2249
    %v2282 = vmul.f32 %v2026, %v2250
    %v2283 = vmul.f32 %v2027, %v2251
    %v2284 = vmul.f32 %v2028, %v2252
    %v2285 = vmul.f32 %v2029, %v2253
    %v2286 = vmul.f32 %v2030, %v2254
    %v2287 = vmul.f32 %v2031, %v2255
    %v2288 = vmul.f32 %v2032, %v2256
    %v2289 = vmul.f32 %v2033, %v2257
    %v2290 = vmul.f32 %v2034, %v2258
    %v2291 = vld [vmem:[%s4] sm:$0xf]
    %v2292 = vld [vmem:[%s4 + $0x4] sm:$0xf]
    %v2293 = vld [vmem:[%s4 + $0x8] sm:$0xf]
    %v2294 = vld [vmem:[%s4 + $0xc] sm:$0xf]
    %v2295 = vld [vmem:[%s4 + $0x10] sm:$0xf]
    %v2296 = vld [vmem:[%s4 + $0x14] sm:$0xf]
    %v2297 = vld [vmem:[%s4 + $0x18] sm:$0xf]
    %v2298 = vld [vmem:[%s4 + $0x1c] sm:$0xf]
    %v2299 = vpack.c.bf16 %v2267, %v2259
    %v2300 = vpack.c.bf16 %v2268, %v2260
    %v2301 = vpack.c.bf16 %v2269, %v2261
    %v2302 = vpack.c.bf16 %v2270, %v2262
    %v2303 = vpack.c.bf16 %v2271, %v2263
    %v2304 = vpack.c.bf16 %v2272, %v2264
    %v2305 = vpack.c.bf16 %v2273, %v2265
    %v2306 = vpack.c.bf16 %v2274, %v2266
    %v2307 = vpack.c.bf16 %v2283, %v2275
    %v2308 = vpack.c.bf16 %v2284, %v2276
    %v2309 = vpack.c.bf16 %v2285, %v2277
    %v2310 = vpack.c.bf16 %v2286, %v2278
    %v2311 = vpack.c.bf16 %v2287, %v2279
    %v2312 = vpack.c.bf16 %v2288, %v2280
    %v2313 = vpack.c.bf16 %v2289, %v2281
    %v2314 = vpack.c.bf16 %v2290, %v2282
    %v2315 = vld [vmem:[%s5] sm:$0xff]
    %v2316 = vld [vmem:[%s5 + $0x8] sm:$0xff]
    %v2317 = vld [vmem:[%s5 + $0x10] sm:$0xff]
    %v2318 = vld [vmem:[%s5 + $0x18] sm:$0xff]
    %v2319 = vld [vmem:[%s5 + $0x20] sm:$0xff]
    %v2320 = vld [vmem:[%s5 + $0x28] sm:$0xff]
    %v2321 = vld [vmem:[%s5 + $0x30] sm:$0xff]
    %v2322 = vld [vmem:[%s5 + $0x38] sm:$0xff]
    %2324 = vset.pattern.permute.xlu0 0
    %2325 = vperm.xlu0 %2324, %v2315
    %v2326 = vpop.permute.xlu0 %2325
    %2329 = vset.pattern.permute.xlu0 0
    %2330 = vperm.xlu0 %2329, %v2316
    %v2331 = vpop.permute.xlu0 %2330
    %2334 = vset.pattern.permute.xlu0 0
    %2335 = vperm.xlu0 %2334, %v2317
    %v2336 = vpop.permute.xlu0 %2335
    %2339 = vset.pattern.permute.xlu0 0
    %2340 = vperm.xlu0 %2339, %v2318
    %v2341 = vpop.permute.xlu0 %2340
    %2344 = vset.pattern.permute.xlu0 0
    %2345 = vperm.xlu0 %2344, %v2319
    %v2346 = vpop.permute.xlu0 %2345
    %2349 = vset.pattern.permute.xlu0 0
    %2350 = vperm.xlu0 %2349, %v2320
    %v2351 = vpop.permute.xlu0 %2350
    %2354 = vset.pattern.permute.xlu0 0
    %2355 = vperm.xlu0 %2354, %v2321
    %v2356 = vpop.permute.xlu0 %2355
    %2359 = vset.pattern.permute.xlu0 0
    %2360 = vperm.xlu0 %2359, %v2322
    %v2361 = vpop.permute.xlu0 %2360
    %v2371 = vunpack.c.l.b16 %v2291
    %v2372 = vunpack.c.l.b16 %v2292
    %v2373 = vunpack.c.l.b16 %v2293
    %v2374 = vunpack.c.l.b16 %v2294
    %v2375 = vunpack.c.l.b16 %v2295
    %v2376 = vunpack.c.l.b16 %v2296
    %v2377 = vunpack.c.l.b16 %v2297
    %v2378 = vunpack.c.l.b16 %v2298
    %v2379 = vpack.c.b16 %v2372, %v2371
    %v2380 = vpack.c.b16 %v2374, %v2373
    %v2381 = vpack.c.b16 %v2376, %v2375
    %v2382 = vpack.c.b16 %v2378, %v2377
    %v2384 = vsel %vm1377, %v2379, 0
    %v2387 = vsel %vm1377, %v2380, 0
    %v2390 = vsel %vm1377, %v2381, 0
    %v2393 = vsel %vm1377, %v2382, 0
    %2395 = vmatprep.subr.bf16.mxu0 %v2300
    %2396 = vmatpush1.bf16.msra.mxu0 %v2299
    %2397 = vmatprep.subr.bf16.mxu0 %v2308
    %2398 = vmatpush1.bf16.msra.mxu0 %v2307
    %2399 = vmatprep.subr.bf16.mxu0 0
    %2400 = vmatpush1.bf16.msra.mxu0 0
    %2401 = vmatprep.subr.bf16.mxu0 0
    %2402 = vmatpush1.bf16.msra.mxu0 0
    %2403 = vmatprep.subr.bf16.mxu0 0
    %2404 = vmatpush1.bf16.msra.mxu0 0
    %2405 = vmatprep.subr.bf16.mxu0 0
    %2406 = vmatpush1.bf16.msra.mxu0 0
    %2407 = vmatprep.subr.bf16.mxu0 0
    %2408 = vmatpush1.bf16.msra.mxu0 0
    %2409 = vmatprep.subr.bf16.mxu0 0
    %2410 = vmatpush1.bf16.msra.mxu0 0
    %2411 = vmatprep.subr.bf16.mxu0 0
    %2412 = vmatpush1.bf16.msra.mxu0 0
    %2413 = vmatprep.subr.bf16.mxu0 0
    %2414 = vmatpush1.bf16.msra.mxu0 0
    %2415 = vmatprep.subr.bf16.mxu0 0
    %2416 = vmatpush1.bf16.msra.mxu0 0
    %2417 = vmatprep.subr.bf16.mxu0 0
    %2418 = vmatpush1.bf16.msra.mxu0 0
    %2419 = vmatprep.subr.bf16.mxu0 0
    %2420 = vmatpush1.bf16.msra.mxu0 0
    %2421 = vmatprep.subr.bf16.mxu0 0
    %2422 = vmatpush1.bf16.msra.mxu0 0
    %2423 = vmatprep.subr.bf16.mxu0 0
    %2424 = vmatpush1.bf16.msra.mxu0 0
    %2425 = vmatprep.subr.bf16.mxu0 0
    %2426 = vmatpush1.bf16.msra.mxu0 0
    %2427 = vmatprep.mubr.bf16.mxu0 0
    %2428 = vmatmul.mubr.bf16.gmra.mrb[0].mxu0 %v2384
    %v2429 = vpop.f32.mrb[0].mxu0
    %v2430 = vadd.f32 %v2326, %v2429
    %v2431 = vpop.f32.mrb[0].mxu0
    %v2432 = vadd.f32 %v2326, %v2431
    %v2433 = vpop.f32.mrb[0].mxu0
    %v2434 = vadd.f32 %v2331, %v2433
    %v2435 = vpop.f32.mrb[0].mxu0
    %v2436 = vadd.f32 %v2331, %v2435
    %2437 = vmatprep.mubr.bf16.mxu0 0
    %2438 = vmatmul.mubr.bf16.gmra.mrb[0].mxu0 %v2387
    %v2439 = vpop.f32.mrb[0].mxu0
    %v2440 = vadd.f32 %v2336, %v2439
    %v2441 = vpop.f32.mrb[0].mxu0
    %v2442 = vadd.f32 %v2336, %v2441
    %v2443 = vpop.f32.mrb[0].mxu0
    %v2444 = vadd.f32 %v2341, %v2443
    %v2445 = vpop.f32.mrb[0].mxu0
    %v2446 = vadd.f32 %v2341, %v2445
    %2447 = vmatprep.mubr.bf16.mxu0 0
    %2448 = vmatmul.mubr.bf16.gmra.mrb[0].mxu0 %v2390
    %v2449 = vpop.f32.mrb[0].mxu0
    %v2450 = vadd.f32 %v2346, %v2449
    %v2451 = vpop.f32.mrb[0].mxu0
    %v2452 = vadd.f32 %v2346, %v2451
    %v2453 = vpop.f32.mrb[0].mxu0
    %v2454 = vadd.f32 %v2351, %v2453
    %v2455 = vpop.f32.mrb[0].mxu0
    %v2456 = vadd.f32 %v2351, %v2455
    %2457 = vmatprep.mubr.bf16.mxu0 0
    %2458 = vmatmul.mubr.bf16.gmra.mrb[0].mxu0 %v2393
    %v2459 = vpop.f32.mrb[0].mxu0
    %v2460 = vadd.f32 %v2356, %v2459
    %v2461 = vpop.f32.mrb[0].mxu0
    %v2462 = vadd.f32 %v2356, %v2461
    %v2463 = vpop.f32.mrb[0].mxu0
    %v2464 = vadd.f32 %v2361, %v2463
    %v2465 = vpop.f32.mrb[0].mxu0
    %v2466 = vadd.f32 %v2361, %v2465
    %2467 = vdwg.mxu0
    %2468 = vmatprep.subr.bf16.mxu0 %v2302
    %2469 = vmatpush1.bf16.msra.mxu0 %v2301
    %2470 = vmatprep.subr.bf16.mxu0 %v2310
    %2471 = vmatpush1.bf16.msra.mxu0 %v2309
    %2472 = vmatprep.subr.bf16.mxu0 0
    %2473 = vmatpush1.bf16.msra.mxu0 0
    %2474 = vmatprep.subr.bf16.mxu0 0
    %2475 = vmatpush1.bf16.msra.mxu0 0
    %2476 = vmatprep.subr.bf16.mxu0 0
    %2477 = vmatpush1.bf16.msra.mxu0 0
    %2478 = vmatprep.subr.bf16.mxu0 0
    %2479 = vmatpush1.bf16.msra.mxu0 0
    %2480 = vmatprep.subr.bf16.mxu0 0
    %2481 = vmatpush1.bf16.msra.mxu0 0
    %2482 = vmatprep.subr.bf16.mxu0 0
    %2483 = vmatpush1.bf16.msra.mxu0 0
    %2484 = vmatprep.subr.bf16.mxu0 0
    %2485 = vmatpush1.bf16.msra.mxu0 0
    %2486 = vmatprep.subr.bf16.mxu0 0
    %2487 = vmatpush1.bf16.msra.mxu0 0
    %2488 = vmatprep.subr.bf16.mxu0 0
    %2489 = vmatpush1.bf16.msra.mxu0 0
    %2490 = vmatprep.subr.bf16.mxu0 0
    %2491 = vmatpush1.bf16.msra.mxu0 0
    %2492 = vmatprep.subr.bf16.mxu0 0
    %2493 = vmatpush1.bf16.msra.mxu0 0
    %2494 = vmatprep.subr.bf16.mxu0 0
    %2495 = vmatpush1.bf16.msra.mxu0 0
    %2496 = vmatprep.subr.bf16.mxu0 0
    %2497 = vmatpush1.bf16.msra.mxu0 0
    %2498 = vmatprep.subr.bf16.mxu0 0
    %2499 = vmatpush1.bf16.msra.mxu0 0
    %2500 = vmatprep.mubr.bf16.mxu0 0
    %2501 = vmatmul.mubr.bf16.gmra.mrb[0].mxu0 %v2384
    %v2502 = vpop.f32.mrb[0].mxu0
    %v2503 = vadd.f32 %v2326, %v2502
    %v2504 = vpop.f32.mrb[0].mxu0
    %v2505 = vadd.f32 %v2326, %v2504
    %v2506 = vpop.f32.mrb[0].mxu0
    %v2507 = vadd.f32 %v2331, %v2506
    %v2508 = vpop.f32.mrb[0].mxu0
    %v2509 = vadd.f32 %v2331, %v2508
    %2510 = vmatprep.mubr.bf16.mxu0 0
    %2511 = vmatmul.mubr.bf16.gmra.mrb[0].mxu0 %v2387
    %v2512 = vpop.f32.mrb[0].mxu0
    %v2513 = vadd.f32 %v2336, %v2512
    %v2514 = vpop.f32.mrb[0].mxu0
    %v2515 = vadd.f32 %v2336, %v2514
    %v2516 = vpop.f32.mrb[0].mxu0
    %v2517 = vadd.f32 %v2341, %v2516
    %v2518 = vpop.f32.mrb[0].mxu0
    %v2519 = vadd.f32 %v2341, %v2518
    %2520 = vmatprep.mubr.bf16.mxu0 0
    %2521 = vmatmul.mubr.bf16.gmra.mrb[0].mxu0 %v2390
    %v2522 = vpop.f32.mrb[0].mxu0
    %v2523 = vadd.f32 %v2346, %v2522
    %v2524 = vpop.f32.mrb[0].mxu0
    %v2525 = vadd.f32 %v2346, %v2524
    %v2526 = vpop.f32.mrb[0].mxu0
    %v2527 = vadd.f32 %v2351, %v2526
    %v2528 = vpop.f32.mrb[0].mxu0
    %v2529 = vadd.f32 %v2351, %v2528
    %2530 = vmatprep.mubr.bf16.mxu0 0
    %2531 = vmatmul.mubr.bf16.gmra.mrb[0].mxu0 %v2393
    %v2532 = vpop.f32.mrb[0].mxu0
    %v2533 = vadd.f32 %v2356, %v2532
    %v2534 = vpop.f32.mrb[0].mxu0
    %v2535 = vadd.f32 %v2356, %v2534
    %v2536 = vpop.f32.mrb[0].mxu0
    %v2537 = vadd.f32 %v2361, %v2536
    %v2538 = vpop.f32.mrb[0].mxu0
    %v2539 = vadd.f32 %v2361, %v2538
    %2540 = vdwg.mxu0
    %2541 = vmatprep.subr.bf16.mxu0 %v2304
    %2542 = vmatpush1.bf16.msra.mxu0 %v2303
    %2543 = vmatprep.subr.bf16.mxu0 %v2312
    %2544 = vmatpush1.bf16.msra.mxu0 %v2311
    %2545 = vmatprep.subr.bf16.mxu0 0
    %2546 = vmatpush1.bf16.msra.mxu0 0
    %2547 = vmatprep.subr.bf16.mxu0 0
    %2548 = vmatpush1.bf16.msra.mxu0 0
    %2549 = vmatprep.subr.bf16.mxu0 0
    %2550 = vmatpush1.bf16.msra.mxu0 0
    %2551 = vmatprep.subr.bf16.mxu0 0
    %2552 = vmatpush1.bf16.msra.mxu0 0
    %2553 = vmatprep.subr.bf16.mxu0 0
    %2554 = vmatpush1.bf16.msra.mxu0 0
    %2555 = vmatprep.subr.bf16.mxu0 0
    %2556 = vmatpush1.bf16.msra.mxu0 0
    %2557 = vmatprep.subr.bf16.mxu0 0
    %2558 = vmatpush1.bf16.msra.mxu0 0
    %2559 = vmatprep.subr.bf16.mxu0 0
    %2560 = vmatpush1.bf16.msra.mxu0 0
    %2561 = vmatprep.subr.bf16.mxu0 0
    %2562 = vmatpush1.bf16.msra.mxu0 0
    %2563 = vmatprep.subr.bf16.mxu0 0
    %2564 = vmatpush1.bf16.msra.mxu0 0
    %2565 = vmatprep.subr.bf16.mxu0 0
    %2566 = vmatpush1.bf16.msra.mxu0 0
    %2567 = vmatprep.subr.bf16.mxu0 0
    %2568 = vmatpush1.bf16.msra.mxu0 0
    %2569 = vmatprep.subr.bf16.mxu0 0
    %2570 = vmatpush1.bf16.msra.mxu0 0
    %2571 = vmatprep.subr.bf16.mxu0 0
    %2572 = vmatpush1.bf16.msra.mxu0 0
    %2573 = vmatprep.mubr.bf16.mxu0 0
    %2574 = vmatmul.mubr.bf16.gmra.mrb[0].mxu0 %v2384
    %v2575 = vpop.f32.mrb[0].mxu0
    %v2576 = vadd.f32 %v2326, %v2575
    %v2577 = vpop.f32.mrb[0].mxu0
    %v2578 = vadd.f32 %v2326, %v2577
    %v2579 = vpop.f32.mrb[0].mxu0
    %v2580 = vadd.f32 %v2331, %v2579
    %v2581 = vpop.f32.mrb[0].mxu0
    %v2582 = vadd.f32 %v2331, %v2581
    %2583 = vmatprep.mubr.bf16.mxu0 0
    %2584 = vmatmul.mubr.bf16.gmra.mrb[0].mxu0 %v2387
    %v2585 = vpop.f32.mrb[0].mxu0
    %v2586 = vadd.f32 %v2336, %v2585
    %v2587 = vpop.f32.mrb[0].mxu0
    %v2588 = vadd.f32 %v2336, %v2587
    %v2589 = vpop.f32.mrb[0].mxu0
    %v2590 = vadd.f32 %v2341, %v2589
    %v2591 = vpop.f32.mrb[0].mxu0
    %v2592 = vadd.f32 %v2341, %v2591
    %2593 = vmatprep.mubr.bf16.mxu0 0
    %2594 = vmatmul.mubr.bf16.gmra.mrb[0].mxu0 %v2390
    %v2595 = vpop.f32.mrb[0].mxu0
    %v2596 = vadd.f32 %v2346, %v2595
    %v2597 = vpop.f32.mrb[0].mxu0
    %v2598 = vadd.f32 %v2346, %v2597
    %v2599 = vpop.f32.mrb[0].mxu0
    %v2600 = vadd.f32 %v2351, %v2599
    %v2601 = vpop.f32.mrb[0].mxu0
    %v2602 = vadd.f32 %v2351, %v2601
    %2603 = vmatprep.mubr.bf16.mxu0 0
    %2604 = vmatmul.mubr.bf16.gmra.mrb[0].mxu0 %v2393
    %v2605 = vpop.f32.mrb[0].mxu0
    %v2606 = vadd.f32 %v2356, %v2605
    %v2607 = vpop.f32.mrb[0].mxu0
    %v2608 = vadd.f32 %v2356, %v2607
    %v2609 = vpop.f32.mrb[0].mxu0
    %v2610 = vadd.f32 %v2361, %v2609
    %v2611 = vpop.f32.mrb[0].mxu0
    %v2612 = vadd.f32 %v2361, %v2611
    %2613 = vdwg.mxu0
    %2614 = vmatprep.subr.bf16.mxu0 %v2306
    %2615 = vmatpush1.bf16.msra.mxu0 %v2305
    %2616 = vmatprep.subr.bf16.mxu0 %v2314
    %2617 = vmatpush1.bf16.msra.mxu0 %v2313
    %2618 = vmatprep.subr.bf16.mxu0 0
    %2619 = vmatpush1.bf16.msra.mxu0 0
    %2620 = vmatprep.subr.bf16.mxu0 0
    %2621 = vmatpush1.bf16.msra.mxu0 0
    %2622 = vmatprep.subr.bf16.mxu0 0
    %2623 = vmatpush1.bf16.msra.mxu0 0
    %2624 = vmatprep.subr.bf16.mxu0 0
    %2625 = vmatpush1.bf16.msra.mxu0 0
    %2626 = vmatprep.subr.bf16.mxu0 0
    %2627 = vmatpush1.bf16.msra.mxu0 0
    %2628 = vmatprep.subr.bf16.mxu0 0
    %2629 = vmatpush1.bf16.msra.mxu0 0
    %2630 = vmatprep.subr.bf16.mxu0 0
    %2631 = vmatpush1.bf16.msra.mxu0 0
    %2632 = vmatprep.subr.bf16.mxu0 0
    %2633 = vmatpush1.bf16.msra.mxu0 0
    %2634 = vmatprep.subr.bf16.mxu0 0
    %2635 = vmatpush1.bf16.msra.mxu0 0
    %2636 = vmatprep.subr.bf16.mxu0 0
    %2637 = vmatpush1.bf16.msra.mxu0 0
    %2638 = vmatprep.subr.bf16.mxu0 0
    %2639 = vmatpush1.bf16.msra.mxu0 0
    %2640 = vmatprep.subr.bf16.mxu0 0
    %2641 = vmatpush1.bf16.msra.mxu0 0
    %2642 = vmatprep.subr.bf16.mxu0 0
    %2643 = vmatpush1.bf16.msra.mxu0 0
    %2644 = vmatprep.subr.bf16.mxu0 0
    %2645 = vmatpush1.bf16.msra.mxu0 0
    %2646 = vmatprep.mubr.bf16.mxu0 0
    %2647 = vmatmul.mubr.bf16.gmra.mrb[0].mxu0 %v2384
    %v2648 = vpop.f32.mrb[0].mxu0
    %v2649 = vadd.f32 %v2326, %v2648
    %v2650 = vpop.f32.mrb[0].mxu0
    %v2651 = vadd.f32 %v2326, %v2650
    %v2652 = vpop.f32.mrb[0].mxu0
    %v2653 = vadd.f32 %v2331, %v2652
    %v2654 = vpop.f32.mrb[0].mxu0
    %v2655 = vadd.f32 %v2331, %v2654
    %2656 = vmatprep.mubr.bf16.mxu0 0
    %2657 = vmatmul.mubr.bf16.gmra.mrb[0].mxu0 %v2387
    %v2658 = vpop.f32.mrb[0].mxu0
    %v2659 = vadd.f32 %v2336, %v2658
    %v2660 = vpop.f32.mrb[0].mxu0
    %v2661 = vadd.f32 %v2336, %v2660
    %v2662 = vpop.f32.mrb[0].mxu0
    %v2663 = vadd.f32 %v2341, %v2662
    %v2664 = vpop.f32.mrb[0].mxu0
    %v2665 = vadd.f32 %v2341, %v2664
    %2666 = vmatprep.mubr.bf16.mxu0 0
    %2667 = vmatmul.mubr.bf16.gmra.mrb[0].mxu0 %v2390
    %v2668 = vpop.f32.mrb[0].mxu0
    %v2669 = vadd.f32 %v2346, %v2668
    %v2670 = vpop.f32.mrb[0].mxu0
    %v2671 = vadd.f32 %v2346, %v2670
    %v2672 = vpop.f32.mrb[0].mxu0
    %v2673 = vadd.f32 %v2351, %v2672
    %v2674 = vpop.f32.mrb[0].mxu0
    %v2675 = vadd.f32 %v2351, %v2674
    %2676 = vmatprep.mubr.bf16.mxu0 0
    %2677 = vmatmul.mubr.bf16.gmra.mrb[0].mxu0 %v2393
    %v2678 = vpop.f32.mrb[0].mxu0
    %v2679 = vadd.f32 %v2356, %v2678
    %v2680 = vpop.f32.mrb[0].mxu0
    %v2681 = vadd.f32 %v2356, %v2680
    %v2682 = vpop.f32.mrb[0].mxu0
    %v2683 = vadd.f32 %v2361, %v2682
    %v2684 = vpop.f32.mrb[0].mxu0
    %v2685 = vadd.f32 %v2361, %v2684
    %2686 = vdwg.mxu0
    %2687 = vst [vmem:[#allocation8] sm:$0xff] %v2430
    %2688 = vst [vmem:[#allocation8 + $0x8] sm:$0xff] %v2432
    %2689 = vst [vmem:[#allocation8 + $0x10] sm:$0xff] %v2503
    %2690 = vst [vmem:[#allocation8 + $0x18] sm:$0xff] %v2505
    %2691 = vst [vmem:[#allocation8 + $0x20] sm:$0xff] %v2434
    %2692 = vst [vmem:[#allocation8 + $0x28] sm:$0xff] %v2436
    %2693 = vst [vmem:[#allocation8 + $0x30] sm:$0xff] %v2507
    %2694 = vst [vmem:[#allocation8 + $0x38] sm:$0xff] %v2509
    %2695 = vst [vmem:[#allocation8 + $0x40] sm:$0xff] %v2440
    %2696 = vst [vmem:[#allocation8 + $0x48] sm:$0xff] %v2442
    %2697 = vst [vmem:[#allocation8 + $0x50] sm:$0xff] %v2513
    %2698 = vst [vmem:[#allocation8 + $0x58] sm:$0xff] %v2515
    %2699 = vst [vmem:[#allocation8 + $0x60] sm:$0xff] %v2444
    %2700 = vst [vmem:[#allocation8 + $0x68] sm:$0xff] %v2446
    %2701 = vst [vmem:[#allocation8 + $0x70] sm:$0xff] %v2517
    %2702 = vst [vmem:[#allocation8 + $0x78] sm:$0xff] %v2519
    %2703 = vst [vmem:[#allocation8 + $0x80] sm:$0xff] %v2450
    %2704 = vst [vmem:[#allocation8 + $0x88] sm:$0xff] %v2452
    %2705 = vst [vmem:[#allocation8 + $0x90] sm:$0xff] %v2523
    %2706 = vst [vmem:[#allocation8 + $0x98] sm:$0xff] %v2525
    %2707 = vst [vmem:[#allocation8 + $0xa0] sm:$0xff] %v2454
    %2708 = vst [vmem:[#allocation8 + $0xa8] sm:$0xff] %v2456
    %2709 = vst [vmem:[#allocation8 + $0xb0] sm:$0xff] %v2527
    %2710 = vst [vmem:[#allocation8 + $0xb8] sm:$0xff] %v2529
    %2711 = vst [vmem:[#allocation8 + $0xc0] sm:$0xff] %v2460
    %2712 = vst [vmem:[#allocation8 + $0xc8] sm:$0xff] %v2462
    %2713 = vst [vmem:[#allocation8 + $0xd0] sm:$0xff] %v2533
    %2714 = vst [vmem:[#allocation8 + $0xd8] sm:$0xff] %v2535
    %2715 = vst [vmem:[#allocation8 + $0xe0] sm:$0xff] %v2464
    %2716 = vst [vmem:[#allocation8 + $0xe8] sm:$0xff] %v2466
    %2717 = vst [vmem:[#allocation8 + $0xf0] sm:$0xff] %v2537
    %2718 = vst [vmem:[#allocation8 + $0xf8] sm:$0xff] %v2539
    %s2719 = scalar_lea.vmem [#allocation8], 256
    %2720 = vst [vmem:[%s2719] sm:$0xff] %v2576
    %2721 = vst [vmem:[%s2719 + $0x8] sm:$0xff] %v2578
    %2722 = vst [vmem:[%s2719 + $0x10] sm:$0xff] %v2649
    %2723 = vst [vmem:[%s2719 + $0x18] sm:$0xff] %v2651
    %2724 = vst [vmem:[%s2719 + $0x20] sm:$0xff] %v2580
    %2725 = vst [vmem:[%s2719 + $0x28] sm:$0xff] %v2582
    %2726 = vst [vmem:[%s2719 + $0x30] sm:$0xff] %v2653
    %2727 = vst [vmem:[%s2719 + $0x38] sm:$0xff] %v2655
    %2728 = vst [vmem:[%s2719 + $0x40] sm:$0xff] %v2586
    %2729 = vst [vmem:[%s2719 + $0x48] sm:$0xff] %v2588
    %2730 = vst [vmem:[%s2719 + $0x50] sm:$0xff] %v2659
    %2731 = vst [vmem:[%s2719 + $0x58] sm:$0xff] %v2661
    %2732 = vst [vmem:[%s2719 + $0x60] sm:$0xff] %v2590
    %2733 = vst [vmem:[%s2719 + $0x68] sm:$0xff] %v2592
    %2734 = vst [vmem:[%s2719 + $0x70] sm:$0xff] %v2663
    %2735 = vst [vmem:[%s2719 + $0x78] sm:$0xff] %v2665
    %2736 = vst [vmem:[%s2719 + $0x80] sm:$0xff] %v2596
    %2737 = vst [vmem:[%s2719 + $0x88] sm:$0xff] %v2598
    %2738 = vst [vmem:[%s2719 + $0x90] sm:$0xff] %v2669
    %2739 = vst [vmem:[%s2719 + $0x98] sm:$0xff] %v2671
    %2740 = vst [vmem:[%s2719 + $0xa0] sm:$0xff] %v2600
    %2741 = vst [vmem:[%s2719 + $0xa8] sm:$0xff] %v2602
    %2742 = vst [vmem:[%s2719 + $0xb0] sm:$0xff] %v2673
    %2743 = vst [vmem:[%s2719 + $0xb8] sm:$0xff] %v2675
    %2744 = vst [vmem:[%s2719 + $0xc0] sm:$0xff] %v2606
    %2745 = vst [vmem:[%s2719 + $0xc8] sm:$0xff] %v2608
    %2746 = vst [vmem:[%s2719 + $0xd0] sm:$0xff] %v2679
    %2747 = vst [vmem:[%s2719 + $0xd8] sm:$0xff] %v2681
    %2748 = vst [vmem:[%s2719 + $0xe0] sm:$0xff] %v2610
    %2749 = vst [vmem:[%s2719 + $0xe8] sm:$0xff] %v2612
    %2750 = vst [vmem:[%s2719 + $0xf0] sm:$0xff] %v2683
    %2751 = vst [vmem:[%s2719 + $0xf8] sm:$0xff] %v2685
    // Predicated region
    $region34: #{fwd.3} parent=1 // pred_check
      _
    $region35: #{fwd.3} parent=1 // pred_check_branch
      %2753 = sbr.rel (0) target = $region37
    $region36: #{fwd.3} parent=1 // pred_region
      %s2755 = ssub.s32 8192, 8192
      %2756 = vsyncadd [#allocation4], %s2755
      %s2757 = sshll.u32 [#allocation7], 4
      %s2758 = int_to_ptr.vmem [resolvable:$true] %s2757
      %2763 = dma.vmem_to_hbm [thread:$0]  %s2758, 8192, %s6, [#allocation4], 512, 512, 32
    $region37: #{fwd.3} parent=1 // pred_fallthru
      _
    // Predicated region
    $region38: #{fwd.3} parent=1 // pred_check
      _
    $region39: #{fwd.3} parent=1 // pred_check_branch
      %2765 = sbr.rel (0) target = $region41
    $region40: #{fwd.3} parent=1 // pred_region
      %s2767 = ssub.s32 8192, 8192
      %2768 = vsyncadd [#allocation9], %s2767
      %s2769 = sshll.u32 [#allocation8], 4
      %s2770 = int_to_ptr.vmem [resolvable:$true] %s2769
      %2775 = dma.vmem_to_hbm [thread:$0]  %s2770, 8192, %s7, [#allocation9], 512, 512, 32
    $region41: #{fwd.3} parent=1 // pred_fallthru
      _
    // Predicated region
    $region42: #{fwd.3} parent=1 // pred_check
      _
    $region43: #{fwd.3} parent=1 // pred_check_branch
      %2777 = sbr.rel (0) target = $region45
    $region44: #{fwd.3} parent=1 // pred_region
      %2778 = dma.done [#allocation4], 8192
    $region45: #{fwd.3} parent=1 // pred_fallthru
      _
    // Predicated region
    $region46: #{fwd.3} parent=1 // pred_check
      _
    $region47: #{fwd.3} parent=1 // pred_check_branch
      %2780 = sbr.rel (0) target = $region49
    $region48: #{fwd.3} parent=1 // pred_region
      %2781 = dma.done [#allocation9], 8192
    $region49: #{fwd.3} parent=1 // pred_fallthru
      _
    %2782 = vsyncpa [#allocation3], 1
    %2783 = vsyncpa [#allocation6], 1
    %2784 = vsyncpa [#allocation4], 1
    %2785 = vsyncpa [#allocation9], 1

// kernel: fwd.2
$region0: #{fwd.2}
  #allocation0 [shape = 'u32[]', space=smem, size = 0x4, offset = 0x4, fixed_abs, tag = 'smem constant byte address 0x4 - core index']
  #allocation1 [shape = 'u32[144,128]{1,0:T(1,128)}', space=vmem, size = 0x12000, scoped, tag = 'internal scratch']
  #allocation2 [shape = 'bf16[512,1536]{1,0:T(16,128)(2,1)}', space=vmem, size = 0x180000, scoped, tag = 'scratch operand']
  #allocation3 [shape = 'f32[64,512]{1,0:T(8,128)}', space=vmem, size = 0x20000, scoped, tag = 'scratch operand']
  #allocation4 [shape = 's32[1]{0}', space=sflag, size = 0x4, scoped, tag = 'scratch operand']
  #allocation14 [shape = 's32[]', space=sflag, size = 0x4, offset = 0, fixed_abs, tag = 'sflag constant byte address 0x0 - dummy sync flag']
  %s0 = inlined_call_operand.vmem [shape: bf16[2,64,512], index: 0, kind: input, shape index: {}]
  %s1 = inlined_call_operand.hbm [shape: f32[64,128], index: 1, kind: input, shape index: {}]
  %s2 = inlined_call_operand.hbm [shape: bf16[32,64], index: 2, kind: input, shape index: {}]
  %s3 = inlined_call_operand.vmem [shape: f32[32,1], index: 3, kind: input, shape index: {}]
  %s4 = inlined_call_operand.vmem [shape: bf16[64,32], index: 4, kind: input, shape index: {}]
  %s5 = inlined_call_operand.vmem [shape: f32[64,1], index: 5, kind: input, shape index: {}]
  %s6 = inlined_call_operand.hbm [shape: bf16[32,64], index: 6, kind: input, shape index: {}]
  %s7 = inlined_call_operand.vmem [shape: f32[32,1], index: 7, kind: input, shape index: {}]
  %s8 = inlined_call_operand.vmem [shape: bf16[64,32], index: 8, kind: input, shape index: {}]
  %s9 = inlined_call_operand.vmem [shape: f32[64,1], index: 9, kind: input, shape index: {}]
  %s10 = inlined_call_operand.hbm [shape: bf16[32,64], index: 10, kind: input, shape index: {}]
  %s11 = inlined_call_operand.vmem [shape: f32[32,1], index: 11, kind: input, shape index: {}]
  %s12 = inlined_call_operand.vmem [shape: bf16[64,32], index: 12, kind: input, shape index: {}]
  %s13 = inlined_call_operand.vmem [shape: f32[64,1], index: 13, kind: input, shape index: {}]
  %s14 = inlined_call_operand.hbm [shape: bf16[512,1536], index: 14, kind: input, shape index: {}]
  %s15 = inlined_call_operand.hbm [shape: f32[2,64,512], index: 15, kind: output, shape index: {}]
  %s16 = sld [smem:[#allocation0]]
  $region105: #{fwd.2} parent=0
    _
  %s18 = ssub.s32 1, %s16
  %s19 = scalar_select 0, %s18, %s16
  $region1: #{fwd.2} parent=0
    #allocation5 [shape = 'u8[32768]{0}', space=vmem, size = 0x8000, scoped, tag = 'input window, operand 1, single buffered']
    #allocation6 [shape = 's32[2]{0}', space=sflag, size = 0x8, scoped, tag = 'scoped memory for fwd.2']
    #allocation7 [shape = 's32[2]{0}', space=sflag, size = 0x8, scoped, tag = 'scoped memory for fwd.2']
    #allocation8 [shape = 'u8[8192]{0}', space=vmem, size = 0x2000, scoped, tag = 'input window, operand 2, single buffered']
    #allocation9 [shape = 's32[1]{0}', space=sflag, size = 0x4, scoped, tag = 'scoped memory for fwd.2']
    #allocation10 [shape = 'u8[8192]{0}', space=vmem, size = 0x2000, scoped, tag = 'input window, operand 6, single buffered']
    #allocation11 [shape = 'u8[8192]{0}', space=vmem, size = 0x2000, scoped, tag = 'input window, operand 10, single buffered']
    #allocation12 [shape = 's32[1]{0}', space=sflag, size = 0x4, scoped, tag = 'scoped memory for fwd.2']
    #allocation13 [shape = 'u8[262144]{0}', space=vmem, size = 0x40000, scoped, tag = 'output window, operand 0']
    %20 = vsyncpa [#allocation6], 0
    %21 = vsyncpa [#allocation9], 0
    %22 = vsyncpa [#allocation12], 0
    %23 = vsyncpa [#allocation7], 0
    %s24 = scalar_lea.sflag [#allocation7], 1
    %25 = vsyncpa %s24, 0
    loop: start=0, step=1, limit=4
    $region2: #{fwd.2} parent=1 // loop_pre_header
      _
    $region3: #{fwd.2} parent=1 // loop_header
      %s27 = sphi 0, %s31
      %p28 = scmp.ge.s32.totalorder %s27, 4
      %s37 = sphi 0, %s39
      %s40 = sphi 0, %s37
      %s41 = sphi 0, %s40
      %s57 = sphi 0, %s41
      %s61 = sphi 0, %s61
      %s63 = sphi 0, %s61
      %s64 = sphi 0, %s63
      %s78 = sphi 0, %s64
      %s82 = sphi 0, %s82
      %s84 = sphi 0, %s82
      %s85 = sphi 0, %s84
      %s99 = sphi 0, %s85
      %s103 = sphi 0, %s103
      %s105 = sphi 0, %s103
      %s106 = sphi 0, %s105
      %s120 = sphi 0, %s106
      %s124 = sphi 0, %s124
      %s126 = sphi 0, %s124
      %s127 = sphi 0, %s126
      %s141 = sphi 0, %s127
      %s145 = sphi 0, %s145
      %s147 = sphi 0, %s145
      %s148 = sphi 0, %s147
      %s162 = sphi 0, %s148
      %s166 = sphi 0, %s166
      %s168 = sphi 0, %s166
      %s169 = sphi 0, %s168
      %s183 = sphi 0, %s169
      %s187 = sphi 0, %s187
      %s189 = sphi 0, %s187
      %s190 = sphi 0, %s189
      %s204 = sphi 0, %s190
      %s208 = sphi 0, %s208
      %s210 = sphi 0, %s208
      %s211 = sphi 0, %s210
      %s225 = sphi 0, %s211
      %s229 = sphi 0, %s229
      %s231 = sphi 0, %s229
      %s232 = sphi 0, %s231
      %s246 = sphi 0, %s232
      %s250 = sphi 0, %s250
      %s252 = sphi 0, %s250
      %s253 = sphi 0, %s252
      %s267 = sphi 0, %s253
      %s271 = sphi 0, %s271
      %s273 = sphi 0, %s271
      %s274 = sphi 0, %s273
      %s288 = sphi 0, %s274
      %s292 = sphi 0, %s292
      %s294 = sphi 0, %s292
      %s295 = sphi 0, %s294
      %s309 = sphi 0, %s295
      %s313 = sphi 0, %s313
      %s315 = sphi 0, %s313
      %s316 = sphi 0, %s315
      %s330 = sphi 0, %s316
      %s336 = sphi 0, %s338
      %s339 = sphi 0, %s336
      %s340 = sphi 0, %s339
      %s356 = sphi 0, %s340
    $region4: #{fwd.2} parent=1 // loop_header_branch
      %30 = sbr.rel (%p28) target = $region8
    $region5: #{fwd.2} parent=1 // loop_body
      %s32 = ssub.s32 %s27, 1
      %s33 = ssub.s32 %s27, 2
      %s34 = sadd.s32 %s27, 1
      %s35 = ssub.s32 %s27, %s34
      %p36 = scmp.eq.s32.totalorder %s35, 0
      %s38 = sadd.s32 %s37, 1
      %s39 = scalar_select %p36, %s37, %s38
      %p42 = pneg %p36
      %p43 = scmp.eq.s32.totalorder %s27, 1
      %p44 = por %p42, %p43
      %p45 = scmp.ne.s32.totalorder %s37, %s40
      %p46 = scmp.eq.s32.totalorder %s27, 0
      %p47 = por %p45, %p46
      %p48 = scmp.ne.s32.totalorder %s37, %s40
      %p49 = scmp.eq.s32.totalorder %s32, 1
      %p50 = por %p48, %p49
      %p51 = scmp.ne.s32.totalorder %s40, %s41
      %p52 = scmp.eq.s32.totalorder %s32, 0
      %p53 = por %p51, %p52
      %p54 = scmp.ne.s32.totalorder %s40, %s41
      %p55 = scmp.eq.s32.totalorder %s33, 1
      %p56 = por %p54, %p55
      %p58 = scmp.ne.s32.totalorder %s41, %s57
      %p59 = scmp.eq.s32.totalorder %s33, 0
      %p60 = por %p58, %p59
      %s62 = sadd.s32 %s61, 1
      %p65 = scmp.eq.s32.totalorder %s27, 1
      %p66 = scmp.ne.s32.totalorder %s61, %s63
      %p67 = scmp.eq.s32.totalorder %s27, 0
      %p68 = por %p66, %p67
      %p69 = scmp.ne.s32.totalorder %s61, %s63
      %p70 = scmp.eq.s32.totalorder %s32, 1
      %p71 = por %p69, %p70
      %p72 = scmp.ne.s32.totalorder %s63, %s64
      %p73 = scmp.eq.s32.totalorder %s32, 0
      %p74 = por %p72, %p73
      %p75 = scmp.ne.s32.totalorder %s63, %s64
      %p76 = scmp.eq.s32.totalorder %s33, 1
      %p77 = por %p75, %p76
      %p79 = scmp.ne.s32.totalorder %s64, %s78
      %p80 = scmp.eq.s32.totalorder %s33, 0
      %p81 = por %p79, %p80
      %s83 = sadd.s32 %s82, 1
      %p86 = scmp.eq.s32.totalorder %s27, 1
      %p87 = scmp.ne.s32.totalorder %s82, %s84
      %p88 = scmp.eq.s32.totalorder %s27, 0
      %p89 = por %p87, %p88
      %p90 = scmp.ne.s32.totalorder %s82, %s84
      %p91 = scmp.eq.s32.totalorder %s32, 1
      %p92 = por %p90, %p91
      %p93 = scmp.ne.s32.totalorder %s84, %s85
      %p94 = scmp.eq.s32.totalorder %s32, 0
      %p95 = por %p93, %p94
      %p96 = scmp.ne.s32.totalorder %s84, %s85
      %p97 = scmp.eq.s32.totalorder %s33, 1
      %p98 = por %p96, %p97
      %p100 = scmp.ne.s32.totalorder %s85, %s99
      %p101 = scmp.eq.s32.totalorder %s33, 0
      %p102 = por %p100, %p101
      %s104 = sadd.s32 %s103, 1
      %p107 = scmp.eq.s32.totalorder %s27, 1
      %p108 = scmp.ne.s32.totalorder %s103, %s105
      %p109 = scmp.eq.s32.totalorder %s27, 0
      %p110 = por %p108, %p109
      %p111 = scmp.ne.s32.totalorder %s103, %s105
      %p112 = scmp.eq.s32.totalorder %s32, 1
      %p113 = por %p111, %p112
      %p114 = scmp.ne.s32.totalorder %s105, %s106
      %p115 = scmp.eq.s32.totalorder %s32, 0
      %p116 = por %p114, %p115
      %p117 = scmp.ne.s32.totalorder %s105, %s106
      %p118 = scmp.eq.s32.totalorder %s33, 1
      %p119 = por %p117, %p118
      %p121 = scmp.ne.s32.totalorder %s106, %s120
      %p122 = scmp.eq.s32.totalorder %s33, 0
      %p123 = por %p121, %p122
      %s125 = sadd.s32 %s124, 1
      %p128 = scmp.eq.s32.totalorder %s27, 1
      %p129 = scmp.ne.s32.totalorder %s124, %s126
      %p130 = scmp.eq.s32.totalorder %s27, 0
      %p131 = por %p129, %p130
      %p132 = scmp.ne.s32.totalorder %s124, %s126
      %p133 = scmp.eq.s32.totalorder %s32, 1
      %p134 = por %p132, %p133
      %p135 = scmp.ne.s32.totalorder %s126, %s127
      %p136 = scmp.eq.s32.totalorder %s32, 0
      %p137 = por %p135, %p136
      %p138 = scmp.ne.s32.totalorder %s126, %s127
      %p139 = scmp.eq.s32.totalorder %s33, 1
      %p140 = por %p138, %p139
      %p142 = scmp.ne.s32.totalorder %s127, %s141
      %p143 = scmp.eq.s32.totalorder %s33, 0
      %p144 = por %p142, %p143
      %s146 = sadd.s32 %s145, 1
      %p149 = scmp.eq.s32.totalorder %s27, 1
      %p150 = scmp.ne.s32.totalorder %s145, %s147
      %p151 = scmp.eq.s32.totalorder %s27, 0
      %p152 = por %p150, %p151
      %p153 = scmp.ne.s32.totalorder %s145, %s147
      %p154 = scmp.eq.s32.totalorder %s32, 1
      %p155 = por %p153, %p154
      %p156 = scmp.ne.s32.totalorder %s147, %s148
      %p157 = scmp.eq.s32.totalorder %s32, 0
      %p158 = por %p156, %p157
      %p159 = scmp.ne.s32.totalorder %s147, %s148
      %p160 = scmp.eq.s32.totalorder %s33, 1
      %p161 = por %p159, %p160
      %p163 = scmp.ne.s32.totalorder %s148, %s162
      %p164 = scmp.eq.s32.totalorder %s33, 0
      %p165 = por %p163, %p164
      %s167 = sadd.s32 %s166, 1
      %p170 = scmp.eq.s32.totalorder %s27, 1
      %p171 = scmp.ne.s32.totalorder %s166, %s168
      %p172 = scmp.eq.s32.totalorder %s27, 0
      %p173 = por %p171, %p172
      %p174 = scmp.ne.s32.totalorder %s166, %s168
      %p175 = scmp.eq.s32.totalorder %s32, 1
      %p176 = por %p174, %p175
      %p177 = scmp.ne.s32.totalorder %s168, %s169
      %p178 = scmp.eq.s32.totalorder %s32, 0
      %p179 = por %p177, %p178
      %p180 = scmp.ne.s32.totalorder %s168, %s169
      %p181 = scmp.eq.s32.totalorder %s33, 1
      %p182 = por %p180, %p181
      %p184 = scmp.ne.s32.totalorder %s169, %s183
      %p185 = scmp.eq.s32.totalorder %s33, 0
      %p186 = por %p184, %p185
      %s188 = sadd.s32 %s187, 1
      %p191 = scmp.eq.s32.totalorder %s27, 1
      %p192 = scmp.ne.s32.totalorder %s187, %s189
      %p193 = scmp.eq.s32.totalorder %s27, 0
      %p194 = por %p192, %p193
      %p195 = scmp.ne.s32.totalorder %s187, %s189
      %p196 = scmp.eq.s32.totalorder %s32, 1
      %p197 = por %p195, %p196
      %p198 = scmp.ne.s32.totalorder %s189, %s190
      %p199 = scmp.eq.s32.totalorder %s32, 0
      %p200 = por %p198, %p199
      %p201 = scmp.ne.s32.totalorder %s189, %s190
      %p202 = scmp.eq.s32.totalorder %s33, 1
      %p203 = por %p201, %p202
      %p205 = scmp.ne.s32.totalorder %s190, %s204
      %p206 = scmp.eq.s32.totalorder %s33, 0
      %p207 = por %p205, %p206
      %s209 = sadd.s32 %s208, 1
      %p212 = scmp.eq.s32.totalorder %s27, 1
      %p213 = scmp.ne.s32.totalorder %s208, %s210
      %p214 = scmp.eq.s32.totalorder %s27, 0
      %p215 = por %p213, %p214
      %p216 = scmp.ne.s32.totalorder %s208, %s210
      %p217 = scmp.eq.s32.totalorder %s32, 1
      %p218 = por %p216, %p217
      %p219 = scmp.ne.s32.totalorder %s210, %s211
      %p220 = scmp.eq.s32.totalorder %s32, 0
      %p221 = por %p219, %p220
      %p222 = scmp.ne.s32.totalorder %s210, %s211
      %p223 = scmp.eq.s32.totalorder %s33, 1
      %p224 = por %p222, %p223
      %p226 = scmp.ne.s32.totalorder %s211, %s225
      %p227 = scmp.eq.s32.totalorder %s33, 0
      %p228 = por %p226, %p227
      %s230 = sadd.s32 %s229, 1
      %p233 = scmp.eq.s32.totalorder %s27, 1
      %p234 = scmp.ne.s32.totalorder %s229, %s231
      %p235 = scmp.eq.s32.totalorder %s27, 0
      %p236 = por %p234, %p235
      %p237 = scmp.ne.s32.totalorder %s229, %s231
      %p238 = scmp.eq.s32.totalorder %s32, 1
      %p239 = por %p237, %p238
      %p240 = scmp.ne.s32.totalorder %s231, %s232
      %p241 = scmp.eq.s32.totalorder %s32, 0
      %p242 = por %p240, %p241
      %p243 = scmp.ne.s32.totalorder %s231, %s232
      %p244 = scmp.eq.s32.totalorder %s33, 1
      %p245 = por %p243, %p244
      %p247 = scmp.ne.s32.totalorder %s232, %s246
      %p248 = scmp.eq.s32.totalorder %s33, 0
      %p249 = por %p247, %p248
      %s251 = sadd.s32 %s250, 1
      %p254 = scmp.eq.s32.totalorder %s27, 1
      %p255 = scmp.ne.s32.totalorder %s250, %s252
      %p256 = scmp.eq.s32.totalorder %s27, 0
      %p257 = por %p255, %p256
      %p258 = scmp.ne.s32.totalorder %s250, %s252
      %p259 = scmp.eq.s32.totalorder %s32, 1
      %p260 = por %p258, %p259
      %p261 = scmp.ne.s32.totalorder %s252, %s253
      %p262 = scmp.eq.s32.totalorder %s32, 0
      %p263 = por %p261, %p262
      %p264 = scmp.ne.s32.totalorder %s252, %s253
      %p265 = scmp.eq.s32.totalorder %s33, 1
      %p266 = por %p264, %p265
      %p268 = scmp.ne.s32.totalorder %s253, %s267
      %p269 = scmp.eq.s32.totalorder %s33, 0
      %p270 = por %p268, %p269
      %s272 = sadd.s32 %s271, 1
      %p275 = scmp.eq.s32.totalorder %s27, 1
      %p276 = scmp.ne.s32.totalorder %s271, %s273
      %p277 = scmp.eq.s32.totalorder %s27, 0
      %p278 = por %p276, %p277
      %p279 = scmp.ne.s32.totalorder %s271, %s273
      %p280 = scmp.eq.s32.totalorder %s32, 1
      %p281 = por %p279, %p280
      %p282 = scmp.ne.s32.totalorder %s273, %s274
      %p283 = scmp.eq.s32.totalorder %s32, 0
      %p284 = por %p282, %p283
      %p285 = scmp.ne.s32.totalorder %s273, %s274
      %p286 = scmp.eq.s32.totalorder %s33, 1
      %p287 = por %p285, %p286
      %p289 = scmp.ne.s32.totalorder %s274, %s288
      %p290 = scmp.eq.s32.totalorder %s33, 0
      %p291 = por %p289, %p290
      %s293 = sadd.s32 %s292, 1
      %p296 = scmp.eq.s32.totalorder %s27, 1
      %p297 = scmp.ne.s32.totalorder %s292, %s294
      %p298 = scmp.eq.s32.totalorder %s27, 0
      %p299 = por %p297, %p298
      %p300 = scmp.ne.s32.totalorder %s292, %s294
      %p301 = scmp.eq.s32.totalorder %s32, 1
      %p302 = por %p300, %p301
      %p303 = scmp.ne.s32.totalorder %s294, %s295
      %p304 = scmp.eq.s32.totalorder %s32, 0
      %p305 = por %p303, %p304
      %p306 = scmp.ne.s32.totalorder %s294, %s295
      %p307 = scmp.eq.s32.totalorder %s33, 1
      %p308 = por %p306, %p307
      %p310 = scmp.ne.s32.totalorder %s295, %s309
      %p311 = scmp.eq.s32.totalorder %s33, 0
      %p312 = por %p310, %p311
      %s314 = sadd.s32 %s313, 1
      %p317 = scmp.eq.s32.totalorder %s27, 1
      %p318 = scmp.ne.s32.totalorder %s313, %s315
      %p319 = scmp.eq.s32.totalorder %s27, 0
      %p320 = por %p318, %p319
      %p321 = scmp.ne.s32.totalorder %s313, %s315
      %p322 = scmp.eq.s32.totalorder %s32, 1
      %p323 = por %p321, %p322
      %p324 = scmp.ne.s32.totalorder %s315, %s316
      %p325 = scmp.eq.s32.totalorder %s32, 0
      %p326 = por %p324, %p325
      %p327 = scmp.ne.s32.totalorder %s315, %s316
      %p328 = scmp.eq.s32.totalorder %s33, 1
      %p329 = por %p327, %p328
      %p331 = scmp.ne.s32.totalorder %s316, %s330
      %p332 = scmp.eq.s32.totalorder %s33, 0
      %p333 = por %p331, %p332
      %s334 = ssub.s32 %s27, %s34
      %p335 = scmp.eq.s32.totalorder %s334, 0
      %s337 = sadd.s32 %s336, 1
      %s338 = scalar_select %p335, %s336, %s337
      %p341 = pneg %p335
      %p342 = scmp.eq.s32.totalorder %s27, 1
      %p343 = por %p341, %p342
      %p344 = scmp.ne.s32.totalorder %s336, %s339
      %p345 = scmp.eq.s32.totalorder %s27, 0
      %p346 = por %p344, %p345
      %p347 = scmp.ne.s32.totalorder %s336, %s339
      %p348 = scmp.eq.s32.totalorder %s32, 1
      %p349 = por %p347, %p348
      %p350 = scmp.ne.s32.totalorder %s339, %s340
      %p351 = scmp.eq.s32.totalorder %s32, 0
      %p352 = por %p350, %p351
      %p353 = scmp.ne.s32.totalorder %s339, %s340
      %p354 = scmp.eq.s32.totalorder %s33, 1
      %p355 = por %p353, %p354
      %p357 = scmp.ne.s32.totalorder %s340, %s356
      %p358 = scmp.eq.s32.totalorder %s33, 0
      %p359 = por %p357, %p358
      %p360 = scmp.le.s32.totalorder 1, %s27
      %p361 = scmp.lt.s32.totalorder %s27, 3
      %p362 = pnand %p360, %p361
      %p363 = pneg %p362
      // Predicated region
      $region9: #{fwd.2} parent=5 // pred_check
        _
      $region10: #{fwd.2} parent=5 // pred_check_branch
        %365 = sbr.rel (%p362) target = $region12
      $region11: #{fwd.2} parent=5 // pred_region
        %s366 = ssub.s32 %s27, 1
        // Predicated region
        $region13: #{fwd.2} parent=11 // pred_check
          %p367 = pneg %p74
        $region14: #{fwd.2} parent=11 // pred_check_branch
          %369 = sbr.rel (%p367) target = $region16
        $region15: #{fwd.2} parent=11 // pred_region
          %s371 = ssub.s32 1024, 1024
          %372 = vsyncadd [#allocation6], %s371
          %s373 = sshll.u32 [#allocation5], 4
          %s374 = int_to_ptr.vmem [resolvable:$true] %s373
          %379 = dma.hbm_to_vmem [thread:$0]  %s1, 1024, %s374, [#allocation6], 128, 128, 8
        $region16: #{fwd.2} parent=11 // pred_fallthru
          _
        // Predicated region
        $region17: #{fwd.2} parent=11 // pred_check
          %p380 = pneg %p95
        $region18: #{fwd.2} parent=11 // pred_check_branch
          %382 = sbr.rel (%p380) target = $region20
        $region19: #{fwd.2} parent=11 // pred_region
          %s384 = ssub.s32 256, 256
          %385 = vsyncadd [#allocation9], %s384
          %s386 = sshll.u32 [#allocation8], 4
          %s387 = int_to_ptr.vmem [resolvable:$true] %s386
          %392 = dma.hbm_to_vmem [thread:$0]  %s2, 256, %s387, [#allocation9], 64, 64, 4
        $region20: #{fwd.2} parent=11 // pred_fallthru
          _
        // Predicated region
        $region21: #{fwd.2} parent=11 // pred_check
          %p393 = pneg %p116
        $region22: #{fwd.2} parent=11 // pred_check_branch
          %395 = sbr.rel (%p393) target = $region24
        $region23: #{fwd.2} parent=11 // pred_region
          _
        $region24: #{fwd.2} parent=11 // pred_fallthru
          _
        // Predicated region
        $region25: #{fwd.2} parent=11 // pred_check
          %p396 = pneg %p137
        $region26: #{fwd.2} parent=11 // pred_check_branch
          %398 = sbr.rel (%p396) target = $region28
        $region27: #{fwd.2} parent=11 // pred_region
          _
        $region28: #{fwd.2} parent=11 // pred_fallthru
          _
        // Predicated region
        $region29: #{fwd.2} parent=11 // pred_check
          %p399 = pneg %p158
        $region30: #{fwd.2} parent=11 // pred_check_branch
          %401 = sbr.rel (%p399) target = $region32
        $region31: #{fwd.2} parent=11 // pred_region
          _
        $region32: #{fwd.2} parent=11 // pred_fallthru
          _
        // Predicated region
        $region33: #{fwd.2} parent=11 // pred_check
          %p402 = pneg %p179
        $region34: #{fwd.2} parent=11 // pred_check_branch
          %404 = sbr.rel (%p402) target = $region36
        $region35: #{fwd.2} parent=11 // pred_region
          %s406 = ssub.s32 256, 256
          %407 = vsyncadd [#allocation9], %s406
          %s408 = sshll.u32 [#allocation10], 4
          %s409 = int_to_ptr.vmem [resolvable:$true] %s408
          %414 = dma.hbm_to_vmem [thread:$0]  %s6, 256, %s409, [#allocation9], 64, 64, 4
        $region36: #{fwd.2} parent=11 // pred_fallthru
          _
        // Predicated region
        $region37: #{fwd.2} parent=11 // pred_check
          %p415 = pneg %p200
        $region38: #{fwd.2} parent=11 // pred_check_branch
          %417 = sbr.rel (%p415) target = $region40
        $region39: #{fwd.2} parent=11 // pred_region
          _
        $region40: #{fwd.2} parent=11 // pred_fallthru
          _
        // Predicated region
        $region41: #{fwd.2} parent=11 // pred_check
          %p418 = pneg %p221
        $region42: #{fwd.2} parent=11 // pred_check_branch
          %420 = sbr.rel (%p418) target = $region44
        $region43: #{fwd.2} parent=11 // pred_region
          _
        $region44: #{fwd.2} parent=11 // pred_fallthru
          _
        // Predicated region
        $region45: #{fwd.2} parent=11 // pred_check
          %p421 = pneg %p242
        $region46: #{fwd.2} parent=11 // pred_check_branch
          %423 = sbr.rel (%p421) target = $region48
        $region47: #{fwd.2} parent=11 // pred_region
          _
        $region48: #{fwd.2} parent=11 // pred_fallthru
          _
        // Predicated region
        $region49: #{fwd.2} parent=11 // pred_check
          %p424 = pneg %p263
        $region50: #{fwd.2} parent=11 // pred_check_branch
          %426 = sbr.rel (%p424) target = $region52
        $region51: #{fwd.2} parent=11 // pred_region
          %s428 = ssub.s32 256, 256
          %429 = vsyncadd [#allocation12], %s428
          %s430 = sshll.u32 [#allocation11], 4
          %s431 = int_to_ptr.vmem [resolvable:$true] %s430
          %436 = dma.hbm_to_vmem [thread:$0]  %s10, 256, %s431, [#allocation12], 64, 64, 4
        $region52: #{fwd.2} parent=11 // pred_fallthru
          _
        // Predicated region
        $region53: #{fwd.2} parent=11 // pred_check
          %p437 = pneg %p284
        $region54: #{fwd.2} parent=11 // pred_check_branch
          %439 = sbr.rel (%p437) target = $region56
        $region55: #{fwd.2} parent=11 // pred_region
          _
        $region56: #{fwd.2} parent=11 // pred_fallthru
          _
        // Predicated region
        $region57: #{fwd.2} parent=11 // pred_check
          %p440 = pneg %p305
        $region58: #{fwd.2} parent=11 // pred_check_branch
          %442 = sbr.rel (%p440) target = $region60
        $region59: #{fwd.2} parent=11 // pred_region
          _
        $region60: #{fwd.2} parent=11 // pred_fallthru
          _
        // Predicated region
        $region61: #{fwd.2} parent=11 // pred_check
          %p443 = pneg %p326
        $region62: #{fwd.2} parent=11 // pred_check_branch
          %445 = sbr.rel (%p443) target = $region64
        $region63: #{fwd.2} parent=11 // pred_region
          _
        $region64: #{fwd.2} parent=11 // pred_fallthru
          _
      $region12: #{fwd.2} parent=5 // pred_fallthru
        _
      %p446 = scmp.lt.s32.totalorder %s27, 2
      // Predicated region
      $region65: #{fwd.2} parent=5 // pred_check
        %p447 = pneg %p446
      $region66: #{fwd.2} parent=5 // pred_check_branch
        %449 = sbr.rel (%p447) target = $region68
      $region67: #{fwd.2} parent=5 // pred_region
        // Predicated region
        $region69: #{fwd.2} parent=67 // pred_check
          %p450 = pneg %p47
        $region70: #{fwd.2} parent=67 // pred_check_branch
          %452 = sbr.rel (%p450) target = $region72
        $region71: #{fwd.2} parent=67 // pred_region
          %p453 = scmp.lt.s32.totalorder %s27, 1
          %s454 = scalar_select %p453, %s27, 1
          %s455 = smul.addr %s454, 32
          %s456 = smul.addr %s455, 4
          %s457 = scalar_lea.vmem %s0, %s456
        $region72: #{fwd.2} parent=67 // pred_fallthru
          _
      $region68: #{fwd.2} parent=5 // pred_fallthru
        _
      %p458 = scmp.le.s32.totalorder 1, %s27
      %p459 = scmp.lt.s32.totalorder %s27, 3
      %p460 = pnand %p458, %p459
      %p461 = pneg %p460
      // Predicated region
      $region73: #{fwd.2} parent=5 // pred_check
        _
      $region74: #{fwd.2} parent=5 // pred_check_branch
        %463 = sbr.rel (%p460) target = $region76
      $region75: #{fwd.2} parent=5 // pred_region
        #allocation15 [shape = 'u32[9]{0}', space=smem, size = 0x24, scoped, tag = 'DMA stride descriptor']
        %s464 = ssub.s32 %s27, 1
        // Predicated region
        $region77: #{fwd.2} parent=75 // pred_check
          %p465 = pneg %p74
        $region78: #{fwd.2} parent=75 // pred_check_branch
          %467 = sbr.rel (%p465) target = $region80
        $region79: #{fwd.2} parent=75 // pred_region
          %468 = dma.done [#allocation6], 1024
        $region80: #{fwd.2} parent=75 // pred_fallthru
          _
        // Predicated region
        $region81: #{fwd.2} parent=75 // pred_check
          %p469 = pneg %p95
        $region82: #{fwd.2} parent=75 // pred_check_branch
          %471 = sbr.rel (%p469) target = $region84
        $region83: #{fwd.2} parent=75 // pred_region
          %472 = dma.done [#allocation9], 256
        $region84: #{fwd.2} parent=75 // pred_fallthru
          _
        // Predicated region
        $region85: #{fwd.2} parent=75 // pred_check
          %p473 = pneg %p179
        $region86: #{fwd.2} parent=75 // pred_check_branch
          %475 = sbr.rel (%p473) target = $region88
        $region87: #{fwd.2} parent=75 // pred_region
          %476 = dma.done [#allocation9], 256
        $region88: #{fwd.2} parent=75 // pred_fallthru
          _
        // Predicated region
        $region89: #{fwd.2} parent=75 // pred_check
          %p477 = pneg %p263
        $region90: #{fwd.2} parent=75 // pred_check_branch
          %479 = sbr.rel (%p477) target = $region92
        $region91: #{fwd.2} parent=75 // pred_region
          %480 = dma.done [#allocation12], 256
        $region92: #{fwd.2} parent=75 // pred_fallthru
          _
        %p481 = scmp.lt.s32.totalorder %s32, 1
        %s482 = scalar_select %p481, %s32, 1
        %s483 = smul.addr %s482, 32
        %s484 = smul.addr %s483, 4
        %s485 = scalar_lea.vmem %s0, %s484
        %p486 = pneg %p53
        %p487 = pneg %p50
        %p488 = pneg %p74
        %p489 = pneg %p71
        %p490 = pneg %p95
        %p491 = pneg %p92
        %p492 = pneg %p116
        %p493 = pneg %p113
        %p494 = pneg %p137
        %p495 = pneg %p134
        %p496 = pneg %p158
        %p497 = pneg %p155
        %p498 = pneg %p179
        %p499 = pneg %p176
        %p500 = pneg %p200
        %p501 = pneg %p197
        %p502 = pneg %p221
        %p503 = pneg %p218
        %p504 = pneg %p242
        %p505 = pneg %p239
        %p506 = pneg %p263
        %p507 = pneg %p260
        %p508 = pneg %p284
        %p509 = pneg %p281
        %p510 = pneg %p305
        %p511 = pneg %p302
        %p512 = pneg %p326
        %p513 = pneg %p323
        %p514 = pneg %p352
        %p515 = pneg %p349
        %s516 = sand.u32 %s339, 1
        %s517 = scalar_lea.sflag [#allocation7], %s516
        %s518 = sand.u32 %s339, 1
        %s519 = smul.addr %s518, 256
        %s520 = scalar_lea.vmem [#allocation13], %s519
        %p521 = scmp.lt.s32.totalorder %s32, 1
        %s522 = scalar_select %p521, %s32, 1
        %s523 = smul.addr %s522, 32
        %s524 = smul.addr %s523, 4
        %s525 = scalar_lea.vmem %s0, %s524
        %s528 = sshll.u32 1, 14
        %s529 = sxor.u32 4294967295, %s528
        %s531 = sld [smem:[#allocation0]]
        %s532 = sadd.s32 2, %s531
        %s534 = sshll.u32 7, 26
        %s535 = sxor.u32 4294967295, %s534
        %s536 = sand.u32 0, %s535
        %s537 = sshll.u32 %s532, 26
        %s538 = sor.u32 %s536, %s537
        %s539 = sshll.u32 [#allocation2], 4
        %s540 = int_to_ptr.vmem [resolvable:$true] %s539
        %543 = sst [smem:[#allocation15]] 1536
        %s544 = scalar_lea.smem [#allocation15], 1
        %545 = sst [smem:[%s544]] 1536
        %s546 = scalar_lea.smem [#allocation15], 2
        %547 = sst [smem:[%s546]] 12
        %s548 = scalar_lea.smem [#allocation15], 3
        %549 = sst [smem:[%s548]] 64
        %s550 = scalar_lea.smem [#allocation15], 4
        %551 = sst [smem:[%s550]] 128
        %s552 = scalar_lea.smem [#allocation15], 5
        %553 = sst [smem:[%s552]] 2
        %s554 = scalar_lea.smem [#allocation15], 6
        %555 = sst [smem:[%s554]] 768
        %s556 = scalar_lea.smem [#allocation15], 7
        %557 = sst [smem:[%s556]] 64
        %s558 = scalar_lea.smem [#allocation15], 8
        %559 = sst [smem:[%s558]] 4
        %561 = dma.general %s14, 49152, %s540, [#allocation4], [#allocation14], [#allocation15], %s538, 0
        %v562 = vld [vmem:[%s525] sm:$0xff]
        %v563 = vld [vmem:[%s525 + $0x8] sm:$0xff]
        %v564 = vld [vmem:[%s525 + $0x10] sm:$0xff]
        %v565 = vld [vmem:[%s525 + $0x18] sm:$0xff]
        %v566 = vld [vmem:[%s525 + $0x20] sm:$0xff]
        %v567 = vld [vmem:[%s525 + $0x28] sm:$0xff]
        %v568 = vld [vmem:[%s525 + $0x30] sm:$0xff]
        %v569 = vld [vmem:[%s525 + $0x38] sm:$0xff]
        %v570 = vld [vmem:[%s525 + $0x40] sm:$0xff]
        %v571 = vld [vmem:[%s525 + $0x48] sm:$0xff]
        %v572 = vld [vmem:[%s525 + $0x50] sm:$0xff]
        %v573 = vld [vmem:[%s525 + $0x58] sm:$0xff]
        %v574 = vld [vmem:[%s525 + $0x60] sm:$0xff]
        %v575 = vld [vmem:[%s525 + $0x68] sm:$0xff]
        %v576 = vld [vmem:[%s525 + $0x70] sm:$0xff]
        %v577 = vld [vmem:[%s525 + $0x78] sm:$0xff]
        %v578 = vld [vmem:[#allocation10] sm:$0xf]
        %v579 = vld [vmem:[#allocation10 + $0x4] sm:$0xf]
        %v580 = vld [vmem:[#allocation10 + $0x8] sm:$0xf]
        %v581 = vld [vmem:[#allocation10 + $0xc] sm:$0xf]
        %v582 = vld [vmem:[%s7] sm:$0xff]
        %v583 = vld [vmem:[%s7 + $0x8] sm:$0xff]
        %v584 = vld [vmem:[%s7 + $0x10] sm:$0xff]
        %v585 = vld [vmem:[%s7 + $0x18] sm:$0xff]
        %587 = vset.pattern.permute.xlu0 0
        %588 = vperm.xlu0 %587, %v582
        %v589 = vpop.permute.xlu0 %588
        %592 = vset.pattern.permute.xlu0 0
        %593 = vperm.xlu0 %592, %v583
        %v594 = vpop.permute.xlu0 %593
        %597 = vset.pattern.permute.xlu0 0
        %598 = vperm.xlu0 %597, %v584
        %v599 = vpop.permute.xlu0 %598
        %602 = vset.pattern.permute.xlu0 0
        %603 = vperm.xlu0 %602, %v585
        %v604 = vpop.permute.xlu0 %603
        %v610 = vunpack.c.l.b16 %v578
        %v611 = vunpack.c.l.b16 %v579
        %v612 = vunpack.c.l.b16 %v580
        %v613 = vunpack.c.l.b16 %v581
        %v614 = vpack.c.b16 %v611, %v610
        %v615 = vpack.c.b16 %v613, %v612
        %v632 = vunpack.c.l.b16 %v562
        %v633 = vunpack.c.h.b16 %v562
        %v634 = vunpack.c.l.b16 %v563
        %v635 = vunpack.c.h.b16 %v563
        %v636 = vunpack.c.l.b16 %v564
        %v637 = vunpack.c.h.b16 %v564
        %v638 = vunpack.c.l.b16 %v565
        %v639 = vunpack.c.h.b16 %v565
        %v640 = vunpack.c.l.b16 %v566
        %v641 = vunpack.c.h.b16 %v566
        %v642 = vunpack.c.l.b16 %v567
        %v643 = vunpack.c.h.b16 %v567
        %v644 = vunpack.c.l.b16 %v568
        %v645 = vunpack.c.h.b16 %v568
        %v646 = vunpack.c.l.b16 %v569
        %v647 = vunpack.c.h.b16 %v569
        %v648 = vunpack.c.l.b16 %v570
        %v649 = vunpack.c.h.b16 %v570
        %v650 = vunpack.c.l.b16 %v571
        %v651 = vunpack.c.h.b16 %v571
        %v652 = vunpack.c.l.b16 %v572
        %v653 = vunpack.c.h.b16 %v572
        %v654 = vunpack.c.l.b16 %v573
        %v655 = vunpack.c.h.b16 %v573
        %v656 = vunpack.c.l.b16 %v574
        %v657 = vunpack.c.h.b16 %v574
        %v658 = vunpack.c.l.b16 %v575
        %v659 = vunpack.c.h.b16 %v575
        %v660 = vunpack.c.l.b16 %v576
        %v661 = vunpack.c.h.b16 %v576
        %v662 = vunpack.c.l.b16 %v577
        %v663 = vunpack.c.h.b16 %v577
        %v664 = vpack.c.b16 %v636, %v632
        %v665 = vpack.c.b16 %v637, %v633
        %v666 = vpack.c.b16 %v638, %v634
        %v667 = vpack.c.b16 %v639, %v635
        %v668 = vpack.c.b16 %v644, %v640
        %v669 = vpack.c.b16 %v645, %v641
        %v670 = vpack.c.b16 %v646, %v642
        %v671 = vpack.c.b16 %v647, %v643
        %v672 = vpack.c.b16 %v652, %v648
        %v673 = vpack.c.b16 %v653, %v649
        %v674 = vpack.c.b16 %v654, %v650
        %v675 = vpack.c.b16 %v655, %v651
        %v676 = vpack.c.b16 %v660, %v656
        %v677 = vpack.c.b16 %v661, %v657
        %v678 = vpack.c.b16 %v662, %v658
        %v679 = vpack.c.b16 %v663, %v659
        %vm696 = vcmask 523264
        %v698 = vsel %vm696, %v614, 0
        %v701 = vsel %vm696, %v615, 0
        %703 = vmatprep.subr.bf16.mxu0 %v665
        %704 = vmatpush1.bf16.msra.mxu0 %v664
        %705 = vmatprep.subr.bf16.mxu0 %v669
        %706 = vmatpush1.bf16.msra.mxu0 %v668
        %707 = vmatprep.subr.bf16.mxu0 %v673
        %708 = vmatpush1.bf16.msra.mxu0 %v672
        %709 = vmatprep.subr.bf16.mxu0 %v677
        %710 = vmatpush1.bf16.msra.mxu0 %v676
        %711 = vmatprep.subr.bf16.mxu0 0
        %712 = vmatpush1.bf16.msra.mxu0 0
        %713 = vmatprep.subr.bf16.mxu0 0
        %714 = vmatpush1.bf16.msra.mxu0 0
        %715 = vmatprep.subr.bf16.mxu0 0
        %716 = vmatpush1.bf16.msra.mxu0 0
        %717 = vmatprep.subr.bf16.mxu0 0
        %718 = vmatpush1.bf16.msra.mxu0 0
        %719 = vmatprep.subr.bf16.mxu0 0
        %720 = vmatpush1.bf16.msra.mxu0 0
        %721 = vmatprep.subr.bf16.mxu0 0
        %722 = vmatpush1.bf16.msra.mxu0 0
        %723 = vmatprep.subr.bf16.mxu0 0
        %724 = vmatpush1.bf16.msra.mxu0 0
        %725 = vmatprep.subr.bf16.mxu0 0
        %726 = vmatpush1.bf16.msra.mxu0 0
        %727 = vmatprep.subr.bf16.mxu0 0
        %728 = vmatpush1.bf16.msra.mxu0 0
        %729 = vmatprep.subr.bf16.mxu0 0
        %730 = vmatpush1.bf16.msra.mxu0 0
        %731 = vmatprep.subr.bf16.mxu0 0
        %732 = vmatpush1.bf16.msra.mxu0 0
        %733 = vmatprep.subr.bf16.mxu0 0
        %734 = vmatpush1.bf16.msra.mxu0 0
        %735 = vmatprep.mubr.bf16.mxu0 0
        %736 = vmatmul.mubr.bf16.gmra.mrb[0].mxu0 %v698
        %v737 = vpop.f32.mrb[0].mxu0
        %v738 = vadd.f32 %v589, %v737
        %v739 = vpop.f32.mrb[0].mxu0
        %v740 = vadd.f32 %v589, %v739
        %v741 = vpop.f32.mrb[0].mxu0
        %v742 = vadd.f32 %v594, %v741
        %v743 = vpop.f32.mrb[0].mxu0
        %v744 = vadd.f32 %v594, %v743
        %745 = vmatprep.mubr.bf16.mxu0 0
        %746 = vmatmul.mubr.bf16.gmra.mrb[0].mxu0 %v701
        %v747 = vpop.f32.mrb[0].mxu0
        %v748 = vadd.f32 %v599, %v747
        %v749 = vpop.f32.mrb[0].mxu0
        %v750 = vadd.f32 %v599, %v749
        %v751 = vpop.f32.mrb[0].mxu0
        %v752 = vadd.f32 %v604, %v751
        %v753 = vpop.f32.mrb[0].mxu0
        %v754 = vadd.f32 %v604, %v753
        %755 = vdwg.mxu0
        %756 = vmatprep.subr.bf16.mxu0 %v667
        %757 = vmatpush1.bf16.msra.mxu0 %v666
        %758 = vmatprep.subr.bf16.mxu0 %v671
        %759 = vmatpush1.bf16.msra.mxu0 %v670
        %760 = vmatprep.subr.bf16.mxu0 %v675
        %761 = vmatpush1.bf16.msra.mxu0 %v674
        %762 = vmatprep.subr.bf16.mxu0 %v679
        %763 = vmatpush1.bf16.msra.mxu0 %v678
        %764 = vmatprep.subr.bf16.mxu0 0
        %765 = vmatpush1.bf16.msra.mxu0 0
        %766 = vmatprep.subr.bf16.mxu0 0
        %767 = vmatpush1.bf16.msra.mxu0 0
        %768 = vmatprep.subr.bf16.mxu0 0
        %769 = vmatpush1.bf16.msra.mxu0 0
        %770 = vmatprep.subr.bf16.mxu0 0
        %771 = vmatpush1.bf16.msra.mxu0 0
        %772 = vmatprep.subr.bf16.mxu0 0
        %773 = vmatpush1.bf16.msra.mxu0 0
        %774 = vmatprep.subr.bf16.mxu0 0
        %775 = vmatpush1.bf16.msra.mxu0 0
        %776 = vmatprep.subr.bf16.mxu0 0
        %777 = vmatpush1.bf16.msra.mxu0 0
        %778 = vmatprep.subr.bf16.mxu0 0
        %779 = vmatpush1.bf16.msra.mxu0 0
        %780 = vmatprep.subr.bf16.mxu0 0
        %781 = vmatpush1.bf16.msra.mxu0 0
        %782 = vmatprep.subr.bf16.mxu0 0
        %783 = vmatpush1.bf16.msra.mxu0 0
        %784 = vmatprep.subr.bf16.mxu0 0
        %785 = vmatpush1.bf16.msra.mxu0 0
        %786 = vmatprep.subr.bf16.mxu0 0
        %787 = vmatpush1.bf16.msra.mxu0 0
        %788 = vmatprep.mubr.bf16.mxu0 0
        %789 = vmatmul.mubr.bf16.gmra.mrb[0].mxu0 %v698
        %v790 = vpop.f32.mrb[0].mxu0
        %v791 = vadd.f32 %v589, %v790
        %v792 = vpop.f32.mrb[0].mxu0
        %v793 = vadd.f32 %v589, %v792
        %v794 = vpop.f32.mrb[0].mxu0
        %v795 = vadd.f32 %v594, %v794
        %v796 = vpop.f32.mrb[0].mxu0
        %v797 = vadd.f32 %v594, %v796
        %798 = vmatprep.mubr.bf16.mxu0 0
        %799 = vmatmul.mubr.bf16.gmra.mrb[0].mxu0 %v701
        %v800 = vpop.f32.mrb[0].mxu0
        %v801 = vadd.f32 %v599, %v800
        %v802 = vpop.f32.mrb[0].mxu0
        %v803 = vadd.f32 %v599, %v802
        %v804 = vpop.f32.mrb[0].mxu0
        %v805 = vadd.f32 %v604, %v804
        %v806 = vpop.f32.mrb[0].mxu0
        %v807 = vadd.f32 %v604, %v806
        %808 = vdwg.mxu0
        %v809 = vmul.f32 %v738, 0.5
        %v810 = vmul.f32 %v740, 0.5
        %v811 = vmul.f32 %v791, 0.5
        %v812 = vmul.f32 %v793, 0.5
        %v813 = vmul.f32 %v742, 0.5
        %v814 = vmul.f32 %v744, 0.5
        %v815 = vmul.f32 %v795, 0.5
        %v816 = vmul.f32 %v797, 0.5
        %v817 = vmul.f32 %v748, 0.5
        %v818 = vmul.f32 %v750, 0.5
        %v819 = vmul.f32 %v801, 0.5
        %v820 = vmul.f32 %v803, 0.5
        %v821 = vmul.f32 %v752, 0.5
        %v822 = vmul.f32 %v754, 0.5
        %v823 = vmul.f32 %v805, 0.5
        %v824 = vmul.f32 %v807, 0.5
        %v825 = vmul.f32 %v738, 0.044715
        %v826 = vmul.f32 %v740, 0.044715
        %v827 = vmul.f32 %v791, 0.044715
        %v828 = vmul.f32 %v793, 0.044715
        %v829 = vmul.f32 %v742, 0.044715
        %v830 = vmul.f32 %v744, 0.044715
        %v831 = vmul.f32 %v795, 0.044715
        %v832 = vmul.f32 %v797, 0.044715
        %v833 = vmul.f32 %v748, 0.044715
        %v834 = vmul.f32 %v750, 0.044715
        %v835 = vmul.f32 %v801, 0.044715
        %v836 = vmul.f32 %v803, 0.044715
        %v837 = vmul.f32 %v752, 0.044715
        %v838 = vmul.f32 %v754, 0.044715
        %v839 = vmul.f32 %v805, 0.044715
        %v840 = vmul.f32 %v807, 0.044715
        %v841 = vmul.f32 %v825, %v738
        %v842 = vmul.f32 %v826, %v740
        %v843 = vmul.f32 %v827, %v791
        %v844 = vmul.f32 %v828, %v793
        %v845 = vmul.f32 %v829, %v742
        %v846 = vmul.f32 %v830, %v744
        %v847 = vmul.f32 %v831, %v795
        %v848 = vmul.f32 %v832, %v797
        %v849 = vmul.f32 %v833, %v748
        %v850 = vmul.f32 %v834, %v750
        %v851 = vmul.f32 %v835, %v801
        %v852 = vmul.f32 %v836, %v803
        %v853 = vmul.f32 %v837, %v752
        %v854 = vmul.f32 %v838, %v754
        %v855 = vmul.f32 %v839, %v805
        %v856 = vmul.f32 %v840, %v807
        %v857 = vmul.f32 %v841, %v738
        %v858 = vmul.f32 %v842, %v740
        %v859 = vmul.f32 %v843, %v791
        %v860 = vmul.f32 %v844, %v793
        %v861 = vmul.f32 %v845, %v742
        %v862 = vmul.f32 %v846, %v744
        %v863 = vmul.f32 %v847, %v795
        %v864 = vmul.f32 %v848, %v797
        %v865 = vmul.f32 %v849, %v748
        %v866 = vmul.f32 %v850, %v750
        %v867 = vmul.f32 %v851, %v801
        %v868 = vmul.f32 %v852, %v803
        %v869 = vmul.f32 %v853, %v752
        %v870 = vmul.f32 %v854, %v754
        %v871 = vmul.f32 %v855, %v805
        %v872 = vmul.f32 %v856, %v807
        %v873 = vadd.f32 %v738, %v857
        %v874 = vadd.f32 %v740, %v858
        %v875 = vadd.f32 %v791, %v859
        %v876 = vadd.f32 %v793, %v860
        %v877 = vadd.f32 %v742, %v861
        %v878 = vadd.f32 %v744, %v862
        %v879 = vadd.f32 %v795, %v863
        %v880 = vadd.f32 %v797, %v864
        %v881 = vadd.f32 %v748, %v865
        %v882 = vadd.f32 %v750, %v866
        %v883 = vadd.f32 %v801, %v867
        %v884 = vadd.f32 %v803, %v868
        %v885 = vadd.f32 %v752, %v869
        %v886 = vadd.f32 %v754, %v870
        %v887 = vadd.f32 %v805, %v871
        %v888 = vadd.f32 %v807, %v872
        %v889 = vmul.f32 %v873, 0.7978846
        %v890 = vmul.f32 %v874, 0.7978846
        %v891 = vmul.f32 %v875, 0.7978846
        %v892 = vmul.f32 %v876, 0.7978846
        %v893 = vmul.f32 %v877, 0.7978846
        %v894 = vmul.f32 %v878, 0.7978846
        %v895 = vmul.f32 %v879, 0.7978846
        %v896 = vmul.f32 %v880, 0.7978846
        %v897 = vmul.f32 %v881, 0.7978846
        %v898 = vmul.f32 %v882, 0.7978846
        %v899 = vmul.f32 %v883, 0.7978846
        %v900 = vmul.f32 %v884, 0.7978846
        %v901 = vmul.f32 %v885, 0.7978846
        %v902 = vmul.f32 %v886, 0.7978846
        %v903 = vmul.f32 %v887, 0.7978846
        %v904 = vmul.f32 %v888, 0.7978846
        %v905 = vtanh.pop %v889
        %v906 = vtanh.pop %v890
        %v907 = vtanh.pop %v891
        %v908 = vtanh.pop %v892
        %v909 = vtanh.pop %v893
        %v910 = vtanh.pop %v894
        %v911 = vtanh.pop %v895
        %v912 = vtanh.pop %v896
        %v913 = vtanh.pop %v897
        %v914 = vtanh.pop %v898
        %v915 = vtanh.pop %v899
        %v916 = vtanh.pop %v900
        %v917 = vtanh.pop %v901
        %v918 = vtanh.pop %v902
        %v919 = vtanh.pop %v903
        %v920 = vtanh.pop %v904
        %v921 = vadd.f32 %v905, 1.0
        %v922 = vadd.f32 %v906, 1.0
        %v923 = vadd.f32 %v907, 1.0
        %v924 = vadd.f32 %v908, 1.0
        %v925 = vadd.f32 %v909, 1.0
        %v926 = vadd.f32 %v910, 1.0
        %v927 = vadd.f32 %v911, 1.0
        %v928 = vadd.f32 %v912, 1.0
        %v929 = vadd.f32 %v913, 1.0
        %v930 = vadd.f32 %v914, 1.0
        %v931 = vadd.f32 %v915, 1.0
        %v932 = vadd.f32 %v916, 1.0
        %v933 = vadd.f32 %v917, 1.0
        %v934 = vadd.f32 %v918, 1.0
        %v935 = vadd.f32 %v919, 1.0
        %v936 = vadd.f32 %v920, 1.0
        %v937 = vmul.f32 %v809, %v921
        %v938 = vmul.f32 %v810, %v922
        %v939 = vmul.f32 %v811, %v923
        %v940 = vmul.f32 %v812, %v924
        %v941 = vmul.f32 %v813, %v925
        %v942 = vmul.f32 %v814, %v926
        %v943 = vmul.f32 %v815, %v927
        %v944 = vmul.f32 %v816, %v928
        %v945 = vmul.f32 %v817, %v929
        %v946 = vmul.f32 %v818, %v930
        %v947 = vmul.f32 %v819, %v931
        %v948 = vmul.f32 %v820, %v932
        %v949 = vmul.f32 %v821, %v933
        %v950 = vmul.f32 %v822, %v934
        %v951 = vmul.f32 %v823, %v935
        %v952 = vmul.f32 %v824, %v936
        %v953 = vld [vmem:[%s8] sm:$0xf]
        %v954 = vld [vmem:[%s8 + $0x4] sm:$0xf]
        %v955 = vld [vmem:[%s8 + $0x8] sm:$0xf]
        %v956 = vld [vmem:[%s8 + $0xc] sm:$0xf]
        %v957 = vld [vmem:[%s8 + $0x10] sm:$0xf]
        %v958 = vld [vmem:[%s8 + $0x14] sm:$0xf]
        %v959 = vld [vmem:[%s8 + $0x18] sm:$0xf]
        %v960 = vld [vmem:[%s8 + $0x1c] sm:$0xf]
        %v961 = vpack.c.bf16 %v941, %v937
        %v962 = vpack.c.bf16 %v942, %v938
        %v963 = vpack.c.bf16 %v943, %v939
        %v964 = vpack.c.bf16 %v944, %v940
        %v965 = vpack.c.bf16 %v949, %v945
        %v966 = vpack.c.bf16 %v950, %v946
        %v967 = vpack.c.bf16 %v951, %v947
        %v968 = vpack.c.bf16 %v952, %v948
        %v969 = vld [vmem:[%s9] sm:$0xff]
        %v970 = vld [vmem:[%s9 + $0x8] sm:$0xff]
        %v971 = vld [vmem:[%s9 + $0x10] sm:$0xff]
        %v972 = vld [vmem:[%s9 + $0x18] sm:$0xff]
        %v973 = vld [vmem:[%s9 + $0x20] sm:$0xff]
        %v974 = vld [vmem:[%s9 + $0x28] sm:$0xff]
        %v975 = vld [vmem:[%s9 + $0x30] sm:$0xff]
        %v976 = vld [vmem:[%s9 + $0x38] sm:$0xff]
        %978 = vset.pattern.permute.xlu0 0
        %979 = vperm.xlu0 %978, %v969
        %v980 = vpop.permute.xlu0 %979
        %983 = vset.pattern.permute.xlu0 0
        %984 = vperm.xlu0 %983, %v970
        %v985 = vpop.permute.xlu0 %984
        %988 = vset.pattern.permute.xlu0 0
        %989 = vperm.xlu0 %988, %v971
        %v990 = vpop.permute.xlu0 %989
        %993 = vset.pattern.permute.xlu0 0
        %994 = vperm.xlu0 %993, %v972
        %v995 = vpop.permute.xlu0 %994
        %998 = vset.pattern.permute.xlu0 0
        %999 = vperm.xlu0 %998, %v973
        %v1000 = vpop.permute.xlu0 %999
        %1003 = vset.pattern.permute.xlu0 0
        %1004 = vperm.xlu0 %1003, %v974
        %v1005 = vpop.permute.xlu0 %1004
        %1008 = vset.pattern.permute.xlu0 0
        %1009 = vperm.xlu0 %1008, %v975
        %v1010 = vpop.permute.xlu0 %1009
        %1013 = vset.pattern.permute.xlu0 0
        %1014 = vperm.xlu0 %1013, %v976
        %v1015 = vpop.permute.xlu0 %1014
        %v1025 = vunpack.c.l.b16 %v953
        %v1026 = vunpack.c.l.b16 %v954
        %v1027 = vunpack.c.l.b16 %v955
        %v1028 = vunpack.c.l.b16 %v956
        %v1029 = vunpack.c.l.b16 %v957
        %v1030 = vunpack.c.l.b16 %v958
        %v1031 = vunpack.c.l.b16 %v959
        %v1032 = vunpack.c.l.b16 %v960
        %v1033 = vpack.c.b16 %v1026, %v1025
        %v1034 = vpack.c.b16 %v1028, %v1027
        %v1035 = vpack.c.b16 %v1030, %v1029
        %v1036 = vpack.c.b16 %v1032, %v1031
        %vm1037 = vcmask 261120
        %v1039 = vsel %vm1037, %v1033, 0
        %v1042 = vsel %vm1037, %v1034, 0
        %v1045 = vsel %vm1037, %v1035, 0
        %v1048 = vsel %vm1037, %v1036, 0
        %1050 = vmatprep.subr.bf16.mxu0 %v962
        %1051 = vmatpush1.bf16.msra.mxu0 %v961
        %1052 = vmatprep.subr.bf16.mxu0 %v966
        %1053 = vmatpush1.bf16.msra.mxu0 %v965
        %1054 = vmatprep.subr.bf16.mxu0 0
        %1055 = vmatpush1.bf16.msra.mxu0 0
        %1056 = vmatprep.subr.bf16.mxu0 0
        %1057 = vmatpush1.bf16.msra.mxu0 0
        %1058 = vmatprep.subr.bf16.mxu0 0
        %1059 = vmatpush1.bf16.msra.mxu0 0
        %1060 = vmatprep.subr.bf16.mxu0 0
        %1061 = vmatpush1.bf16.msra.mxu0 0
        %1062 = vmatprep.subr.bf16.mxu0 0
        %1063 = vmatpush1.bf16.msra.mxu0 0
        %1064 = vmatprep.subr.bf16.mxu0 0
        %1065 = vmatpush1.bf16.msra.mxu0 0
        %1066 = vmatprep.subr.bf16.mxu0 0
        %1067 = vmatpush1.bf16.msra.mxu0 0
        %1068 = vmatprep.subr.bf16.mxu0 0
        %1069 = vmatpush1.bf16.msra.mxu0 0
        %1070 = vmatprep.subr.bf16.mxu0 0
        %1071 = vmatpush1.bf16.msra.mxu0 0
        %1072 = vmatprep.subr.bf16.mxu0 0
        %1073 = vmatpush1.bf16.msra.mxu0 0
        %1074 = vmatprep.subr.bf16.mxu0 0
        %1075 = vmatpush1.bf16.msra.mxu0 0
        %1076 = vmatprep.subr.bf16.mxu0 0
        %1077 = vmatpush1.bf16.msra.mxu0 0
        %1078 = vmatprep.subr.bf16.mxu0 0
        %1079 = vmatpush1.bf16.msra.mxu0 0
        %1080 = vmatprep.subr.bf16.mxu0 0
        %1081 = vmatpush1.bf16.msra.mxu0 0
        %1082 = vmatprep.mubr.bf16.mxu0 0
        %1083 = vmatmul.mubr.bf16.gmra.mrb[0].mxu0 %v1039
        %v1084 = vpop.f32.mrb[0].mxu0
        %v1085 = vadd.f32 %v980, %v1084
        %v1086 = vpop.f32.mrb[0].mxu0
        %v1087 = vadd.f32 %v980, %v1086
        %v1088 = vpop.f32.mrb[0].mxu0
        %v1089 = vadd.f32 %v985, %v1088
        %v1090 = vpop.f32.mrb[0].mxu0
        %v1091 = vadd.f32 %v985, %v1090
        %1092 = vmatprep.mubr.bf16.mxu0 0
        %1093 = vmatmul.mubr.bf16.gmra.mrb[0].mxu0 %v1042
        %v1094 = vpop.f32.mrb[0].mxu0
        %v1095 = vadd.f32 %v990, %v1094
        %v1096 = vpop.f32.mrb[0].mxu0
        %v1097 = vadd.f32 %v990, %v1096
        %v1098 = vpop.f32.mrb[0].mxu0
        %v1099 = vadd.f32 %v995, %v1098
        %v1100 = vpop.f32.mrb[0].mxu0
        %v1101 = vadd.f32 %v995, %v1100
        %1102 = vmatprep.mubr.bf16.mxu0 0
        %1103 = vmatmul.mubr.bf16.gmra.mrb[0].mxu0 %v1045
        %v1104 = vpop.f32.mrb[0].mxu0
        %v1105 = vadd.f32 %v1000, %v1104
        %v1106 = vpop.f32.mrb[0].mxu0
        %v1107 = vadd.f32 %v1000, %v1106
        %v1108 = vpop.f32.mrb[0].mxu0
        %v1109 = vadd.f32 %v1005, %v1108
        %v1110 = vpop.f32.mrb[0].mxu0
        %v1111 = vadd.f32 %v1005, %v1110
        %1112 = vmatprep.mubr.bf16.mxu0 0
        %1113 = vmatmul.mubr.bf16.gmra.mrb[0].mxu0 %v1048
        %v1114 = vpop.f32.mrb[0].mxu0
        %v1115 = vadd.f32 %v1010, %v1114
        %v1116 = vpop.f32.mrb[0].mxu0
        %v1117 = vadd.f32 %v1010, %v1116
        %v1118 = vpop.f32.mrb[0].mxu0
        %v1119 = vadd.f32 %v1015, %v1118
        %v1120 = vpop.f32.mrb[0].mxu0
        %v1121 = vadd.f32 %v1015, %v1120
        %1122 = vdwg.mxu0
        %1123 = vmatprep.subr.bf16.mxu0 %v964
        %1124 = vmatpush1.bf16.msra.mxu0 %v963
        %1125 = vmatprep.subr.bf16.mxu0 %v968
        %1126 = vmatpush1.bf16.msra.mxu0 %v967
        %1127 = vmatprep.subr.bf16.mxu0 0
        %1128 = vmatpush1.bf16.msra.mxu0 0
        %1129 = vmatprep.subr.bf16.mxu0 0
        %1130 = vmatpush1.bf16.msra.mxu0 0
        %1131 = vmatprep.subr.bf16.mxu0 0
        %1132 = vmatpush1.bf16.msra.mxu0 0
        %1133 = vmatprep.subr.bf16.mxu0 0
        %1134 = vmatpush1.bf16.msra.mxu0 0
        %1135 = vmatprep.subr.bf16.mxu0 0
        %1136 = vmatpush1.bf16.msra.mxu0 0
        %1137 = vmatprep.subr.bf16.mxu0 0
        %1138 = vmatpush1.bf16.msra.mxu0 0
        %1139 = vmatprep.subr.bf16.mxu0 0
        %1140 = vmatpush1.bf16.msra.mxu0 0
        %1141 = vmatprep.subr.bf16.mxu0 0
        %1142 = vmatpush1.bf16.msra.mxu0 0
        %1143 = vmatprep.subr.bf16.mxu0 0
        %1144 = vmatpush1.bf16.msra.mxu0 0
        %1145 = vmatprep.subr.bf16.mxu0 0
        %1146 = vmatpush1.bf16.msra.mxu0 0
        %1147 = vmatprep.subr.bf16.mxu0 0
        %1148 = vmatpush1.bf16.msra.mxu0 0
        %1149 = vmatprep.subr.bf16.mxu0 0
        %1150 = vmatpush1.bf16.msra.mxu0 0
        %1151 = vmatprep.subr.bf16.mxu0 0
        %1152 = vmatpush1.bf16.msra.mxu0 0
        %1153 = vmatprep.subr.bf16.mxu0 0
        %1154 = vmatpush1.bf16.msra.mxu0 0
        %1155 = vmatprep.mubr.bf16.mxu0 0
        %1156 = vmatmul.mubr.bf16.gmra.mrb[0].mxu0 %v1039
        %v1157 = vpop.f32.mrb[0].mxu0
        %v1158 = vadd.f32 %v980, %v1157
        %v1159 = vpop.f32.mrb[0].mxu0
        %v1160 = vadd.f32 %v980, %v1159
        %v1161 = vpop.f32.mrb[0].mxu0
        %v1162 = vadd.f32 %v985, %v1161
        %v1163 = vpop.f32.mrb[0].mxu0
        %v1164 = vadd.f32 %v985, %v1163
        %1165 = vmatprep.mubr.bf16.mxu0 0
        %1166 = vmatmul.mubr.bf16.gmra.mrb[0].mxu0 %v1042
        %v1167 = vpop.f32.mrb[0].mxu0
        %v1168 = vadd.f32 %v990, %v1167
        %v1169 = vpop.f32.mrb[0].mxu0
        %v1170 = vadd.f32 %v990, %v1169
        %v1171 = vpop.f32.mrb[0].mxu0
        %v1172 = vadd.f32 %v995, %v1171
        %v1173 = vpop.f32.mrb[0].mxu0
        %v1174 = vadd.f32 %v995, %v1173
        %1175 = vmatprep.mubr.bf16.mxu0 0
        %1176 = vmatmul.mubr.bf16.gmra.mrb[0].mxu0 %v1045
        %v1177 = vpop.f32.mrb[0].mxu0
        %v1178 = vadd.f32 %v1000, %v1177
        %v1179 = vpop.f32.mrb[0].mxu0
        %v1180 = vadd.f32 %v1000, %v1179
        %v1181 = vpop.f32.mrb[0].mxu0
        %v1182 = vadd.f32 %v1005, %v1181
        %v1183 = vpop.f32.mrb[0].mxu0
        %v1184 = vadd.f32 %v1005, %v1183
        %1185 = vmatprep.mubr.bf16.mxu0 0
        %1186 = vmatmul.mubr.bf16.gmra.mrb[0].mxu0 %v1048
        %v1187 = vpop.f32.mrb[0].mxu0
        %v1188 = vadd.f32 %v1010, %v1187
        %v1189 = vpop.f32.mrb[0].mxu0
        %v1190 = vadd.f32 %v1010, %v1189
        %v1191 = vpop.f32.mrb[0].mxu0
        %v1192 = vadd.f32 %v1015, %v1191
        %v1193 = vpop.f32.mrb[0].mxu0
        %v1194 = vadd.f32 %v1015, %v1193
        %1195 = vdwg.mxu0
        %s1196 = smul.u32 4, 64
        %s1197 = smul.u32 %s1196, 12
        %s1198 = sshll.u32 %s1197, 4
        %1199 = dma.done [#allocation4], %s1198
        %v1200 = vld [vmem:[#allocation2] sm:$0xff]
        %v1201 = vld [vmem:[#allocation2 + $0x8] sm:$0xff]
        %v1202 = vld [vmem:[#allocation2 + $0x10] sm:$0xff]
        %v1203 = vld [vmem:[#allocation2 + $0x18] sm:$0xff]
        %v1204 = vld [vmem:[#allocation2 + $0x20] sm:$0xff]
        %v1205 = vld [vmem:[#allocation2 + $0x28] sm:$0xff]
        %v1206 = vld [vmem:[#allocation2 + $0x30] sm:$0xff]
        %v1207 = vld [vmem:[#allocation2 + $0x38] sm:$0xff]
        %v1208 = vld [vmem:[#allocation2 + $0x40] sm:$0xff]
        %v1209 = vld [vmem:[#allocation2 + $0x48] sm:$0xff]
        %v1210 = vld [vmem:[#allocation2 + $0x50] sm:$0xff]
        %v1211 = vld [vmem:[#allocation2 + $0x58] sm:$0xff]
        %v1212 = vld [vmem:[#allocation2 + $0x60] sm:$0xff]
        %v1213 = vld [vmem:[#allocation2 + $0x68] sm:$0xff]
        %v1214 = vld [vmem:[#allocation2 + $0x70] sm:$0xff]
        %v1215 = vld [vmem:[#allocation2 + $0x78] sm:$0xff]
        %v1216 = vld [vmem:[#allocation2 + $0x80] sm:$0xff]
        %v1217 = vld [vmem:[#allocation2 + $0x88] sm:$0xff]
        %v1218 = vld [vmem:[#allocation2 + $0x90] sm:$0xff]
        %v1219 = vld [vmem:[#allocation2 + $0x98] sm:$0xff]
        %v1220 = vld [vmem:[#allocation2 + $0xa0] sm:$0xff]
        %v1221 = vld [vmem:[#allocation2 + $0xa8] sm:$0xff]
        %v1222 = vld [vmem:[#allocation2 + $0xb0] sm:$0xff]
        %v1223 = vld [vmem:[#allocation2 + $0xb8] sm:$0xff]
        %v1224 = vld [vmem:[#allocation2 + $0xc0] sm:$0xff]
        %v1225 = vld [vmem:[#allocation2 + $0xc8] sm:$0xff]
        %v1226 = vld [vmem:[#allocation2 + $0xd0] sm:$0xff]
        %v1227 = vld [vmem:[#allocation2 + $0xd8] sm:$0xff]
        %v1228 = vld [vmem:[#allocation2 + $0xe0] sm:$0xff]
        %v1229 = vld [vmem:[#allocation2 + $0xe8] sm:$0xff]
        %v1230 = vld [vmem:[#allocation2 + $0xf0] sm:$0xff]
        %v1231 = vld [vmem:[#allocation2 + $0xf8] sm:$0xff]
        %v1232 = vld [vmem:[#allocation2 + $0x100] sm:$0xff]
        %v1233 = vld [vmem:[#allocation2 + $0x108] sm:$0xff]
        %v1234 = vld [vmem:[#allocation2 + $0x110] sm:$0xff]
        %v1235 = vld [vmem:[#allocation2 + $0x118] sm:$0xff]
        %v1236 = vld [vmem:[#allocation2 + $0x120] sm:$0xff]
        %v1237 = vld [vmem:[#allocation2 + $0x128] sm:$0xff]
        %v1238 = vld [vmem:[#allocation2 + $0x130] sm:$0xff]
        %v1239 = vld [vmem:[#allocation2 + $0x138] sm:$0xff]
        %v1240 = vld [vmem:[#allocation2 + $0x140] sm:$0xff]
        %v1241 = vld [vmem:[#allocation2 + $0x148] sm:$0xff]
        %v1242 = vld [vmem:[#allocation2 + $0x150] sm:$0xff]
        %v1243 = vld [vmem:[#allocation2 + $0x158] sm:$0xff]
        %v1244 = vld [vmem:[#allocation2 + $0x160] sm:$0xff]
        %v1245 = vld [vmem:[#allocation2 + $0x168] sm:$0xff]
        %v1246 = vld [vmem:[#allocation2 + $0x170] sm:$0xff]
        %v1247 = vld [vmem:[#allocation2 + $0x178] sm:$0xff]
        %v1248 = vld [vmem:[#allocation2 + $0x180] sm:$0xff]
        %v1249 = vld [vmem:[#allocation2 + $0x188] sm:$0xff]
        %v1250 = vld [vmem:[#allocation2 + $0x190] sm:$0xff]
        %v1251 = vld [vmem:[#allocation2 + $0x198] sm:$0xff]
        %v1252 = vld [vmem:[#allocation2 + $0x1a0] sm:$0xff]
        %v1253 = vld [vmem:[#allocation2 + $0x1a8] sm:$0xff]
        %v1254 = vld [vmem:[#allocation2 + $0x1b0] sm:$0xff]
        %v1255 = vld [vmem:[#allocation2 + $0x1b8] sm:$0xff]
        %v1256 = vld [vmem:[#allocation2 + $0x1c0] sm:$0xff]
        %v1257 = vld [vmem:[#allocation2 + $0x1c8] sm:$0xff]
        %v1258 = vld [vmem:[#allocation2 + $0x1d0] sm:$0xff]
        %v1259 = vld [vmem:[#allocation2 + $0x1d8] sm:$0xff]
        %v1260 = vld [vmem:[#allocation2 + $0x1e0] sm:$0xff]
        %v1261 = vld [vmem:[#allocation2 + $0x1e8] sm:$0xff]
        %v1262 = vld [vmem:[#allocation2 + $0x1f0] sm:$0xff]
        %v1263 = vld [vmem:[#allocation2 + $0x1f8] sm:$0xff]
        %v1264 = vld [vmem:[#allocation2 + $0x200] sm:$0xff]
        %v1265 = vld [vmem:[#allocation2 + $0x208] sm:$0xff]
        %v1266 = vld [vmem:[#allocation2 + $0x210] sm:$0xff]
        %v1267 = vld [vmem:[#allocation2 + $0x218] sm:$0xff]
        %v1268 = vld [vmem:[#allocation2 + $0x220] sm:$0xff]
        %v1269 = vld [vmem:[#allocation2 + $0x228] sm:$0xff]
        %v1270 = vld [vmem:[#allocation2 + $0x230] sm:$0xff]
        %v1271 = vld [vmem:[#allocation2 + $0x238] sm:$0xff]
        %v1272 = vld [vmem:[#allocation2 + $0x240] sm:$0xff]
        %v1273 = vld [vmem:[#allocation2 + $0x248] sm:$0xff]
        %v1274 = vld [vmem:[#allocation2 + $0x250] sm:$0xff]
        %v1275 = vld [vmem:[#allocation2 + $0x258] sm:$0xff]
        %v1276 = vld [vmem:[#allocation2 + $0x260] sm:$0xff]
        %v1277 = vld [vmem:[#allocation2 + $0x268] sm:$0xff]
        %v1278 = vld [vmem:[#allocation2 + $0x270] sm:$0xff]
        %v1279 = vld [vmem:[#allocation2 + $0x278] sm:$0xff]
        %v1280 = vld [vmem:[#allocation2 + $0x280] sm:$0xff]
        %v1281 = vld [vmem:[#allocation2 + $0x288] sm:$0xff]
        %v1282 = vld [vmem:[#allocation2 + $0x290] sm:$0xff]
        %v1283 = vld [vmem:[#allocation2 + $0x298] sm:$0xff]
        %v1284 = vld [vmem:[#allocation2 + $0x2a0] sm:$0xff]
        %v1285 = vld [vmem:[#allocation2 + $0x2a8] sm:$0xff]
        %v1286 = vld [vmem:[#allocation2 + $0x2b0] sm:$0xff]
        %v1287 = vld [vmem:[#allocation2 + $0x2b8] sm:$0xff]
        %v1288 = vld [vmem:[#allocation2 + $0x2c0] sm:$0xff]
        %v1289 = vld [vmem:[#allocation2 + $0x2c8] sm:$0xff]
        %v1290 = vld [vmem:[#allocation2 + $0x2d0] sm:$0xff]
        %v1291 = vld [vmem:[#allocation2 + $0x2d8] sm:$0xff]
        %v1292 = vld [vmem:[#allocation2 + $0x2e0] sm:$0xff]
        %v1293 = vld [vmem:[#allocation2 + $0x2e8] sm:$0xff]
        %v1294 = vld [vmem:[#allocation2 + $0x2f0] sm:$0xff]
        %v1295 = vld [vmem:[#allocation2 + $0x2f8] sm:$0xff]
        %v1296 = vld [vmem:[#allocation2 + $0x300] sm:$0xff]
        %v1297 = vld [vmem:[#allocation2 + $0x308] sm:$0xff]
        %v1298 = vld [vmem:[#allocation2 + $0x310] sm:$0xff]
        %v1299 = vld [vmem:[#allocation2 + $0x318] sm:$0xff]
        %v1300 = vld [vmem:[#allocation2 + $0x320] sm:$0xff]
        %v1301 = vld [vmem:[#allocation2 + $0x328] sm:$0xff]
        %v1302 = vld [vmem:[#allocation2 + $0x330] sm:$0xff]
        %v1303 = vld [vmem:[#allocation2 + $0x338] sm:$0xff]
        %v1304 = vld [vmem:[#allocation2 + $0x340] sm:$0xff]
        %v1305 = vld [vmem:[#allocation2 + $0x348] sm:$0xff]
        %v1306 = vld [vmem:[#allocation2 + $0x350] sm:$0xff]
        %v1307 = vld [vmem:[#allocation2 + $0x358] sm:$0xff]
        %v1308 = vld [vmem:[#allocation2 + $0x360] sm:$0xff]
        %v1309 = vld [vmem:[#allocation2 + $0x368] sm:$0xff]
        %v1310 = vld [vmem:[#allocation2 + $0x370] sm:$0xff]
        %v1311 = vld [vmem:[#allocation2 + $0x378] sm:$0xff]
        %v1312 = vld [vmem:[#allocation2 + $0x380] sm:$0xff]
        %v1313 = vld [vmem:[#allocation2 + $0x388] sm:$0xff]
        %v1314 = vld [vmem:[#allocation2 + $0x390] sm:$0xff]
        %v1315 = vld [vmem:[#allocation2 + $0x398] sm:$0xff]
        %v1316 = vld [vmem:[#allocation2 + $0x3a0] sm:$0xff]
        %v1317 = vld [vmem:[#allocation2 + $0x3a8] sm:$0xff]
        %v1318 = vld [vmem:[#allocation2 + $0x3b0] sm:$0xff]
        %v1319 = vld [vmem:[#allocation2 + $0x3b8] sm:$0xff]
        %v1320 = vld [vmem:[#allocation2 + $0x3c0] sm:$0xff]
        %v1321 = vld [vmem:[#allocation2 + $0x3c8] sm:$0xff]
        %v1322 = vld [vmem:[#allocation2 + $0x3d0] sm:$0xff]
        %v1323 = vld [vmem:[#allocation2 + $0x3d8] sm:$0xff]
        %v1324 = vld [vmem:[#allocation2 + $0x3e0] sm:$0xff]
        %v1325 = vld [vmem:[#allocation2 + $0x3e8] sm:$0xff]
        %v1326 = vld [vmem:[#allocation2 + $0x3f0] sm:$0xff]
        %v1327 = vld [vmem:[#allocation2 + $0x3f8] sm:$0xff]
        %v1328 = vld [vmem:[#allocation2 + $0x400] sm:$0xff]
        %v1329 = vld [vmem:[#allocation2 + $0x408] sm:$0xff]
        %v1330 = vld [vmem:[#allocation2 + $0x410] sm:$0xff]
        %v1331 = vld [vmem:[#allocation2 + $0x418] sm:$0xff]
        %v1332 = vld [vmem:[#allocation2 + $0x420] sm:$0xff]
        %v1333 = vld [vmem:[#allocation2 + $0x428] sm:$0xff]
        %v1334 = vld [vmem:[#allocation2 + $0x430] sm:$0xff]
        %v1335 = vld [vmem:[#allocation2 + $0x438] sm:$0xff]
        %v1336 = vld [vmem:[#allocation2 + $0x440] sm:$0xff]
        %v1337 = vld [vmem:[#allocation2 + $0x448] sm:$0xff]
        %v1338 = vld [vmem:[#allocation2 + $0x450] sm:$0xff]
        %v1339 = vld [vmem:[#allocation2 + $0x458] sm:$0xff]
        %v1340 = vld [vmem:[#allocation2 + $0x460] sm:$0xff]
        %v1341 = vld [vmem:[#allocation2 + $0x468] sm:$0xff]
        %v1342 = vld [vmem:[#allocation2 + $0x470] sm:$0xff]
        %v1343 = vld [vmem:[#allocation2 + $0x478] sm:$0xff]
        %v1344 = vld [vmem:[#allocation2 + $0x480] sm:$0xff]
        %v1345 = vld [vmem:[#allocation2 + $0x488] sm:$0xff]
        %v1346 = vld [vmem:[#allocation2 + $0x490] sm:$0xff]
        %v1347 = vld [vmem:[#allocation2 + $0x498] sm:$0xff]
        %v1348 = vld [vmem:[#allocation2 + $0x4a0] sm:$0xff]
        %v1349 = vld [vmem:[#allocation2 + $0x4a8] sm:$0xff]
        %v1350 = vld [vmem:[#allocation2 + $0x4b0] sm:$0xff]
        %v1351 = vld [vmem:[#allocation2 + $0x4b8] sm:$0xff]
        %v1352 = vld [vmem:[#allocation2 + $0x4c0] sm:$0xff]
        %v1353 = vld [vmem:[#allocation2 + $0x4c8] sm:$0xff]
        %v1354 = vld [vmem:[#allocation2 + $0x4d0] sm:$0xff]
        %v1355 = vld [vmem:[#allocation2 + $0x4d8] sm:$0xff]
        %v1356 = vld [vmem:[#allocation2 + $0x4e0] sm:$0xff]
        %v1357 = vld [vmem:[#allocation2 + $0x4e8] sm:$0xff]
        %v1358 = vld [vmem:[#allocation2 + $0x4f0] sm:$0xff]
        %v1359 = vld [vmem:[#allocation2 + $0x4f8] sm:$0xff]
        %v1360 = vld [vmem:[#allocation2 + $0x500] sm:$0xff]
        %v1361 = vld [vmem:[#allocation2 + $0x508] sm:$0xff]
        %v1362 = vld [vmem:[#allocation2 + $0x510] sm:$0xff]
        %v1363 = vld [vmem:[#allocation2 + $0x518] sm:$0xff]
        %v1364 = vld [vmem:[#allocation2 + $0x520] sm:$0xff]
        %v1365 = vld [vmem:[#allocation2 + $0x528] sm:$0xff]
        %v1366 = vld [vmem:[#allocation2 + $0x530] sm:$0xff]
        %v1367 = vld [vmem:[#allocation2 + $0x538] sm:$0xff]
        %v1368 = vld [vmem:[#allocation2 + $0x540] sm:$0xff]
        %v1369 = vld [vmem:[#allocation2 + $0x548] sm:$0xff]
        %v1370 = vld [vmem:[#allocation2 + $0x550] sm:$0xff]
        %v1371 = vld [vmem:[#allocation2 + $0x558] sm:$0xff]
        %v1372 = vld [vmem:[#allocation2 + $0x560] sm:$0xff]
        %v1373 = vld [vmem:[#allocation2 + $0x568] sm:$0xff]
        %v1374 = vld [vmem:[#allocation2 + $0x570] sm:$0xff]
        %v1375 = vld [vmem:[#allocation2 + $0x578] sm:$0xff]
        %v1376 = vld [vmem:[#allocation2 + $0x580] sm:$0xff]
        %v1377 = vld [vmem:[#allocation2 + $0x588] sm:$0xff]
        %v1378 = vld [vmem:[#allocation2 + $0x590] sm:$0xff]
        %v1379 = vld [vmem:[#allocation2 + $0x598] sm:$0xff]
        %v1380 = vld [vmem:[#allocation2 + $0x5a0] sm:$0xff]
        %v1381 = vld [vmem:[#allocation2 + $0x5a8] sm:$0xff]
        %v1382 = vld [vmem:[#allocation2 + $0x5b0] sm:$0xff]
        %v1383 = vld [vmem:[#allocation2 + $0x5b8] sm:$0xff]
        %v1384 = vld [vmem:[#allocation2 + $0x5c0] sm:$0xff]
        %v1385 = vld [vmem:[#allocation2 + $0x5c8] sm:$0xff]
        %v1386 = vld [vmem:[#allocation2 + $0x5d0] sm:$0xff]
        %v1387 = vld [vmem:[#allocation2 + $0x5d8] sm:$0xff]
        %v1388 = vld [vmem:[#allocation2 + $0x5e0] sm:$0xff]
        %v1389 = vld [vmem:[#allocation2 + $0x5e8] sm:$0xff]
        %v1390 = vld [vmem:[#allocation2 + $0x5f0] sm:$0xff]
        %v1391 = vld [vmem:[#allocation2 + $0x5f8] sm:$0xff]
        %v1392 = vld [vmem:[#allocation2 + $0x600] sm:$0xff]
        %v1393 = vld [vmem:[#allocation2 + $0x608] sm:$0xff]
        %v1394 = vld [vmem:[#allocation2 + $0x610] sm:$0xff]
        %v1395 = vld [vmem:[#allocation2 + $0x618] sm:$0xff]
        %v1396 = vld [vmem:[#allocation2 + $0x620] sm:$0xff]
        %v1397 = vld [vmem:[#allocation2 + $0x628] sm:$0xff]
        %v1398 = vld [vmem:[#allocation2 + $0x630] sm:$0xff]
        %v1399 = vld [vmem:[#allocation2 + $0x638] sm:$0xff]
        %v1400 = vld [vmem:[#allocation2 + $0x640] sm:$0xff]
        %v1401 = vld [vmem:[#allocation2 + $0x648] sm:$0xff]
        %v1402 = vld [vmem:[#allocation2 + $0x650] sm:$0xff]
        %v1403 = vld [vmem:[#allocation2 + $0x658] sm:$0xff]
        %v1404 = vld [vmem:[#allocation2 + $0x660] sm:$0xff]
        %v1405 = vld [vmem:[#allocation2 + $0x668] sm:$0xff]
        %v1406 = vld [vmem:[#allocation2 + $0x670] sm:$0xff]
        %v1407 = vld [vmem:[#allocation2 + $0x678] sm:$0xff]
        %v1408 = vld [vmem:[#allocation2 + $0x680] sm:$0xff]
        %v1409 = vld [vmem:[#allocation2 + $0x688] sm:$0xff]
        %v1410 = vld [vmem:[#allocation2 + $0x690] sm:$0xff]
        %v1411 = vld [vmem:[#allocation2 + $0x698] sm:$0xff]
        %v1412 = vld [vmem:[#allocation2 + $0x6a0] sm:$0xff]
        %v1413 = vld [vmem:[#allocation2 + $0x6a8] sm:$0xff]
        %v1414 = vld [vmem:[#allocation2 + $0x6b0] sm:$0xff]
        %v1415 = vld [vmem:[#allocation2 + $0x6b8] sm:$0xff]
        %v1416 = vld [vmem:[#allocation2 + $0x6c0] sm:$0xff]
        %v1417 = vld [vmem:[#allocation2 + $0x6c8] sm:$0xff]
        %v1418 = vld [vmem:[#allocation2 + $0x6d0] sm:$0xff]
        %v1419 = vld [vmem:[#allocation2 + $0x6d8] sm:$0xff]
        %v1420 = vld [vmem:[#allocation2 + $0x6e0] sm:$0xff]
        %v1421 = vld [vmem:[#allocation2 + $0x6e8] sm:$0xff]
        %v1422 = vld [vmem:[#allocation2 + $0x6f0] sm:$0xff]
        %v1423 = vld [vmem:[#allocation2 + $0x6f8] sm:$0xff]
        %v1424 = vld [vmem:[#allocation2 + $0x700] sm:$0xff]
        %v1425 = vld [vmem:[#allocation2 + $0x708] sm:$0xff]
        %v1426 = vld [vmem:[#allocation2 + $0x710] sm:$0xff]
        %v1427 = vld [vmem:[#allocation2 + $0x718] sm:$0xff]
        %v1428 = vld [vmem:[#allocation2 + $0x720] sm:$0xff]
        %v1429 = vld [vmem:[#allocation2 + $0x728] sm:$0xff]
        %v1430 = vld [vmem:[#allocation2 + $0x730] sm:$0xff]
        %v1431 = vld [vmem:[#allocation2 + $0x738] sm:$0xff]
        %v1432 = vld [vmem:[#allocation2 + $0x740] sm:$0xff]
        %v1433 = vld [vmem:[#allocation2 + $0x748] sm:$0xff]
        %v1434 = vld [vmem:[#allocation2 + $0x750] sm:$0xff]
        %v1435 = vld [vmem:[#allocation2 + $0x758] sm:$0xff]
        %v1436 = vld [vmem:[#allocation2 + $0x760] sm:$0xff]
        %v1437 = vld [vmem:[#allocation2 + $0x768] sm:$0xff]
        %v1438 = vld [vmem:[#allocation2 + $0x770] sm:$0xff]
        %v1439 = vld [vmem:[#allocation2 + $0x778] sm:$0xff]
        %v1440 = vld [vmem:[#allocation2 + $0x780] sm:$0xff]
        %v1441 = vld [vmem:[#allocation2 + $0x788] sm:$0xff]
        %v1442 = vld [vmem:[#allocation2 + $0x790] sm:$0xff]
        %v1443 = vld [vmem:[#allocation2 + $0x798] sm:$0xff]
        %v1444 = vld [vmem:[#allocation2 + $0x7a0] sm:$0xff]
        %v1445 = vld [vmem:[#allocation2 + $0x7a8] sm:$0xff]
        %v1446 = vld [vmem:[#allocation2 + $0x7b0] sm:$0xff]
        %v1447 = vld [vmem:[#allocation2 + $0x7b8] sm:$0xff]
        %v1448 = vld [vmem:[#allocation2 + $0x7c0] sm:$0xff]
        %v1449 = vld [vmem:[#allocation2 + $0x7c8] sm:$0xff]
        %v1450 = vld [vmem:[#allocation2 + $0x7d0] sm:$0xff]
        %v1451 = vld [vmem:[#allocation2 + $0x7d8] sm:$0xff]
        %v1452 = vld [vmem:[#allocation2 + $0x7e0] sm:$0xff]
        %v1453 = vld [vmem:[#allocation2 + $0x7e8] sm:$0xff]
        %v1454 = vld [vmem:[#allocation2 + $0x7f0] sm:$0xff]
        %v1455 = vld [vmem:[#allocation2 + $0x7f8] sm:$0xff]
        %v1456 = vld [vmem:[#allocation2 + $0x800] sm:$0xff]
        %v1457 = vld [vmem:[#allocation2 + $0x808] sm:$0xff]
        %v1458 = vld [vmem:[#allocation2 + $0x810] sm:$0xff]
        %v1459 = vld [vmem:[#allocation2 + $0x818] sm:$0xff]
        %v1460 = vld [vmem:[#allocation2 + $0x820] sm:$0xff]
        %v1461 = vld [vmem:[#allocation2 + $0x828] sm:$0xff]
        %v1462 = vld [vmem:[#allocation2 + $0x830] sm:$0xff]
        %v1463 = vld [vmem:[#allocation2 + $0x838] sm:$0xff]
        %v1464 = vld [vmem:[#allocation2 + $0x840] sm:$0xff]
        %v1465 = vld [vmem:[#allocation2 + $0x848] sm:$0xff]
        %v1466 = vld [vmem:[#allocation2 + $0x850] sm:$0xff]
        %v1467 = vld [vmem:[#allocation2 + $0x858] sm:$0xff]
        %v1468 = vld [vmem:[#allocation2 + $0x860] sm:$0xff]
        %v1469 = vld [vmem:[#allocation2 + $0x868] sm:$0xff]
        %v1470 = vld [vmem:[#allocation2 + $0x870] sm:$0xff]
        %v1471 = vld [vmem:[#allocation2 + $0x878] sm:$0xff]
        %v1472 = vld [vmem:[#allocation2 + $0x880] sm:$0xff]
        %v1473 = vld [vmem:[#allocation2 + $0x888] sm:$0xff]
        %v1474 = vld [vmem:[#allocation2 + $0x890] sm:$0xff]
        %v1475 = vld [vmem:[#allocation2 + $0x898] sm:$0xff]
        %v1476 = vld [vmem:[#allocation2 + $0x8a0] sm:$0xff]
        %v1477 = vld [vmem:[#allocation2 + $0x8a8] sm:$0xff]
        %v1478 = vld [vmem:[#allocation2 + $0x8b0] sm:$0xff]
        %v1479 = vld [vmem:[#allocation2 + $0x8b8] sm:$0xff]
        %v1480 = vld [vmem:[#allocation2 + $0x8c0] sm:$0xff]
        %v1481 = vld [vmem:[#allocation2 + $0x8c8] sm:$0xff]
        %v1482 = vld [vmem:[#allocation2 + $0x8d0] sm:$0xff]
        %v1483 = vld [vmem:[#allocation2 + $0x8d8] sm:$0xff]
        %v1484 = vld [vmem:[#allocation2 + $0x8e0] sm:$0xff]
        %v1485 = vld [vmem:[#allocation2 + $0x8e8] sm:$0xff]
        %v1486 = vld [vmem:[#allocation2 + $0x8f0] sm:$0xff]
        %v1487 = vld [vmem:[#allocation2 + $0x8f8] sm:$0xff]
        %v1488 = vld [vmem:[#allocation2 + $0x900] sm:$0xff]
        %v1489 = vld [vmem:[#allocation2 + $0x908] sm:$0xff]
        %v1490 = vld [vmem:[#allocation2 + $0x910] sm:$0xff]
        %v1491 = vld [vmem:[#allocation2 + $0x918] sm:$0xff]
        %v1492 = vld [vmem:[#allocation2 + $0x920] sm:$0xff]
        %v1493 = vld [vmem:[#allocation2 + $0x928] sm:$0xff]
        %v1494 = vld [vmem:[#allocation2 + $0x930] sm:$0xff]
        %v1495 = vld [vmem:[#allocation2 + $0x938] sm:$0xff]
        %v1496 = vld [vmem:[#allocation2 + $0x940] sm:$0xff]
        %v1497 = vld [vmem:[#allocation2 + $0x948] sm:$0xff]
        %v1498 = vld [vmem:[#allocation2 + $0x950] sm:$0xff]
        %v1499 = vld [vmem:[#allocation2 + $0x958] sm:$0xff]
        %v1500 = vld [vmem:[#allocation2 + $0x960] sm:$0xff]
        %v1501 = vld [vmem:[#allocation2 + $0x968] sm:$0xff]
        %v1502 = vld [vmem:[#allocation2 + $0x970] sm:$0xff]
        %v1503 = vld [vmem:[#allocation2 + $0x978] sm:$0xff]
        %v1504 = vld [vmem:[#allocation2 + $0x980] sm:$0xff]
        %v1505 = vld [vmem:[#allocation2 + $0x988] sm:$0xff]
        %v1506 = vld [vmem:[#allocation2 + $0x990] sm:$0xff]
        %v1507 = vld [vmem:[#allocation2 + $0x998] sm:$0xff]
        %v1508 = vld [vmem:[#allocation2 + $0x9a0] sm:$0xff]
        %v1509 = vld [vmem:[#allocation2 + $0x9a8] sm:$0xff]
        %v1510 = vld [vmem:[#allocation2 + $0x9b0] sm:$0xff]
        %v1511 = vld [vmem:[#allocation2 + $0x9b8] sm:$0xff]
        %v1512 = vld [vmem:[#allocation2 + $0x9c0] sm:$0xff]
        %v1513 = vld [vmem:[#allocation2 + $0x9c8] sm:$0xff]
        %v1514 = vld [vmem:[#allocation2 + $0x9d0] sm:$0xff]
        %v1515 = vld [vmem:[#allocation2 + $0x9d8] sm:$0xff]
        %v1516 = vld [vmem:[#allocation2 + $0x9e0] sm:$0xff]
        %v1517 = vld [vmem:[#allocation2 + $0x9e8] sm:$0xff]
        %v1518 = vld [vmem:[#allocation2 + $0x9f0] sm:$0xff]
        %v1519 = vld [vmem:[#allocation2 + $0x9f8] sm:$0xff]
        %v1520 = vld [vmem:[#allocation2 + $0xa00] sm:$0xff]
        %v1521 = vld [vmem:[#allocation2 + $0xa08] sm:$0xff]
        %v1522 = vld [vmem:[#allocation2 + $0xa10] sm:$0xff]
        %v1523 = vld [vmem:[#allocation2 + $0xa18] sm:$0xff]
        %v1524 = vld [vmem:[#allocation2 + $0xa20] sm:$0xff]
        %v1525 = vld [vmem:[#allocation2 + $0xa28] sm:$0xff]
        %v1526 = vld [vmem:[#allocation2 + $0xa30] sm:$0xff]
        %v1527 = vld [vmem:[#allocation2 + $0xa38] sm:$0xff]
        %v1528 = vld [vmem:[#allocation2 + $0xa40] sm:$0xff]
        %v1529 = vld [vmem:[#allocation2 + $0xa48] sm:$0xff]
        %v1530 = vld [vmem:[#allocation2 + $0xa50] sm:$0xff]
        %v1531 = vld [vmem:[#allocation2 + $0xa58] sm:$0xff]
        %v1532 = vld [vmem:[#allocation2 + $0xa60] sm:$0xff]
        %v1533 = vld [vmem:[#allocation2 + $0xa68] sm:$0xff]
        %v1534 = vld [vmem:[#allocation2 + $0xa70] sm:$0xff]
        %v1535 = vld [vmem:[#allocation2 + $0xa78] sm:$0xff]
        %v1536 = vld [vmem:[#allocation2 + $0xa80] sm:$0xff]
        %v1537 = vld [vmem:[#allocation2 + $0xa88] sm:$0xff]
        %v1538 = vld [vmem:[#allocation2 + $0xa90] sm:$0xff]
        %v1539 = vld [vmem:[#allocation2 + $0xa98] sm:$0xff]
        %v1540 = vld [vmem:[#allocation2 + $0xaa0] sm:$0xff]
        %v1541 = vld [vmem:[#allocation2 + $0xaa8] sm:$0xff]
        %v1542 = vld [vmem:[#allocation2 + $0xab0] sm:$0xff]
        %v1543 = vld [vmem:[#allocation2 + $0xab8] sm:$0xff]
        %v1544 = vld [vmem:[#allocation2 + $0xac0] sm:$0xff]
        %v1545 = vld [vmem:[#allocation2 + $0xac8] sm:$0xff]
        %v1546 = vld [vmem:[#allocation2 + $0xad0] sm:$0xff]
        %v1547 = vld [vmem:[#allocation2 + $0xad8] sm:$0xff]
        %v1548 = vld [vmem:[#allocation2 + $0xae0] sm:$0xff]
        %v1549 = vld [vmem:[#allocation2 + $0xae8] sm:$0xff]
        %v1550 = vld [vmem:[#allocation2 + $0xaf0] sm:$0xff]
        %v1551 = vld [vmem:[#allocation2 + $0xaf8] sm:$0xff]
        %v1552 = vld [vmem:[#allocation2 + $0xb00] sm:$0xff]
        %v1553 = vld [vmem:[#allocation2 + $0xb08] sm:$0xff]
        %v1554 = vld [vmem:[#allocation2 + $0xb10] sm:$0xff]
        %v1555 = vld [vmem:[#allocation2 + $0xb18] sm:$0xff]
        %v1556 = vld [vmem:[#allocation2 + $0xb20] sm:$0xff]
        %v1557 = vld [vmem:[#allocation2 + $0xb28] sm:$0xff]
        %v1558 = vld [vmem:[#allocation2 + $0xb30] sm:$0xff]
        %v1559 = vld [vmem:[#allocation2 + $0xb38] sm:$0xff]
        %v1560 = vld [vmem:[#allocation2 + $0xb40] sm:$0xff]
        %v1561 = vld [vmem:[#allocation2 + $0xb48] sm:$0xff]
        %v1562 = vld [vmem:[#allocation2 + $0xb50] sm:$0xff]
        %v1563 = vld [vmem:[#allocation2 + $0xb58] sm:$0xff]
        %v1564 = vld [vmem:[#allocation2 + $0xb60] sm:$0xff]
        %v1565 = vld [vmem:[#allocation2 + $0xb68] sm:$0xff]
        %v1566 = vld [vmem:[#allocation2 + $0xb70] sm:$0xff]
        %v1567 = vld [vmem:[#allocation2 + $0xb78] sm:$0xff]
        %v1568 = vld [vmem:[#allocation2 + $0xb80] sm:$0xff]
        %v1569 = vld [vmem:[#allocation2 + $0xb88] sm:$0xff]
        %v1570 = vld [vmem:[#allocation2 + $0xb90] sm:$0xff]
        %v1571 = vld [vmem:[#allocation2 + $0xb98] sm:$0xff]
        %v1572 = vld [vmem:[#allocation2 + $0xba0] sm:$0xff]
        %v1573 = vld [vmem:[#allocation2 + $0xba8] sm:$0xff]
        %v1574 = vld [vmem:[#allocation2 + $0xbb0] sm:$0xff]
        %v1575 = vld [vmem:[#allocation2 + $0xbb8] sm:$0xff]
        %v1576 = vld [vmem:[#allocation2 + $0xbc0] sm:$0xff]
        %v1577 = vld [vmem:[#allocation2 + $0xbc8] sm:$0xff]
        %v1578 = vld [vmem:[#allocation2 + $0xbd0] sm:$0xff]
        %v1579 = vld [vmem:[#allocation2 + $0xbd8] sm:$0xff]
        %v1580 = vld [vmem:[#allocation2 + $0xbe0] sm:$0xff]
        %v1581 = vld [vmem:[#allocation2 + $0xbe8] sm:$0xff]
        %v1582 = vld [vmem:[#allocation2 + $0xbf0] sm:$0xff]
        %v1583 = vld [vmem:[#allocation2 + $0xbf8] sm:$0xff]
        %1584 = vmatprep.subr.bf16.mxu0 %v1201
        %1585 = vmatpush1.bf16.msra.mxu0 %v1200
        %1586 = vmatprep.subr.bf16.mxu0 %v1213
        %1587 = vmatpush1.bf16.msra.mxu0 %v1212
        %1588 = vmatprep.subr.bf16.mxu0 %v1225
        %1589 = vmatpush1.bf16.msra.mxu0 %v1224
        %1590 = vmatprep.subr.bf16.mxu0 %v1237
        %1591 = vmatpush1.bf16.msra.mxu0 %v1236
        %1592 = vmatprep.subr.bf16.mxu0 %v1249
        %1593 = vmatpush1.bf16.msra.mxu0 %v1248
        %1594 = vmatprep.subr.bf16.mxu0 %v1261
        %1595 = vmatpush1.bf16.msra.mxu0 %v1260
        %1596 = vmatprep.subr.bf16.mxu0 %v1273
        %1597 = vmatpush1.bf16.msra.mxu0 %v1272
        %1598 = vmatprep.subr.bf16.mxu0 %v1285
        %1599 = vmatpush1.bf16.msra.mxu0 %v1284
        %1600 = vmatprep.subr.bf16.mxu0 %v1297
        %1601 = vmatpush1.bf16.msra.mxu0 %v1296
        %1602 = vmatprep.subr.bf16.mxu0 %v1309
        %1603 = vmatpush1.bf16.msra.mxu0 %v1308
        %1604 = vmatprep.subr.bf16.mxu0 %v1321
        %1605 = vmatpush1.bf16.msra.mxu0 %v1320
        %1606 = vmatprep.subr.bf16.mxu0 %v1333
        %1607 = vmatpush1.bf16.msra.mxu0 %v1332
        %1608 = vmatprep.subr.bf16.mxu0 %v1345
        %1609 = vmatpush1.bf16.msra.mxu0 %v1344
        %1610 = vmatprep.subr.bf16.mxu0 %v1357
        %1611 = vmatpush1.bf16.msra.mxu0 %v1356
        %1612 = vmatprep.subr.bf16.mxu0 %v1369
        %1613 = vmatpush1.bf16.msra.mxu0 %v1368
        %1614 = vmatprep.subr.bf16.mxu0 %v1381
        %1615 = vmatpush1.bf16.msra.mxu0 %v1380
        %1616 = vmatprep.mubr.bf16.mxu0 %v665
        %1617 = vmatmul.mubr.bf16.gmra.mrb[0].mxu0 %v664
        %v1618 = vpop.f32.mrb[0].mxu0
        %v1619 = vadd.f32 0.0, %v1618
        %v1620 = vpop.f32.mrb[0].mxu0
        %v1621 = vadd.f32 0.0, %v1620
        %v1622 = vpop.f32.mrb[0].mxu0
        %v1623 = vadd.f32 0.0, %v1622
        %v1624 = vpop.f32.mrb[0].mxu0
        %v1625 = vadd.f32 0.0, %v1624
        %1626 = vmatprep.mubr.bf16.mxu0 %v669
        %1627 = vmatmul.mubr.bf16.gmra.mrb[0].mxu0 %v668
        %v1628 = vpop.f32.mrb[0].mxu0
        %v1629 = vadd.f32 0.0, %v1628
        %v1630 = vpop.f32.mrb[0].mxu0
        %v1631 = vadd.f32 0.0, %v1630
        %v1632 = vpop.f32.mrb[0].mxu0
        %v1633 = vadd.f32 0.0, %v1632
        %v1634 = vpop.f32.mrb[0].mxu0
        %v1635 = vadd.f32 0.0, %v1634
        %1636 = vmatprep.mubr.bf16.mxu0 %v673
        %1637 = vmatmul.mubr.bf16.gmra.mrb[0].mxu0 %v672
        %v1638 = vpop.f32.mrb[0].mxu0
        %v1639 = vadd.f32 0.0, %v1638
        %v1640 = vpop.f32.mrb[0].mxu0
        %v1641 = vadd.f32 0.0, %v1640
        %v1642 = vpop.f32.mrb[0].mxu0
        %v1643 = vadd.f32 0.0, %v1642
        %v1644 = vpop.f32.mrb[0].mxu0
        %v1645 = vadd.f32 0.0, %v1644
        %1646 = vmatprep.mubr.bf16.mxu0 %v677
        %1647 = vmatmul.mubr.bf16.gmra.mrb[0].mxu0 %v676
        %v1648 = vpop.f32.mrb[0].mxu0
        %v1649 = vadd.f32 0.0, %v1648
        %v1650 = vpop.f32.mrb[0].mxu0
        %v1651 = vadd.f32 0.0, %v1650
        %v1652 = vpop.f32.mrb[0].mxu0
        %v1653 = vadd.f32 0.0, %v1652
        %v1654 = vpop.f32.mrb[0].mxu0
        %v1655 = vadd.f32 0.0, %v1654
        %1656 = vdwg.mxu0
        %1657 = vmatprep.subr.bf16.mxu0 %v1393
        %1658 = vmatpush1.bf16.msra.mxu0 %v1392
        %1659 = vmatprep.subr.bf16.mxu0 %v1405
        %1660 = vmatpush1.bf16.msra.mxu0 %v1404
        %1661 = vmatprep.subr.bf16.mxu0 %v1417
        %1662 = vmatpush1.bf16.msra.mxu0 %v1416
        %1663 = vmatprep.subr.bf16.mxu0 %v1429
        %1664 = vmatpush1.bf16.msra.mxu0 %v1428
        %1665 = vmatprep.subr.bf16.mxu0 %v1441
        %1666 = vmatpush1.bf16.msra.mxu0 %v1440
        %1667 = vmatprep.subr.bf16.mxu0 %v1453
        %1668 = vmatpush1.bf16.msra.mxu0 %v1452
        %1669 = vmatprep.subr.bf16.mxu0 %v1465
        %1670 = vmatpush1.bf16.msra.mxu0 %v1464
        %1671 = vmatprep.subr.bf16.mxu0 %v1477
        %1672 = vmatpush1.bf16.msra.mxu0 %v1476
        %1673 = vmatprep.subr.bf16.mxu0 %v1489
        %1674 = vmatpush1.bf16.msra.mxu0 %v1488
        %1675 = vmatprep.subr.bf16.mxu0 %v1501
        %1676 = vmatpush1.bf16.msra.mxu0 %v1500
        %1677 = vmatprep.subr.bf16.mxu0 %v1513
        %1678 = vmatpush1.bf16.msra.mxu0 %v1512
        %1679 = vmatprep.subr.bf16.mxu0 %v1525
        %1680 = vmatpush1.bf16.msra.mxu0 %v1524
        %1681 = vmatprep.subr.bf16.mxu0 %v1537
        %1682 = vmatpush1.bf16.msra.mxu0 %v1536
        %1683 = vmatprep.subr.bf16.mxu0 %v1549
        %1684 = vmatpush1.bf16.msra.mxu0 %v1548
        %1685 = vmatprep.subr.bf16.mxu0 %v1561
        %1686 = vmatpush1.bf16.msra.mxu0 %v1560
        %1687 = vmatprep.subr.bf16.mxu0 %v1573
        %1688 = vmatpush1.bf16.msra.mxu0 %v1572
        %1689 = vmatprep.mubr.bf16.mxu0 %v667
        %1690 = vmatmul.mubr.bf16.gmra.mrb[0].mxu0 %v666
        %v1691 = vpop.f32.mrb[0].mxu0
        %v1692 = vadd.f32 %v1619, %v1691
        %v1693 = vpop.f32.mrb[0].mxu0
        %v1694 = vadd.f32 %v1621, %v1693
        %v1695 = vpop.f32.mrb[0].mxu0
        %v1696 = vadd.f32 %v1623, %v1695
        %v1697 = vpop.f32.mrb[0].mxu0
        %v1698 = vadd.f32 %v1625, %v1697
        %1699 = vmatprep.mubr.bf16.mxu0 %v671
        %1700 = vmatmul.mubr.bf16.gmra.mrb[0].mxu0 %v670
        %v1701 = vpop.f32.mrb[0].mxu0
        %v1702 = vadd.f32 %v1629, %v1701
        %v1703 = vpop.f32.mrb[0].mxu0
        %v1704 = vadd.f32 %v1631, %v1703
        %v1705 = vpop.f32.mrb[0].mxu0
        %v1706 = vadd.f32 %v1633, %v1705
        %v1707 = vpop.f32.mrb[0].mxu0
        %v1708 = vadd.f32 %v1635, %v1707
        %1709 = vmatprep.mubr.bf16.mxu0 %v675
        %1710 = vmatmul.mubr.bf16.gmra.mrb[0].mxu0 %v674
        %v1711 = vpop.f32.mrb[0].mxu0
        %v1712 = vadd.f32 %v1639, %v1711
        %v1713 = vpop.f32.mrb[0].mxu0
        %v1714 = vadd.f32 %v1641, %v1713
        %v1715 = vpop.f32.mrb[0].mxu0
        %v1716 = vadd.f32 %v1643, %v1715
        %v1717 = vpop.f32.mrb[0].mxu0
        %v1718 = vadd.f32 %v1645, %v1717
        %1719 = vmatprep.mubr.bf16.mxu0 %v679
        %1720 = vmatmul.mubr.bf16.gmra.mrb[0].mxu0 %v678
        %v1721 = vpop.f32.mrb[0].mxu0
        %v1722 = vadd.f32 %v1649, %v1721
        %v1723 = vpop.f32.mrb[0].mxu0
        %v1724 = vadd.f32 %v1651, %v1723
        %v1725 = vpop.f32.mrb[0].mxu0
        %v1726 = vadd.f32 %v1653, %v1725
        %v1727 = vpop.f32.mrb[0].mxu0
        %v1728 = vadd.f32 %v1655, %v1727
        %1729 = vdwg.mxu0
        %1730 = vmatprep.subr.bf16.mxu0 %v1203
        %1731 = vmatpush1.bf16.msra.mxu0 %v1202
        %1732 = vmatprep.subr.bf16.mxu0 %v1215
        %1733 = vmatpush1.bf16.msra.mxu0 %v1214
        %1734 = vmatprep.subr.bf16.mxu0 %v1227
        %1735 = vmatpush1.bf16.msra.mxu0 %v1226
        %1736 = vmatprep.subr.bf16.mxu0 %v1239
        %1737 = vmatpush1.bf16.msra.mxu0 %v1238
        %1738 = vmatprep.subr.bf16.mxu0 %v1251
        %1739 = vmatpush1.bf16.msra.mxu0 %v1250
        %1740 = vmatprep.subr.bf16.mxu0 %v1263
        %1741 = vmatpush1.bf16.msra.mxu0 %v1262
        %1742 = vmatprep.subr.bf16.mxu0 %v1275
        %1743 = vmatpush1.bf16.msra.mxu0 %v1274
        %1744 = vmatprep.subr.bf16.mxu0 %v1287
        %1745 = vmatpush1.bf16.msra.mxu0 %v1286
        %1746 = vmatprep.subr.bf16.mxu0 %v1299
        %1747 = vmatpush1.bf16.msra.mxu0 %v1298
        %1748 = vmatprep.subr.bf16.mxu0 %v1311
        %1749 = vmatpush1.bf16.msra.mxu0 %v1310
        %1750 = vmatprep.subr.bf16.mxu0 %v1323
        %1751 = vmatpush1.bf16.msra.mxu0 %v1322
        %1752 = vmatprep.subr.bf16.mxu0 %v1335
        %1753 = vmatpush1.bf16.msra.mxu0 %v1334
        %1754 = vmatprep.subr.bf16.mxu0 %v1347
        %1755 = vmatpush1.bf16.msra.mxu0 %v1346
        %1756 = vmatprep.subr.bf16.mxu0 %v1359
        %1757 = vmatpush1.bf16.msra.mxu0 %v1358
        %1758 = vmatprep.subr.bf16.mxu0 %v1371
        %1759 = vmatpush1.bf16.msra.mxu0 %v1370
        %1760 = vmatprep.subr.bf16.mxu0 %v1383
        %1761 = vmatpush1.bf16.msra.mxu0 %v1382
        %1762 = vmatprep.mubr.bf16.mxu0 %v665
        %1763 = vmatmul.mubr.bf16.gmra.mrb[0].mxu0 %v664
        %v1764 = vpop.f32.mrb[0].mxu0
        %v1765 = vadd.f32 0.0, %v1764
        %v1766 = vpop.f32.mrb[0].mxu0
        %v1767 = vadd.f32 0.0, %v1766
        %v1768 = vpop.f32.mrb[0].mxu0
        %v1769 = vadd.f32 0.0, %v1768
        %v1770 = vpop.f32.mrb[0].mxu0
        %v1771 = vadd.f32 0.0, %v1770
        %1772 = vmatprep.mubr.bf16.mxu0 %v669
        %1773 = vmatmul.mubr.bf16.gmra.mrb[0].mxu0 %v668
        %v1774 = vpop.f32.mrb[0].mxu0
        %v1775 = vadd.f32 0.0, %v1774
        %v1776 = vpop.f32.mrb[0].mxu0
        %v1777 = vadd.f32 0.0, %v1776
        %v1778 = vpop.f32.mrb[0].mxu0
        %v1779 = vadd.f32 0.0, %v1778
        %v1780 = vpop.f32.mrb[0].mxu0
        %v1781 = vadd.f32 0.0, %v1780
        %1782 = vmatprep.mubr.bf16.mxu0 %v673
        %1783 = vmatmul.mubr.bf16.gmra.mrb[0].mxu0 %v672
        %v1784 = vpop.f32.mrb[0].mxu0
        %v1785 = vadd.f32 0.0, %v1784
        %v1786 = vpop.f32.mrb[0].mxu0
        %v1787 = vadd.f32 0.0, %v1786
        %v1788 = vpop.f32.mrb[0].mxu0
        %v1789 = vadd.f32 0.0, %v1788
        %v1790 = vpop.f32.mrb[0].mxu0
        %v1791 = vadd.f32 0.0, %v1790
        %1792 = vmatprep.mubr.bf16.mxu0 %v677
        %1793 = vmatmul.mubr.bf16.gmra.mrb[0].mxu0 %v676
        %v1794 = vpop.f32.mrb[0].mxu0
        %v1795 = vadd.f32 0.0, %v1794
        %v1796 = vpop.f32.mrb[0].mxu0
        %v1797 = vadd.f32 0.0, %v1796
        %v1798 = vpop.f32.mrb[0].mxu0
        %v1799 = vadd.f32 0.0, %v1798
        %v1800 = vpop.f32.mrb[0].mxu0
        %v1801 = vadd.f32 0.0, %v1800
        %1802 = vdwg.mxu0
        %1803 = vmatprep.subr.bf16.mxu0 %v1395
        %1804 = vmatpush1.bf16.msra.mxu0 %v1394
        %1805 = vmatprep.subr.bf16.mxu0 %v1407
        %1806 = vmatpush1.bf16.msra.mxu0 %v1406
        %1807 = vmatprep.subr.bf16.mxu0 %v1419
        %1808 = vmatpush1.bf16.msra.mxu0 %v1418
        %1809 = vmatprep.subr.bf16.mxu0 %v1431
        %1810 = vmatpush1.bf16.msra.mxu0 %v1430
        %1811 = vmatprep.subr.bf16.mxu0 %v1443
        %1812 = vmatpush1.bf16.msra.mxu0 %v1442
        %1813 = vmatprep.subr.bf16.mxu0 %v1455
        %1814 = vmatpush1.bf16.msra.mxu0 %v1454
        %1815 = vmatprep.subr.bf16.mxu0 %v1467
        %1816 = vmatpush1.bf16.msra.mxu0 %v1466
        %1817 = vmatprep.subr.bf16.mxu0 %v1479
        %1818 = vmatpush1.bf16.msra.mxu0 %v1478
        %1819 = vmatprep.subr.bf16.mxu0 %v1491
        %1820 = vmatpush1.bf16.msra.mxu0 %v1490
        %1821 = vmatprep.subr.bf16.mxu0 %v1503
        %1822 = vmatpush1.bf16.msra.mxu0 %v1502
        %1823 = vmatprep.subr.bf16.mxu0 %v1515
        %1824 = vmatpush1.bf16.msra.mxu0 %v1514
        %1825 = vmatprep.subr.bf16.mxu0 %v1527
        %1826 = vmatpush1.bf16.msra.mxu0 %v1526
        %1827 = vmatprep.subr.bf16.mxu0 %v1539
        %1828 = vmatpush1.bf16.msra.mxu0 %v1538
        %1829 = vmatprep.subr.bf16.mxu0 %v1551
        %1830 = vmatpush1.bf16.msra.mxu0 %v1550
        %1831 = vmatprep.subr.bf16.mxu0 %v1563
        %1832 = vmatpush1.bf16.msra.mxu0 %v1562
        %1833 = vmatprep.subr.bf16.mxu0 %v1575
        %1834 = vmatpush1.bf16.msra.mxu0 %v1574
        %1835 = vmatprep.mubr.bf16.mxu0 %v667
        %1836 = vmatmul.mubr.bf16.gmra.mrb[0].mxu0 %v666
        %v1837 = vpop.f32.mrb[0].mxu0
        %v1838 = vadd.f32 %v1765, %v1837
        %v1839 = vpop.f32.mrb[0].mxu0
        %v1840 = vadd.f32 %v1767, %v1839
        %v1841 = vpop.f32.mrb[0].mxu0
        %v1842 = vadd.f32 %v1769, %v1841
        %v1843 = vpop.f32.mrb[0].mxu0
        %v1844 = vadd.f32 %v1771, %v1843
        %1845 = vmatprep.mubr.bf16.mxu0 %v671
        %1846 = vmatmul.mubr.bf16.gmra.mrb[0].mxu0 %v670
        %v1847 = vpop.f32.mrb[0].mxu0
        %v1848 = vadd.f32 %v1775, %v1847
        %v1849 = vpop.f32.mrb[0].mxu0
        %v1850 = vadd.f32 %v1777, %v1849
        %v1851 = vpop.f32.mrb[0].mxu0
        %v1852 = vadd.f32 %v1779, %v1851
        %v1853 = vpop.f32.mrb[0].mxu0
        %v1854 = vadd.f32 %v1781, %v1853
        %1855 = vmatprep.mubr.bf16.mxu0 %v675
        %1856 = vmatmul.mubr.bf16.gmra.mrb[0].mxu0 %v674
        %v1857 = vpop.f32.mrb[0].mxu0
        %v1858 = vadd.f32 %v1785, %v1857
        %v1859 = vpop.f32.mrb[0].mxu0
        %v1860 = vadd.f32 %v1787, %v1859
        %v1861 = vpop.f32.mrb[0].mxu0
        %v1862 = vadd.f32 %v1789, %v1861
        %v1863 = vpop.f32.mrb[0].mxu0
        %v1864 = vadd.f32 %v1791, %v1863
        %1865 = vmatprep.mubr.bf16.mxu0 %v679
        %1866 = vmatmul.mubr.bf16.gmra.mrb[0].mxu0 %v678
        %v1867 = vpop.f32.mrb[0].mxu0
        %v1868 = vadd.f32 %v1795, %v1867
        %v1869 = vpop.f32.mrb[0].mxu0
        %v1870 = vadd.f32 %v1797, %v1869
        %v1871 = vpop.f32.mrb[0].mxu0
        %v1872 = vadd.f32 %v1799, %v1871
        %v1873 = vpop.f32.mrb[0].mxu0
        %v1874 = vadd.f32 %v1801, %v1873
        %1875 = vdwg.mxu0
        %1876 = vmatprep.subr.bf16.mxu0 %v1205
        %1877 = vmatpush1.bf16.msra.mxu0 %v1204
        %1878 = vmatprep.subr.bf16.mxu0 %v1217
        %1879 = vmatpush1.bf16.msra.mxu0 %v1216
        %1880 = vmatprep.subr.bf16.mxu0 %v1229
        %1881 = vmatpush1.bf16.msra.mxu0 %v1228
        %1882 = vmatprep.subr.bf16.mxu0 %v1241
        %1883 = vmatpush1.bf16.msra.mxu0 %v1240
        %1884 = vmatprep.subr.bf16.mxu0 %v1253
        %1885 = vmatpush1.bf16.msra.mxu0 %v1252
        %1886 = vmatprep.subr.bf16.mxu0 %v1265
        %1887 = vmatpush1.bf16.msra.mxu0 %v1264
        %1888 = vmatprep.subr.bf16.mxu0 %v1277
        %1889 = vmatpush1.bf16.msra.mxu0 %v1276
        %1890 = vmatprep.subr.bf16.mxu0 %v1289
        %1891 = vmatpush1.bf16.msra.mxu0 %v1288
        %1892 = vmatprep.subr.bf16.mxu0 %v1301
        %1893 = vmatpush1.bf16.msra.mxu0 %v1300
        %1894 = vmatprep.subr.bf16.mxu0 %v1313
        %1895 = vmatpush1.bf16.msra.mxu0 %v1312
        %1896 = vmatprep.subr.bf16.mxu0 %v1325
        %1897 = vmatpush1.bf16.msra.mxu0 %v1324
        %1898 = vmatprep.subr.bf16.mxu0 %v1337
        %1899 = vmatpush1.bf16.msra.mxu0 %v1336
        %1900 = vmatprep.subr.bf16.mxu0 %v1349
        %1901 = vmatpush1.bf16.msra.mxu0 %v1348
        %1902 = vmatprep.subr.bf16.mxu0 %v1361
        %1903 = vmatpush1.bf16.msra.mxu0 %v1360
        %1904 = vmatprep.subr.bf16.mxu0 %v1373
        %1905 = vmatpush1.bf16.msra.mxu0 %v1372
        %1906 = vmatprep.subr.bf16.mxu0 %v1385
        %1907 = vmatpush1.bf16.msra.mxu0 %v1384
        %1908 = vmatprep.mubr.bf16.mxu0 %v665
        %1909 = vmatmul.mubr.bf16.gmra.mrb[0].mxu0 %v664
        %v1910 = vpop.f32.mrb[0].mxu0
        %v1911 = vadd.f32 0.0, %v1910
        %v1912 = vpop.f32.mrb[0].mxu0
        %v1913 = vadd.f32 0.0, %v1912
        %v1914 = vpop.f32.mrb[0].mxu0
        %v1915 = vadd.f32 0.0, %v1914
        %v1916 = vpop.f32.mrb[0].mxu0
        %v1917 = vadd.f32 0.0, %v1916
        %1918 = vmatprep.mubr.bf16.mxu0 %v669
        %1919 = vmatmul.mubr.bf16.gmra.mrb[0].mxu0 %v668
        %v1920 = vpop.f32.mrb[0].mxu0
        %v1921 = vadd.f32 0.0, %v1920
        %v1922 = vpop.f32.mrb[0].mxu0
        %v1923 = vadd.f32 0.0, %v1922
        %v1924 = vpop.f32.mrb[0].mxu0
        %v1925 = vadd.f32 0.0, %v1924
        %v1926 = vpop.f32.mrb[0].mxu0
        %v1927 = vadd.f32 0.0, %v1926
        %1928 = vmatprep.mubr.bf16.mxu0 %v673
        %1929 = vmatmul.mubr.bf16.gmra.mrb[0].mxu0 %v672
        %v1930 = vpop.f32.mrb[0].mxu0
        %v1931 = vadd.f32 0.0, %v1930
        %v1932 = vpop.f32.mrb[0].mxu0
        %v1933 = vadd.f32 0.0, %v1932
        %v1934 = vpop.f32.mrb[0].mxu0
        %v1935 = vadd.f32 0.0, %v1934
        %v1936 = vpop.f32.mrb[0].mxu0
        %v1937 = vadd.f32 0.0, %v1936
        %1938 = vmatprep.mubr.bf16.mxu0 %v677
        %1939 = vmatmul.mubr.bf16.gmra.mrb[0].mxu0 %v676
        %v1940 = vpop.f32.mrb[0].mxu0
        %v1941 = vadd.f32 0.0, %v1940
        %v1942 = vpop.f32.mrb[0].mxu0
        %v1943 = vadd.f32 0.0, %v1942
        %v1944 = vpop.f32.mrb[0].mxu0
        %v1945 = vadd.f32 0.0, %v1944
        %v1946 = vpop.f32.mrb[0].mxu0
        %v1947 = vadd.f32 0.0, %v1946
        %1948 = vdwg.mxu0
        %1949 = vmatprep.subr.bf16.mxu0 %v1397
        %1950 = vmatpush1.bf16.msra.mxu0 %v1396
        %1951 = vmatprep.subr.bf16.mxu0 %v1409
        %1952 = vmatpush1.bf16.msra.mxu0 %v1408
        %1953 = vmatprep.subr.bf16.mxu0 %v1421
        %1954 = vmatpush1.bf16.msra.mxu0 %v1420
        %1955 = vmatprep.subr.bf16.mxu0 %v1433
        %1956 = vmatpush1.bf16.msra.mxu0 %v1432
        %1957 = vmatprep.subr.bf16.mxu0 %v1445
        %1958 = vmatpush1.bf16.msra.mxu0 %v1444
        %1959 = vmatprep.subr.bf16.mxu0 %v1457
        %1960 = vmatpush1.bf16.msra.mxu0 %v1456
        %1961 = vmatprep.subr.bf16.mxu0 %v1469
        %1962 = vmatpush1.bf16.msra.mxu0 %v1468
        %1963 = vmatprep.subr.bf16.mxu0 %v1481
        %1964 = vmatpush1.bf16.msra.mxu0 %v1480
        %1965 = vmatprep.subr.bf16.mxu0 %v1493
        %1966 = vmatpush1.bf16.msra.mxu0 %v1492
        %1967 = vmatprep.subr.bf16.mxu0 %v1505
        %1968 = vmatpush1.bf16.msra.mxu0 %v1504
        %1969 = vmatprep.subr.bf16.mxu0 %v1517
        %1970 = vmatpush1.bf16.msra.mxu0 %v1516
        %1971 = vmatprep.subr.bf16.mxu0 %v1529
        %1972 = vmatpush1.bf16.msra.mxu0 %v1528
        %1973 = vmatprep.subr.bf16.mxu0 %v1541
        %1974 = vmatpush1.bf16.msra.mxu0 %v1540
        %1975 = vmatprep.subr.bf16.mxu0 %v1553
        %1976 = vmatpush1.bf16.msra.mxu0 %v1552
        %1977 = vmatprep.subr.bf16.mxu0 %v1565
        %1978 = vmatpush1.bf16.msra.mxu0 %v1564
        %1979 = vmatprep.subr.bf16.mxu0 %v1577
        %1980 = vmatpush1.bf16.msra.mxu0 %v1576
        %1981 = vmatprep.mubr.bf16.mxu0 %v667
        %1982 = vmatmul.mubr.bf16.gmra.mrb[0].mxu0 %v666
        %v1983 = vpop.f32.mrb[0].mxu0
        %v1984 = vadd.f32 %v1911, %v1983
        %v1985 = vpop.f32.mrb[0].mxu0
        %v1986 = vadd.f32 %v1913, %v1985
        %v1987 = vpop.f32.mrb[0].mxu0
        %v1988 = vadd.f32 %v1915, %v1987
        %v1989 = vpop.f32.mrb[0].mxu0
        %v1990 = vadd.f32 %v1917, %v1989
        %1991 = vmatprep.mubr.bf16.mxu0 %v671
        %1992 = vmatmul.mubr.bf16.gmra.mrb[0].mxu0 %v670
        %v1993 = vpop.f32.mrb[0].mxu0
        %v1994 = vadd.f32 %v1921, %v1993
        %v1995 = vpop.f32.mrb[0].mxu0
        %v1996 = vadd.f32 %v1923, %v1995
        %v1997 = vpop.f32.mrb[0].mxu0
        %v1998 = vadd.f32 %v1925, %v1997
        %v1999 = vpop.f32.mrb[0].mxu0
        %v2000 = vadd.f32 %v1927, %v1999
        %2001 = vmatprep.mubr.bf16.mxu0 %v675
        %2002 = vmatmul.mubr.bf16.gmra.mrb[0].mxu0 %v674
        %v2003 = vpop.f32.mrb[0].mxu0
        %v2004 = vadd.f32 %v1931, %v2003
        %v2005 = vpop.f32.mrb[0].mxu0
        %v2006 = vadd.f32 %v1933, %v2005
        %v2007 = vpop.f32.mrb[0].mxu0
        %v2008 = vadd.f32 %v1935, %v2007
        %v2009 = vpop.f32.mrb[0].mxu0
        %v2010 = vadd.f32 %v1937, %v2009
        %2011 = vmatprep.mubr.bf16.mxu0 %v679
        %2012 = vmatmul.mubr.bf16.gmra.mrb[0].mxu0 %v678
        %v2013 = vpop.f32.mrb[0].mxu0
        %v2014 = vadd.f32 %v1941, %v2013
        %v2015 = vpop.f32.mrb[0].mxu0
        %v2016 = vadd.f32 %v1943, %v2015
        %v2017 = vpop.f32.mrb[0].mxu0
        %v2018 = vadd.f32 %v1945, %v2017
        %v2019 = vpop.f32.mrb[0].mxu0
        %v2020 = vadd.f32 %v1947, %v2019
        %2021 = vdwg.mxu0
        %2022 = vmatprep.subr.bf16.mxu0 %v1207
        %2023 = vmatpush1.bf16.msra.mxu0 %v1206
        %2024 = vmatprep.subr.bf16.mxu0 %v1219
        %2025 = vmatpush1.bf16.msra.mxu0 %v1218
        %2026 = vmatprep.subr.bf16.mxu0 %v1231
        %2027 = vmatpush1.bf16.msra.mxu0 %v1230
        %2028 = vmatprep.subr.bf16.mxu0 %v1243
        %2029 = vmatpush1.bf16.msra.mxu0 %v1242
        %2030 = vmatprep.subr.bf16.mxu0 %v1255
        %2031 = vmatpush1.bf16.msra.mxu0 %v1254
        %2032 = vmatprep.subr.bf16.mxu0 %v1267
        %2033 = vmatpush1.bf16.msra.mxu0 %v1266
        %2034 = vmatprep.subr.bf16.mxu0 %v1279
        %2035 = vmatpush1.bf16.msra.mxu0 %v1278
        %2036 = vmatprep.subr.bf16.mxu0 %v1291
        %2037 = vmatpush1.bf16.msra.mxu0 %v1290
        %2038 = vmatprep.subr.bf16.mxu0 %v1303
        %2039 = vmatpush1.bf16.msra.mxu0 %v1302
        %2040 = vmatprep.subr.bf16.mxu0 %v1315
        %2041 = vmatpush1.bf16.msra.mxu0 %v1314
        %2042 = vmatprep.subr.bf16.mxu0 %v1327
        %2043 = vmatpush1.bf16.msra.mxu0 %v1326
        %2044 = vmatprep.subr.bf16.mxu0 %v1339
        %2045 = vmatpush1.bf16.msra.mxu0 %v1338
        %2046 = vmatprep.subr.bf16.mxu0 %v1351
        %2047 = vmatpush1.bf16.msra.mxu0 %v1350
        %2048 = vmatprep.subr.bf16.mxu0 %v1363
        %2049 = vmatpush1.bf16.msra.mxu0 %v1362
        %2050 = vmatprep.subr.bf16.mxu0 %v1375
        %2051 = vmatpush1.bf16.msra.mxu0 %v1374
        %2052 = vmatprep.subr.bf16.mxu0 %v1387
        %2053 = vmatpush1.bf16.msra.mxu0 %v1386
        %2054 = vmatprep.mubr.bf16.mxu0 %v665
        %2055 = vmatmul.mubr.bf16.gmra.mrb[0].mxu0 %v664
        %v2056 = vpop.f32.mrb[0].mxu0
        %v2057 = vadd.f32 0.0, %v2056
        %v2058 = vpop.f32.mrb[0].mxu0
        %v2059 = vadd.f32 0.0, %v2058
        %v2060 = vpop.f32.mrb[0].mxu0
        %v2061 = vadd.f32 0.0, %v2060
        %v2062 = vpop.f32.mrb[0].mxu0
        %v2063 = vadd.f32 0.0, %v2062
        %2064 = vmatprep.mubr.bf16.mxu0 %v669
        %2065 = vmatmul.mubr.bf16.gmra.mrb[0].mxu0 %v668
        %v2066 = vpop.f32.mrb[0].mxu0
        %v2067 = vadd.f32 0.0, %v2066
        %v2068 = vpop.f32.mrb[0].mxu0
        %v2069 = vadd.f32 0.0, %v2068
        %v2070 = vpop.f32.mrb[0].mxu0
        %v2071 = vadd.f32 0.0, %v2070
        %v2072 = vpop.f32.mrb[0].mxu0
        %v2073 = vadd.f32 0.0, %v2072
        %2074 = vmatprep.mubr.bf16.mxu0 %v673
        %2075 = vmatmul.mubr.bf16.gmra.mrb[0].mxu0 %v672
        %v2076 = vpop.f32.mrb[0].mxu0
        %v2077 = vadd.f32 0.0, %v2076
        %v2078 = vpop.f32.mrb[0].mxu0
        %v2079 = vadd.f32 0.0, %v2078
        %v2080 = vpop.f32.mrb[0].mxu0
        %v2081 = vadd.f32 0.0, %v2080
        %v2082 = vpop.f32.mrb[0].mxu0
        %v2083 = vadd.f32 0.0, %v2082
        %2084 = vmatprep.mubr.bf16.mxu0 %v677
        %2085 = vmatmul.mubr.bf16.gmra.mrb[0].mxu0 %v676
        %v2086 = vpop.f32.mrb[0].mxu0
        %v2087 = vadd.f32 0.0, %v2086
        %v2088 = vpop.f32.mrb[0].mxu0
        %v2089 = vadd.f32 0.0, %v2088
        %v2090 = vpop.f32.mrb[0].mxu0
        %v2091 = vadd.f32 0.0, %v2090
        %v2092 = vpop.f32.mrb[0].mxu0
        %v2093 = vadd.f32 0.0, %v2092
        %2094 = vdwg.mxu0
        %2095 = vmatprep.subr.bf16.mxu0 %v1399
        %2096 = vmatpush1.bf16.msra.mxu0 %v1398
        %2097 = vmatprep.subr.bf16.mxu0 %v1411
        %2098 = vmatpush1.bf16.msra.mxu0 %v1410
        %2099 = vmatprep.subr.bf16.mxu0 %v1423
        %2100 = vmatpush1.bf16.msra.mxu0 %v1422
        %2101 = vmatprep.subr.bf16.mxu0 %v1435
        %2102 = vmatpush1.bf16.msra.mxu0 %v1434
        %2103 = vmatprep.subr.bf16.mxu0 %v1447
        %2104 = vmatpush1.bf16.msra.mxu0 %v1446
        %2105 = vmatprep.subr.bf16.mxu0 %v1459
        %2106 = vmatpush1.bf16.msra.mxu0 %v1458
        %2107 = vmatprep.subr.bf16.mxu0 %v1471
        %2108 = vmatpush1.bf16.msra.mxu0 %v1470
        %2109 = vmatprep.subr.bf16.mxu0 %v1483
        %2110 = vmatpush1.bf16.msra.mxu0 %v1482
        %2111 = vmatprep.subr.bf16.mxu0 %v1495
        %2112 = vmatpush1.bf16.msra.mxu0 %v1494
        %2113 = vmatprep.subr.bf16.mxu0 %v1507
        %2114 = vmatpush1.bf16.msra.mxu0 %v1506
        %2115 = vmatprep.subr.bf16.mxu0 %v1519
        %2116 = vmatpush1.bf16.msra.mxu0 %v1518
        %2117 = vmatprep.subr.bf16.mxu0 %v1531
        %2118 = vmatpush1.bf16.msra.mxu0 %v1530
        %2119 = vmatprep.subr.bf16.mxu0 %v1543
        %2120 = vmatpush1.bf16.msra.mxu0 %v1542
        %2121 = vmatprep.subr.bf16.mxu0 %v1555
        %2122 = vmatpush1.bf16.msra.mxu0 %v1554
        %2123 = vmatprep.subr.bf16.mxu0 %v1567
        %2124 = vmatpush1.bf16.msra.mxu0 %v1566
        %2125 = vmatprep.subr.bf16.mxu0 %v1579
        %2126 = vmatpush1.bf16.msra.mxu0 %v1578
        %2127 = vmatprep.mubr.bf16.mxu0 %v667
        %2128 = vmatmul.mubr.bf16.gmra.mrb[0].mxu0 %v666
        %v2129 = vpop.f32.mrb[0].mxu0
        %v2130 = vadd.f32 %v2057, %v2129
        %v2131 = vpop.f32.mrb[0].mxu0
        %v2132 = vadd.f32 %v2059, %v2131
        %v2133 = vpop.f32.mrb[0].mxu0
        %v2134 = vadd.f32 %v2061, %v2133
        %v2135 = vpop.f32.mrb[0].mxu0
        %v2136 = vadd.f32 %v2063, %v2135
        %2137 = vmatprep.mubr.bf16.mxu0 %v671
        %2138 = vmatmul.mubr.bf16.gmra.mrb[0].mxu0 %v670
        %v2139 = vpop.f32.mrb[0].mxu0
        %v2140 = vadd.f32 %v2067, %v2139
        %v2141 = vpop.f32.mrb[0].mxu0
        %v2142 = vadd.f32 %v2069, %v2141
        %v2143 = vpop.f32.mrb[0].mxu0
        %v2144 = vadd.f32 %v2071, %v2143
        %v2145 = vpop.f32.mrb[0].mxu0
        %v2146 = vadd.f32 %v2073, %v2145
        %2147 = vmatprep.mubr.bf16.mxu0 %v675
        %2148 = vmatmul.mubr.bf16.gmra.mrb[0].mxu0 %v674
        %v2149 = vpop.f32.mrb[0].mxu0
        %v2150 = vadd.f32 %v2077, %v2149
        %v2151 = vpop.f32.mrb[0].mxu0
        %v2152 = vadd.f32 %v2079, %v2151
        %v2153 = vpop.f32.mrb[0].mxu0
        %v2154 = vadd.f32 %v2081, %v2153
        %v2155 = vpop.f32.mrb[0].mxu0
        %v2156 = vadd.f32 %v2083, %v2155
        %2157 = vmatprep.mubr.bf16.mxu0 %v679
        %2158 = vmatmul.mubr.bf16.gmra.mrb[0].mxu0 %v678
        %v2159 = vpop.f32.mrb[0].mxu0
        %v2160 = vadd.f32 %v2087, %v2159
        %v2161 = vpop.f32.mrb[0].mxu0
        %v2162 = vadd.f32 %v2089, %v2161
        %v2163 = vpop.f32.mrb[0].mxu0
        %v2164 = vadd.f32 %v2091, %v2163
        %v2165 = vpop.f32.mrb[0].mxu0
        %v2166 = vadd.f32 %v2093, %v2165
        %2167 = vdwg.mxu0
        %2168 = vmatprep.subr.bf16.mxu0 %v1209
        %2169 = vmatpush1.bf16.msra.mxu0 %v1208
        %2170 = vmatprep.subr.bf16.mxu0 %v1221
        %2171 = vmatpush1.bf16.msra.mxu0 %v1220
        %2172 = vmatprep.subr.bf16.mxu0 %v1233
        %2173 = vmatpush1.bf16.msra.mxu0 %v1232
        %2174 = vmatprep.subr.bf16.mxu0 %v1245
        %2175 = vmatpush1.bf16.msra.mxu0 %v1244
        %2176 = vmatprep.subr.bf16.mxu0 %v1257
        %2177 = vmatpush1.bf16.msra.mxu0 %v1256
        %2178 = vmatprep.subr.bf16.mxu0 %v1269
        %2179 = vmatpush1.bf16.msra.mxu0 %v1268
        %2180 = vmatprep.subr.bf16.mxu0 %v1281
        %2181 = vmatpush1.bf16.msra.mxu0 %v1280
        %2182 = vmatprep.subr.bf16.mxu0 %v1293
        %2183 = vmatpush1.bf16.msra.mxu0 %v1292
        %2184 = vmatprep.subr.bf16.mxu0 %v1305
        %2185 = vmatpush1.bf16.msra.mxu0 %v1304
        %2186 = vmatprep.subr.bf16.mxu0 %v1317
        %2187 = vmatpush1.bf16.msra.mxu0 %v1316
        %2188 = vmatprep.subr.bf16.mxu0 %v1329
        %2189 = vmatpush1.bf16.msra.mxu0 %v1328
        %2190 = vmatprep.subr.bf16.mxu0 %v1341
        %2191 = vmatpush1.bf16.msra.mxu0 %v1340
        %2192 = vmatprep.subr.bf16.mxu0 %v1353
        %2193 = vmatpush1.bf16.msra.mxu0 %v1352
        %2194 = vmatprep.subr.bf16.mxu0 %v1365
        %2195 = vmatpush1.bf16.msra.mxu0 %v1364
        %2196 = vmatprep.subr.bf16.mxu0 %v1377
        %2197 = vmatpush1.bf16.msra.mxu0 %v1376
        %2198 = vmatprep.subr.bf16.mxu0 %v1389
        %2199 = vmatpush1.bf16.msra.mxu0 %v1388
        %2200 = vmatprep.mubr.bf16.mxu0 %v665
        %2201 = vmatmul.mubr.bf16.gmra.mrb[0].mxu0 %v664
        %v2202 = vpop.f32.mrb[0].mxu0
        %v2203 = vadd.f32 0.0, %v2202
        %v2204 = vpop.f32.mrb[0].mxu0
        %v2205 = vadd.f32 0.0, %v2204
        %v2206 = vpop.f32.mrb[0].mxu0
        %v2207 = vadd.f32 0.0, %v2206
        %v2208 = vpop.f32.mrb[0].mxu0
        %v2209 = vadd.f32 0.0, %v2208
        %2210 = vmatprep.mubr.bf16.mxu0 %v669
        %2211 = vmatmul.mubr.bf16.gmra.mrb[0].mxu0 %v668
        %v2212 = vpop.f32.mrb[0].mxu0
        %v2213 = vadd.f32 0.0, %v2212
        %v2214 = vpop.f32.mrb[0].mxu0
        %v2215 = vadd.f32 0.0, %v2214
        %v2216 = vpop.f32.mrb[0].mxu0
        %v2217 = vadd.f32 0.0, %v2216
        %v2218 = vpop.f32.mrb[0].mxu0
        %v2219 = vadd.f32 0.0, %v2218
        %2220 = vmatprep.mubr.bf16.mxu0 %v673
        %2221 = vmatmul.mubr.bf16.gmra.mrb[0].mxu0 %v672
        %v2222 = vpop.f32.mrb[0].mxu0
        %v2223 = vadd.f32 0.0, %v2222
        %v2224 = vpop.f32.mrb[0].mxu0
        %v2225 = vadd.f32 0.0, %v2224
        %v2226 = vpop.f32.mrb[0].mxu0
        %v2227 = vadd.f32 0.0, %v2226
        %v2228 = vpop.f32.mrb[0].mxu0
        %v2229 = vadd.f32 0.0, %v2228
        %2230 = vmatprep.mubr.bf16.mxu0 %v677
        %2231 = vmatmul.mubr.bf16.gmra.mrb[0].mxu0 %v676
        %v2232 = vpop.f32.mrb[0].mxu0
        %v2233 = vadd.f32 0.0, %v2232
        %v2234 = vpop.f32.mrb[0].mxu0
        %v2235 = vadd.f32 0.0, %v2234
        %v2236 = vpop.f32.mrb[0].mxu0
        %v2237 = vadd.f32 0.0, %v2236
        %v2238 = vpop.f32.mrb[0].mxu0
        %v2239 = vadd.f32 0.0, %v2238
        %2240 = vdwg.mxu0
        %2241 = vmatprep.subr.bf16.mxu0 %v1401
        %2242 = vmatpush1.bf16.msra.mxu0 %v1400
        %2243 = vmatprep.subr.bf16.mxu0 %v1413
        %2244 = vmatpush1.bf16.msra.mxu0 %v1412
        %2245 = vmatprep.subr.bf16.mxu0 %v1425
        %2246 = vmatpush1.bf16.msra.mxu0 %v1424
        %2247 = vmatprep.subr.bf16.mxu0 %v1437
        %2248 = vmatpush1.bf16.msra.mxu0 %v1436
        %2249 = vmatprep.subr.bf16.mxu0 %v1449
        %2250 = vmatpush1.bf16.msra.mxu0 %v1448
        %2251 = vmatprep.subr.bf16.mxu0 %v1461
        %2252 = vmatpush1.bf16.msra.mxu0 %v1460
        %2253 = vmatprep.subr.bf16.mxu0 %v1473
        %2254 = vmatpush1.bf16.msra.mxu0 %v1472
        %2255 = vmatprep.subr.bf16.mxu0 %v1485
        %2256 = vmatpush1.bf16.msra.mxu0 %v1484
        %2257 = vmatprep.subr.bf16.mxu0 %v1497
        %2258 = vmatpush1.bf16.msra.mxu0 %v1496
        %2259 = vmatprep.subr.bf16.mxu0 %v1509
        %2260 = vmatpush1.bf16.msra.mxu0 %v1508
        %2261 = vmatprep.subr.bf16.mxu0 %v1521
        %2262 = vmatpush1.bf16.msra.mxu0 %v1520
        %2263 = vmatprep.subr.bf16.mxu0 %v1533
        %2264 = vmatpush1.bf16.msra.mxu0 %v1532
        %2265 = vmatprep.subr.bf16.mxu0 %v1545
        %2266 = vmatpush1.bf16.msra.mxu0 %v1544
        %2267 = vmatprep.subr.bf16.mxu0 %v1557
        %2268 = vmatpush1.bf16.msra.mxu0 %v1556
        %2269 = vmatprep.subr.bf16.mxu0 %v1569
        %2270 = vmatpush1.bf16.msra.mxu0 %v1568
        %2271 = vmatprep.subr.bf16.mxu0 %v1581
        %2272 = vmatpush1.bf16.msra.mxu0 %v1580
        %2273 = vmatprep.mubr.bf16.mxu0 %v667
        %2274 = vmatmul.mubr.bf16.gmra.mrb[0].mxu0 %v666
        %v2275 = vpop.f32.mrb[0].mxu0
        %v2276 = vadd.f32 %v2203, %v2275
        %v2277 = vpop.f32.mrb[0].mxu0
        %v2278 = vadd.f32 %v2205, %v2277
        %v2279 = vpop.f32.mrb[0].mxu0
        %v2280 = vadd.f32 %v2207, %v2279
        %v2281 = vpop.f32.mrb[0].mxu0
        %v2282 = vadd.f32 %v2209, %v2281
        %2283 = vmatprep.mubr.bf16.mxu0 %v671
        %2284 = vmatmul.mubr.bf16.gmra.mrb[0].mxu0 %v670
        %v2285 = vpop.f32.mrb[0].mxu0
        %v2286 = vadd.f32 %v2213, %v2285
        %v2287 = vpop.f32.mrb[0].mxu0
        %v2288 = vadd.f32 %v2215, %v2287
        %v2289 = vpop.f32.mrb[0].mxu0
        %v2290 = vadd.f32 %v2217, %v2289
        %v2291 = vpop.f32.mrb[0].mxu0
        %v2292 = vadd.f32 %v2219, %v2291
        %2293 = vmatprep.mubr.bf16.mxu0 %v675
        %2294 = vmatmul.mubr.bf16.gmra.mrb[0].mxu0 %v674
        %v2295 = vpop.f32.mrb[0].mxu0
        %v2296 = vadd.f32 %v2223, %v2295
        %v2297 = vpop.f32.mrb[0].mxu0
        %v2298 = vadd.f32 %v2225, %v2297
        %v2299 = vpop.f32.mrb[0].mxu0
        %v2300 = vadd.f32 %v2227, %v2299
        %v2301 = vpop.f32.mrb[0].mxu0
        %v2302 = vadd.f32 %v2229, %v2301
        %2303 = vmatprep.mubr.bf16.mxu0 %v679
        %2304 = vmatmul.mubr.bf16.gmra.mrb[0].mxu0 %v678
        %v2305 = vpop.f32.mrb[0].mxu0
        %v2306 = vadd.f32 %v2233, %v2305
        %v2307 = vpop.f32.mrb[0].mxu0
        %v2308 = vadd.f32 %v2235, %v2307
        %v2309 = vpop.f32.mrb[0].mxu0
        %v2310 = vadd.f32 %v2237, %v2309
        %v2311 = vpop.f32.mrb[0].mxu0
        %v2312 = vadd.f32 %v2239, %v2311
        %2313 = vdwg.mxu0
        %2314 = vmatprep.subr.bf16.mxu0 %v1211
        %2315 = vmatpush1.bf16.msra.mxu0 %v1210
        %2316 = vmatprep.subr.bf16.mxu0 %v1223
        %2317 = vmatpush1.bf16.msra.mxu0 %v1222
        %2318 = vmatprep.subr.bf16.mxu0 %v1235
        %2319 = vmatpush1.bf16.msra.mxu0 %v1234
        %2320 = vmatprep.subr.bf16.mxu0 %v1247
        %2321 = vmatpush1.bf16.msra.mxu0 %v1246
        %2322 = vmatprep.subr.bf16.mxu0 %v1259
        %2323 = vmatpush1.bf16.msra.mxu0 %v1258
        %2324 = vmatprep.subr.bf16.mxu0 %v1271
        %2325 = vmatpush1.bf16.msra.mxu0 %v1270
        %2326 = vmatprep.subr.bf16.mxu0 %v1283
        %2327 = vmatpush1.bf16.msra.mxu0 %v1282
        %2328 = vmatprep.subr.bf16.mxu0 %v1295
        %2329 = vmatpush1.bf16.msra.mxu0 %v1294
        %2330 = vmatprep.subr.bf16.mxu0 %v1307
        %2331 = vmatpush1.bf16.msra.mxu0 %v1306
        %2332 = vmatprep.subr.bf16.mxu0 %v1319
        %2333 = vmatpush1.bf16.msra.mxu0 %v1318
        %2334 = vmatprep.subr.bf16.mxu0 %v1331
        %2335 = vmatpush1.bf16.msra.mxu0 %v1330
        %2336 = vmatprep.subr.bf16.mxu0 %v1343
        %2337 = vmatpush1.bf16.msra.mxu0 %v1342
        %2338 = vmatprep.subr.bf16.mxu0 %v1355
        %2339 = vmatpush1.bf16.msra.mxu0 %v1354
        %2340 = vmatprep.subr.bf16.mxu0 %v1367
        %2341 = vmatpush1.bf16.msra.mxu0 %v1366
        %2342 = vmatprep.subr.bf16.mxu0 %v1379
        %2343 = vmatpush1.bf16.msra.mxu0 %v1378
        %2344 = vmatprep.subr.bf16.mxu0 %v1391
        %2345 = vmatpush1.bf16.msra.mxu0 %v1390
        %2346 = vmatprep.mubr.bf16.mxu0 %v665
        %2347 = vmatmul.mubr.bf16.gmra.mrb[0].mxu0 %v664
        %v2348 = vpop.f32.mrb[0].mxu0
        %v2349 = vadd.f32 0.0, %v2348
        %v2350 = vpop.f32.mrb[0].mxu0
        %v2351 = vadd.f32 0.0, %v2350
        %v2352 = vpop.f32.mrb[0].mxu0
        %v2353 = vadd.f32 0.0, %v2352
        %v2354 = vpop.f32.mrb[0].mxu0
        %v2355 = vadd.f32 0.0, %v2354
        %2356 = vmatprep.mubr.bf16.mxu0 %v669
        %2357 = vmatmul.mubr.bf16.gmra.mrb[0].mxu0 %v668
        %v2358 = vpop.f32.mrb[0].mxu0
        %v2359 = vadd.f32 0.0, %v2358
        %v2360 = vpop.f32.mrb[0].mxu0
        %v2361 = vadd.f32 0.0, %v2360
        %v2362 = vpop.f32.mrb[0].mxu0
        %v2363 = vadd.f32 0.0, %v2362
        %v2364 = vpop.f32.mrb[0].mxu0
        %v2365 = vadd.f32 0.0, %v2364
        %2366 = vmatprep.mubr.bf16.mxu0 %v673
        %2367 = vmatmul.mubr.bf16.gmra.mrb[0].mxu0 %v672
        %v2368 = vpop.f32.mrb[0].mxu0
        %v2369 = vadd.f32 0.0, %v2368
        %v2370 = vpop.f32.mrb[0].mxu0
        %v2371 = vadd.f32 0.0, %v2370
        %v2372 = vpop.f32.mrb[0].mxu0
        %v2373 = vadd.f32 0.0, %v2372
        %v2374 = vpop.f32.mrb[0].mxu0
        %v2375 = vadd.f32 0.0, %v2374
        %2376 = vmatprep.mubr.bf16.mxu0 %v677
        %2377 = vmatmul.mubr.bf16.gmra.mrb[0].mxu0 %v676
        %v2378 = vpop.f32.mrb[0].mxu0
        %v2379 = vadd.f32 0.0, %v2378
        %v2380 = vpop.f32.mrb[0].mxu0
        %v2381 = vadd.f32 0.0, %v2380
        %v2382 = vpop.f32.mrb[0].mxu0
        %v2383 = vadd.f32 0.0, %v2382
        %v2384 = vpop.f32.mrb[0].mxu0
        %v2385 = vadd.f32 0.0, %v2384
        %2386 = vdwg.mxu0
        %2387 = vmatprep.subr.bf16.mxu0 %v1403
        %2388 = vmatpush1.bf16.msra.mxu0 %v1402
        %2389 = vmatprep.subr.bf16.mxu0 %v1415
        %2390 = vmatpush1.bf16.msra.mxu0 %v1414
        %2391 = vmatprep.subr.bf16.mxu0 %v1427
        %2392 = vmatpush1.bf16.msra.mxu0 %v1426
        %2393 = vmatprep.subr.bf16.mxu0 %v1439
        %2394 = vmatpush1.bf16.msra.mxu0 %v1438
        %2395 = vmatprep.subr.bf16.mxu0 %v1451
        %2396 = vmatpush1.bf16.msra.mxu0 %v1450
        %2397 = vmatprep.subr.bf16.mxu0 %v1463
        %2398 = vmatpush1.bf16.msra.mxu0 %v1462
        %2399 = vmatprep.subr.bf16.mxu0 %v1475
        %2400 = vmatpush1.bf16.msra.mxu0 %v1474
        %2401 = vmatprep.subr.bf16.mxu0 %v1487
        %2402 = vmatpush1.bf16.msra.mxu0 %v1486
        %2403 = vmatprep.subr.bf16.mxu0 %v1499
        %2404 = vmatpush1.bf16.msra.mxu0 %v1498
        %2405 = vmatprep.subr.bf16.mxu0 %v1511
        %2406 = vmatpush1.bf16.msra.mxu0 %v1510
        %2407 = vmatprep.subr.bf16.mxu0 %v1523
        %2408 = vmatpush1.bf16.msra.mxu0 %v1522
        %2409 = vmatprep.subr.bf16.mxu0 %v1535
        %2410 = vmatpush1.bf16.msra.mxu0 %v1534
        %2411 = vmatprep.subr.bf16.mxu0 %v1547
        %2412 = vmatpush1.bf16.msra.mxu0 %v1546
        %2413 = vmatprep.subr.bf16.mxu0 %v1559
        %2414 = vmatpush1.bf16.msra.mxu0 %v1558
        %2415 = vmatprep.subr.bf16.mxu0 %v1571
        %2416 = vmatpush1.bf16.msra.mxu0 %v1570
        %2417 = vmatprep.subr.bf16.mxu0 %v1583
        %2418 = vmatpush1.bf16.msra.mxu0 %v1582
        %2419 = vmatprep.mubr.bf16.mxu0 %v667
        %2420 = vmatmul.mubr.bf16.gmra.mrb[0].mxu0 %v666
        %v2421 = vpop.f32.mrb[0].mxu0
        %v2422 = vadd.f32 %v2349, %v2421
        %v2423 = vpop.f32.mrb[0].mxu0
        %v2424 = vadd.f32 %v2351, %v2423
        %v2425 = vpop.f32.mrb[0].mxu0
        %v2426 = vadd.f32 %v2353, %v2425
        %v2427 = vpop.f32.mrb[0].mxu0
        %v2428 = vadd.f32 %v2355, %v2427
        %2429 = vmatprep.mubr.bf16.mxu0 %v671
        %2430 = vmatmul.mubr.bf16.gmra.mrb[0].mxu0 %v670
        %v2431 = vpop.f32.mrb[0].mxu0
        %v2432 = vadd.f32 %v2359, %v2431
        %v2433 = vpop.f32.mrb[0].mxu0
        %v2434 = vadd.f32 %v2361, %v2433
        %v2435 = vpop.f32.mrb[0].mxu0
        %v2436 = vadd.f32 %v2363, %v2435
        %v2437 = vpop.f32.mrb[0].mxu0
        %v2438 = vadd.f32 %v2365, %v2437
        %2439 = vmatprep.mubr.bf16.mxu0 %v675
        %2440 = vmatmul.mubr.bf16.gmra.mrb[0].mxu0 %v674
        %v2441 = vpop.f32.mrb[0].mxu0
        %v2442 = vadd.f32 %v2369, %v2441
        %v2443 = vpop.f32.mrb[0].mxu0
        %v2444 = vadd.f32 %v2371, %v2443
        %v2445 = vpop.f32.mrb[0].mxu0
        %v2446 = vadd.f32 %v2373, %v2445
        %v2447 = vpop.f32.mrb[0].mxu0
        %v2448 = vadd.f32 %v2375, %v2447
        %2449 = vmatprep.mubr.bf16.mxu0 %v679
        %2450 = vmatmul.mubr.bf16.gmra.mrb[0].mxu0 %v678
        %v2451 = vpop.f32.mrb[0].mxu0
        %v2452 = vadd.f32 %v2379, %v2451
        %v2453 = vpop.f32.mrb[0].mxu0
        %v2454 = vadd.f32 %v2381, %v2453
        %v2455 = vpop.f32.mrb[0].mxu0
        %v2456 = vadd.f32 %v2383, %v2455
        %v2457 = vpop.f32.mrb[0].mxu0
        %v2458 = vadd.f32 %v2385, %v2457
        %2459 = vdwg.mxu0
        %v2460 = vld [vmem:[#allocation5] sm:$0xff]
        %v2461 = vld [vmem:[#allocation5 + $0x8] sm:$0xff]
        %v2462 = vld [vmem:[#allocation5 + $0x10] sm:$0xff]
        %v2463 = vld [vmem:[#allocation5 + $0x18] sm:$0xff]
        %v2464 = vld [vmem:[#allocation5 + $0x20] sm:$0xff]
        %v2465 = vld [vmem:[#allocation5 + $0x28] sm:$0xff]
        %v2466 = vld [vmem:[#allocation5 + $0x30] sm:$0xff]
        %v2467 = vld [vmem:[#allocation5 + $0x38] sm:$0xff]
        %v2468 = vpack.c.bf16 %v1696, %v1692
        %v2469 = vpack.c.bf16 %v1706, %v1702
        %v2470 = vpack.c.bf16 %v1716, %v1712
        %v2471 = vpack.c.bf16 %v1726, %v1722
        %v2472 = vadd.f32 %v1984, %v2460
        %v2473 = vadd.f32 %v1988, %v2461
        %v2474 = vadd.f32 %v1994, %v2462
        %v2475 = vadd.f32 %v1998, %v2463
        %v2476 = vadd.f32 %v2004, %v2464
        %v2477 = vadd.f32 %v2008, %v2465
        %v2478 = vadd.f32 %v2014, %v2466
        %v2479 = vadd.f32 %v2018, %v2467
        %v2480 = vpack.c.bf16 %v2473, %v2472
        %v2481 = vpack.c.bf16 %v2475, %v2474
        %v2482 = vpack.c.bf16 %v2477, %v2476
        %v2483 = vpack.c.bf16 %v2479, %v2478
        %v2484 = vpack.c.bf16 %v2280, %v2276
        %v2485 = vpack.c.bf16 %v2290, %v2286
        %v2486 = vpack.c.bf16 %v2300, %v2296
        %v2487 = vpack.c.bf16 %v2310, %v2306
        %2488 = vmatprep.subr.bf16.mxu0 0
        %2489 = vmatpush1.bf16.xpose.msra.mxu0 %v2480
        %2490 = vmatprep.subr.bf16.mxu0 0
        %2491 = vmatpush1.bf16.xpose.msra.mxu0 %v2481
        %2492 = vmatprep.subr.bf16.mxu0 0
        %2493 = vmatpush1.bf16.xpose.msra.mxu0 %v2482
        %2494 = vmatprep.subr.bf16.mxu0 0
        %2495 = vmatpush1.bf16.xpose.msra.mxu0 %v2483
        %2496 = vmatprep.subr.bf16.mxu0 0
        %2497 = vmatpush1.bf16.xpose.msra.mxu0 0
        %2498 = vmatprep.subr.bf16.mxu0 0
        %2499 = vmatpush1.bf16.xpose.msra.mxu0 0
        %2500 = vmatprep.subr.bf16.mxu0 0
        %2501 = vmatpush1.bf16.xpose.msra.mxu0 0
        %2502 = vmatprep.subr.bf16.mxu0 0
        %2503 = vmatpush1.bf16.xpose.msra.mxu0 0
        %2504 = vmatprep.subr.bf16.mxu0 0
        %2505 = vmatpush1.bf16.xpose.msra.mxu0 0
        %2506 = vmatprep.subr.bf16.mxu0 0
        %2507 = vmatpush1.bf16.xpose.msra.mxu0 0
        %2508 = vmatprep.subr.bf16.mxu0 0
        %2509 = vmatpush1.bf16.xpose.msra.mxu0 0
        %2510 = vmatprep.subr.bf16.mxu0 0
        %2511 = vmatpush1.bf16.xpose.msra.mxu0 0
        %2512 = vmatprep.subr.bf16.mxu0 0
        %2513 = vmatpush1.bf16.xpose.msra.mxu0 0
        %2514 = vmatprep.subr.bf16.mxu0 0
        %2515 = vmatpush1.bf16.xpose.msra.mxu0 0
        %2516 = vmatprep.subr.bf16.mxu0 0
        %2517 = vmatpush1.bf16.xpose.msra.mxu0 0
        %2518 = vmatprep.subr.bf16.mxu0 0
        %2519 = vmatpush1.bf16.xpose.msra.mxu0 0
        %2520 = vmatprep.mubr.bf16.mxu0 0
        %2521 = vmatmul.mubr.bf16.gmra.mrb[0].mxu0 %v2468
        %v2522 = vpop.f32.mrb[0].mxu0
        %v2523 = vadd.f32 0.0, %v2522
        %v2524 = vpop.f32.mrb[0].mxu0
        %v2525 = vpop.f32.mrb[0].mxu0
        %v2526 = vadd.f32 0.0, %v2525
        %v2527 = vpop.f32.mrb[0].mxu0
        %2528 = vmatprep.mubr.bf16.mxu0 0
        %2529 = vmatmul.mubr.bf16.gmra.mrb[0].mxu0 %v2469
        %v2530 = vpop.f32.mrb[0].mxu0
        %v2531 = vadd.f32 0.0, %v2530
        %v2532 = vpop.f32.mrb[0].mxu0
        %v2533 = vpop.f32.mrb[0].mxu0
        %v2534 = vadd.f32 0.0, %v2533
        %v2535 = vpop.f32.mrb[0].mxu0
        %2536 = vmatprep.mubr.bf16.mxu0 0
        %2537 = vmatmul.mubr.bf16.gmra.mrb[0].mxu0 %v2470
        %v2538 = vpop.f32.mrb[0].mxu0
        %v2539 = vadd.f32 0.0, %v2538
        %v2540 = vpop.f32.mrb[0].mxu0
        %v2541 = vpop.f32.mrb[0].mxu0
        %v2542 = vadd.f32 0.0, %v2541
        %v2543 = vpop.f32.mrb[0].mxu0
        %2544 = vmatprep.mubr.bf16.mxu0 0
        %2545 = vmatmul.mubr.bf16.gmra.mrb[0].mxu0 %v2471
        %v2546 = vpop.f32.mrb[0].mxu0
        %v2547 = vadd.f32 0.0, %v2546
        %v2548 = vpop.f32.mrb[0].mxu0
        %v2549 = vpop.f32.mrb[0].mxu0
        %v2550 = vadd.f32 0.0, %v2549
        %v2551 = vpop.f32.mrb[0].mxu0
        %2552 = vdwg.mxu0
        %v2553 = vsel %vm696, %v2523, -inf
        %2554 = vmax.xlane.f32.xlu0 %v2553
        %v2555 = vpop.xlane.xlu0 %2554
        %v2556 = vsel %vm696, %v2526, -inf
        %2557 = vmax.xlane.f32.xlu0 %v2556
        %v2558 = vpop.xlane.xlu0 %2557
        %v2559 = vsel %vm696, %v2531, -inf
        %2560 = vmax.xlane.f32.xlu0 %v2559
        %v2561 = vpop.xlane.xlu0 %2560
        %v2562 = vsel %vm696, %v2534, -inf
        %2563 = vmax.xlane.f32.xlu0 %v2562
        %v2564 = vpop.xlane.xlu0 %2563
        %v2565 = vsel %vm696, %v2539, -inf
        %2566 = vmax.xlane.f32.xlu0 %v2565
        %v2567 = vpop.xlane.xlu0 %2566
        %v2568 = vsel %vm696, %v2542, -inf
        %2569 = vmax.xlane.f32.xlu0 %v2568
        %v2570 = vpop.xlane.xlu0 %2569
        %v2571 = vsel %vm696, %v2547, -inf
        %2572 = vmax.xlane.f32.xlu0 %v2571
        %v2573 = vpop.xlane.xlu0 %2572
        %v2574 = vsel %vm696, %v2550, -inf
        %2575 = vmax.xlane.f32.xlu0 %v2574
        %v2576 = vpop.xlane.xlu0 %2575
        %v2577 = vsub.f32 %v2523, %v2555
        %v2578 = vsub.f32 %v2526, %v2558
        %v2579 = vsub.f32 %v2531, %v2561
        %v2580 = vsub.f32 %v2534, %v2564
        %v2581 = vsub.f32 %v2539, %v2567
        %v2582 = vsub.f32 %v2542, %v2570
        %v2583 = vsub.f32 %v2547, %v2573
        %v2584 = vsub.f32 %v2550, %v2576
        %v2585 = vmul.f32 %v2577, 1.442695
        %v2586 = vpow.pop %v2585
        %v2587 = vmul.f32 %v2578, 1.442695
        %v2588 = vpow.pop %v2587
        %v2589 = vmul.f32 %v2579, 1.442695
        %v2590 = vpow.pop %v2589
        %v2591 = vmul.f32 %v2580, 1.442695
        %v2592 = vpow.pop %v2591
        %v2593 = vmul.f32 %v2581, 1.442695
        %v2594 = vpow.pop %v2593
        %v2595 = vmul.f32 %v2582, 1.442695
        %v2596 = vpow.pop %v2595
        %v2597 = vmul.f32 %v2583, 1.442695
        %v2598 = vpow.pop %v2597
        %v2599 = vmul.f32 %v2584, 1.442695
        %v2600 = vpow.pop %v2599
        %v2601 = vsel %vm696, %v2586, 0.0
        %2602 = vadd.xlane.f32.xlu0 %v2601
        %v2603 = vpop.xlane.xlu0 %2602
        %v2604 = vsel %vm696, %v2588, 0.0
        %2605 = vadd.xlane.f32.xlu0 %v2604
        %v2606 = vpop.xlane.xlu0 %2605
        %v2607 = vsel %vm696, %v2590, 0.0
        %2608 = vadd.xlane.f32.xlu0 %v2607
        %v2609 = vpop.xlane.xlu0 %2608
        %v2610 = vsel %vm696, %v2592, 0.0
        %2611 = vadd.xlane.f32.xlu0 %v2610
        %v2612 = vpop.xlane.xlu0 %2611
        %v2613 = vsel %vm696, %v2594, 0.0
        %2614 = vadd.xlane.f32.xlu0 %v2613
        %v2615 = vpop.xlane.xlu0 %2614
        %v2616 = vsel %vm696, %v2596, 0.0
        %2617 = vadd.xlane.f32.xlu0 %v2616
        %v2618 = vpop.xlane.xlu0 %2617
        %v2619 = vsel %vm696, %v2598, 0.0
        %2620 = vadd.xlane.f32.xlu0 %v2619
        %v2621 = vpop.xlane.xlu0 %2620
        %v2622 = vsel %vm696, %v2600, 0.0
        %2623 = vadd.xlane.f32.xlu0 %v2622
        %v2624 = vpop.xlane.xlu0 %2623
        %v2625 = vrcp.pop %v2603
        %v2626 = vrcp.pop %v2606
        %v2627 = vrcp.pop %v2609
        %v2628 = vrcp.pop %v2612
        %v2629 = vrcp.pop %v2615
        %v2630 = vrcp.pop %v2618
        %v2631 = vrcp.pop %v2621
        %v2632 = vrcp.pop %v2624
        %v2633 = vmul.f32 %v2586, %v2625
        %v2634 = vmul.f32 %v2588, %v2626
        %v2635 = vmul.f32 %v2590, %v2627
        %v2636 = vmul.f32 %v2592, %v2628
        %v2637 = vmul.f32 %v2594, %v2629
        %v2638 = vmul.f32 %v2596, %v2630
        %v2639 = vmul.f32 %v2598, %v2631
        %v2640 = vmul.f32 %v2600, %v2632
        %v2641 = vpack.c.bf16 %v2634, %v2633
        %v2642 = vpack.c.bf16 %v2636, %v2635
        %v2643 = vpack.c.bf16 %v2638, %v2637
        %v2644 = vpack.c.bf16 %v2640, %v2639
        %v2646 = vsel %vm696, %v2641, 0
        %v2649 = vsel %vm696, %v2642, 0
        %v2652 = vsel %vm696, %v2643, 0
        %v2655 = vsel %vm696, %v2644, 0
        %2657 = vmatprep.subr.bf16.mxu0 0
        %2658 = vmatpush1.bf16.msra.mxu0 %v2484
        %2659 = vmatprep.subr.bf16.mxu0 0
        %2660 = vmatpush1.bf16.msra.mxu0 %v2485
        %2661 = vmatprep.subr.bf16.mxu0 0
        %2662 = vmatpush1.bf16.msra.mxu0 %v2486
        %2663 = vmatprep.subr.bf16.mxu0 0
        %2664 = vmatpush1.bf16.msra.mxu0 %v2487
        %2665 = vmatprep.subr.bf16.mxu0 0
        %2666 = vmatpush1.bf16.msra.mxu0 0
        %2667 = vmatprep.subr.bf16.mxu0 0
        %2668 = vmatpush1.bf16.msra.mxu0 0
        %2669 = vmatprep.subr.bf16.mxu0 0
        %2670 = vmatpush1.bf16.msra.mxu0 0
        %2671 = vmatprep.subr.bf16.mxu0 0
        %2672 = vmatpush1.bf16.msra.mxu0 0
        %2673 = vmatprep.subr.bf16.mxu0 0
        %2674 = vmatpush1.bf16.msra.mxu0 0
        %2675 = vmatprep.subr.bf16.mxu0 0
        %2676 = vmatpush1.bf16.msra.mxu0 0
        %2677 = vmatprep.subr.bf16.mxu0 0
        %2678 = vmatpush1.bf16.msra.mxu0 0
        %2679 = vmatprep.subr.bf16.mxu0 0
        %2680 = vmatpush1.bf16.msra.mxu0 0
        %2681 = vmatprep.subr.bf16.mxu0 0
        %2682 = vmatpush1.bf16.msra.mxu0 0
        %2683 = vmatprep.subr.bf16.mxu0 0
        %2684 = vmatpush1.bf16.msra.mxu0 0
        %2685 = vmatprep.subr.bf16.mxu0 0
        %2686 = vmatpush1.bf16.msra.mxu0 0
        %2687 = vmatprep.subr.bf16.mxu0 0
        %2688 = vmatpush1.bf16.msra.mxu0 0
        %2689 = vmatprep.mubr.bf16.mxu0 0
        %2690 = vmatmul.mubr.bf16.gmra.mrb[0].mxu0 %v2646
        %v2691 = vpop.f32.mrb[0].mxu0
        %v2692 = vadd.f32 0.0, %v2691
        %v2693 = vpop.f32.mrb[0].mxu0
        %v2694 = vpop.f32.mrb[0].mxu0
        %v2695 = vadd.f32 0.0, %v2694
        %v2696 = vpop.f32.mrb[0].mxu0
        %2697 = vmatprep.mubr.bf16.mxu0 0
        %2698 = vmatmul.mubr.bf16.gmra.mrb[0].mxu0 %v2649
        %v2699 = vpop.f32.mrb[0].mxu0
        %v2700 = vadd.f32 0.0, %v2699
        %v2701 = vpop.f32.mrb[0].mxu0
        %v2702 = vpop.f32.mrb[0].mxu0
        %v2703 = vadd.f32 0.0, %v2702
        %v2704 = vpop.f32.mrb[0].mxu0
        %2705 = vmatprep.mubr.bf16.mxu0 0
        %2706 = vmatmul.mubr.bf16.gmra.mrb[0].mxu0 %v2652
        %v2707 = vpop.f32.mrb[0].mxu0
        %v2708 = vadd.f32 0.0, %v2707
        %v2709 = vpop.f32.mrb[0].mxu0
        %v2710 = vpop.f32.mrb[0].mxu0
        %v2711 = vadd.f32 0.0, %v2710
        %v2712 = vpop.f32.mrb[0].mxu0
        %2713 = vmatprep.mubr.bf16.mxu0 0
        %2714 = vmatmul.mubr.bf16.gmra.mrb[0].mxu0 %v2655
        %v2715 = vpop.f32.mrb[0].mxu0
        %v2716 = vadd.f32 0.0, %v2715
        %v2717 = vpop.f32.mrb[0].mxu0
        %v2718 = vpop.f32.mrb[0].mxu0
        %v2719 = vadd.f32 0.0, %v2718
        %v2720 = vpop.f32.mrb[0].mxu0
        %2721 = vdwg.mxu0
        %2722 = vst [vmem:[#allocation3] sm:$0xff] %v2692
        %2723 = vst [vmem:[#allocation3 + $0x20] sm:$0xff] %v2695
        %2724 = vst [vmem:[#allocation3 + $0x40] sm:$0xff] %v2700
        %2725 = vst [vmem:[#allocation3 + $0x60] sm:$0xff] %v2703
        %2726 = vst [vmem:[#allocation3 + $0x80] sm:$0xff] %v2708
        %2727 = vst [vmem:[#allocation3 + $0xa0] sm:$0xff] %v2711
        %2728 = vst [vmem:[#allocation3 + $0xc0] sm:$0xff] %v2716
        %2729 = vst [vmem:[#allocation3 + $0xe0] sm:$0xff] %v2719
        %v2730 = vpack.c.bf16 %v1698, %v1694
        %v2731 = vpack.c.bf16 %v1708, %v1704
        %v2732 = vpack.c.bf16 %v1718, %v1714
        %v2733 = vpack.c.bf16 %v1728, %v1724
        %v2734 = vadd.f32 %v1986, %v2460
        %v2735 = vadd.f32 %v1990, %v2461
        %v2736 = vadd.f32 %v1996, %v2462
        %v2737 = vadd.f32 %v2000, %v2463
        %v2738 = vadd.f32 %v2006, %v2464
        %v2739 = vadd.f32 %v2010, %v2465
        %v2740 = vadd.f32 %v2016, %v2466
        %v2741 = vadd.f32 %v2020, %v2467
        %v2742 = vpack.c.bf16 %v2735, %v2734
        %v2743 = vpack.c.bf16 %v2737, %v2736
        %v2744 = vpack.c.bf16 %v2739, %v2738
        %v2745 = vpack.c.bf16 %v2741, %v2740
        %v2746 = vpack.c.bf16 %v2282, %v2278
        %v2747 = vpack.c.bf16 %v2292, %v2288
        %v2748 = vpack.c.bf16 %v2302, %v2298
        %v2749 = vpack.c.bf16 %v2312, %v2308
        %2750 = vmatprep.subr.bf16.mxu0 0
        %2751 = vmatpush1.bf16.xpose.msra.mxu0 %v2742
        %2752 = vmatprep.subr.bf16.mxu0 0
        %2753 = vmatpush1.bf16.xpose.msra.mxu0 %v2743
        %2754 = vmatprep.subr.bf16.mxu0 0
        %2755 = vmatpush1.bf16.xpose.msra.mxu0 %v2744
        %2756 = vmatprep.subr.bf16.mxu0 0
        %2757 = vmatpush1.bf16.xpose.msra.mxu0 %v2745
        %2758 = vmatprep.subr.bf16.mxu0 0
        %2759 = vmatpush1.bf16.xpose.msra.mxu0 0
        %2760 = vmatprep.subr.bf16.mxu0 0
        %2761 = vmatpush1.bf16.xpose.msra.mxu0 0
        %2762 = vmatprep.subr.bf16.mxu0 0
        %2763 = vmatpush1.bf16.xpose.msra.mxu0 0
        %2764 = vmatprep.subr.bf16.mxu0 0
        %2765 = vmatpush1.bf16.xpose.msra.mxu0 0
        %2766 = vmatprep.subr.bf16.mxu0 0
        %2767 = vmatpush1.bf16.xpose.msra.mxu0 0
        %2768 = vmatprep.subr.bf16.mxu0 0
        %2769 = vmatpush1.bf16.xpose.msra.mxu0 0
        %2770 = vmatprep.subr.bf16.mxu0 0
        %2771 = vmatpush1.bf16.xpose.msra.mxu0 0
        %2772 = vmatprep.subr.bf16.mxu0 0
        %2773 = vmatpush1.bf16.xpose.msra.mxu0 0
        %2774 = vmatprep.subr.bf16.mxu0 0
        %2775 = vmatpush1.bf16.xpose.msra.mxu0 0
        %2776 = vmatprep.subr.bf16.mxu0 0
        %2777 = vmatpush1.bf16.xpose.msra.mxu0 0
        %2778 = vmatprep.subr.bf16.mxu0 0
        %2779 = vmatpush1.bf16.xpose.msra.mxu0 0
        %2780 = vmatprep.subr.bf16.mxu0 0
        %2781 = vmatpush1.bf16.xpose.msra.mxu0 0
        %2782 = vmatprep.mubr.bf16.mxu0 0
        %2783 = vmatmul.mubr.bf16.gmra.mrb[0].mxu0 %v2730
        %v2784 = vpop.f32.mrb[0].mxu0
        %v2785 = vadd.f32 0.0, %v2784
        %v2786 = vpop.f32.mrb[0].mxu0
        %v2787 = vpop.f32.mrb[0].mxu0
        %v2788 = vadd.f32 0.0, %v2787
        %v2789 = vpop.f32.mrb[0].mxu0
        %2790 = vmatprep.mubr.bf16.mxu0 0
        %2791 = vmatmul.mubr.bf16.gmra.mrb[0].mxu0 %v2731
        %v2792 = vpop.f32.mrb[0].mxu0
        %v2793 = vadd.f32 0.0, %v2792
        %v2794 = vpop.f32.mrb[0].mxu0
        %v2795 = vpop.f32.mrb[0].mxu0
        %v2796 = vadd.f32 0.0, %v2795
        %v2797 = vpop.f32.mrb[0].mxu0
        %2798 = vmatprep.mubr.bf16.mxu0 0
        %2799 = vmatmul.mubr.bf16.gmra.mrb[0].mxu0 %v2732
        %v2800 = vpop.f32.mrb[0].mxu0
        %v2801 = vadd.f32 0.0, %v2800
        %v2802 = vpop.f32.mrb[0].mxu0
        %v2803 = vpop.f32.mrb[0].mxu0
        %v2804 = vadd.f32 0.0, %v2803
        %v2805 = vpop.f32.mrb[0].mxu0
        %2806 = vmatprep.mubr.bf16.mxu0 0
        %2807 = vmatmul.mubr.bf16.gmra.mrb[0].mxu0 %v2733
        %v2808 = vpop.f32.mrb[0].mxu0
        %v2809 = vadd.f32 0.0, %v2808
        %v2810 = vpop.f32.mrb[0].mxu0
        %v2811 = vpop.f32.mrb[0].mxu0
        %v2812 = vadd.f32 0.0, %v2811
        %v2813 = vpop.f32.mrb[0].mxu0
        %2814 = vdwg.mxu0
        %v2815 = vsel %vm696, %v2785, -inf
        %2816 = vmax.xlane.f32.xlu0 %v2815
        %v2817 = vpop.xlane.xlu0 %2816
        %v2818 = vsel %vm696, %v2788, -inf
        %2819 = vmax.xlane.f32.xlu0 %v2818
        %v2820 = vpop.xlane.xlu0 %2819
        %v2821 = vsel %vm696, %v2793, -inf
        %2822 = vmax.xlane.f32.xlu0 %v2821
        %v2823 = vpop.xlane.xlu0 %2822
        %v2824 = vsel %vm696, %v2796, -inf
        %2825 = vmax.xlane.f32.xlu0 %v2824
        %v2826 = vpop.xlane.xlu0 %2825
        %v2827 = vsel %vm696, %v2801, -inf
        %2828 = vmax.xlane.f32.xlu0 %v2827
        %v2829 = vpop.xlane.xlu0 %2828
        %v2830 = vsel %vm696, %v2804, -inf
        %2831 = vmax.xlane.f32.xlu0 %v2830
        %v2832 = vpop.xlane.xlu0 %2831
        %v2833 = vsel %vm696, %v2809, -inf
        %2834 = vmax.xlane.f32.xlu0 %v2833
        %v2835 = vpop.xlane.xlu0 %2834
        %v2836 = vsel %vm696, %v2812, -inf
        %2837 = vmax.xlane.f32.xlu0 %v2836
        %v2838 = vpop.xlane.xlu0 %2837
        %v2839 = vsub.f32 %v2785, %v2817
        %v2840 = vsub.f32 %v2788, %v2820
        %v2841 = vsub.f32 %v2793, %v2823
        %v2842 = vsub.f32 %v2796, %v2826
        %v2843 = vsub.f32 %v2801, %v2829
        %v2844 = vsub.f32 %v2804, %v2832
        %v2845 = vsub.f32 %v2809, %v2835
        %v2846 = vsub.f32 %v2812, %v2838
        %v2847 = vmul.f32 %v2839, 1.442695
        %v2848 = vpow.pop %v2847
        %v2849 = vmul.f32 %v2840, 1.442695
        %v2850 = vpow.pop %v2849
        %v2851 = vmul.f32 %v2841, 1.442695
        %v2852 = vpow.pop %v2851
        %v2853 = vmul.f32 %v2842, 1.442695
        %v2854 = vpow.pop %v2853
        %v2855 = vmul.f32 %v2843, 1.442695
        %v2856 = vpow.pop %v2855
        %v2857 = vmul.f32 %v2844, 1.442695
        %v2858 = vpow.pop %v2857
        %v2859 = vmul.f32 %v2845, 1.442695
        %v2860 = vpow.pop %v2859
        %v2861 = vmul.f32 %v2846, 1.442695
        %v2862 = vpow.pop %v2861
        %v2863 = vsel %vm696, %v2848, 0.0
        %2864 = vadd.xlane.f32.xlu0 %v2863
        %v2865 = vpop.xlane.xlu0 %2864
        %v2866 = vsel %vm696, %v2850, 0.0
        %2867 = vadd.xlane.f32.xlu0 %v2866
        %v2868 = vpop.xlane.xlu0 %2867
        %v2869 = vsel %vm696, %v2852, 0.0
        %2870 = vadd.xlane.f32.xlu0 %v2869
        %v2871 = vpop.xlane.xlu0 %2870
        %v2872 = vsel %vm696, %v2854, 0.0
        %2873 = vadd.xlane.f32.xlu0 %v2872
        %v2874 = vpop.xlane.xlu0 %2873
        %v2875 = vsel %vm696, %v2856, 0.0
        %2876 = vadd.xlane.f32.xlu0 %v2875
        %v2877 = vpop.xlane.xlu0 %2876
        %v2878 = vsel %vm696, %v2858, 0.0
        %2879 = vadd.xlane.f32.xlu0 %v2878
        %v2880 = vpop.xlane.xlu0 %2879
        %v2881 = vsel %vm696, %v2860, 0.0
        %2882 = vadd.xlane.f32.xlu0 %v2881
        %v2883 = vpop.xlane.xlu0 %2882
        %v2884 = vsel %vm696, %v2862, 0.0
        %2885 = vadd.xlane.f32.xlu0 %v2884
        %v2886 = vpop.xlane.xlu0 %2885
        %v2887 = vrcp.pop %v2865
        %v2888 = vrcp.pop %v2868
        %v2889 = vrcp.pop %v2871
        %v2890 = vrcp.pop %v2874
        %v2891 = vrcp.pop %v2877
        %v2892 = vrcp.pop %v2880
        %v2893 = vrcp.pop %v2883
        %v2894 = vrcp.pop %v2886
        %v2895 = vmul.f32 %v2848, %v2887
        %v2896 = vmul.f32 %v2850, %v2888
        %v2897 = vmul.f32 %v2852, %v2889
        %v2898 = vmul.f32 %v2854, %v2890
        %v2899 = vmul.f32 %v2856, %v2891
        %v2900 = vmul.f32 %v2858, %v2892
        %v2901 = vmul.f32 %v2860, %v2893
        %v2902 = vmul.f32 %v2862, %v2894
        %v2903 = vpack.c.bf16 %v2896, %v2895
        %v2904 = vpack.c.bf16 %v2898, %v2897
        %v2905 = vpack.c.bf16 %v2900, %v2899
        %v2906 = vpack.c.bf16 %v2902, %v2901
        %v2908 = vsel %vm696, %v2903, 0
        %v2911 = vsel %vm696, %v2904, 0
        %v2914 = vsel %vm696, %v2905, 0
        %v2917 = vsel %vm696, %v2906, 0
        %2919 = vmatprep.subr.bf16.mxu0 0
        %2920 = vmatpush1.bf16.msra.mxu0 %v2746
        %2921 = vmatprep.subr.bf16.mxu0 0
        %2922 = vmatpush1.bf16.msra.mxu0 %v2747
        %2923 = vmatprep.subr.bf16.mxu0 0
        %2924 = vmatpush1.bf16.msra.mxu0 %v2748
        %2925 = vmatprep.subr.bf16.mxu0 0
        %2926 = vmatpush1.bf16.msra.mxu0 %v2749
        %2927 = vmatprep.subr.bf16.mxu0 0
        %2928 = vmatpush1.bf16.msra.mxu0 0
        %2929 = vmatprep.subr.bf16.mxu0 0
        %2930 = vmatpush1.bf16.msra.mxu0 0
        %2931 = vmatprep.subr.bf16.mxu0 0
        %2932 = vmatpush1.bf16.msra.mxu0 0
        %2933 = vmatprep.subr.bf16.mxu0 0
        %2934 = vmatpush1.bf16.msra.mxu0 0
        %2935 = vmatprep.subr.bf16.mxu0 0
        %2936 = vmatpush1.bf16.msra.mxu0 0
        %2937 = vmatprep.subr.bf16.mxu0 0
        %2938 = vmatpush1.bf16.msra.mxu0 0
        %2939 = vmatprep.subr.bf16.mxu0 0
        %2940 = vmatpush1.bf16.msra.mxu0 0
        %2941 = vmatprep.subr.bf16.mxu0 0
        %2942 = vmatpush1.bf16.msra.mxu0 0
        %2943 = vmatprep.subr.bf16.mxu0 0
        %2944 = vmatpush1.bf16.msra.mxu0 0
        %2945 = vmatprep.subr.bf16.mxu0 0
        %2946 = vmatpush1.bf16.msra.mxu0 0
        %2947 = vmatprep.subr.bf16.mxu0 0
        %2948 = vmatpush1.bf16.msra.mxu0 0
        %2949 = vmatprep.subr.bf16.mxu0 0
        %2950 = vmatpush1.bf16.msra.mxu0 0
        %2951 = vmatprep.mubr.bf16.mxu0 0
        %2952 = vmatmul.mubr.bf16.gmra.mrb[0].mxu0 %v2908
        %v2953 = vpop.f32.mrb[0].mxu0
        %v2954 = vadd.f32 0.0, %v2953
        %v2955 = vpop.f32.mrb[0].mxu0
        %v2956 = vpop.f32.mrb[0].mxu0
        %v2957 = vadd.f32 0.0, %v2956
        %v2958 = vpop.f32.mrb[0].mxu0
        %2959 = vmatprep.mubr.bf16.mxu0 0
        %2960 = vmatmul.mubr.bf16.gmra.mrb[0].mxu0 %v2911
        %v2961 = vpop.f32.mrb[0].mxu0
        %v2962 = vadd.f32 0.0, %v2961
        %v2963 = vpop.f32.mrb[0].mxu0
        %v2964 = vpop.f32.mrb[0].mxu0
        %v2965 = vadd.f32 0.0, %v2964
        %v2966 = vpop.f32.mrb[0].mxu0
        %2967 = vmatprep.mubr.bf16.mxu0 0
        %2968 = vmatmul.mubr.bf16.gmra.mrb[0].mxu0 %v2914
        %v2969 = vpop.f32.mrb[0].mxu0
        %v2970 = vadd.f32 0.0, %v2969
        %v2971 = vpop.f32.mrb[0].mxu0
        %v2972 = vpop.f32.mrb[0].mxu0
        %v2973 = vadd.f32 0.0, %v2972
        %v2974 = vpop.f32.mrb[0].mxu0
        %2975 = vmatprep.mubr.bf16.mxu0 0
        %2976 = vmatmul.mubr.bf16.gmra.mrb[0].mxu0 %v2917
        %v2977 = vpop.f32.mrb[0].mxu0
        %v2978 = vadd.f32 0.0, %v2977
        %v2979 = vpop.f32.mrb[0].mxu0
        %v2980 = vpop.f32.mrb[0].mxu0
        %v2981 = vadd.f32 0.0, %v2980
        %v2982 = vpop.f32.mrb[0].mxu0
        %2983 = vdwg.mxu0
        %2984 = vst [vmem:[#allocation3 + $0x8] sm:$0xff] %v2954
        %2985 = vst [vmem:[#allocation3 + $0x28] sm:$0xff] %v2957
        %2986 = vst [vmem:[#allocation3 + $0x48] sm:$0xff] %v2962
        %2987 = vst [vmem:[#allocation3 + $0x68] sm:$0xff] %v2965
        %2988 = vst [vmem:[#allocation3 + $0x88] sm:$0xff] %v2970
        %2989 = vst [vmem:[#allocation3 + $0xa8] sm:$0xff] %v2973
        %2990 = vst [vmem:[#allocation3 + $0xc8] sm:$0xff] %v2978
        %2991 = vst [vmem:[#allocation3 + $0xe8] sm:$0xff] %v2981
        %v2992 = vpack.c.bf16 %v1842, %v1838
        %v2993 = vpack.c.bf16 %v1852, %v1848
        %v2994 = vpack.c.bf16 %v1862, %v1858
        %v2995 = vpack.c.bf16 %v1872, %v1868
        %v2996 = vadd.f32 %v2130, %v2460
        %v2997 = vadd.f32 %v2134, %v2461
        %v2998 = vadd.f32 %v2140, %v2462
        %v2999 = vadd.f32 %v2144, %v2463
        %v3000 = vadd.f32 %v2150, %v2464
        %v3001 = vadd.f32 %v2154, %v2465
        %v3002 = vadd.f32 %v2160, %v2466
        %v3003 = vadd.f32 %v2164, %v2467
        %v3004 = vpack.c.bf16 %v2997, %v2996
        %v3005 = vpack.c.bf16 %v2999, %v2998
        %v3006 = vpack.c.bf16 %v3001, %v3000
        %v3007 = vpack.c.bf16 %v3003, %v3002
        %v3008 = vpack.c.bf16 %v2426, %v2422
        %v3009 = vpack.c.bf16 %v2436, %v2432
        %v3010 = vpack.c.bf16 %v2446, %v2442
        %v3011 = vpack.c.bf16 %v2456, %v2452
        %3012 = vmatprep.subr.bf16.mxu0 0
        %3013 = vmatpush1.bf16.xpose.msra.mxu0 %v3004
        %3014 = vmatprep.subr.bf16.mxu0 0
        %3015 = vmatpush1.bf16.xpose.msra.mxu0 %v3005
        %3016 = vmatprep.subr.bf16.mxu0 0
        %3017 = vmatpush1.bf16.xpose.msra.mxu0 %v3006
        %3018 = vmatprep.subr.bf16.mxu0 0
        %3019 = vmatpush1.bf16.xpose.msra.mxu0 %v3007
        %3020 = vmatprep.subr.bf16.mxu0 0
        %3021 = vmatpush1.bf16.xpose.msra.mxu0 0
        %3022 = vmatprep.subr.bf16.mxu0 0
        %3023 = vmatpush1.bf16.xpose.msra.mxu0 0
        %3024 = vmatprep.subr.bf16.mxu0 0
        %3025 = vmatpush1.bf16.xpose.msra.mxu0 0
        %3026 = vmatprep.subr.bf16.mxu0 0
        %3027 = vmatpush1.bf16.xpose.msra.mxu0 0
        %3028 = vmatprep.subr.bf16.mxu0 0
        %3029 = vmatpush1.bf16.xpose.msra.mxu0 0
        %3030 = vmatprep.subr.bf16.mxu0 0
        %3031 = vmatpush1.bf16.xpose.msra.mxu0 0
        %3032 = vmatprep.subr.bf16.mxu0 0
        %3033 = vmatpush1.bf16.xpose.msra.mxu0 0
        %3034 = vmatprep.subr.bf16.mxu0 0
        %3035 = vmatpush1.bf16.xpose.msra.mxu0 0
        %3036 = vmatprep.subr.bf16.mxu0 0
        %3037 = vmatpush1.bf16.xpose.msra.mxu0 0
        %3038 = vmatprep.subr.bf16.mxu0 0
        %3039 = vmatpush1.bf16.xpose.msra.mxu0 0
        %3040 = vmatprep.subr.bf16.mxu0 0
        %3041 = vmatpush1.bf16.xpose.msra.mxu0 0
        %3042 = vmatprep.subr.bf16.mxu0 0
        %3043 = vmatpush1.bf16.xpose.msra.mxu0 0
        %3044 = vmatprep.mubr.bf16.mxu0 0
        %3045 = vmatmul.mubr.bf16.gmra.mrb[0].mxu0 %v2992
        %v3046 = vpop.f32.mrb[0].mxu0
        %v3047 = vadd.f32 0.0, %v3046
        %v3048 = vpop.f32.mrb[0].mxu0
        %v3049 = vpop.f32.mrb[0].mxu0
        %v3050 = vadd.f32 0.0, %v3049
        %v3051 = vpop.f32.mrb[0].mxu0
        %3052 = vmatprep.mubr.bf16.mxu0 0
        %3053 = vmatmul.mubr.bf16.gmra.mrb[0].mxu0 %v2993
        %v3054 = vpop.f32.mrb[0].mxu0
        %v3055 = vadd.f32 0.0, %v3054
        %v3056 = vpop.f32.mrb[0].mxu0
        %v3057 = vpop.f32.mrb[0].mxu0
        %v3058 = vadd.f32 0.0, %v3057
        %v3059 = vpop.f32.mrb[0].mxu0
        %3060 = vmatprep.mubr.bf16.mxu0 0
        %3061 = vmatmul.mubr.bf16.gmra.mrb[0].mxu0 %v2994
        %v3062 = vpop.f32.mrb[0].mxu0
        %v3063 = vadd.f32 0.0, %v3062
        %v3064 = vpop.f32.mrb[0].mxu0
        %v3065 = vpop.f32.mrb[0].mxu0
        %v3066 = vadd.f32 0.0, %v3065
        %v3067 = vpop.f32.mrb[0].mxu0
        %3068 = vmatprep.mubr.bf16.mxu0 0
        %3069 = vmatmul.mubr.bf16.gmra.mrb[0].mxu0 %v2995
        %v3070 = vpop.f32.mrb[0].mxu0
        %v3071 = vadd.f32 0.0, %v3070
        %v3072 = vpop.f32.mrb[0].mxu0
        %v3073 = vpop.f32.mrb[0].mxu0
        %v3074 = vadd.f32 0.0, %v3073
        %v3075 = vpop.f32.mrb[0].mxu0
        %3076 = vdwg.mxu0
        %v3077 = vsel %vm696, %v3047, -inf
        %3078 = vmax.xlane.f32.xlu0 %v3077
        %v3079 = vpop.xlane.xlu0 %3078
        %v3080 = vsel %vm696, %v3050, -inf
        %3081 = vmax.xlane.f32.xlu0 %v3080
        %v3082 = vpop.xlane.xlu0 %3081
        %v3083 = vsel %vm696, %v3055, -inf
        %3084 = vmax.xlane.f32.xlu0 %v3083
        %v3085 = vpop.xlane.xlu0 %3084
        %v3086 = vsel %vm696, %v3058, -inf
        %3087 = vmax.xlane.f32.xlu0 %v3086
        %v3088 = vpop.xlane.xlu0 %3087
        %v3089 = vsel %vm696, %v3063, -inf
        %3090 = vmax.xlane.f32.xlu0 %v3089
        %v3091 = vpop.xlane.xlu0 %3090
        %v3092 = vsel %vm696, %v3066, -inf
        %3093 = vmax.xlane.f32.xlu0 %v3092
        %v3094 = vpop.xlane.xlu0 %3093
        %v3095 = vsel %vm696, %v3071, -inf
        %3096 = vmax.xlane.f32.xlu0 %v3095
        %v3097 = vpop.xlane.xlu0 %3096
        %v3098 = vsel %vm696, %v3074, -inf
        %3099 = vmax.xlane.f32.xlu0 %v3098
        %v3100 = vpop.xlane.xlu0 %3099
        %v3101 = vsub.f32 %v3047, %v3079
        %v3102 = vsub.f32 %v3050, %v3082
        %v3103 = vsub.f32 %v3055, %v3085
        %v3104 = vsub.f32 %v3058, %v3088
        %v3105 = vsub.f32 %v3063, %v3091
        %v3106 = vsub.f32 %v3066, %v3094
        %v3107 = vsub.f32 %v3071, %v3097
        %v3108 = vsub.f32 %v3074, %v3100
        %v3109 = vmul.f32 %v3101, 1.442695
        %v3110 = vpow.pop %v3109
        %v3111 = vmul.f32 %v3102, 1.442695
        %v3112 = vpow.pop %v3111
        %v3113 = vmul.f32 %v3103, 1.442695
        %v3114 = vpow.pop %v3113
        %v3115 = vmul.f32 %v3104, 1.442695
        %v3116 = vpow.pop %v3115
        %v3117 = vmul.f32 %v3105, 1.442695
        %v3118 = vpow.pop %v3117
        %v3119 = vmul.f32 %v3106, 1.442695
        %v3120 = vpow.pop %v3119
        %v3121 = vmul.f32 %v3107, 1.442695
        %v3122 = vpow.pop %v3121
        %v3123 = vmul.f32 %v3108, 1.442695
        %v3124 = vpow.pop %v3123
        %v3125 = vsel %vm696, %v3110, 0.0
        %3126 = vadd.xlane.f32.xlu0 %v3125
        %v3127 = vpop.xlane.xlu0 %3126
        %v3128 = vsel %vm696, %v3112, 0.0
        %3129 = vadd.xlane.f32.xlu0 %v3128
        %v3130 = vpop.xlane.xlu0 %3129
        %v3131 = vsel %vm696, %v3114, 0.0
        %3132 = vadd.xlane.f32.xlu0 %v3131
        %v3133 = vpop.xlane.xlu0 %3132
        %v3134 = vsel %vm696, %v3116, 0.0
        %3135 = vadd.xlane.f32.xlu0 %v3134
        %v3136 = vpop.xlane.xlu0 %3135
        %v3137 = vsel %vm696, %v3118, 0.0
        %3138 = vadd.xlane.f32.xlu0 %v3137
        %v3139 = vpop.xlane.xlu0 %3138
        %v3140 = vsel %vm696, %v3120, 0.0
        %3141 = vadd.xlane.f32.xlu0 %v3140
        %v3142 = vpop.xlane.xlu0 %3141
        %v3143 = vsel %vm696, %v3122, 0.0
        %3144 = vadd.xlane.f32.xlu0 %v3143
        %v3145 = vpop.xlane.xlu0 %3144
        %v3146 = vsel %vm696, %v3124, 0.0
        %3147 = vadd.xlane.f32.xlu0 %v3146
        %v3148 = vpop.xlane.xlu0 %3147
        %v3149 = vrcp.pop %v3127
        %v3150 = vrcp.pop %v3130
        %v3151 = vrcp.pop %v3133
        %v3152 = vrcp.pop %v3136
        %v3153 = vrcp.pop %v3139
        %v3154 = vrcp.pop %v3142
        %v3155 = vrcp.pop %v3145
        %v3156 = vrcp.pop %v3148
        %v3157 = vmul.f32 %v3110, %v3149
        %v3158 = vmul.f32 %v3112, %v3150
        %v3159 = vmul.f32 %v3114, %v3151
        %v3160 = vmul.f32 %v3116, %v3152
        %v3161 = vmul.f32 %v3118, %v3153
        %v3162 = vmul.f32 %v3120, %v3154
        %v3163 = vmul.f32 %v3122, %v3155
        %v3164 = vmul.f32 %v3124, %v3156
        %v3165 = vpack.c.bf16 %v3158, %v3157
        %v3166 = vpack.c.bf16 %v3160, %v3159
        %v3167 = vpack.c.bf16 %v3162, %v3161
        %v3168 = vpack.c.bf16 %v3164, %v3163
        %v3170 = vsel %vm696, %v3165, 0
        %v3173 = vsel %vm696, %v3166, 0
        %v3176 = vsel %vm696, %v3167, 0
        %v3179 = vsel %vm696, %v3168, 0
        %3181 = vmatprep.subr.bf16.mxu0 0
        %3182 = vmatpush1.bf16.msra.mxu0 %v3008
        %3183 = vmatprep.subr.bf16.mxu0 0
        %3184 = vmatpush1.bf16.msra.mxu0 %v3009
        %3185 = vmatprep.subr.bf16.mxu0 0
        %3186 = vmatpush1.bf16.msra.mxu0 %v3010
        %3187 = vmatprep.subr.bf16.mxu0 0
        %3188 = vmatpush1.bf16.msra.mxu0 %v3011
        %3189 = vmatprep.subr.bf16.mxu0 0
        %3190 = vmatpush1.bf16.msra.mxu0 0
        %3191 = vmatprep.subr.bf16.mxu0 0
        %3192 = vmatpush1.bf16.msra.mxu0 0
        %3193 = vmatprep.subr.bf16.mxu0 0
        %3194 = vmatpush1.bf16.msra.mxu0 0
        %3195 = vmatprep.subr.bf16.mxu0 0
        %3196 = vmatpush1.bf16.msra.mxu0 0
        %3197 = vmatprep.subr.bf16.mxu0 0
        %3198 = vmatpush1.bf16.msra.mxu0 0
        %3199 = vmatprep.subr.bf16.mxu0 0
        %3200 = vmatpush1.bf16.msra.mxu0 0
        %3201 = vmatprep.subr.bf16.mxu0 0
        %3202 = vmatpush1.bf16.msra.mxu0 0
        %3203 = vmatprep.subr.bf16.mxu0 0
        %3204 = vmatpush1.bf16.msra.mxu0 0
        %3205 = vmatprep.subr.bf16.mxu0 0
        %3206 = vmatpush1.bf16.msra.mxu0 0
        %3207 = vmatprep.subr.bf16.mxu0 0
        %3208 = vmatpush1.bf16.msra.mxu0 0
        %3209 = vmatprep.subr.bf16.mxu0 0
        %3210 = vmatpush1.bf16.msra.mxu0 0
        %3211 = vmatprep.subr.bf16.mxu0 0
        %3212 = vmatpush1.bf16.msra.mxu0 0
        %3213 = vmatprep.mubr.bf16.mxu0 0
        %3214 = vmatmul.mubr.bf16.gmra.mrb[0].mxu0 %v3170
        %v3215 = vpop.f32.mrb[0].mxu0
        %v3216 = vadd.f32 0.0, %v3215
        %v3217 = vpop.f32.mrb[0].mxu0
        %v3218 = vpop.f32.mrb[0].mxu0
        %v3219 = vadd.f32 0.0, %v3218
        %v3220 = vpop.f32.mrb[0].mxu0
        %3221 = vmatprep.mubr.bf16.mxu0 0
        %3222 = vmatmul.mubr.bf16.gmra.mrb[0].mxu0 %v3173
        %v3223 = vpop.f32.mrb[0].mxu0
        %v3224 = vadd.f32 0.0, %v3223
        %v3225 = vpop.f32.mrb[0].mxu0
        %v3226 = vpop.f32.mrb[0].mxu0
        %v3227 = vadd.f32 0.0, %v3226
        %v3228 = vpop.f32.mrb[0].mxu0
        %3229 = vmatprep.mubr.bf16.mxu0 0
        %3230 = vmatmul.mubr.bf16.gmra.mrb[0].mxu0 %v3176
        %v3231 = vpop.f32.mrb[0].mxu0
        %v3232 = vadd.f32 0.0, %v3231
        %v3233 = vpop.f32.mrb[0].mxu0
        %v3234 = vpop.f32.mrb[0].mxu0
        %v3235 = vadd.f32 0.0, %v3234
        %v3236 = vpop.f32.mrb[0].mxu0
        %3237 = vmatprep.mubr.bf16.mxu0 0
        %3238 = vmatmul.mubr.bf16.gmra.mrb[0].mxu0 %v3179
        %v3239 = vpop.f32.mrb[0].mxu0
        %v3240 = vadd.f32 0.0, %v3239
        %v3241 = vpop.f32.mrb[0].mxu0
        %v3242 = vpop.f32.mrb[0].mxu0
        %v3243 = vadd.f32 0.0, %v3242
        %v3244 = vpop.f32.mrb[0].mxu0
        %3245 = vdwg.mxu0
        %3246 = vst [vmem:[#allocation3 + $0x10] sm:$0xff] %v3216
        %3247 = vst [vmem:[#allocation3 + $0x30] sm:$0xff] %v3219
        %3248 = vst [vmem:[#allocation3 + $0x50] sm:$0xff] %v3224
        %3249 = vst [vmem:[#allocation3 + $0x70] sm:$0xff] %v3227
        %3250 = vst [vmem:[#allocation3 + $0x90] sm:$0xff] %v3232
        %3251 = vst [vmem:[#allocation3 + $0xb0] sm:$0xff] %v3235
        %3252 = vst [vmem:[#allocation3 + $0xd0] sm:$0xff] %v3240
        %3253 = vst [vmem:[#allocation3 + $0xf0] sm:$0xff] %v3243
        %v3254 = vpack.c.bf16 %v1844, %v1840
        %v3255 = vpack.c.bf16 %v1854, %v1850
        %v3256 = vpack.c.bf16 %v1864, %v1860
        %v3257 = vpack.c.bf16 %v1874, %v1870
        %v3258 = vadd.f32 %v2132, %v2460
        %v3259 = vadd.f32 %v2136, %v2461
        %v3260 = vadd.f32 %v2142, %v2462
        %v3261 = vadd.f32 %v2146, %v2463
        %v3262 = vadd.f32 %v2152, %v2464
        %v3263 = vadd.f32 %v2156, %v2465
        %v3264 = vadd.f32 %v2162, %v2466
        %v3265 = vadd.f32 %v2166, %v2467
        %v3266 = vpack.c.bf16 %v3259, %v3258
        %v3267 = vpack.c.bf16 %v3261, %v3260
        %v3268 = vpack.c.bf16 %v3263, %v3262
        %v3269 = vpack.c.bf16 %v3265, %v3264
        %v3270 = vpack.c.bf16 %v2428, %v2424
        %v3271 = vpack.c.bf16 %v2438, %v2434
        %v3272 = vpack.c.bf16 %v2448, %v2444
        %v3273 = vpack.c.bf16 %v2458, %v2454
        %3274 = vmatprep.subr.bf16.mxu0 0
        %3275 = vmatpush1.bf16.xpose.msra.mxu0 %v3266
        %3276 = vmatprep.subr.bf16.mxu0 0
        %3277 = vmatpush1.bf16.xpose.msra.mxu0 %v3267
        %3278 = vmatprep.subr.bf16.mxu0 0
        %3279 = vmatpush1.bf16.xpose.msra.mxu0 %v3268
        %3280 = vmatprep.subr.bf16.mxu0 0
        %3281 = vmatpush1.bf16.xpose.msra.mxu0 %v3269
        %3282 = vmatprep.subr.bf16.mxu0 0
        %3283 = vmatpush1.bf16.xpose.msra.mxu0 0
        %3284 = vmatprep.subr.bf16.mxu0 0
        %3285 = vmatpush1.bf16.xpose.msra.mxu0 0
        %3286 = vmatprep.subr.bf16.mxu0 0
        %3287 = vmatpush1.bf16.xpose.msra.mxu0 0
        %3288 = vmatprep.subr.bf16.mxu0 0
        %3289 = vmatpush1.bf16.xpose.msra.mxu0 0
        %3290 = vmatprep.subr.bf16.mxu0 0
        %3291 = vmatpush1.bf16.xpose.msra.mxu0 0
        %3292 = vmatprep.subr.bf16.mxu0 0
        %3293 = vmatpush1.bf16.xpose.msra.mxu0 0
        %3294 = vmatprep.subr.bf16.mxu0 0
        %3295 = vmatpush1.bf16.xpose.msra.mxu0 0
        %3296 = vmatprep.subr.bf16.mxu0 0
        %3297 = vmatpush1.bf16.xpose.msra.mxu0 0
        %3298 = vmatprep.subr.bf16.mxu0 0
        %3299 = vmatpush1.bf16.xpose.msra.mxu0 0
        %3300 = vmatprep.subr.bf16.mxu0 0
        %3301 = vmatpush1.bf16.xpose.msra.mxu0 0
        %3302 = vmatprep.subr.bf16.mxu0 0
        %3303 = vmatpush1.bf16.xpose.msra.mxu0 0
        %3304 = vmatprep.subr.bf16.mxu0 0
        %3305 = vmatpush1.bf16.xpose.msra.mxu0 0
        %3306 = vmatprep.mubr.bf16.mxu0 0
        %3307 = vmatmul.mubr.bf16.gmra.mrb[0].mxu0 %v3254
        %v3308 = vpop.f32.mrb[0].mxu0
        %v3309 = vadd.f32 0.0, %v3308
        %v3310 = vpop.f32.mrb[0].mxu0
        %v3311 = vpop.f32.mrb[0].mxu0
        %v3312 = vadd.f32 0.0, %v3311
        %v3313 = vpop.f32.mrb[0].mxu0
        %3314 = vmatprep.mubr.bf16.mxu0 0
        %3315 = vmatmul.mubr.bf16.gmra.mrb[0].mxu0 %v3255
        %v3316 = vpop.f32.mrb[0].mxu0
        %v3317 = vadd.f32 0.0, %v3316
        %v3318 = vpop.f32.mrb[0].mxu0
        %v3319 = vpop.f32.mrb[0].mxu0
        %v3320 = vadd.f32 0.0, %v3319
        %v3321 = vpop.f32.mrb[0].mxu0
        %3322 = vmatprep.mubr.bf16.mxu0 0
        %3323 = vmatmul.mubr.bf16.gmra.mrb[0].mxu0 %v3256
        %v3324 = vpop.f32.mrb[0].mxu0
        %v3325 = vadd.f32 0.0, %v3324
        %v3326 = vpop.f32.mrb[0].mxu0
        %v3327 = vpop.f32.mrb[0].mxu0
        %v3328 = vadd.f32 0.0, %v3327
        %v3329 = vpop.f32.mrb[0].mxu0
        %3330 = vmatprep.mubr.bf16.mxu0 0
        %3331 = vmatmul.mubr.bf16.gmra.mrb[0].mxu0 %v3257
        %v3332 = vpop.f32.mrb[0].mxu0
        %v3333 = vadd.f32 0.0, %v3332
        %v3334 = vpop.f32.mrb[0].mxu0
        %v3335 = vpop.f32.mrb[0].mxu0
        %v3336 = vadd.f32 0.0, %v3335
        %v3337 = vpop.f32.mrb[0].mxu0
        %3338 = vdwg.mxu0
        %v3339 = vsel %vm696, %v3309, -inf
        %3340 = vmax.xlane.f32.xlu0 %v3339
        %v3341 = vpop.xlane.xlu0 %3340
        %v3342 = vsel %vm696, %v3312, -inf
        %3343 = vmax.xlane.f32.xlu0 %v3342
        %v3344 = vpop.xlane.xlu0 %3343
        %v3345 = vsel %vm696, %v3317, -inf
        %3346 = vmax.xlane.f32.xlu0 %v3345
        %v3347 = vpop.xlane.xlu0 %3346
        %v3348 = vsel %vm696, %v3320, -inf
        %3349 = vmax.xlane.f32.xlu0 %v3348
        %v3350 = vpop.xlane.xlu0 %3349
        %v3351 = vsel %vm696, %v3325, -inf
        %3352 = vmax.xlane.f32.xlu0 %v3351
        %v3353 = vpop.xlane.xlu0 %3352
        %v3354 = vsel %vm696, %v3328, -inf
        %3355 = vmax.xlane.f32.xlu0 %v3354
        %v3356 = vpop.xlane.xlu0 %3355
        %v3357 = vsel %vm696, %v3333, -inf
        %3358 = vmax.xlane.f32.xlu0 %v3357
        %v3359 = vpop.xlane.xlu0 %3358
        %v3360 = vsel %vm696, %v3336, -inf
        %3361 = vmax.xlane.f32.xlu0 %v3360
        %v3362 = vpop.xlane.xlu0 %3361
        %v3363 = vsub.f32 %v3309, %v3341
        %v3364 = vsub.f32 %v3312, %v3344
        %v3365 = vsub.f32 %v3317, %v3347
        %v3366 = vsub.f32 %v3320, %v3350
        %v3367 = vsub.f32 %v3325, %v3353
        %v3368 = vsub.f32 %v3328, %v3356
        %v3369 = vsub.f32 %v3333, %v3359
        %v3370 = vsub.f32 %v3336, %v3362
        %v3371 = vmul.f32 %v3363, 1.442695
        %v3372 = vpow.pop %v3371
        %v3373 = vmul.f32 %v3364, 1.442695
        %v3374 = vpow.pop %v3373
        %v3375 = vmul.f32 %v3365, 1.442695
        %v3376 = vpow.pop %v3375
        %v3377 = vmul.f32 %v3366, 1.442695
        %v3378 = vpow.pop %v3377
        %v3379 = vmul.f32 %v3367, 1.442695
        %v3380 = vpow.pop %v3379
        %v3381 = vmul.f32 %v3368, 1.442695
        %v3382 = vpow.pop %v3381
        %v3383 = vmul.f32 %v3369, 1.442695
        %v3384 = vpow.pop %v3383
        %v3385 = vmul.f32 %v3370, 1.442695
        %v3386 = vpow.pop %v3385
        %v3387 = vsel %vm696, %v3372, 0.0
        %3388 = vadd.xlane.f32.xlu0 %v3387
        %v3389 = vpop.xlane.xlu0 %3388
        %v3390 = vsel %vm696, %v3374, 0.0
        %3391 = vadd.xlane.f32.xlu0 %v3390
        %v3392 = vpop.xlane.xlu0 %3391
        %v3393 = vsel %vm696, %v3376, 0.0
        %3394 = vadd.xlane.f32.xlu0 %v3393
        %v3395 = vpop.xlane.xlu0 %3394
        %v3396 = vsel %vm696, %v3378, 0.0
        %3397 = vadd.xlane.f32.xlu0 %v3396
        %v3398 = vpop.xlane.xlu0 %3397
        %v3399 = vsel %vm696, %v3380, 0.0
        %3400 = vadd.xlane.f32.xlu0 %v3399
        %v3401 = vpop.xlane.xlu0 %3400
        %v3402 = vsel %vm696, %v3382, 0.0
        %3403 = vadd.xlane.f32.xlu0 %v3402
        %v3404 = vpop.xlane.xlu0 %3403
        %v3405 = vsel %vm696, %v3384, 0.0
        %3406 = vadd.xlane.f32.xlu0 %v3405
        %v3407 = vpop.xlane.xlu0 %3406
        %v3408 = vsel %vm696, %v3386, 0.0
        %3409 = vadd.xlane.f32.xlu0 %v3408
        %v3410 = vpop.xlane.xlu0 %3409
        %v3411 = vrcp.pop %v3389
        %v3412 = vrcp.pop %v3392
        %v3413 = vrcp.pop %v3395
        %v3414 = vrcp.pop %v3398
        %v3415 = vrcp.pop %v3401
        %v3416 = vrcp.pop %v3404
        %v3417 = vrcp.pop %v3407
        %v3418 = vrcp.pop %v3410
        %v3419 = vmul.f32 %v3372, %v3411
        %v3420 = vmul.f32 %v3374, %v3412
        %v3421 = vmul.f32 %v3376, %v3413
        %v3422 = vmul.f32 %v3378, %v3414
        %v3423 = vmul.f32 %v3380, %v3415
        %v3424 = vmul.f32 %v3382, %v3416
        %v3425 = vmul.f32 %v3384, %v3417
        %v3426 = vmul.f32 %v3386, %v3418
        %v3427 = vpack.c.bf16 %v3420, %v3419
        %v3428 = vpack.c.bf16 %v3422, %v3421
        %v3429 = vpack.c.bf16 %v3424, %v3423
        %v3430 = vpack.c.bf16 %v3426, %v3425
        %v3432 = vsel %vm696, %v3427, 0
        %v3435 = vsel %vm696, %v3428, 0
        %v3438 = vsel %vm696, %v3429, 0
        %v3441 = vsel %vm696, %v3430, 0
        %3443 = vmatprep.subr.bf16.mxu0 0
        %3444 = vmatpush1.bf16.msra.mxu0 %v3270
        %3445 = vmatprep.subr.bf16.mxu0 0
        %3446 = vmatpush1.bf16.msra.mxu0 %v3271
        %3447 = vmatprep.subr.bf16.mxu0 0
        %3448 = vmatpush1.bf16.msra.mxu0 %v3272
        %3449 = vmatprep.subr.bf16.mxu0 0
        %3450 = vmatpush1.bf16.msra.mxu0 %v3273
        %3451 = vmatprep.subr.bf16.mxu0 0
        %3452 = vmatpush1.bf16.msra.mxu0 0
        %3453 = vmatprep.subr.bf16.mxu0 0
        %3454 = vmatpush1.bf16.msra.mxu0 0
        %3455 = vmatprep.subr.bf16.mxu0 0
        %3456 = vmatpush1.bf16.msra.mxu0 0
        %3457 = vmatprep.subr.bf16.mxu0 0
        %3458 = vmatpush1.bf16.msra.mxu0 0
        %3459 = vmatprep.subr.bf16.mxu0 0
        %3460 = vmatpush1.bf16.msra.mxu0 0
        %3461 = vmatprep.subr.bf16.mxu0 0
        %3462 = vmatpush1.bf16.msra.mxu0 0
        %3463 = vmatprep.subr.bf16.mxu0 0
        %3464 = vmatpush1.bf16.msra.mxu0 0
        %3465 = vmatprep.subr.bf16.mxu0 0
        %3466 = vmatpush1.bf16.msra.mxu0 0
        %3467 = vmatprep.subr.bf16.mxu0 0
        %3468 = vmatpush1.bf16.msra.mxu0 0
        %3469 = vmatprep.subr.bf16.mxu0 0
        %3470 = vmatpush1.bf16.msra.mxu0 0
        %3471 = vmatprep.subr.bf16.mxu0 0
        %3472 = vmatpush1.bf16.msra.mxu0 0
        %3473 = vmatprep.subr.bf16.mxu0 0
        %3474 = vmatpush1.bf16.msra.mxu0 0
        %3475 = vmatprep.mubr.bf16.mxu0 0
        %3476 = vmatmul.mubr.bf16.gmra.mrb[0].mxu0 %v3432
        %v3477 = vpop.f32.mrb[0].mxu0
        %v3478 = vadd.f32 0.0, %v3477
        %v3479 = vpop.f32.mrb[0].mxu0
        %v3480 = vpop.f32.mrb[0].mxu0
        %v3481 = vadd.f32 0.0, %v3480
        %v3482 = vpop.f32.mrb[0].mxu0
        %3483 = vmatprep.mubr.bf16.mxu0 0
        %3484 = vmatmul.mubr.bf16.gmra.mrb[0].mxu0 %v3435
        %v3485 = vpop.f32.mrb[0].mxu0
        %v3486 = vadd.f32 0.0, %v3485
        %v3487 = vpop.f32.mrb[0].mxu0
        %v3488 = vpop.f32.mrb[0].mxu0
        %v3489 = vadd.f32 0.0, %v3488
        %v3490 = vpop.f32.mrb[0].mxu0
        %3491 = vmatprep.mubr.bf16.mxu0 0
        %3492 = vmatmul.mubr.bf16.gmra.mrb[0].mxu0 %v3438
        %v3493 = vpop.f32.mrb[0].mxu0
        %v3494 = vadd.f32 0.0, %v3493
        %v3495 = vpop.f32.mrb[0].mxu0
        %v3496 = vpop.f32.mrb[0].mxu0
        %v3497 = vadd.f32 0.0, %v3496
        %v3498 = vpop.f32.mrb[0].mxu0
        %3499 = vmatprep.mubr.bf16.mxu0 0
        %3500 = vmatmul.mubr.bf16.gmra.mrb[0].mxu0 %v3441
        %v3501 = vpop.f32.mrb[0].mxu0
        %v3502 = vadd.f32 0.0, %v3501
        %v3503 = vpop.f32.mrb[0].mxu0
        %v3504 = vpop.f32.mrb[0].mxu0
        %v3505 = vadd.f32 0.0, %v3504
        %v3506 = vpop.f32.mrb[0].mxu0
        %3507 = vdwg.mxu0
        %3508 = vst [vmem:[#allocation3 + $0x18] sm:$0xff] %v3478
        %3509 = vst [vmem:[#allocation3 + $0x38] sm:$0xff] %v3481
        %3510 = vst [vmem:[#allocation3 + $0x58] sm:$0xff] %v3486
        %3511 = vst [vmem:[#allocation3 + $0x78] sm:$0xff] %v3489
        %3512 = vst [vmem:[#allocation3 + $0x98] sm:$0xff] %v3494
        %3513 = vst [vmem:[#allocation3 + $0xb8] sm:$0xff] %v3497
        %3514 = vst [vmem:[#allocation3 + $0xd8] sm:$0xff] %v3502
        %3515 = vst [vmem:[#allocation3 + $0xf8] sm:$0xff] %v3505
        %v3516 = vld [vmem:[#allocation3] sm:$0xff]
        %v3517 = vld [vmem:[#allocation3 + $0x8] sm:$0xff]
        %v3518 = vld [vmem:[#allocation3 + $0x10] sm:$0xff]
        %v3519 = vld [vmem:[#allocation3 + $0x18] sm:$0xff]
        %v3520 = vld [vmem:[#allocation3 + $0x20] sm:$0xff]
        %v3521 = vld [vmem:[#allocation3 + $0x28] sm:$0xff]
        %v3522 = vld [vmem:[#allocation3 + $0x30] sm:$0xff]
        %v3523 = vld [vmem:[#allocation3 + $0x38] sm:$0xff]
        %v3524 = vld [vmem:[#allocation3 + $0x40] sm:$0xff]
        %v3525 = vld [vmem:[#allocation3 + $0x48] sm:$0xff]
        %v3526 = vld [vmem:[#allocation3 + $0x50] sm:$0xff]
        %v3527 = vld [vmem:[#allocation3 + $0x58] sm:$0xff]
        %v3528 = vld [vmem:[#allocation3 + $0x60] sm:$0xff]
        %v3529 = vld [vmem:[#allocation3 + $0x68] sm:$0xff]
        %v3530 = vld [vmem:[#allocation3 + $0x70] sm:$0xff]
        %v3531 = vld [vmem:[#allocation3 + $0x78] sm:$0xff]
        %v3532 = vld [vmem:[#allocation3 + $0x80] sm:$0xff]
        %v3533 = vld [vmem:[#allocation3 + $0x88] sm:$0xff]
        %v3534 = vld [vmem:[#allocation3 + $0x90] sm:$0xff]
        %v3535 = vld [vmem:[#allocation3 + $0x98] sm:$0xff]
        %v3536 = vld [vmem:[#allocation3 + $0xa0] sm:$0xff]
        %v3537 = vld [vmem:[#allocation3 + $0xa8] sm:$0xff]
        %v3538 = vld [vmem:[#allocation3 + $0xb0] sm:$0xff]
        %v3539 = vld [vmem:[#allocation3 + $0xb8] sm:$0xff]
        %v3540 = vld [vmem:[#allocation3 + $0xc0] sm:$0xff]
        %v3541 = vld [vmem:[#allocation3 + $0xc8] sm:$0xff]
        %v3542 = vld [vmem:[#allocation3 + $0xd0] sm:$0xff]
        %v3543 = vld [vmem:[#allocation3 + $0xd8] sm:$0xff]
        %v3544 = vld [vmem:[#allocation3 + $0xe0] sm:$0xff]
        %v3545 = vld [vmem:[#allocation3 + $0xe8] sm:$0xff]
        %v3546 = vld [vmem:[#allocation3 + $0xf0] sm:$0xff]
        %v3547 = vld [vmem:[#allocation3 + $0xf8] sm:$0xff]
        %v3548 = vld [vmem:[#allocation8] sm:$0xf]
        %v3549 = vld [vmem:[#allocation8 + $0x4] sm:$0xf]
        %v3550 = vld [vmem:[#allocation8 + $0x8] sm:$0xf]
        %v3551 = vld [vmem:[#allocation8 + $0xc] sm:$0xf]
        %v3552 = vpack.c.bf16 %v3520, %v3516
        %v3553 = vpack.c.bf16 %v3521, %v3517
        %v3554 = vpack.c.bf16 %v3522, %v3518
        %v3555 = vpack.c.bf16 %v3523, %v3519
        %v3556 = vpack.c.bf16 %v3528, %v3524
        %v3557 = vpack.c.bf16 %v3529, %v3525
        %v3558 = vpack.c.bf16 %v3530, %v3526
        %v3559 = vpack.c.bf16 %v3531, %v3527
        %v3560 = vpack.c.bf16 %v3536, %v3532
        %v3561 = vpack.c.bf16 %v3537, %v3533
        %v3562 = vpack.c.bf16 %v3538, %v3534
        %v3563 = vpack.c.bf16 %v3539, %v3535
        %v3564 = vpack.c.bf16 %v3544, %v3540
        %v3565 = vpack.c.bf16 %v3545, %v3541
        %v3566 = vpack.c.bf16 %v3546, %v3542
        %v3567 = vpack.c.bf16 %v3547, %v3543
        %v3568 = vld [vmem:[%s3] sm:$0xff]
        %v3569 = vld [vmem:[%s3 + $0x8] sm:$0xff]
        %v3570 = vld [vmem:[%s3 + $0x10] sm:$0xff]
        %v3571 = vld [vmem:[%s3 + $0x18] sm:$0xff]
        %3573 = vset.pattern.permute.xlu0 0
        %3574 = vperm.xlu0 %3573, %v3568
        %v3575 = vpop.permute.xlu0 %3574
        %3578 = vset.pattern.permute.xlu0 0
        %3579 = vperm.xlu0 %3578, %v3569
        %v3580 = vpop.permute.xlu0 %3579
        %3583 = vset.pattern.permute.xlu0 0
        %3584 = vperm.xlu0 %3583, %v3570
        %v3585 = vpop.permute.xlu0 %3584
        %3588 = vset.pattern.permute.xlu0 0
        %3589 = vperm.xlu0 %3588, %v3571
        %v3590 = vpop.permute.xlu0 %3589
        %v3596 = vunpack.c.l.b16 %v3548
        %v3597 = vunpack.c.l.b16 %v3549
        %v3598 = vunpack.c.l.b16 %v3550
        %v3599 = vunpack.c.l.b16 %v3551
        %v3600 = vpack.c.b16 %v3597, %v3596
        %v3601 = vpack.c.b16 %v3599, %v3598
        %v3603 = vsel %vm696, %v3600, 0
        %v3606 = vsel %vm696, %v3601, 0
        %3608 = vmatprep.subr.bf16.mxu0 %v3553
        %3609 = vmatpush1.bf16.msra.mxu0 %v3552
        %3610 = vmatprep.subr.bf16.mxu0 %v3557
        %3611 = vmatpush1.bf16.msra.mxu0 %v3556
        %3612 = vmatprep.subr.bf16.mxu0 %v3561
        %3613 = vmatpush1.bf16.msra.mxu0 %v3560
        %3614 = vmatprep.subr.bf16.mxu0 %v3565
        %3615 = vmatpush1.bf16.msra.mxu0 %v3564
        %3616 = vmatprep.subr.bf16.mxu0 0
        %3617 = vmatpush1.bf16.msra.mxu0 0
        %3618 = vmatprep.subr.bf16.mxu0 0
        %3619 = vmatpush1.bf16.msra.mxu0 0
        %3620 = vmatprep.subr.bf16.mxu0 0
        %3621 = vmatpush1.bf16.msra.mxu0 0
        %3622 = vmatprep.subr.bf16.mxu0 0
        %3623 = vmatpush1.bf16.msra.mxu0 0
        %3624 = vmatprep.subr.bf16.mxu0 0
        %3625 = vmatpush1.bf16.msra.mxu0 0
        %3626 = vmatprep.subr.bf16.mxu0 0
        %3627 = vmatpush1.bf16.msra.mxu0 0
        %3628 = vmatprep.subr.bf16.mxu0 0
        %3629 = vmatpush1.bf16.msra.mxu0 0
        %3630 = vmatprep.subr.bf16.mxu0 0
        %3631 = vmatpush1.bf16.msra.mxu0 0
        %3632 = vmatprep.subr.bf16.mxu0 0
        %3633 = vmatpush1.bf16.msra.mxu0 0
        %3634 = vmatprep.subr.bf16.mxu0 0
        %3635 = vmatpush1.bf16.msra.mxu0 0
        %3636 = vmatprep.subr.bf16.mxu0 0
        %3637 = vmatpush1.bf16.msra.mxu0 0
        %3638 = vmatprep.subr.bf16.mxu0 0
        %3639 = vmatpush1.bf16.msra.mxu0 0
        %3640 = vmatprep.mubr.bf16.mxu0 0
        %3641 = vmatmul.mubr.bf16.gmra.mrb[0].mxu0 %v3603
        %v3642 = vpop.f32.mrb[0].mxu0
        %v3643 = vadd.f32 %v3575, %v3642
        %v3644 = vpop.f32.mrb[0].mxu0
        %v3645 = vadd.f32 %v3575, %v3644
        %v3646 = vpop.f32.mrb[0].mxu0
        %v3647 = vadd.f32 %v3580, %v3646
        %v3648 = vpop.f32.mrb[0].mxu0
        %v3649 = vadd.f32 %v3580, %v3648
        %3650 = vmatprep.mubr.bf16.mxu0 0
        %3651 = vmatmul.mubr.bf16.gmra.mrb[0].mxu0 %v3606
        %v3652 = vpop.f32.mrb[0].mxu0
        %v3653 = vadd.f32 %v3585, %v3652
        %v3654 = vpop.f32.mrb[0].mxu0
        %v3655 = vadd.f32 %v3585, %v3654
        %v3656 = vpop.f32.mrb[0].mxu0
        %v3657 = vadd.f32 %v3590, %v3656
        %v3658 = vpop.f32.mrb[0].mxu0
        %v3659 = vadd.f32 %v3590, %v3658
        %3660 = vdwg.mxu0
        %3661 = vmatprep.subr.bf16.mxu0 %v3555
        %3662 = vmatpush1.bf16.msra.mxu0 %v3554
        %3663 = vmatprep.subr.bf16.mxu0 %v3559
        %3664 = vmatpush1.bf16.msra.mxu0 %v3558
        %3665 = vmatprep.subr.bf16.mxu0 %v3563
        %3666 = vmatpush1.bf16.msra.mxu0 %v3562
        %3667 = vmatprep.subr.bf16.mxu0 %v3567
        %3668 = vmatpush1.bf16.msra.mxu0 %v3566
        %3669 = vmatprep.subr.bf16.mxu0 0
        %3670 = vmatpush1.bf16.msra.mxu0 0
        %3671 = vmatprep.subr.bf16.mxu0 0
        %3672 = vmatpush1.bf16.msra.mxu0 0
        %3673 = vmatprep.subr.bf16.mxu0 0
        %3674 = vmatpush1.bf16.msra.mxu0 0
        %3675 = vmatprep.subr.bf16.mxu0 0
        %3676 = vmatpush1.bf16.msra.mxu0 0
        %3677 = vmatprep.subr.bf16.mxu0 0
        %3678 = vmatpush1.bf16.msra.mxu0 0
        %3679 = vmatprep.subr.bf16.mxu0 0
        %3680 = vmatpush1.bf16.msra.mxu0 0
        %3681 = vmatprep.subr.bf16.mxu0 0
        %3682 = vmatpush1.bf16.msra.mxu0 0
        %3683 = vmatprep.subr.bf16.mxu0 0
        %3684 = vmatpush1.bf16.msra.mxu0 0
        %3685 = vmatprep.subr.bf16.mxu0 0
        %3686 = vmatpush1.bf16.msra.mxu0 0
        %3687 = vmatprep.subr.bf16.mxu0 0
        %3688 = vmatpush1.bf16.msra.mxu0 0
        %3689 = vmatprep.subr.bf16.mxu0 0
        %3690 = vmatpush1.bf16.msra.mxu0 0
        %3691 = vmatprep.subr.bf16.mxu0 0
        %3692 = vmatpush1.bf16.msra.mxu0 0
        %3693 = vmatprep.mubr.bf16.mxu0 0
        %3694 = vmatmul.mubr.bf16.gmra.mrb[0].mxu0 %v3603
        %v3695 = vpop.f32.mrb[0].mxu0
        %v3696 = vadd.f32 %v3575, %v3695
        %v3697 = vpop.f32.mrb[0].mxu0
        %v3698 = vadd.f32 %v3575, %v3697
        %v3699 = vpop.f32.mrb[0].mxu0
        %v3700 = vadd.f32 %v3580, %v3699
        %v3701 = vpop.f32.mrb[0].mxu0
        %v3702 = vadd.f32 %v3580, %v3701
        %3703 = vmatprep.mubr.bf16.mxu0 0
        %3704 = vmatmul.mubr.bf16.gmra.mrb[0].mxu0 %v3606
        %v3705 = vpop.f32.mrb[0].mxu0
        %v3706 = vadd.f32 %v3585, %v3705
        %v3707 = vpop.f32.mrb[0].mxu0
        %v3708 = vadd.f32 %v3585, %v3707
        %v3709 = vpop.f32.mrb[0].mxu0
        %v3710 = vadd.f32 %v3590, %v3709
        %v3711 = vpop.f32.mrb[0].mxu0
        %v3712 = vadd.f32 %v3590, %v3711
        %3713 = vdwg.mxu0
        %v3714 = vmul.f32 %v3643, 0.5
        %v3715 = vmul.f32 %v3645, 0.5
        %v3716 = vmul.f32 %v3696, 0.5
        %v3717 = vmul.f32 %v3698, 0.5
        %v3718 = vmul.f32 %v3647, 0.5
        %v3719 = vmul.f32 %v3649, 0.5
        %v3720 = vmul.f32 %v3700, 0.5
        %v3721 = vmul.f32 %v3702, 0.5
        %v3722 = vmul.f32 %v3653, 0.5
        %v3723 = vmul.f32 %v3655, 0.5
        %v3724 = vmul.f32 %v3706, 0.5
        %v3725 = vmul.f32 %v3708, 0.5
        %v3726 = vmul.f32 %v3657, 0.5
        %v3727 = vmul.f32 %v3659, 0.5
        %v3728 = vmul.f32 %v3710, 0.5
        %v3729 = vmul.f32 %v3712, 0.5
        %v3730 = vmul.f32 %v3643, 0.044715
        %v3731 = vmul.f32 %v3645, 0.044715
        %v3732 = vmul.f32 %v3696, 0.044715
        %v3733 = vmul.f32 %v3698, 0.044715
        %v3734 = vmul.f32 %v3647, 0.044715
        %v3735 = vmul.f32 %v3649, 0.044715
        %v3736 = vmul.f32 %v3700, 0.044715
        %v3737 = vmul.f32 %v3702, 0.044715
        %v3738 = vmul.f32 %v3653, 0.044715
        %v3739 = vmul.f32 %v3655, 0.044715
        %v3740 = vmul.f32 %v3706, 0.044715
        %v3741 = vmul.f32 %v3708, 0.044715
        %v3742 = vmul.f32 %v3657, 0.044715
        %v3743 = vmul.f32 %v3659, 0.044715
        %v3744 = vmul.f32 %v3710, 0.044715
        %v3745 = vmul.f32 %v3712, 0.044715
        %v3746 = vmul.f32 %v3730, %v3643
        %v3747 = vmul.f32 %v3731, %v3645
        %v3748 = vmul.f32 %v3732, %v3696
        %v3749 = vmul.f32 %v3733, %v3698
        %v3750 = vmul.f32 %v3734, %v3647
        %v3751 = vmul.f32 %v3735, %v3649
        %v3752 = vmul.f32 %v3736, %v3700
        %v3753 = vmul.f32 %v3737, %v3702
        %v3754 = vmul.f32 %v3738, %v3653
        %v3755 = vmul.f32 %v3739, %v3655
        %v3756 = vmul.f32 %v3740, %v3706
        %v3757 = vmul.f32 %v3741, %v3708
        %v3758 = vmul.f32 %v3742, %v3657
        %v3759 = vmul.f32 %v3743, %v3659
        %v3760 = vmul.f32 %v3744, %v3710
        %v3761 = vmul.f32 %v3745, %v3712
        %v3762 = vmul.f32 %v3746, %v3643
        %v3763 = vmul.f32 %v3747, %v3645
        %v3764 = vmul.f32 %v3748, %v3696
        %v3765 = vmul.f32 %v3749, %v3698
        %v3766 = vmul.f32 %v3750, %v3647
        %v3767 = vmul.f32 %v3751, %v3649
        %v3768 = vmul.f32 %v3752, %v3700
        %v3769 = vmul.f32 %v3753, %v3702
        %v3770 = vmul.f32 %v3754, %v3653
        %v3771 = vmul.f32 %v3755, %v3655
        %v3772 = vmul.f32 %v3756, %v3706
        %v3773 = vmul.f32 %v3757, %v3708
        %v3774 = vmul.f32 %v3758, %v3657
        %v3775 = vmul.f32 %v3759, %v3659
        %v3776 = vmul.f32 %v3760, %v3710
        %v3777 = vmul.f32 %v3761, %v3712
        %v3778 = vadd.f32 %v3643, %v3762
        %v3779 = vadd.f32 %v3645, %v3763
        %v3780 = vadd.f32 %v3696, %v3764
        %v3781 = vadd.f32 %v3698, %v3765
        %v3782 = vadd.f32 %v3647, %v3766
        %v3783 = vadd.f32 %v3649, %v3767
        %v3784 = vadd.f32 %v3700, %v3768
        %v3785 = vadd.f32 %v3702, %v3769
        %v3786 = vadd.f32 %v3653, %v3770
        %v3787 = vadd.f32 %v3655, %v3771
        %v3788 = vadd.f32 %v3706, %v3772
        %v3789 = vadd.f32 %v3708, %v3773
        %v3790 = vadd.f32 %v3657, %v3774
        %v3791 = vadd.f32 %v3659, %v3775
        %v3792 = vadd.f32 %v3710, %v3776
        %v3793 = vadd.f32 %v3712, %v3777
        %v3794 = vmul.f32 %v3778, 0.7978846
        %v3795 = vmul.f32 %v3779, 0.7978846
        %v3796 = vmul.f32 %v3780, 0.7978846
        %v3797 = vmul.f32 %v3781, 0.7978846
        %v3798 = vmul.f32 %v3782, 0.7978846
        %v3799 = vmul.f32 %v3783, 0.7978846
        %v3800 = vmul.f32 %v3784, 0.7978846
        %v3801 = vmul.f32 %v3785, 0.7978846
        %v3802 = vmul.f32 %v3786, 0.7978846
        %v3803 = vmul.f32 %v3787, 0.7978846
        %v3804 = vmul.f32 %v3788, 0.7978846
        %v3805 = vmul.f32 %v3789, 0.7978846
        %v3806 = vmul.f32 %v3790, 0.7978846
        %v3807 = vmul.f32 %v3791, 0.7978846
        %v3808 = vmul.f32 %v3792, 0.7978846
        %v3809 = vmul.f32 %v3793, 0.7978846
        %v3810 = vtanh.pop %v3794
        %v3811 = vtanh.pop %v3795
        %v3812 = vtanh.pop %v3796
        %v3813 = vtanh.pop %v3797
        %v3814 = vtanh.pop %v3798
        %v3815 = vtanh.pop %v3799
        %v3816 = vtanh.pop %v3800
        %v3817 = vtanh.pop %v3801
        %v3818 = vtanh.pop %v3802
        %v3819 = vtanh.pop %v3803
        %v3820 = vtanh.pop %v3804
        %v3821 = vtanh.pop %v3805
        %v3822 = vtanh.pop %v3806
        %v3823 = vtanh.pop %v3807
        %v3824 = vtanh.pop %v3808
        %v3825 = vtanh.pop %v3809
        %v3826 = vadd.f32 %v3810, 1.0
        %v3827 = vadd.f32 %v3811, 1.0
        %v3828 = vadd.f32 %v3812, 1.0
        %v3829 = vadd.f32 %v3813, 1.0
        %v3830 = vadd.f32 %v3814, 1.0
        %v3831 = vadd.f32 %v3815, 1.0
        %v3832 = vadd.f32 %v3816, 1.0
        %v3833 = vadd.f32 %v3817, 1.0
        %v3834 = vadd.f32 %v3818, 1.0
        %v3835 = vadd.f32 %v3819, 1.0
        %v3836 = vadd.f32 %v3820, 1.0
        %v3837 = vadd.f32 %v3821, 1.0
        %v3838 = vadd.f32 %v3822, 1.0
        %v3839 = vadd.f32 %v3823, 1.0
        %v3840 = vadd.f32 %v3824, 1.0
        %v3841 = vadd.f32 %v3825, 1.0
        %v3842 = vmul.f32 %v3714, %v3826
        %v3843 = vmul.f32 %v3715, %v3827
        %v3844 = vmul.f32 %v3716, %v3828
        %v3845 = vmul.f32 %v3717, %v3829
        %v3846 = vmul.f32 %v3718, %v3830
        %v3847 = vmul.f32 %v3719, %v3831
        %v3848 = vmul.f32 %v3720, %v3832
        %v3849 = vmul.f32 %v3721, %v3833
        %v3850 = vmul.f32 %v3722, %v3834
        %v3851 = vmul.f32 %v3723, %v3835
        %v3852 = vmul.f32 %v3724, %v3836
        %v3853 = vmul.f32 %v3725, %v3837
        %v3854 = vmul.f32 %v3726, %v3838
        %v3855 = vmul.f32 %v3727, %v3839
        %v3856 = vmul.f32 %v3728, %v3840
        %v3857 = vmul.f32 %v3729, %v3841
        %v3858 = vld [vmem:[%s4] sm:$0xf]
        %v3859 = vld [vmem:[%s4 + $0x4] sm:$0xf]
        %v3860 = vld [vmem:[%s4 + $0x8] sm:$0xf]
        %v3861 = vld [vmem:[%s4 + $0xc] sm:$0xf]
        %v3862 = vld [vmem:[%s4 + $0x10] sm:$0xf]
        %v3863 = vld [vmem:[%s4 + $0x14] sm:$0xf]
        %v3864 = vld [vmem:[%s4 + $0x18] sm:$0xf]
        %v3865 = vld [vmem:[%s4 + $0x1c] sm:$0xf]
        %v3866 = vpack.c.bf16 %v3846, %v3842
        %v3867 = vpack.c.bf16 %v3847, %v3843
        %v3868 = vpack.c.bf16 %v3848, %v3844
        %v3869 = vpack.c.bf16 %v3849, %v3845
        %v3870 = vpack.c.bf16 %v3854, %v3850
        %v3871 = vpack.c.bf16 %v3855, %v3851
        %v3872 = vpack.c.bf16 %v3856, %v3852
        %v3873 = vpack.c.bf16 %v3857, %v3853
        %v3874 = vld [vmem:[%s5] sm:$0xff]
        %v3875 = vld [vmem:[%s5 + $0x8] sm:$0xff]
        %v3876 = vld [vmem:[%s5 + $0x10] sm:$0xff]
        %v3877 = vld [vmem:[%s5 + $0x18] sm:$0xff]
        %v3878 = vld [vmem:[%s5 + $0x20] sm:$0xff]
        %v3879 = vld [vmem:[%s5 + $0x28] sm:$0xff]
        %v3880 = vld [vmem:[%s5 + $0x30] sm:$0xff]
        %v3881 = vld [vmem:[%s5 + $0x38] sm:$0xff]
        %3883 = vset.pattern.permute.xlu0 0
        %3884 = vperm.xlu0 %3883, %v3874
        %v3885 = vpop.permute.xlu0 %3884
        %3888 = vset.pattern.permute.xlu0 0
        %3889 = vperm.xlu0 %3888, %v3875
        %v3890 = vpop.permute.xlu0 %3889
        %3893 = vset.pattern.permute.xlu0 0
        %3894 = vperm.xlu0 %3893, %v3876
        %v3895 = vpop.permute.xlu0 %3894
        %3898 = vset.pattern.permute.xlu0 0
        %3899 = vperm.xlu0 %3898, %v3877
        %v3900 = vpop.permute.xlu0 %3899
        %3903 = vset.pattern.permute.xlu0 0
        %3904 = vperm.xlu0 %3903, %v3878
        %v3905 = vpop.permute.xlu0 %3904
        %3908 = vset.pattern.permute.xlu0 0
        %3909 = vperm.xlu0 %3908, %v3879
        %v3910 = vpop.permute.xlu0 %3909
        %3913 = vset.pattern.permute.xlu0 0
        %3914 = vperm.xlu0 %3913, %v3880
        %v3915 = vpop.permute.xlu0 %3914
        %3918 = vset.pattern.permute.xlu0 0
        %3919 = vperm.xlu0 %3918, %v3881
        %v3920 = vpop.permute.xlu0 %3919
        %v3930 = vunpack.c.l.b16 %v3858
        %v3931 = vunpack.c.l.b16 %v3859
        %v3932 = vunpack.c.l.b16 %v3860
        %v3933 = vunpack.c.l.b16 %v3861
        %v3934 = vunpack.c.l.b16 %v3862
        %v3935 = vunpack.c.l.b16 %v3863
        %v3936 = vunpack.c.l.b16 %v3864
        %v3937 = vunpack.c.l.b16 %v3865
        %v3938 = vpack.c.b16 %v3931, %v3930
        %v3939 = vpack.c.b16 %v3933, %v3932
        %v3940 = vpack.c.b16 %v3935, %v3934
        %v3941 = vpack.c.b16 %v3937, %v3936
        %v3943 = vsel %vm1037, %v3938, 0
        %v3946 = vsel %vm1037, %v3939, 0
        %v3949 = vsel %vm1037, %v3940, 0
        %v3952 = vsel %vm1037, %v3941, 0
        %3954 = vmatprep.subr.bf16.mxu0 %v3867
        %3955 = vmatpush1.bf16.msra.mxu0 %v3866
        %3956 = vmatprep.subr.bf16.mxu0 %v3871
        %3957 = vmatpush1.bf16.msra.mxu0 %v3870
        %3958 = vmatprep.subr.bf16.mxu0 0
        %3959 = vmatpush1.bf16.msra.mxu0 0
        %3960 = vmatprep.subr.bf16.mxu0 0
        %3961 = vmatpush1.bf16.msra.mxu0 0
        %3962 = vmatprep.subr.bf16.mxu0 0
        %3963 = vmatpush1.bf16.msra.mxu0 0
        %3964 = vmatprep.subr.bf16.mxu0 0
        %3965 = vmatpush1.bf16.msra.mxu0 0
        %3966 = vmatprep.subr.bf16.mxu0 0
        %3967 = vmatpush1.bf16.msra.mxu0 0
        %3968 = vmatprep.subr.bf16.mxu0 0
        %3969 = vmatpush1.bf16.msra.mxu0 0
        %3970 = vmatprep.subr.bf16.mxu0 0
        %3971 = vmatpush1.bf16.msra.mxu0 0
        %3972 = vmatprep.subr.bf16.mxu0 0
        %3973 = vmatpush1.bf16.msra.mxu0 0
        %3974 = vmatprep.subr.bf16.mxu0 0
        %3975 = vmatpush1.bf16.msra.mxu0 0
        %3976 = vmatprep.subr.bf16.mxu0 0
        %3977 = vmatpush1.bf16.msra.mxu0 0
        %3978 = vmatprep.subr.bf16.mxu0 0
        %3979 = vmatpush1.bf16.msra.mxu0 0
        %3980 = vmatprep.subr.bf16.mxu0 0
        %3981 = vmatpush1.bf16.msra.mxu0 0
        %3982 = vmatprep.subr.bf16.mxu0 0
        %3983 = vmatpush1.bf16.msra.mxu0 0
        %3984 = vmatprep.subr.bf16.mxu0 0
        %3985 = vmatpush1.bf16.msra.mxu0 0
        %3986 = vmatprep.mubr.bf16.mxu0 0
        %3987 = vmatmul.mubr.bf16.gmra.mrb[0].mxu0 %v3943
        %v3988 = vpop.f32.mrb[0].mxu0
        %v3989 = vadd.f32 %v3885, %v3988
        %v3990 = vpop.f32.mrb[0].mxu0
        %v3991 = vadd.f32 %v3885, %v3990
        %v3992 = vpop.f32.mrb[0].mxu0
        %v3993 = vadd.f32 %v3890, %v3992
        %v3994 = vpop.f32.mrb[0].mxu0
        %v3995 = vadd.f32 %v3890, %v3994
        %3996 = vmatprep.mubr.bf16.mxu0 0
        %3997 = vmatmul.mubr.bf16.gmra.mrb[0].mxu0 %v3946
        %v3998 = vpop.f32.mrb[0].mxu0
        %v3999 = vadd.f32 %v3895, %v3998
        %v4000 = vpop.f32.mrb[0].mxu0
        %v4001 = vadd.f32 %v3895, %v4000
        %v4002 = vpop.f32.mrb[0].mxu0
        %v4003 = vadd.f32 %v3900, %v4002
        %v4004 = vpop.f32.mrb[0].mxu0
        %v4005 = vadd.f32 %v3900, %v4004
        %4006 = vmatprep.mubr.bf16.mxu0 0
        %4007 = vmatmul.mubr.bf16.gmra.mrb[0].mxu0 %v3949
        %v4008 = vpop.f32.mrb[0].mxu0
        %v4009 = vadd.f32 %v3905, %v4008
        %v4010 = vpop.f32.mrb[0].mxu0
        %v4011 = vadd.f32 %v3905, %v4010
        %v4012 = vpop.f32.mrb[0].mxu0
        %v4013 = vadd.f32 %v3910, %v4012
        %v4014 = vpop.f32.mrb[0].mxu0
        %v4015 = vadd.f32 %v3910, %v4014
        %4016 = vmatprep.mubr.bf16.mxu0 0
        %4017 = vmatmul.mubr.bf16.gmra.mrb[0].mxu0 %v3952
        %v4018 = vpop.f32.mrb[0].mxu0
        %v4019 = vadd.f32 %v3915, %v4018
        %v4020 = vpop.f32.mrb[0].mxu0
        %v4021 = vadd.f32 %v3915, %v4020
        %v4022 = vpop.f32.mrb[0].mxu0
        %v4023 = vadd.f32 %v3920, %v4022
        %v4024 = vpop.f32.mrb[0].mxu0
        %v4025 = vadd.f32 %v3920, %v4024
        %4026 = vdwg.mxu0
        %4027 = vmatprep.subr.bf16.mxu0 %v3869
        %4028 = vmatpush1.bf16.msra.mxu0 %v3868
        %4029 = vmatprep.subr.bf16.mxu0 %v3873
        %4030 = vmatpush1.bf16.msra.mxu0 %v3872
        %4031 = vmatprep.subr.bf16.mxu0 0
        %4032 = vmatpush1.bf16.msra.mxu0 0
        %4033 = vmatprep.subr.bf16.mxu0 0
        %4034 = vmatpush1.bf16.msra.mxu0 0
        %4035 = vmatprep.subr.bf16.mxu0 0
        %4036 = vmatpush1.bf16.msra.mxu0 0
        %4037 = vmatprep.subr.bf16.mxu0 0
        %4038 = vmatpush1.bf16.msra.mxu0 0
        %4039 = vmatprep.subr.bf16.mxu0 0
        %4040 = vmatpush1.bf16.msra.mxu0 0
        %4041 = vmatprep.subr.bf16.mxu0 0
        %4042 = vmatpush1.bf16.msra.mxu0 0
        %4043 = vmatprep.subr.bf16.mxu0 0
        %4044 = vmatpush1.bf16.msra.mxu0 0
        %4045 = vmatprep.subr.bf16.mxu0 0
        %4046 = vmatpush1.bf16.msra.mxu0 0
        %4047 = vmatprep.subr.bf16.mxu0 0
        %4048 = vmatpush1.bf16.msra.mxu0 0
        %4049 = vmatprep.subr.bf16.mxu0 0
        %4050 = vmatpush1.bf16.msra.mxu0 0
        %4051 = vmatprep.subr.bf16.mxu0 0
        %4052 = vmatpush1.bf16.msra.mxu0 0
        %4053 = vmatprep.subr.bf16.mxu0 0
        %4054 = vmatpush1.bf16.msra.mxu0 0
        %4055 = vmatprep.subr.bf16.mxu0 0
        %4056 = vmatpush1.bf16.msra.mxu0 0
        %4057 = vmatprep.subr.bf16.mxu0 0
        %4058 = vmatpush1.bf16.msra.mxu0 0
        %4059 = vmatprep.mubr.bf16.mxu0 0
        %4060 = vmatmul.mubr.bf16.gmra.mrb[0].mxu0 %v3943
        %v4061 = vpop.f32.mrb[0].mxu0
        %v4062 = vadd.f32 %v3885, %v4061
        %v4063 = vpop.f32.mrb[0].mxu0
        %v4064 = vadd.f32 %v3885, %v4063
        %v4065 = vpop.f32.mrb[0].mxu0
        %v4066 = vadd.f32 %v3890, %v4065
        %v4067 = vpop.f32.mrb[0].mxu0
        %v4068 = vadd.f32 %v3890, %v4067
        %4069 = vmatprep.mubr.bf16.mxu0 0
        %4070 = vmatmul.mubr.bf16.gmra.mrb[0].mxu0 %v3946
        %v4071 = vpop.f32.mrb[0].mxu0
        %v4072 = vadd.f32 %v3895, %v4071
        %v4073 = vpop.f32.mrb[0].mxu0
        %v4074 = vadd.f32 %v3895, %v4073
        %v4075 = vpop.f32.mrb[0].mxu0
        %v4076 = vadd.f32 %v3900, %v4075
        %v4077 = vpop.f32.mrb[0].mxu0
        %v4078 = vadd.f32 %v3900, %v4077
        %4079 = vmatprep.mubr.bf16.mxu0 0
        %4080 = vmatmul.mubr.bf16.gmra.mrb[0].mxu0 %v3949
        %v4081 = vpop.f32.mrb[0].mxu0
        %v4082 = vadd.f32 %v3905, %v4081
        %v4083 = vpop.f32.mrb[0].mxu0
        %v4084 = vadd.f32 %v3905, %v4083
        %v4085 = vpop.f32.mrb[0].mxu0
        %v4086 = vadd.f32 %v3910, %v4085
        %v4087 = vpop.f32.mrb[0].mxu0
        %v4088 = vadd.f32 %v3910, %v4087
        %4089 = vmatprep.mubr.bf16.mxu0 0
        %4090 = vmatmul.mubr.bf16.gmra.mrb[0].mxu0 %v3952
        %v4091 = vpop.f32.mrb[0].mxu0
        %v4092 = vadd.f32 %v3915, %v4091
        %v4093 = vpop.f32.mrb[0].mxu0
        %v4094 = vadd.f32 %v3915, %v4093
        %v4095 = vpop.f32.mrb[0].mxu0
        %v4096 = vadd.f32 %v3920, %v4095
        %v4097 = vpop.f32.mrb[0].mxu0
        %v4098 = vadd.f32 %v3920, %v4097
        %4099 = vdwg.mxu0
        %v4100 = vadd.f32 %v3989, %v1085
        %v4101 = vadd.f32 %v3991, %v1087
        %v4102 = vadd.f32 %v4062, %v1158
        %v4103 = vadd.f32 %v4064, %v1160
        %v4104 = vadd.f32 %v3993, %v1089
        %v4105 = vadd.f32 %v3995, %v1091
        %v4106 = vadd.f32 %v4066, %v1162
        %v4107 = vadd.f32 %v4068, %v1164
        %v4108 = vadd.f32 %v3999, %v1095
        %v4109 = vadd.f32 %v4001, %v1097
        %v4110 = vadd.f32 %v4072, %v1168
        %v4111 = vadd.f32 %v4074, %v1170
        %v4112 = vadd.f32 %v4003, %v1099
        %v4113 = vadd.f32 %v4005, %v1101
        %v4114 = vadd.f32 %v4076, %v1172
        %v4115 = vadd.f32 %v4078, %v1174
        %v4116 = vadd.f32 %v4009, %v1105
        %v4117 = vadd.f32 %v4011, %v1107
        %v4118 = vadd.f32 %v4082, %v1178
        %v4119 = vadd.f32 %v4084, %v1180
        %v4120 = vadd.f32 %v4013, %v1109
        %v4121 = vadd.f32 %v4015, %v1111
        %v4122 = vadd.f32 %v4086, %v1182
        %v4123 = vadd.f32 %v4088, %v1184
        %v4124 = vadd.f32 %v4019, %v1115
        %v4125 = vadd.f32 %v4021, %v1117
        %v4126 = vadd.f32 %v4092, %v1188
        %v4127 = vadd.f32 %v4094, %v1190
        %v4128 = vadd.f32 %v4023, %v1119
        %v4129 = vadd.f32 %v4025, %v1121
        %v4130 = vadd.f32 %v4096, %v1192
        %v4131 = vadd.f32 %v4098, %v1194
        %v4132 = vld [vmem:[#allocation11] sm:$0xf]
        %v4133 = vld [vmem:[#allocation11 + $0x4] sm:$0xf]
        %v4134 = vld [vmem:[#allocation11 + $0x8] sm:$0xf]
        %v4135 = vld [vmem:[#allocation11 + $0xc] sm:$0xf]
        %v4136 = vpack.c.bf16 %v4104, %v4100
        %v4137 = vpack.c.bf16 %v4105, %v4101
        %v4138 = vpack.c.bf16 %v4106, %v4102
        %v4139 = vpack.c.bf16 %v4107, %v4103
        %v4140 = vpack.c.bf16 %v4112, %v4108
        %v4141 = vpack.c.bf16 %v4113, %v4109
        %v4142 = vpack.c.bf16 %v4114, %v4110
        %v4143 = vpack.c.bf16 %v4115, %v4111
        %v4144 = vpack.c.bf16 %v4120, %v4116
        %v4145 = vpack.c.bf16 %v4121, %v4117
        %v4146 = vpack.c.bf16 %v4122, %v4118
        %v4147 = vpack.c.bf16 %v4123, %v4119
        %v4148 = vpack.c.bf16 %v4128, %v4124
        %v4149 = vpack.c.bf16 %v4129, %v4125
        %v4150 = vpack.c.bf16 %v4130, %v4126
        %v4151 = vpack.c.bf16 %v4131, %v4127
        %v4152 = vld [vmem:[%s11] sm:$0xff]
        %v4153 = vld [vmem:[%s11 + $0x8] sm:$0xff]
        %v4154 = vld [vmem:[%s11 + $0x10] sm:$0xff]
        %v4155 = vld [vmem:[%s11 + $0x18] sm:$0xff]
        %4157 = vset.pattern.permute.xlu0 0
        %4158 = vperm.xlu0 %4157, %v4152
        %v4159 = vpop.permute.xlu0 %4158
        %4162 = vset.pattern.permute.xlu0 0
        %4163 = vperm.xlu0 %4162, %v4153
        %v4164 = vpop.permute.xlu0 %4163
        %4167 = vset.pattern.permute.xlu0 0
        %4168 = vperm.xlu0 %4167, %v4154
        %v4169 = vpop.permute.xlu0 %4168
        %4172 = vset.pattern.permute.xlu0 0
        %4173 = vperm.xlu0 %4172, %v4155
        %v4174 = vpop.permute.xlu0 %4173
        %v4180 = vunpack.c.l.b16 %v4132
        %v4181 = vunpack.c.l.b16 %v4133
        %v4182 = vunpack.c.l.b16 %v4134
        %v4183 = vunpack.c.l.b16 %v4135
        %v4184 = vpack.c.b16 %v4181, %v4180
        %v4185 = vpack.c.b16 %v4183, %v4182
        %v4187 = vsel %vm696, %v4184, 0
        %v4190 = vsel %vm696, %v4185, 0
        %4192 = vmatprep.subr.bf16.mxu0 %v4137
        %4193 = vmatpush1.bf16.msra.mxu0 %v4136
        %4194 = vmatprep.subr.bf16.mxu0 %v4141
        %4195 = vmatpush1.bf16.msra.mxu0 %v4140
        %4196 = vmatprep.subr.bf16.mxu0 %v4145
        %4197 = vmatpush1.bf16.msra.mxu0 %v4144
        %4198 = vmatprep.subr.bf16.mxu0 %v4149
        %4199 = vmatpush1.bf16.msra.mxu0 %v4148
        %4200 = vmatprep.subr.bf16.mxu0 0
        %4201 = vmatpush1.bf16.msra.mxu0 0
        %4202 = vmatprep.subr.bf16.mxu0 0
        %4203 = vmatpush1.bf16.msra.mxu0 0
        %4204 = vmatprep.subr.bf16.mxu0 0
        %4205 = vmatpush1.bf16.msra.mxu0 0
        %4206 = vmatprep.subr.bf16.mxu0 0
        %4207 = vmatpush1.bf16.msra.mxu0 0
        %4208 = vmatprep.subr.bf16.mxu0 0
        %4209 = vmatpush1.bf16.msra.mxu0 0
        %4210 = vmatprep.subr.bf16.mxu0 0
        %4211 = vmatpush1.bf16.msra.mxu0 0
        %4212 = vmatprep.subr.bf16.mxu0 0
        %4213 = vmatpush1.bf16.msra.mxu0 0
        %4214 = vmatprep.subr.bf16.mxu0 0
        %4215 = vmatpush1.bf16.msra.mxu0 0
        %4216 = vmatprep.subr.bf16.mxu0 0
        %4217 = vmatpush1.bf16.msra.mxu0 0
        %4218 = vmatprep.subr.bf16.mxu0 0
        %4219 = vmatpush1.bf16.msra.mxu0 0
        %4220 = vmatprep.subr.bf16.mxu0 0
        %4221 = vmatpush1.bf16.msra.mxu0 0
        %4222 = vmatprep.subr.bf16.mxu0 0
        %4223 = vmatpush1.bf16.msra.mxu0 0
        %4224 = vmatprep.mubr.bf16.mxu0 0
        %4225 = vmatmul.mubr.bf16.gmra.mrb[0].mxu0 %v4187
        %v4226 = vpop.f32.mrb[0].mxu0
        %v4227 = vadd.f32 %v4159, %v4226
        %v4228 = vpop.f32.mrb[0].mxu0
        %v4229 = vadd.f32 %v4159, %v4228
        %v4230 = vpop.f32.mrb[0].mxu0
        %v4231 = vadd.f32 %v4164, %v4230
        %v4232 = vpop.f32.mrb[0].mxu0
        %v4233 = vadd.f32 %v4164, %v4232
        %4234 = vmatprep.mubr.bf16.mxu0 0
        %4235 = vmatmul.mubr.bf16.gmra.mrb[0].mxu0 %v4190
        %v4236 = vpop.f32.mrb[0].mxu0
        %v4237 = vadd.f32 %v4169, %v4236
        %v4238 = vpop.f32.mrb[0].mxu0
        %v4239 = vadd.f32 %v4169, %v4238
        %v4240 = vpop.f32.mrb[0].mxu0
        %v4241 = vadd.f32 %v4174, %v4240
        %v4242 = vpop.f32.mrb[0].mxu0
        %v4243 = vadd.f32 %v4174, %v4242
        %4244 = vdwg.mxu0
        %4245 = vmatprep.subr.bf16.mxu0 %v4139
        %4246 = vmatpush1.bf16.msra.mxu0 %v4138
        %4247 = vmatprep.subr.bf16.mxu0 %v4143
        %4248 = vmatpush1.bf16.msra.mxu0 %v4142
        %4249 = vmatprep.subr.bf16.mxu0 %v4147
        %4250 = vmatpush1.bf16.msra.mxu0 %v4146
        %4251 = vmatprep.subr.bf16.mxu0 %v4151
        %4252 = vmatpush1.bf16.msra.mxu0 %v4150
        %4253 = vmatprep.subr.bf16.mxu0 0
        %4254 = vmatpush1.bf16.msra.mxu0 0
        %4255 = vmatprep.subr.bf16.mxu0 0
        %4256 = vmatpush1.bf16.msra.mxu0 0
        %4257 = vmatprep.subr.bf16.mxu0 0
        %4258 = vmatpush1.bf16.msra.mxu0 0
        %4259 = vmatprep.subr.bf16.mxu0 0
        %4260 = vmatpush1.bf16.msra.mxu0 0
        %4261 = vmatprep.subr.bf16.mxu0 0
        %4262 = vmatpush1.bf16.msra.mxu0 0
        %4263 = vmatprep.subr.bf16.mxu0 0
        %4264 = vmatpush1.bf16.msra.mxu0 0
        %4265 = vmatprep.subr.bf16.mxu0 0
        %4266 = vmatpush1.bf16.msra.mxu0 0
        %4267 = vmatprep.subr.bf16.mxu0 0
        %4268 = vmatpush1.bf16.msra.mxu0 0
        %4269 = vmatprep.subr.bf16.mxu0 0
        %4270 = vmatpush1.bf16.msra.mxu0 0
        %4271 = vmatprep.subr.bf16.mxu0 0
        %4272 = vmatpush1.bf16.msra.mxu0 0
        %4273 = vmatprep.subr.bf16.mxu0 0
        %4274 = vmatpush1.bf16.msra.mxu0 0
        %4275 = vmatprep.subr.bf16.mxu0 0
        %4276 = vmatpush1.bf16.msra.mxu0 0
        %4277 = vmatprep.mubr.bf16.mxu0 0
        %4278 = vmatmul.mubr.bf16.gmra.mrb[0].mxu0 %v4187
        %v4279 = vpop.f32.mrb[0].mxu0
        %v4280 = vadd.f32 %v4159, %v4279
        %v4281 = vpop.f32.mrb[0].mxu0
        %v4282 = vadd.f32 %v4159, %v4281
        %v4283 = vpop.f32.mrb[0].mxu0
        %v4284 = vadd.f32 %v4164, %v4283
        %v4285 = vpop.f32.mrb[0].mxu0
        %v4286 = vadd.f32 %v4164, %v4285
        %4287 = vmatprep.mubr.bf16.mxu0 0
        %4288 = vmatmul.mubr.bf16.gmra.mrb[0].mxu0 %v4190
        %v4289 = vpop.f32.mrb[0].mxu0
        %v4290 = vadd.f32 %v4169, %v4289
        %v4291 = vpop.f32.mrb[0].mxu0
        %v4292 = vadd.f32 %v4169, %v4291
        %v4293 = vpop.f32.mrb[0].mxu0
        %v4294 = vadd.f32 %v4174, %v4293
        %v4295 = vpop.f32.mrb[0].mxu0
        %v4296 = vadd.f32 %v4174, %v4295
        %4297 = vdwg.mxu0
        %v4298 = vmul.f32 %v4227, 0.5
        %v4299 = vmul.f32 %v4229, 0.5
        %v4300 = vmul.f32 %v4280, 0.5
        %v4301 = vmul.f32 %v4282, 0.5
        %v4302 = vmul.f32 %v4231, 0.5
        %v4303 = vmul.f32 %v4233, 0.5
        %v4304 = vmul.f32 %v4284, 0.5
        %v4305 = vmul.f32 %v4286, 0.5
        %v4306 = vmul.f32 %v4237, 0.5
        %v4307 = vmul.f32 %v4239, 0.5
        %v4308 = vmul.f32 %v4290, 0.5
        %v4309 = vmul.f32 %v4292, 0.5
        %v4310 = vmul.f32 %v4241, 0.5
        %v4311 = vmul.f32 %v4243, 0.5
        %v4312 = vmul.f32 %v4294, 0.5
        %v4313 = vmul.f32 %v4296, 0.5
        %v4314 = vmul.f32 %v4227, 0.044715
        %v4315 = vmul.f32 %v4229, 0.044715
        %v4316 = vmul.f32 %v4280, 0.044715
        %v4317 = vmul.f32 %v4282, 0.044715
        %v4318 = vmul.f32 %v4231, 0.044715
        %v4319 = vmul.f32 %v4233, 0.044715
        %v4320 = vmul.f32 %v4284, 0.044715
        %v4321 = vmul.f32 %v4286, 0.044715
        %v4322 = vmul.f32 %v4237, 0.044715
        %v4323 = vmul.f32 %v4239, 0.044715
        %v4324 = vmul.f32 %v4290, 0.044715
        %v4325 = vmul.f32 %v4292, 0.044715
        %v4326 = vmul.f32 %v4241, 0.044715
        %v4327 = vmul.f32 %v4243, 0.044715
        %v4328 = vmul.f32 %v4294, 0.044715
        %v4329 = vmul.f32 %v4296, 0.044715
        %v4330 = vmul.f32 %v4314, %v4227
        %v4331 = vmul.f32 %v4315, %v4229
        %v4332 = vmul.f32 %v4316, %v4280
        %v4333 = vmul.f32 %v4317, %v4282
        %v4334 = vmul.f32 %v4318, %v4231
        %v4335 = vmul.f32 %v4319, %v4233
        %v4336 = vmul.f32 %v4320, %v4284
        %v4337 = vmul.f32 %v4321, %v4286
        %v4338 = vmul.f32 %v4322, %v4237
        %v4339 = vmul.f32 %v4323, %v4239
        %v4340 = vmul.f32 %v4324, %v4290
        %v4341 = vmul.f32 %v4325, %v4292
        %v4342 = vmul.f32 %v4326, %v4241
        %v4343 = vmul.f32 %v4327, %v4243
        %v4344 = vmul.f32 %v4328, %v4294
        %v4345 = vmul.f32 %v4329, %v4296
        %v4346 = vmul.f32 %v4330, %v4227
        %v4347 = vmul.f32 %v4331, %v4229
        %v4348 = vmul.f32 %v4332, %v4280
        %v4349 = vmul.f32 %v4333, %v4282
        %v4350 = vmul.f32 %v4334, %v4231
        %v4351 = vmul.f32 %v4335, %v4233
        %v4352 = vmul.f32 %v4336, %v4284
        %v4353 = vmul.f32 %v4337, %v4286
        %v4354 = vmul.f32 %v4338, %v4237
        %v4355 = vmul.f32 %v4339, %v4239
        %v4356 = vmul.f32 %v4340, %v4290
        %v4357 = vmul.f32 %v4341, %v4292
        %v4358 = vmul.f32 %v4342, %v4241
        %v4359 = vmul.f32 %v4343, %v4243
        %v4360 = vmul.f32 %v4344, %v4294
        %v4361 = vmul.f32 %v4345, %v4296
        %v4362 = vadd.f32 %v4227, %v4346
        %v4363 = vadd.f32 %v4229, %v4347
        %v4364 = vadd.f32 %v4280, %v4348
        %v4365 = vadd.f32 %v4282, %v4349
        %v4366 = vadd.f32 %v4231, %v4350
        %v4367 = vadd.f32 %v4233, %v4351
        %v4368 = vadd.f32 %v4284, %v4352
        %v4369 = vadd.f32 %v4286, %v4353
        %v4370 = vadd.f32 %v4237, %v4354
        %v4371 = vadd.f32 %v4239, %v4355
        %v4372 = vadd.f32 %v4290, %v4356
        %v4373 = vadd.f32 %v4292, %v4357
        %v4374 = vadd.f32 %v4241, %v4358
        %v4375 = vadd.f32 %v4243, %v4359
        %v4376 = vadd.f32 %v4294, %v4360
        %v4377 = vadd.f32 %v4296, %v4361
        %v4378 = vmul.f32 %v4362, 0.7978846
        %v4379 = vmul.f32 %v4363, 0.7978846
        %v4380 = vmul.f32 %v4364, 0.7978846
        %v4381 = vmul.f32 %v4365, 0.7978846
        %v4382 = vmul.f32 %v4366, 0.7978846
        %v4383 = vmul.f32 %v4367, 0.7978846
        %v4384 = vmul.f32 %v4368, 0.7978846
        %v4385 = vmul.f32 %v4369, 0.7978846
        %v4386 = vmul.f32 %v4370, 0.7978846
        %v4387 = vmul.f32 %v4371, 0.7978846
        %v4388 = vmul.f32 %v4372, 0.7978846
        %v4389 = vmul.f32 %v4373, 0.7978846
        %v4390 = vmul.f32 %v4374, 0.7978846
        %v4391 = vmul.f32 %v4375, 0.7978846
        %v4392 = vmul.f32 %v4376, 0.7978846
        %v4393 = vmul.f32 %v4377, 0.7978846
        %v4394 = vtanh.pop %v4378
        %v4395 = vtanh.pop %v4379
        %v4396 = vtanh.pop %v4380
        %v4397 = vtanh.pop %v4381
        %v4398 = vtanh.pop %v4382
        %v4399 = vtanh.pop %v4383
        %v4400 = vtanh.pop %v4384
        %v4401 = vtanh.pop %v4385
        %v4402 = vtanh.pop %v4386
        %v4403 = vtanh.pop %v4387
        %v4404 = vtanh.pop %v4388
        %v4405 = vtanh.pop %v4389
        %v4406 = vtanh.pop %v4390
        %v4407 = vtanh.pop %v4391
        %v4408 = vtanh.pop %v4392
        %v4409 = vtanh.pop %v4393
        %v4410 = vadd.f32 %v4394, 1.0
        %v4411 = vadd.f32 %v4395, 1.0
        %v4412 = vadd.f32 %v4396, 1.0
        %v4413 = vadd.f32 %v4397, 1.0
        %v4414 = vadd.f32 %v4398, 1.0
        %v4415 = vadd.f32 %v4399, 1.0
        %v4416 = vadd.f32 %v4400, 1.0
        %v4417 = vadd.f32 %v4401, 1.0
        %v4418 = vadd.f32 %v4402, 1.0
        %v4419 = vadd.f32 %v4403, 1.0
        %v4420 = vadd.f32 %v4404, 1.0
        %v4421 = vadd.f32 %v4405, 1.0
        %v4422 = vadd.f32 %v4406, 1.0
        %v4423 = vadd.f32 %v4407, 1.0
        %v4424 = vadd.f32 %v4408, 1.0
        %v4425 = vadd.f32 %v4409, 1.0
        %v4426 = vmul.f32 %v4298, %v4410
        %v4427 = vmul.f32 %v4299, %v4411
        %v4428 = vmul.f32 %v4300, %v4412
        %v4429 = vmul.f32 %v4301, %v4413
        %v4430 = vmul.f32 %v4302, %v4414
        %v4431 = vmul.f32 %v4303, %v4415
        %v4432 = vmul.f32 %v4304, %v4416
        %v4433 = vmul.f32 %v4305, %v4417
        %v4434 = vmul.f32 %v4306, %v4418
        %v4435 = vmul.f32 %v4307, %v4419
        %v4436 = vmul.f32 %v4308, %v4420
        %v4437 = vmul.f32 %v4309, %v4421
        %v4438 = vmul.f32 %v4310, %v4422
        %v4439 = vmul.f32 %v4311, %v4423
        %v4440 = vmul.f32 %v4312, %v4424
        %v4441 = vmul.f32 %v4313, %v4425
        %v4442 = vld [vmem:[%s12] sm:$0xf]
        %v4443 = vld [vmem:[%s12 + $0x4] sm:$0xf]
        %v4444 = vld [vmem:[%s12 + $0x8] sm:$0xf]
        %v4445 = vld [vmem:[%s12 + $0xc] sm:$0xf]
        %v4446 = vld [vmem:[%s12 + $0x10] sm:$0xf]
        %v4447 = vld [vmem:[%s12 + $0x14] sm:$0xf]
        %v4448 = vld [vmem:[%s12 + $0x18] sm:$0xf]
        %v4449 = vld [vmem:[%s12 + $0x1c] sm:$0xf]
        %v4450 = vpack.c.bf16 %v4430, %v4426
        %v4451 = vpack.c.bf16 %v4431, %v4427
        %v4452 = vpack.c.bf16 %v4432, %v4428
        %v4453 = vpack.c.bf16 %v4433, %v4429
        %v4454 = vpack.c.bf16 %v4438, %v4434
        %v4455 = vpack.c.bf16 %v4439, %v4435
        %v4456 = vpack.c.bf16 %v4440, %v4436
        %v4457 = vpack.c.bf16 %v4441, %v4437
        %v4458 = vld [vmem:[%s13] sm:$0xff]
        %v4459 = vld [vmem:[%s13 + $0x8] sm:$0xff]
        %v4460 = vld [vmem:[%s13 + $0x10] sm:$0xff]
        %v4461 = vld [vmem:[%s13 + $0x18] sm:$0xff]
        %v4462 = vld [vmem:[%s13 + $0x20] sm:$0xff]
        %v4463 = vld [vmem:[%s13 + $0x28] sm:$0xff]
        %v4464 = vld [vmem:[%s13 + $0x30] sm:$0xff]
        %v4465 = vld [vmem:[%s13 + $0x38] sm:$0xff]
        %4467 = vset.pattern.permute.xlu0 0
        %4468 = vperm.xlu0 %4467, %v4458
        %v4469 = vpop.permute.xlu0 %4468
        %4472 = vset.pattern.permute.xlu0 0
        %4473 = vperm.xlu0 %4472, %v4459
        %v4474 = vpop.permute.xlu0 %4473
        %4477 = vset.pattern.permute.xlu0 0
        %4478 = vperm.xlu0 %4477, %v4460
        %v4479 = vpop.permute.xlu0 %4478
        %4482 = vset.pattern.permute.xlu0 0
        %4483 = vperm.xlu0 %4482, %v4461
        %v4484 = vpop.permute.xlu0 %4483
        %4487 = vset.pattern.permute.xlu0 0
        %4488 = vperm.xlu0 %4487, %v4462
        %v4489 = vpop.permute.xlu0 %4488
        %4492 = vset.pattern.permute.xlu0 0
        %4493 = vperm.xlu0 %4492, %v4463
        %v4494 = vpop.permute.xlu0 %4493
        %4497 = vset.pattern.permute.xlu0 0
        %4498 = vperm.xlu0 %4497, %v4464
        %v4499 = vpop.permute.xlu0 %4498
        %4502 = vset.pattern.permute.xlu0 0
        %4503 = vperm.xlu0 %4502, %v4465
        %v4504 = vpop.permute.xlu0 %4503
        %v4514 = vunpack.c.l.b16 %v4442
        %v4515 = vunpack.c.l.b16 %v4443
        %v4516 = vunpack.c.l.b16 %v4444
        %v4517 = vunpack.c.l.b16 %v4445
        %v4518 = vunpack.c.l.b16 %v4446
        %v4519 = vunpack.c.l.b16 %v4447
        %v4520 = vunpack.c.l.b16 %v4448
        %v4521 = vunpack.c.l.b16 %v4449
        %v4522 = vpack.c.b16 %v4515, %v4514
        %v4523 = vpack.c.b16 %v4517, %v4516
        %v4524 = vpack.c.b16 %v4519, %v4518
        %v4525 = vpack.c.b16 %v4521, %v4520
        %v4527 = vsel %vm1037, %v4522, 0
        %v4530 = vsel %vm1037, %v4523, 0
        %v4533 = vsel %vm1037, %v4524, 0
        %v4536 = vsel %vm1037, %v4525, 0
        %4538 = vmatprep.subr.bf16.mxu0 %v4451
        %4539 = vmatpush1.bf16.msra.mxu0 %v4450
        %4540 = vmatprep.subr.bf16.mxu0 %v4455
        %4541 = vmatpush1.bf16.msra.mxu0 %v4454
        %4542 = vmatprep.subr.bf16.mxu0 0
        %4543 = vmatpush1.bf16.msra.mxu0 0
        %4544 = vmatprep.subr.bf16.mxu0 0
        %4545 = vmatpush1.bf16.msra.mxu0 0
        %4546 = vmatprep.subr.bf16.mxu0 0
        %4547 = vmatpush1.bf16.msra.mxu0 0
        %4548 = vmatprep.subr.bf16.mxu0 0
        %4549 = vmatpush1.bf16.msra.mxu0 0
        %4550 = vmatprep.subr.bf16.mxu0 0
        %4551 = vmatpush1.bf16.msra.mxu0 0
        %4552 = vmatprep.subr.bf16.mxu0 0
        %4553 = vmatpush1.bf16.msra.mxu0 0
        %4554 = vmatprep.subr.bf16.mxu0 0
        %4555 = vmatpush1.bf16.msra.mxu0 0
        %4556 = vmatprep.subr.bf16.mxu0 0
        %4557 = vmatpush1.bf16.msra.mxu0 0
        %4558 = vmatprep.subr.bf16.mxu0 0
        %4559 = vmatpush1.bf16.msra.mxu0 0
        %4560 = vmatprep.subr.bf16.mxu0 0
        %4561 = vmatpush1.bf16.msra.mxu0 0
        %4562 = vmatprep.subr.bf16.mxu0 0
        %4563 = vmatpush1.bf16.msra.mxu0 0
        %4564 = vmatprep.subr.bf16.mxu0 0
        %4565 = vmatpush1.bf16.msra.mxu0 0
        %4566 = vmatprep.subr.bf16.mxu0 0
        %4567 = vmatpush1.bf16.msra.mxu0 0
        %4568 = vmatprep.subr.bf16.mxu0 0
        %4569 = vmatpush1.bf16.msra.mxu0 0
        %4570 = vmatprep.mubr.bf16.mxu0 0
        %4571 = vmatmul.mubr.bf16.gmra.mrb[0].mxu0 %v4527
        %v4572 = vpop.f32.mrb[0].mxu0
        %v4573 = vadd.f32 %v4469, %v4572
        %v4574 = vpop.f32.mrb[0].mxu0
        %v4575 = vadd.f32 %v4469, %v4574
        %v4576 = vpop.f32.mrb[0].mxu0
        %v4577 = vadd.f32 %v4474, %v4576
        %v4578 = vpop.f32.mrb[0].mxu0
        %v4579 = vadd.f32 %v4474, %v4578
        %4580 = vmatprep.mubr.bf16.mxu0 0
        %4581 = vmatmul.mubr.bf16.gmra.mrb[0].mxu0 %v4530
        %v4582 = vpop.f32.mrb[0].mxu0
        %v4583 = vadd.f32 %v4479, %v4582
        %v4584 = vpop.f32.mrb[0].mxu0
        %v4585 = vadd.f32 %v4479, %v4584
        %v4586 = vpop.f32.mrb[0].mxu0
        %v4587 = vadd.f32 %v4484, %v4586
        %v4588 = vpop.f32.mrb[0].mxu0
        %v4589 = vadd.f32 %v4484, %v4588
        %4590 = vmatprep.mubr.bf16.mxu0 0
        %4591 = vmatmul.mubr.bf16.gmra.mrb[0].mxu0 %v4533
        %v4592 = vpop.f32.mrb[0].mxu0
        %v4593 = vadd.f32 %v4489, %v4592
        %v4594 = vpop.f32.mrb[0].mxu0
        %v4595 = vadd.f32 %v4489, %v4594
        %v4596 = vpop.f32.mrb[0].mxu0
        %v4597 = vadd.f32 %v4494, %v4596
        %v4598 = vpop.f32.mrb[0].mxu0
        %v4599 = vadd.f32 %v4494, %v4598
        %4600 = vmatprep.mubr.bf16.mxu0 0
        %4601 = vmatmul.mubr.bf16.gmra.mrb[0].mxu0 %v4536
        %v4602 = vpop.f32.mrb[0].mxu0
        %v4603 = vadd.f32 %v4499, %v4602
        %v4604 = vpop.f32.mrb[0].mxu0
        %v4605 = vadd.f32 %v4499, %v4604
        %v4606 = vpop.f32.mrb[0].mxu0
        %v4607 = vadd.f32 %v4504, %v4606
        %v4608 = vpop.f32.mrb[0].mxu0
        %v4609 = vadd.f32 %v4504, %v4608
        %4610 = vdwg.mxu0
        %4611 = vmatprep.subr.bf16.mxu0 %v4453
        %4612 = vmatpush1.bf16.msra.mxu0 %v4452
        %4613 = vmatprep.subr.bf16.mxu0 %v4457
        %4614 = vmatpush1.bf16.msra.mxu0 %v4456
        %4615 = vmatprep.subr.bf16.mxu0 0
        %4616 = vmatpush1.bf16.msra.mxu0 0
        %4617 = vmatprep.subr.bf16.mxu0 0
        %4618 = vmatpush1.bf16.msra.mxu0 0
        %4619 = vmatprep.subr.bf16.mxu0 0
        %4620 = vmatpush1.bf16.msra.mxu0 0
        %4621 = vmatprep.subr.bf16.mxu0 0
        %4622 = vmatpush1.bf16.msra.mxu0 0
        %4623 = vmatprep.subr.bf16.mxu0 0
        %4624 = vmatpush1.bf16.msra.mxu0 0
        %4625 = vmatprep.subr.bf16.mxu0 0
        %4626 = vmatpush1.bf16.msra.mxu0 0
        %4627 = vmatprep.subr.bf16.mxu0 0
        %4628 = vmatpush1.bf16.msra.mxu0 0
        %4629 = vmatprep.subr.bf16.mxu0 0
        %4630 = vmatpush1.bf16.msra.mxu0 0
        %4631 = vmatprep.subr.bf16.mxu0 0
        %4632 = vmatpush1.bf16.msra.mxu0 0
        %4633 = vmatprep.subr.bf16.mxu0 0
        %4634 = vmatpush1.bf16.msra.mxu0 0
        %4635 = vmatprep.subr.bf16.mxu0 0
        %4636 = vmatpush1.bf16.msra.mxu0 0
        %4637 = vmatprep.subr.bf16.mxu0 0
        %4638 = vmatpush1.bf16.msra.mxu0 0
        %4639 = vmatprep.subr.bf16.mxu0 0
        %4640 = vmatpush1.bf16.msra.mxu0 0
        %4641 = vmatprep.subr.bf16.mxu0 0
        %4642 = vmatpush1.bf16.msra.mxu0 0
        %4643 = vmatprep.mubr.bf16.mxu0 0
        %4644 = vmatmul.mubr.bf16.gmra.mrb[0].mxu0 %v4527
        %v4645 = vpop.f32.mrb[0].mxu0
        %v4646 = vadd.f32 %v4469, %v4645
        %v4647 = vpop.f32.mrb[0].mxu0
        %v4648 = vadd.f32 %v4469, %v4647
        %v4649 = vpop.f32.mrb[0].mxu0
        %v4650 = vadd.f32 %v4474, %v4649
        %v4651 = vpop.f32.mrb[0].mxu0
        %v4652 = vadd.f32 %v4474, %v4651
        %4653 = vmatprep.mubr.bf16.mxu0 0
        %4654 = vmatmul.mubr.bf16.gmra.mrb[0].mxu0 %v4530
        %v4655 = vpop.f32.mrb[0].mxu0
        %v4656 = vadd.f32 %v4479, %v4655
        %v4657 = vpop.f32.mrb[0].mxu0
        %v4658 = vadd.f32 %v4479, %v4657
        %v4659 = vpop.f32.mrb[0].mxu0
        %v4660 = vadd.f32 %v4484, %v4659
        %v4661 = vpop.f32.mrb[0].mxu0
        %v4662 = vadd.f32 %v4484, %v4661
        %4663 = vmatprep.mubr.bf16.mxu0 0
        %4664 = vmatmul.mubr.bf16.gmra.mrb[0].mxu0 %v4533
        %v4665 = vpop.f32.mrb[0].mxu0
        %v4666 = vadd.f32 %v4489, %v4665
        %v4667 = vpop.f32.mrb[0].mxu0
        %v4668 = vadd.f32 %v4489, %v4667
        %v4669 = vpop.f32.mrb[0].mxu0
        %v4670 = vadd.f32 %v4494, %v4669
        %v4671 = vpop.f32.mrb[0].mxu0
        %v4672 = vadd.f32 %v4494, %v4671
        %4673 = vmatprep.mubr.bf16.mxu0 0
        %4674 = vmatmul.mubr.bf16.gmra.mrb[0].mxu0 %v4536
        %v4675 = vpop.f32.mrb[0].mxu0
        %v4676 = vadd.f32 %v4499, %v4675
        %v4677 = vpop.f32.mrb[0].mxu0
        %v4678 = vadd.f32 %v4499, %v4677
        %v4679 = vpop.f32.mrb[0].mxu0
        %v4680 = vadd.f32 %v4504, %v4679
        %v4681 = vpop.f32.mrb[0].mxu0
        %v4682 = vadd.f32 %v4504, %v4681
        %4683 = vdwg.mxu0
        %4684 = vst [vmem:[%s520] sm:$0xff] %v4573
        %4685 = vst [vmem:[%s520 + $0x8] sm:$0xff] %v4575
        %4686 = vst [vmem:[%s520 + $0x10] sm:$0xff] %v4646
        %4687 = vst [vmem:[%s520 + $0x18] sm:$0xff] %v4648
        %4688 = vst [vmem:[%s520 + $0x20] sm:$0xff] %v4577
        %4689 = vst [vmem:[%s520 + $0x28] sm:$0xff] %v4579
        %4690 = vst [vmem:[%s520 + $0x30] sm:$0xff] %v4650
        %4691 = vst [vmem:[%s520 + $0x38] sm:$0xff] %v4652
        %4692 = vst [vmem:[%s520 + $0x40] sm:$0xff] %v4583
        %4693 = vst [vmem:[%s520 + $0x48] sm:$0xff] %v4585
        %4694 = vst [vmem:[%s520 + $0x50] sm:$0xff] %v4656
        %4695 = vst [vmem:[%s520 + $0x58] sm:$0xff] %v4658
        %4696 = vst [vmem:[%s520 + $0x60] sm:$0xff] %v4587
        %4697 = vst [vmem:[%s520 + $0x68] sm:$0xff] %v4589
        %4698 = vst [vmem:[%s520 + $0x70] sm:$0xff] %v4660
        %4699 = vst [vmem:[%s520 + $0x78] sm:$0xff] %v4662
        %4700 = vst [vmem:[%s520 + $0x80] sm:$0xff] %v4593
        %4701 = vst [vmem:[%s520 + $0x88] sm:$0xff] %v4595
        %4702 = vst [vmem:[%s520 + $0x90] sm:$0xff] %v4666
        %4703 = vst [vmem:[%s520 + $0x98] sm:$0xff] %v4668
        %4704 = vst [vmem:[%s520 + $0xa0] sm:$0xff] %v4597
        %4705 = vst [vmem:[%s520 + $0xa8] sm:$0xff] %v4599
        %4706 = vst [vmem:[%s520 + $0xb0] sm:$0xff] %v4670
        %4707 = vst [vmem:[%s520 + $0xb8] sm:$0xff] %v4672
        %4708 = vst [vmem:[%s520 + $0xc0] sm:$0xff] %v4603
        %4709 = vst [vmem:[%s520 + $0xc8] sm:$0xff] %v4605
        %4710 = vst [vmem:[%s520 + $0xd0] sm:$0xff] %v4676
        %4711 = vst [vmem:[%s520 + $0xd8] sm:$0xff] %v4678
        %4712 = vst [vmem:[%s520 + $0xe0] sm:$0xff] %v4607
        %4713 = vst [vmem:[%s520 + $0xe8] sm:$0xff] %v4609
        %4714 = vst [vmem:[%s520 + $0xf0] sm:$0xff] %v4680
        %4715 = vst [vmem:[%s520 + $0xf8] sm:$0xff] %v4682
        %s4716 = sand.u32 %s339, 1
        %s4717 = scalar_lea.sflag [#allocation7], %s4716
        %s4718 = sand.u32 %s339, 1
        %s4719 = smul.addr %s4718, 256
        %s4720 = scalar_lea.vmem [#allocation13], %s4719
        // Predicated region
        $region93: #{fwd.2} parent=75 // pred_check
          %p4721 = pneg %p349
        $region94: #{fwd.2} parent=75 // pred_check_branch
          %4723 = sbr.rel (%p4721) target = $region96
        $region95: #{fwd.2} parent=75 // pred_region
          %s4725 = ssub.s32 4096, 4096
          %4726 = vsyncadd %s4717, %s4725
          %s4727 = smul.addr %s32, 32
          %s4728 = smul.addr %s4727, 128
          %s4729 = scalar_lea.hbm %s15, %s4728
          %s4730 = sshll.u32 %s4720, 4
          %s4731 = int_to_ptr.vmem [resolvable:$true] %s4730
          %4736 = dma.vmem_to_hbm [thread:$0]  %s4731, 4096, %s4729, %s4717, 512, 512, 32
        $region96: #{fwd.2} parent=75 // pred_fallthru
          _
      $region76: #{fwd.2} parent=5 // pred_fallthru
        _
      %p4737 = scmp.le.s32.totalorder 2, %s27
      // Predicated region
      $region97: #{fwd.2} parent=5 // pred_check
        %p4738 = pneg %p4737
      $region98: #{fwd.2} parent=5 // pred_check_branch
        %4740 = sbr.rel (%p4738) target = $region100
      $region99: #{fwd.2} parent=5 // pred_region
        %s4741 = ssub.s32 %s27, 2
        // Predicated region
        $region101: #{fwd.2} parent=99 // pred_check
          %p4742 = pneg %p355
        $region102: #{fwd.2} parent=99 // pred_check_branch
          %4744 = sbr.rel (%p4742) target = $region104
        $region103: #{fwd.2} parent=99 // pred_region
          %s4745 = sand.u32 %s340, 1
          %s4746 = scalar_lea.sflag [#allocation7], %s4745
          %s4747 = sand.u32 %s340, 1
          %s4748 = smul.addr %s4747, 256
          %s4749 = scalar_lea.vmem [#allocation13], %s4748
          %4750 = dma.done %s4746, 4096
        $region104: #{fwd.2} parent=99 // pred_fallthru
          _
      $region100: #{fwd.2} parent=5 // pred_fallthru
        _
    $region6: #{fwd.2} parent=1 // loop_footer
      %s31 = sadd.s32 1, %s27
    $region7: #{fwd.2} parent=1 // loop_footer_branch
      %26 = sbr.rel target = $region3
    $region8: #{fwd.2} parent=1 // loop_exit
      _
    %4751 = vsyncpa [#allocation6], 1
    %s4752 = scalar_lea.sflag [#allocation6], 1
    %4753 = vsyncpa %s4752, 1
    %4754 = vsyncpa [#allocation9], 1
    %4755 = vsyncpa [#allocation12], 1
    %4756 = vsyncpa [#allocation7], 1
    %s4757 = scalar_lea.sflag [#allocation7], 1
    %4758 = vsyncpa %s4757, 1
  %4759 = vsyncmov [#allocation4]
  %s4760 = vpop.sfrf %4759
  %p4761 = scmp.eq.s32.totalorder %s4760, 0
  %p4762 = pneg %p4761
  %4764 = shalt.err (%p4762)

</llo_original>
